<compile_context>
chip_gen: v6e
topology: v6e:2x2x1
jax: 0.10.0
libtpu: 0.0.40
codegen_flags: <defaults>
</compile_context>

<pallas_src>
import jax
import jax.numpy as jnp
from jax.experimental import pallas as pl
from jax.experimental.pallas import tpu as pltpu


_TK = 512      # K-chunk (rows) of the streamed int8 weights
_NK_R1 = 4     # 2048 / 512
_NK_R2 = 2     # 1024 / 512


# ----------------------------------------------------------------------------
# Fused kernel: whole forward pass in one invocation
# ----------------------------------------------------------------------------
def fused_classifier_kernel(x_ref, vp_ref, w1_ref, wr3_ref, wr1_hbm, wr2_hbm,
                            o_ref, wr1_buf, wr2_buf, sem1, sem2):
    f32 = jnp.float32
    bf16 = jnp.bfloat16

    def start_chunk(hbm, k, buf, sem, slot):
        pltpu.make_async_copy(hbm.at[pl.ds(k * _TK, _TK)], buf.at[slot],
                              sem.at[slot]).start()

    def wait_chunk(hbm, k, buf, sem, slot):
        pltpu.make_async_copy(hbm.at[pl.ds(k * _TK, _TK)], buf.at[slot],
                              sem.at[slot]).wait()

    # Kick off the res1 int8 weight stream immediately so it overlaps the
    # fc1 matmul + epilogue (manual double buffer, statically unrolled).
    start_chunk(wr1_hbm, 0, wr1_buf, sem1, 0)
    start_chunk(wr1_hbm, 1, wr1_buf, sem1, 1)

    # ---- fc1 -> relu -> bn1 (folded scale/shift) -> dropout(identity) ------
    z = jnp.dot(x_ref[...].astype(bf16), w1_ref[...], preferred_element_type=f32)
    h = jnp.maximum(z + vp_ref[0:1, :], 0.0) * vp_ref[1:2, :] + vp_ref[2:3, :]
    h = h.astype(bf16)                                   # (B, 2048)

    def res_epilogue(z, v):
        # z = [zf | za] raw accumulators; v rows = [bf', s', t, qs_a, ba]
        # (per-channel int8 dequant scales are pre-folded into bf'/s'/qs_a;
        #  for the bf16 res3 block qs_a == 1 and bf'/s' are the raw values).
        n = v.shape[1]
        zf, za = z[:, :n], z[:, n:]
        f = jnp.maximum(zf + v[0:1, :], 0.0) * v[1:2, :] + v[2:3, :]
        return f + za * v[3:4, :] + v[4:5, :]

    # ---- res1: [Wf|Wa] int8 (2048, 2048) streamed in 4 chunks of 512 rows --
    z1 = None
    for k in range(_NK_R1):
        slot = k & 1
        wait_chunk(wr1_hbm, k, wr1_buf, sem1, slot)
        part = jnp.dot(h[:, k * _TK:(k + 1) * _TK],
                       wr1_buf[slot].astype(bf16), preferred_element_type=f32)
        z1 = part if z1 is None else z1 + part
        if k + 2 < _NK_R1:
            start_chunk(wr1_hbm, k + 2, wr1_buf, sem1, slot)    # refill this slot
        else:
            k2 = k + 2 - _NK_R1                                 # 0, 1
            start_chunk(wr2_hbm, k2, wr2_buf, sem2, k2 & 1)     # prefetch res2
    h = res_epilogue(z1, vp_ref[3:8, 0:1024]).astype(bf16)      # (B, 1024)

    # ---- res2: [Wf|Wa] int8 (1024, 1024) streamed in 2 chunks --------------
    z2 = None
    for k in range(_NK_R2):
        slot = k & 1
        wait_chunk(wr2_hbm, k, wr2_buf, sem2, slot)
        part = jnp.dot(h[:, k * _TK:(k + 1) * _TK],
                       wr2_buf[slot].astype(bf16), preferred_element_type=f32)
        z2 = part if z2 is None else z2 + part
    h = res_epilogue(z2, vp_ref[3:8, 1024:1536]).astype(bf16)   # (B, 512)

    # ---- res3: small [Wf|Wa] kept in bf16 as a plain VMEM block ------------
    z3 = jnp.dot(h, wr3_ref[...], preferred_element_type=f32)
    h = res_epilogue(z3, vp_ref[3:8, 1536:1792])                # (B, 256) f32

    # ---- fc_out (1/temperature folded into wo/bo): VPU reduce, no MXU ------
    wo = vp_ref[3:4, 1792:2048]                                 # (1, 256)
    bo = vp_ref[4:5, 1792:1793]                                 # (1, 1)
    o_ref[...] = jnp.sum(h * wo, axis=-1, keepdims=True) + bo


# ----------------------------------------------------------------------------
# Wrapper: single pallas_call; big int8 weights stay in HBM, rest in VMEM
# ----------------------------------------------------------------------------
@jax.jit
def improved_codebert_classifier_fwd(x, q):
    B = x.shape[0]
    vmem = pl.BlockSpec(memory_space=pltpu.MemorySpace.VMEM)
    hbm = pl.BlockSpec(memory_space=pl.ANY)
    return pl.pallas_call(
        fused_classifier_kernel,
        out_shape=jax.ShapeDtypeStruct((B, 1), jnp.float32),
        in_specs=[vmem, vmem, vmem, vmem, hbm, hbm],
        out_specs=vmem,
        scratch_shapes=[
            pltpu.VMEM((2, _TK, 2048), jnp.int8),    # res1 weight double buffer
            pltpu.VMEM((2, _TK, 1024), jnp.int8),    # res2 weight double buffer
            pltpu.SemaphoreType.DMA((2,)),           # res1 DMA sems
            pltpu.SemaphoreType.DMA((2,)),           # res2 DMA sems
        ],
        compiler_params=pltpu.CompilerParams(vmem_limit_bytes=24 << 20),
    )(x, q["vp"], q["w1"], q["w_r3"], q["w_r1_q"], q["w_r2_q"])


# ----------------------------------------------------------------------------
# Parameter init (deterministic, synthetic) + inference-time folding/quant
# ----------------------------------------------------------------------------
def init_linear(key, fan_in, fan_out):
    k1, k2 = jax.random.split(key)
    w = jax.random.normal(k1, (fan_in, fan_out), jnp.float32) / jnp.sqrt(
        jnp.float32(fan_in))
    b = 0.01 * jax.random.normal(k2, (fan_out,), jnp.float32)
    return w, b


def init_bn_folded(key, n, eps=1e-5):
    k1, k2, k3, k4 = jax.random.split(key, 4)
    gamma = 1.0 + 0.1 * jax.random.normal(k1, (n,), jnp.float32)
    beta = 0.1 * jax.random.normal(k2, (n,), jnp.float32)
    running_mean = 0.1 * jax.random.normal(k3, (n,), jnp.float32)
    running_var = 1.0 + 0.1 * jax.random.uniform(k4, (n,), jnp.float32)
    scale = gamma / jnp.sqrt(running_var + eps)
    shift = beta - running_mean * scale
    return scale, shift


def init_params(key, input_dim):
    keys = jax.random.split(key, 16)
    p = {}
    p["fc1_w"], p["fc1_b"] = init_linear(keys[0], input_dim, 2048)
    p["bn1_s"], p["bn1_t"] = init_bn_folded(keys[1], 2048)
    p["r1_fw"], p["r1_fb"] = init_linear(keys[2], 2048, 1024)
    p["r1_s"], p["r1_t"] = init_bn_folded(keys[3], 1024)
    p["r1_aw"], p["r1_ab"] = init_linear(keys[4], 2048, 1024)
    p["r2_fw"], p["r2_fb"] = init_linear(keys[5], 1024, 512)
    p["r2_s"], p["r2_t"] = init_bn_folded(keys[6], 512)
    p["r2_aw"], p["r2_ab"] = init_linear(keys[7], 1024, 512)
    p["r3_fw"], p["r3_fb"] = init_linear(keys[8], 512, 256)
    p["r3_s"], p["r3_t"] = init_bn_folded(keys[9], 256)
    p["r3_aw"], p["r3_ab"] = init_linear(keys[10], 512, 256)
    p["fo_w"], p["fo_b"] = init_linear(keys[11], 256, 1)
    p["temperature"] = jnp.ones((1,), jnp.float32) * 1.5
    return p


def quantize_per_col(w):
    """Symmetric per-output-channel int8 quantization: w ~= wq * scale."""
    amax = jnp.max(jnp.abs(w), axis=0)
    scale = jnp.maximum(amax, 1e-8) / 127.0
    wq = jnp.clip(jnp.round(w / scale), -127.0, 127.0).astype(jnp.int8)
    return wq, scale


def prepare_inference_params(p):
    """int8-quantize the big streamed weights (scales folded into the packed
    per-channel rows), keep small weights in bf16, pack every per-channel
    vector into a single (8, 2048) f32 slab, fold 1/temperature into fc_out."""
    q = {}
    q["w1"] = p["fc1_w"].astype(jnp.bfloat16)                     # (in, 2048)
    q["w_r3"] = jnp.concatenate([p["r3_fw"], p["r3_aw"]], axis=1).astype(
        jnp.bfloat16)                                             # (512, 512)

    w_r1 = jnp.concatenate([p["r1_fw"], p["r1_aw"]], axis=1)      # (2048, 2048)
    w_r2 = jnp.concatenate([p["r2_fw"], p["r2_aw"]], axis=1)      # (1024, 1024)
    q["w_r1_q"], qs_r1 = quantize_per_col(w_r1)
    q["w_r2_q"], qs_r2 = quantize_per_col(w_r2)
    q["qs_r1"], q["qs_r2"] = qs_r1, qs_r2   # kept only for the host reference

    def block_rows(fb, s, t, ab, qs_f=None, qs_a=None):
        n = fb.shape[0]
        qs_f = jnp.ones((n,), jnp.float32) if qs_f is None else qs_f
        qs_a = jnp.ones((n,), jnp.float32) if qs_a is None else qs_a
        # relu(z*qs_f + b)*s + t == relu(z + b/qs_f)*(s*qs_f) + t  (qs_f > 0)
        return jnp.stack([fb / qs_f, s * qs_f, t, qs_a, ab], axis=0)

    vp = jnp.zeros((8, 2048), jnp.float32)
    vp = vp.at[0, :].set(p["fc1_b"])
    vp = vp.at[1, :].set(p["bn1_s"])
    vp = vp.at[2, :].set(p["bn1_t"])
    vp = vp.at[3:8, 0:1024].set(block_rows(p["r1_fb"], p["r1_s"], p["r1_t"],
                                           p["r1_ab"], qs_r1[:1024], qs_r1[1024:]))
    vp = vp.at[3:8, 1024:1536].set(block_rows(p["r2_fb"], p["r2_s"], p["r2_t"],
                                              p["r2_ab"], qs_r2[:512], qs_r2[512:]))
    vp = vp.at[3:8, 1536:1792].set(block_rows(p["r3_fb"], p["r3_s"], p["r3_t"],
                                              p["r3_ab"]))
    inv_t = 1.0 / p["temperature"][0]
    vp = vp.at[3, 1792:2048].set(p["fo_w"][:, 0] * inv_t)
    vp = vp.at[4, 1792].set(p["fo_b"][0] * inv_t)
    q["vp"] = vp
    return q


# ----------------------------------------------------------------------------
# Host references
# ----------------------------------------------------------------------------
def reference_fwd_inference(x, p, q):
    """Mirrors the kernel's numerics (bf16 matmuls, int8 weights + per-channel
    dequant) but not its packing/folding/pipelining — the correctness target."""
    bf16, f32 = jnp.bfloat16, jnp.float32

    def mm(a, w):
        return jnp.dot(a.astype(bf16), w.astype(bf16), preferred_element_type=f32)

    h = jnp.maximum(mm(x, p["fc1_w"]) + p["fc1_b"], 0.0)
    h = h * p["bn1_s"] + p["bn1_t"]
    for r, wq, qs in (("r1", q["w_r1_q"], q["qs_r1"]),
                      ("r2", q["w_r2_q"], q["qs_r2"])):
        n = p[f"{r}_fb"].shape[0]
        z = mm(h, wq) * qs
        f = jnp.maximum(z[:, :n] + p[f"{r}_fb"], 0.0) * p[f"{r}_s"] + p[f"{r}_t"]
        h = f + z[:, n:] + p[f"{r}_ab"]
    f = jnp.maximum(mm(h, p["r3_fw"]) + p["r3_fb"], 0.0) * p["r3_s"] + p["r3_t"]
    h = f + mm(h, p["r3_aw"]) + p["r3_ab"]
    y = jnp.dot(h, p["fo_w"], preferred_element_type=f32) + p["fo_b"]
    return y / p["temperature"]


def reference_fwd_f32(x, p):
    """Full-precision reference of the original module (sanity bound only)."""
    h = jnp.maximum(x @ p["fc1_w"] + p["fc1_b"], 0.0)
    h = h * p["bn1_s"] + p["bn1_t"]
    for r in ("r1", "r2", "r3"):
        f = jnp.maximum(h @ p[f"{r}_fw"] + p[f"{r}_fb"], 0.0)
        f = f * p[f"{r}_s"] + p[f"{r}_t"]
        h = f + h @ p[f"{r}_aw"] + p[f"{r}_ab"]
    y = h @ p["fo_w"] + p["fo_b"]
    return y / p["temperature"]


if __name__ == "__main__":
    key = jax.random.PRNGKey(0)
    k_param, k_x = jax.random.split(key)

    INPUT_DIM = 256
    BATCH = 8

    params = init_params(k_param, INPUT_DIM)
    infer_params = prepare_inference_params(params)
    x = jax.random.normal(k_x, (BATCH, INPUT_DIM), jnp.float32)

    out = improved_codebert_classifier_fwd(x, infer_params)
    out = jax.block_until_ready(out)

    ref_q = reference_fwd_inference(x, params, infer_params)
    ref_f = reference_fwd_f32(x, params)

    assert out.shape == (BATCH, 1)
    assert jnp.all(jnp.isfinite(out))
    # Tight check vs the matched (bf16 / int8-dequant) inference math.
    assert jnp.allclose(out, ref_q, atol=5e-3, rtol=5e-3), \
        float(jnp.max(jnp.abs(out - ref_q)))
    # Loose bound vs the exact f32 module: quantization/bf16 error stays small.
    assert float(jnp.max(jnp.abs(out - ref_f))) < 0.25

    print("KERNEL_OK")
</pallas_src>

<mosaic_0001>
module attributes {stable_mosaic.version = 11 : i64} {
  func.func @fused_classifier_kernel(%arg0: memref<8x256xf32, #tpu.memory_space<vmem>>, %arg1: memref<8x2048xf32, #tpu.memory_space<vmem>>, %arg2: memref<256x2048xbf16, #tpu.memory_space<vmem>>, %arg3: memref<512x512xbf16, #tpu.memory_space<vmem>>, %arg4: memref<2048x2048xi8, #tpu.memory_space<any>>, %arg5: memref<1024x1024xi8, #tpu.memory_space<any>>, %arg6: memref<8x1xf32, #tpu.memory_space<vmem>>, %arg7: memref<2x512x2048xi8, #tpu.memory_space<vmem>>, %arg8: memref<2x512x1024xi8, #tpu.memory_space<vmem>>, %arg9: memref<2x!tpu.dma_semaphore, #tpu.memory_space<semaphore_mem>>, %arg10: memref<2x!tpu.dma_semaphore, #tpu.memory_space<semaphore_mem>>) attributes {dimension_semantics = [], scalar_prefetch = 0 : i64, scratch_operands = 4 : i64, tpu.core_type = #tpu.core_type<tc>} {
    %c0_i32 = arith.constant 0 : i32
    %c0_i32_0 = arith.constant 0 : i32
    %c0_i32_1 = arith.constant 0 : i32
    %c0_i32_2 = arith.constant 0 : i32
    %0 = tpu.memref_slice %arg4[%c0_i32_1, %c0_i32_2] : memref<2048x2048xi8, #tpu.memory_space<any>> -> memref<512x2048xi8, #tpu.memory_space<any>>
    %c0_i32_3 = arith.constant 0 : i32
    %c0_i32_4 = arith.constant 0 : i32
    %1 = tpu.memref_slice %arg7[%c0_i32, %c0_i32_3, %c0_i32_4] : memref<2x512x2048xi8, #tpu.memory_space<vmem>> -> memref<1x512x2048xi8, #tpu.memory_space<vmem>>
    %2 = tpu.memref_squeeze %1 : memref<1x512x2048xi8, #tpu.memory_space<vmem>> -> memref<512x2048xi8, #tpu.memory_space<vmem>>
    %3 = tpu.memref_slice %arg9[%c0_i32_0] : memref<2x!tpu.dma_semaphore, #tpu.memory_space<semaphore_mem>> -> memref<1x!tpu.dma_semaphore, #tpu.memory_space<semaphore_mem>>
    %4 = tpu.memref_squeeze %3 : memref<1x!tpu.dma_semaphore, #tpu.memory_space<semaphore_mem>> -> memref<!tpu.dma_semaphore, #tpu.memory_space<semaphore_mem>>
    tpu.enqueue_dma source(%0 : memref<512x2048xi8, #tpu.memory_space<any>>) target(%2 : memref<512x2048xi8, #tpu.memory_space<vmem>>) target_semaphore(%4 : memref<!tpu.dma_semaphore, #tpu.memory_space<semaphore_mem>>)
    %c1_i32 = arith.constant 1 : i32
    %c1_i32_5 = arith.constant 1 : i32
    %c512_i32 = arith.constant 512 : i32
    %c0_i32_6 = arith.constant 0 : i32
    %5 = tpu.memref_slice %arg4[%c512_i32, %c0_i32_6] : memref<2048x2048xi8, #tpu.memory_space<any>> -> memref<512x2048xi8, #tpu.memory_space<any>>
    %c0_i32_7 = arith.constant 0 : i32
    %c0_i32_8 = arith.constant 0 : i32
    %6 = tpu.memref_slice %arg7[%c1_i32, %c0_i32_7, %c0_i32_8] : memref<2x512x2048xi8, #tpu.memory_space<vmem>> -> memref<1x512x2048xi8, #tpu.memory_space<vmem>>
    %7 = tpu.memref_squeeze %6 : memref<1x512x2048xi8, #tpu.memory_space<vmem>> -> memref<512x2048xi8, #tpu.memory_space<vmem>>
    %8 = tpu.memref_slice %arg9[%c1_i32_5] : memref<2x!tpu.dma_semaphore, #tpu.memory_space<semaphore_mem>> -> memref<1x!tpu.dma_semaphore, #tpu.memory_space<semaphore_mem>>
    %9 = tpu.memref_squeeze %8 : memref<1x!tpu.dma_semaphore, #tpu.memory_space<semaphore_mem>> -> memref<!tpu.dma_semaphore, #tpu.memory_space<semaphore_mem>>
    tpu.enqueue_dma source(%5 : memref<512x2048xi8, #tpu.memory_space<any>>) target(%7 : memref<512x2048xi8, #tpu.memory_space<vmem>>) target_semaphore(%9 : memref<!tpu.dma_semaphore, #tpu.memory_space<semaphore_mem>>)
    %c0 = arith.constant 0 : index
    %c0_9 = arith.constant 0 : index
    %10 = vector.load %arg0[%c0, %c0_9] : memref<8x256xf32, #tpu.memory_space<vmem>>, vector<8x256xf32>
    %11 = arith.truncf %10 : vector<8x256xf32> to vector<8x256xbf16>
    %c0_10 = arith.constant 0 : index
    %c0_11 = arith.constant 0 : index
    %12 = vector.load %arg2[%c0_10, %c0_11] : memref<256x2048xbf16, #tpu.memory_space<vmem>>, vector<256x2048xbf16>
    %cst = arith.constant dense<0.000000e+00> : vector<8x2048xf32>
    %13 = tpu.matmul %11, %12, %cst {dimension_numbers = #tpu.dot_dimension_numbers<[1], [0], [0], [1], [0, 0, 1, 1], [], []>} : vector<8x256xbf16>, vector<256x2048xbf16>, vector<8x2048xf32> -> vector<8x2048xf32>
    %c0_12 = arith.constant 0 : index
    %c0_13 = arith.constant 0 : index
    %14 = vector.load %arg1[%c0_12, %c0_13] : memref<8x2048xf32, #tpu.memory_space<vmem>>, vector<1x2048xf32>
    %15 = vector.broadcast %14 : vector<1x2048xf32> to vector<8x2048xf32>
    %16 = arith.addf %13, %15 : vector<8x2048xf32>
    %cst_14 = arith.constant 0.000000e+00 : f32
    %17 = vector.broadcast %cst_14 : f32 to vector<8x2048xf32>
    %18 = arith.maximumf %16, %17 : vector<8x2048xf32>
    %c1 = arith.constant 1 : index
    %c0_15 = arith.constant 0 : index
    %19 = vector.load %arg1[%c1, %c0_15] : memref<8x2048xf32, #tpu.memory_space<vmem>>, vector<1x2048xf32>
    %20 = vector.broadcast %19 : vector<1x2048xf32> to vector<8x2048xf32>
    %21 = arith.mulf %18, %20 : vector<8x2048xf32>
    %c2 = arith.constant 2 : index
    %c0_16 = arith.constant 0 : index
    %22 = vector.load %arg1[%c2, %c0_16] : memref<8x2048xf32, #tpu.memory_space<vmem>>, vector<1x2048xf32>
    %23 = vector.broadcast %22 : vector<1x2048xf32> to vector<8x2048xf32>
    %24 = arith.addf %21, %23 : vector<8x2048xf32>
    %25 = arith.truncf %24 : vector<8x2048xf32> to vector<8x2048xbf16>
    %c0_i32_17 = arith.constant 0 : i32
    %c0_i32_18 = arith.constant 0 : i32
    %c0_i32_19 = arith.constant 0 : i32
    %c0_i32_20 = arith.constant 0 : i32
    %26 = tpu.memref_slice %arg4[%c0_i32_19, %c0_i32_20] : memref<2048x2048xi8, #tpu.memory_space<any>> -> memref<512x2048xi8, #tpu.memory_space<any>>
    %c0_i32_21 = arith.constant 0 : i32
    %c0_i32_22 = arith.constant 0 : i32
    %27 = tpu.memref_slice %arg7[%c0_i32_17, %c0_i32_21, %c0_i32_22] : memref<2x512x2048xi8, #tpu.memory_space<vmem>> -> memref<1x512x2048xi8, #tpu.memory_space<vmem>>
    %28 = tpu.memref_squeeze %27 : memref<1x512x2048xi8, #tpu.memory_space<vmem>> -> memref<512x2048xi8, #tpu.memory_space<vmem>>
    %29 = tpu.memref_slice %arg9[%c0_i32_18] : memref<2x!tpu.dma_semaphore, #tpu.memory_space<semaphore_mem>> -> memref<1x!tpu.dma_semaphore, #tpu.memory_space<semaphore_mem>>
    %30 = tpu.memref_squeeze %29 : memref<1x!tpu.dma_semaphore, #tpu.memory_space<semaphore_mem>> -> memref<!tpu.dma_semaphore, #tpu.memory_space<semaphore_mem>>
    tpu.wait_dma2 semaphore(%30 : memref<!tpu.dma_semaphore, #tpu.memory_space<semaphore_mem>>) src(%26 : memref<512x2048xi8, #tpu.memory_space<any>>) dst(%28 : memref<512x2048xi8, #tpu.memory_space<vmem>>)
    %31 = vector.extract_strided_slice %25 {offsets = [0, 0], sizes = [8, 512], strides = [1, 1]} : vector<8x2048xbf16> to vector<8x512xbf16>
    %c0_23 = arith.constant 0 : index
    %c0_24 = arith.constant 0 : index
    %c0_25 = arith.constant 0 : index
    %32 = vector.load %arg7[%c0_23, %c0_24, %c0_25] : memref<2x512x2048xi8, #tpu.memory_space<vmem>>, vector<1x512x2048xi8>
    %33 = vector.shape_cast %32 : vector<1x512x2048xi8> to vector<512x2048xi8>
    %34 = arith.sitofp %33 : vector<512x2048xi8> to vector<512x2048xbf16>
    %cst_26 = arith.constant dense<0.000000e+00> : vector<8x2048xf32>
    %35 = tpu.matmul %31, %34, %cst_26 {dimension_numbers = #tpu.dot_dimension_numbers<[1], [0], [0], [1], [0, 0, 1, 1], [], []>} : vector<8x512xbf16>, vector<512x2048xbf16>, vector<8x2048xf32> -> vector<8x2048xf32>
    %c0_i32_27 = arith.constant 0 : i32
    %c0_i32_28 = arith.constant 0 : i32
    %c1024_i32 = arith.constant 1024 : i32
    %c0_i32_29 = arith.constant 0 : i32
    %36 = tpu.memref_slice %arg4[%c1024_i32, %c0_i32_29] : memref<2048x2048xi8, #tpu.memory_space<any>> -> memref<512x2048xi8, #tpu.memory_space<any>>
    %c0_i32_30 = arith.constant 0 : i32
    %c0_i32_31 = arith.constant 0 : i32
    %37 = tpu.memref_slice %arg7[%c0_i32_27, %c0_i32_30, %c0_i32_31] : memref<2x512x2048xi8, #tpu.memory_space<vmem>> -> memref<1x512x2048xi8, #tpu.memory_space<vmem>>
    %38 = tpu.memref_squeeze %37 : memref<1x512x2048xi8, #tpu.memory_space<vmem>> -> memref<512x2048xi8, #tpu.memory_space<vmem>>
    %39 = tpu.memref_slice %arg9[%c0_i32_28] : memref<2x!tpu.dma_semaphore, #tpu.memory_space<semaphore_mem>> -> memref<1x!tpu.dma_semaphore, #tpu.memory_space<semaphore_mem>>
    %40 = tpu.memref_squeeze %39 : memref<1x!tpu.dma_semaphore, #tpu.memory_space<semaphore_mem>> -> memref<!tpu.dma_semaphore, #tpu.memory_space<semaphore_mem>>
    tpu.enqueue_dma source(%36 : memref<512x2048xi8, #tpu.memory_space<any>>) target(%38 : memref<512x2048xi8, #tpu.memory_space<vmem>>) target_semaphore(%40 : memref<!tpu.dma_semaphore, #tpu.memory_space<semaphore_mem>>)
    %c1_i32_32 = arith.constant 1 : i32
    %c1_i32_33 = arith.constant 1 : i32
    %c512_i32_34 = arith.constant 512 : i32
    %c0_i32_35 = arith.constant 0 : i32
    %41 = tpu.memref_slice %arg4[%c512_i32_34, %c0_i32_35] : memref<2048x2048xi8, #tpu.memory_space<any>> -> memref<512x2048xi8, #tpu.memory_space<any>>
    %c0_i32_36 = arith.constant 0 : i32
    %c0_i32_37 = arith.constant 0 : i32
    %42 = tpu.memref_slice %arg7[%c1_i32_32, %c0_i32_36, %c0_i32_37] : memref<2x512x2048xi8, #tpu.memory_space<vmem>> -> memref<1x512x2048xi8, #tpu.memory_space<vmem>>
    %43 = tpu.memref_squeeze %42 : memref<1x512x2048xi8, #tpu.memory_space<vmem>> -> memref<512x2048xi8, #tpu.memory_space<vmem>>
    %44 = tpu.memref_slice %arg9[%c1_i32_33] : memref<2x!tpu.dma_semaphore, #tpu.memory_space<semaphore_mem>> -> memref<1x!tpu.dma_semaphore, #tpu.memory_space<semaphore_mem>>
    %45 = tpu.memref_squeeze %44 : memref<1x!tpu.dma_semaphore, #tpu.memory_space<semaphore_mem>> -> memref<!tpu.dma_semaphore, #tpu.memory_space<semaphore_mem>>
    tpu.wait_dma2 semaphore(%45 : memref<!tpu.dma_semaphore, #tpu.memory_space<semaphore_mem>>) src(%41 : memref<512x2048xi8, #tpu.memory_space<any>>) dst(%43 : memref<512x2048xi8, #tpu.memory_space<vmem>>)
    %46 = vector.extract_strided_slice %25 {offsets = [0, 512], sizes = [8, 512], strides = [1, 1]} : vector<8x2048xbf16> to vector<8x512xbf16>
    %c1_38 = arith.constant 1 : index
    %c0_39 = arith.constant 0 : index
    %c0_40 = arith.constant 0 : index
    %47 = vector.load %arg7[%c1_38, %c0_39, %c0_40] : memref<2x512x2048xi8, #tpu.memory_space<vmem>>, vector<1x512x2048xi8>
    %48 = vector.shape_cast %47 : vector<1x512x2048xi8> to vector<512x2048xi8>
    %49 = arith.sitofp %48 : vector<512x2048xi8> to vector<512x2048xbf16>
    %cst_41 = arith.constant dense<0.000000e+00> : vector<8x2048xf32>
    %50 = tpu.matmul %46, %49, %cst_41 {dimension_numbers = #tpu.dot_dimension_numbers<[1], [0], [0], [1], [0, 0, 1, 1], [], []>} : vector<8x512xbf16>, vector<512x2048xbf16>, vector<8x2048xf32> -> vector<8x2048xf32>
    %51 = arith.addf %35, %50 : vector<8x2048xf32>
    %c1_i32_42 = arith.constant 1 : i32
    %c1_i32_43 = arith.constant 1 : i32
    %c1536_i32 = arith.constant 1536 : i32
    %c0_i32_44 = arith.constant 0 : i32
    %52 = tpu.memref_slice %arg4[%c1536_i32, %c0_i32_44] : memref<2048x2048xi8, #tpu.memory_space<any>> -> memref<512x2048xi8, #tpu.memory_space<any>>
    %c0_i32_45 = arith.constant 0 : i32
    %c0_i32_46 = arith.constant 0 : i32
    %53 = tpu.memref_slice %arg7[%c1_i32_42, %c0_i32_45, %c0_i32_46] : memref<2x512x2048xi8, #tpu.memory_space<vmem>> -> memref<1x512x2048xi8, #tpu.memory_space<vmem>>
    %54 = tpu.memref_squeeze %53 : memref<1x512x2048xi8, #tpu.memory_space<vmem>> -> memref<512x2048xi8, #tpu.memory_space<vmem>>
    %55 = tpu.memref_slice %arg9[%c1_i32_43] : memref<2x!tpu.dma_semaphore, #tpu.memory_space<semaphore_mem>> -> memref<1x!tpu.dma_semaphore, #tpu.memory_space<semaphore_mem>>
    %56 = tpu.memref_squeeze %55 : memref<1x!tpu.dma_semaphore, #tpu.memory_space<semaphore_mem>> -> memref<!tpu.dma_semaphore, #tpu.memory_space<semaphore_mem>>
    tpu.enqueue_dma source(%52 : memref<512x2048xi8, #tpu.memory_space<any>>) target(%54 : memref<512x2048xi8, #tpu.memory_space<vmem>>) target_semaphore(%56 : memref<!tpu.dma_semaphore, #tpu.memory_space<semaphore_mem>>)
    %c0_i32_47 = arith.constant 0 : i32
    %c0_i32_48 = arith.constant 0 : i32
    %c1024_i32_49 = arith.constant 1024 : i32
    %c0_i32_50 = arith.constant 0 : i32
    %57 = tpu.memref_slice %arg4[%c1024_i32_49, %c0_i32_50] : memref<2048x2048xi8, #tpu.memory_space<any>> -> memref<512x2048xi8, #tpu.memory_space<any>>
    %c0_i32_51 = arith.constant 0 : i32
    %c0_i32_52 = arith.constant 0 : i32
    %58 = tpu.memref_slice %arg7[%c0_i32_47, %c0_i32_51, %c0_i32_52] : memref<2x512x2048xi8, #tpu.memory_space<vmem>> -> memref<1x512x2048xi8, #tpu.memory_space<vmem>>
    %59 = tpu.memref_squeeze %58 : memref<1x512x2048xi8, #tpu.memory_space<vmem>> -> memref<512x2048xi8, #tpu.memory_space<vmem>>
    %60 = tpu.memref_slice %arg9[%c0_i32_48] : memref<2x!tpu.dma_semaphore, #tpu.memory_space<semaphore_mem>> -> memref<1x!tpu.dma_semaphore, #tpu.memory_space<semaphore_mem>>
    %61 = tpu.memref_squeeze %60 : memref<1x!tpu.dma_semaphore, #tpu.memory_space<semaphore_mem>> -> memref<!tpu.dma_semaphore, #tpu.memory_space<semaphore_mem>>
    tpu.wait_dma2 semaphore(%61 : memref<!tpu.dma_semaphore, #tpu.memory_space<semaphore_mem>>) src(%57 : memref<512x2048xi8, #tpu.memory_space<any>>) dst(%59 : memref<512x2048xi8, #tpu.memory_space<vmem>>)
    %62 = vector.extract_strided_slice %25 {offsets = [0, 1024], sizes = [8, 512], strides = [1, 1]} : vector<8x2048xbf16> to vector<8x512xbf16>
    %c0_53 = arith.constant 0 : index
    %c0_54 = arith.constant 0 : index
    %c0_55 = arith.constant 0 : index
    %63 = vector.load %arg7[%c0_53, %c0_54, %c0_55] : memref<2x512x2048xi8, #tpu.memory_space<vmem>>, vector<1x512x2048xi8>
    %64 = vector.shape_cast %63 : vector<1x512x2048xi8> to vector<512x2048xi8>
    %65 = arith.sitofp %64 : vector<512x2048xi8> to vector<512x2048xbf16>
    %cst_56 = arith.constant dense<0.000000e+00> : vector<8x2048xf32>
    %66 = tpu.matmul %62, %65, %cst_56 {dimension_numbers = #tpu.dot_dimension_numbers<[1], [0], [0], [1], [0, 0, 1, 1], [], []>} : vector<8x512xbf16>, vector<512x2048xbf16>, vector<8x2048xf32> -> vector<8x2048xf32>
    %67 = arith.addf %51, %66 : vector<8x2048xf32>
    %c0_i32_57 = arith.constant 0 : i32
    %c0_i32_58 = arith.constant 0 : i32
    %c0_i32_59 = arith.constant 0 : i32
    %c0_i32_60 = arith.constant 0 : i32
    %68 = tpu.memref_slice %arg5[%c0_i32_59, %c0_i32_60] : memref<1024x1024xi8, #tpu.memory_space<any>> -> memref<512x1024xi8, #tpu.memory_space<any>>
    %c0_i32_61 = arith.constant 0 : i32
    %c0_i32_62 = arith.constant 0 : i32
    %69 = tpu.memref_slice %arg8[%c0_i32_57, %c0_i32_61, %c0_i32_62] : memref<2x512x1024xi8, #tpu.memory_space<vmem>> -> memref<1x512x1024xi8, #tpu.memory_space<vmem>>
    %70 = tpu.memref_squeeze %69 : memref<1x512x1024xi8, #tpu.memory_space<vmem>> -> memref<512x1024xi8, #tpu.memory_space<vmem>>
    %71 = tpu.memref_slice %arg10[%c0_i32_58] : memref<2x!tpu.dma_semaphore, #tpu.memory_space<semaphore_mem>> -> memref<1x!tpu.dma_semaphore, #tpu.memory_space<semaphore_mem>>
    %72 = tpu.memref_squeeze %71 : memref<1x!tpu.dma_semaphore, #tpu.memory_space<semaphore_mem>> -> memref<!tpu.dma_semaphore, #tpu.memory_space<semaphore_mem>>
    tpu.enqueue_dma source(%68 : memref<512x1024xi8, #tpu.memory_space<any>>) target(%70 : memref<512x1024xi8, #tpu.memory_space<vmem>>) target_semaphore(%72 : memref<!tpu.dma_semaphore, #tpu.memory_space<semaphore_mem>>)
    %c1_i32_63 = arith.constant 1 : i32
    %c1_i32_64 = arith.constant 1 : i32
    %c1536_i32_65 = arith.constant 1536 : i32
    %c0_i32_66 = arith.constant 0 : i32
    %73 = tpu.memref_slice %arg4[%c1536_i32_65, %c0_i32_66] : memref<2048x2048xi8, #tpu.memory_space<any>> -> memref<512x2048xi8, #tpu.memory_space<any>>
    %c0_i32_67 = arith.constant 0 : i32
    %c0_i32_68 = arith.constant 0 : i32
    %74 = tpu.memref_slice %arg7[%c1_i32_63, %c0_i32_67, %c0_i32_68] : memref<2x512x2048xi8, #tpu.memory_space<vmem>> -> memref<1x512x2048xi8, #tpu.memory_space<vmem>>
    %75 = tpu.memref_squeeze %74 : memref<1x512x2048xi8, #tpu.memory_space<vmem>> -> memref<512x2048xi8, #tpu.memory_space<vmem>>
    %76 = tpu.memref_slice %arg9[%c1_i32_64] : memref<2x!tpu.dma_semaphore, #tpu.memory_space<semaphore_mem>> -> memref<1x!tpu.dma_semaphore, #tpu.memory_space<semaphore_mem>>
    %77 = tpu.memref_squeeze %76 : memref<1x!tpu.dma_semaphore, #tpu.memory_space<semaphore_mem>> -> memref<!tpu.dma_semaphore, #tpu.memory_space<semaphore_mem>>
    tpu.wait_dma2 semaphore(%77 : memref<!tpu.dma_semaphore, #tpu.memory_space<semaphore_mem>>) src(%73 : memref<512x2048xi8, #tpu.memory_space<any>>) dst(%75 : memref<512x2048xi8, #tpu.memory_space<vmem>>)
    %78 = vector.extract_strided_slice %25 {offsets = [0, 1536], sizes = [8, 512], strides = [1, 1]} : vector<8x2048xbf16> to vector<8x512xbf16>
    %c1_69 = arith.constant 1 : index
    %c0_70 = arith.constant 0 : index
    %c0_71 = arith.constant 0 : index
    %79 = vector.load %arg7[%c1_69, %c0_70, %c0_71] : memref<2x512x2048xi8, #tpu.memory_space<vmem>>, vector<1x512x2048xi8>
    %80 = vector.shape_cast %79 : vector<1x512x2048xi8> to vector<512x2048xi8>
    %81 = arith.sitofp %80 : vector<512x2048xi8> to vector<512x2048xbf16>
    %cst_72 = arith.constant dense<0.000000e+00> : vector<8x2048xf32>
    %82 = tpu.matmul %78, %81, %cst_72 {dimension_numbers = #tpu.dot_dimension_numbers<[1], [0], [0], [1], [0, 0, 1, 1], [], []>} : vector<8x512xbf16>, vector<512x2048xbf16>, vector<8x2048xf32> -> vector<8x2048xf32>
    %83 = arith.addf %67, %82 : vector<8x2048xf32>
    %c1_i32_73 = arith.constant 1 : i32
    %c1_i32_74 = arith.constant 1 : i32
    %c512_i32_75 = arith.constant 512 : i32
    %c0_i32_76 = arith.constant 0 : i32
    %84 = tpu.memref_slice %arg5[%c512_i32_75, %c0_i32_76] : memref<1024x1024xi8, #tpu.memory_space<any>> -> memref<512x1024xi8, #tpu.memory_space<any>>
    %c0_i32_77 = arith.constant 0 : i32
    %c0_i32_78 = arith.constant 0 : i32
    %85 = tpu.memref_slice %arg8[%c1_i32_73, %c0_i32_77, %c0_i32_78] : memref<2x512x1024xi8, #tpu.memory_space<vmem>> -> memref<1x512x1024xi8, #tpu.memory_space<vmem>>
    %86 = tpu.memref_squeeze %85 : memref<1x512x1024xi8, #tpu.memory_space<vmem>> -> memref<512x1024xi8, #tpu.memory_space<vmem>>
    %87 = tpu.memref_slice %arg10[%c1_i32_74] : memref<2x!tpu.dma_semaphore, #tpu.memory_space<semaphore_mem>> -> memref<1x!tpu.dma_semaphore, #tpu.memory_space<semaphore_mem>>
    %88 = tpu.memref_squeeze %87 : memref<1x!tpu.dma_semaphore, #tpu.memory_space<semaphore_mem>> -> memref<!tpu.dma_semaphore, #tpu.memory_space<semaphore_mem>>
    tpu.enqueue_dma source(%84 : memref<512x1024xi8, #tpu.memory_space<any>>) target(%86 : memref<512x1024xi8, #tpu.memory_space<vmem>>) target_semaphore(%88 : memref<!tpu.dma_semaphore, #tpu.memory_space<semaphore_mem>>)
    %c3 = arith.constant 3 : index
    %c0_79 = arith.constant 0 : index
    %89 = vector.load %arg1[%c3, %c0_79] : memref<8x2048xf32, #tpu.memory_space<vmem>>, vector<5x1024xf32>
    %90 = vector.extract_strided_slice %83 {offsets = [0, 0], sizes = [8, 1024], strides = [1, 1]} : vector<8x2048xf32> to vector<8x1024xf32>
    %91 = vector.extract_strided_slice %83 {offsets = [0, 1024], sizes = [8, 1024], strides = [1, 1]} : vector<8x2048xf32> to vector<8x1024xf32>
    %92 = vector.extract_strided_slice %89 {offsets = [0, 0], sizes = [1, 1024], strides = [1, 1]} : vector<5x1024xf32> to vector<1x1024xf32>
    %93 = vector.broadcast %92 : vector<1x1024xf32> to vector<8x1024xf32>
    %94 = arith.addf %90, %93 : vector<8x1024xf32>
    %cst_80 = arith.constant 0.000000e+00 : f32
    %95 = vector.broadcast %cst_80 : f32 to vector<8x1024xf32>
    %96 = arith.maximumf %94, %95 : vector<8x1024xf32>
    %97 = vector.extract_strided_slice %89 {offsets = [1, 0], sizes = [1, 1024], strides = [1, 1]} : vector<5x1024xf32> to vector<1x1024xf32>
    %98 = vector.broadcast %97 : vector<1x1024xf32> to vector<8x1024xf32>
    %99 = arith.mulf %96, %98 : vector<8x1024xf32>
    %100 = vector.extract_strided_slice %89 {offsets = [2, 0], sizes = [1, 1024], strides = [1, 1]} : vector<5x1024xf32> to vector<1x1024xf32>
    %101 = vector.broadcast %100 : vector<1x1024xf32> to vector<8x1024xf32>
    %102 = arith.addf %99, %101 : vector<8x1024xf32>
    %103 = vector.extract_strided_slice %89 {offsets = [3, 0], sizes = [1, 1024], strides = [1, 1]} : vector<5x1024xf32> to vector<1x1024xf32>
    %104 = vector.broadcast %103 : vector<1x1024xf32> to vector<8x1024xf32>
    %105 = arith.mulf %91, %104 : vector<8x1024xf32>
    %106 = arith.addf %102, %105 : vector<8x1024xf32>
    %107 = vector.extract_strided_slice %89 {offsets = [4, 0], sizes = [1, 1024], strides = [1, 1]} : vector<5x1024xf32> to vector<1x1024xf32>
    %108 = vector.broadcast %107 : vector<1x1024xf32> to vector<8x1024xf32>
    %109 = arith.addf %106, %108 : vector<8x1024xf32>
    %110 = arith.truncf %109 : vector<8x1024xf32> to vector<8x1024xbf16>
    %c0_i32_81 = arith.constant 0 : i32
    %c0_i32_82 = arith.constant 0 : i32
    %c0_i32_83 = arith.constant 0 : i32
    %c0_i32_84 = arith.constant 0 : i32
    %111 = tpu.memref_slice %arg5[%c0_i32_83, %c0_i32_84] : memref<1024x1024xi8, #tpu.memory_space<any>> -> memref<512x1024xi8, #tpu.memory_space<any>>
    %c0_i32_85 = arith.constant 0 : i32
    %c0_i32_86 = arith.constant 0 : i32
    %112 = tpu.memref_slice %arg8[%c0_i32_81, %c0_i32_85, %c0_i32_86] : memref<2x512x1024xi8, #tpu.memory_space<vmem>> -> memref<1x512x1024xi8, #tpu.memory_space<vmem>>
    %113 = tpu.memref_squeeze %112 : memref<1x512x1024xi8, #tpu.memory_space<vmem>> -> memref<512x1024xi8, #tpu.memory_space<vmem>>
    %114 = tpu.memref_slice %arg10[%c0_i32_82] : memref<2x!tpu.dma_semaphore, #tpu.memory_space<semaphore_mem>> -> memref<1x!tpu.dma_semaphore, #tpu.memory_space<semaphore_mem>>
    %115 = tpu.memref_squeeze %114 : memref<1x!tpu.dma_semaphore, #tpu.memory_space<semaphore_mem>> -> memref<!tpu.dma_semaphore, #tpu.memory_space<semaphore_mem>>
    tpu.wait_dma2 semaphore(%115 : memref<!tpu.dma_semaphore, #tpu.memory_space<semaphore_mem>>) src(%111 : memref<512x1024xi8, #tpu.memory_space<any>>) dst(%113 : memref<512x1024xi8, #tpu.memory_space<vmem>>)
    %116 = vector.extract_strided_slice %110 {offsets = [0, 0], sizes = [8, 512], strides = [1, 1]} : vector<8x1024xbf16> to vector<8x512xbf16>
    %c0_87 = arith.constant 0 : index
    %c0_88 = arith.constant 0 : index
    %c0_89 = arith.constant 0 : index
    %117 = vector.load %arg8[%c0_87, %c0_88, %c0_89] : memref<2x512x1024xi8, #tpu.memory_space<vmem>>, vector<1x512x1024xi8>
    %118 = vector.shape_cast %117 : vector<1x512x1024xi8> to vector<512x1024xi8>
    %119 = arith.sitofp %118 : vector<512x1024xi8> to vector<512x1024xbf16>
    %cst_90 = arith.constant dense<0.000000e+00> : vector<8x1024xf32>
    %120 = tpu.matmul %116, %119, %cst_90 {dimension_numbers = #tpu.dot_dimension_numbers<[1], [0], [0], [1], [0, 0, 1, 1], [], []>} : vector<8x512xbf16>, vector<512x1024xbf16>, vector<8x1024xf32> -> vector<8x1024xf32>
    %c1_i32_91 = arith.constant 1 : i32
    %c1_i32_92 = arith.constant 1 : i32
    %c512_i32_93 = arith.constant 512 : i32
    %c0_i32_94 = arith.constant 0 : i32
    %121 = tpu.memref_slice %arg5[%c512_i32_93, %c0_i32_94] : memref<1024x1024xi8, #tpu.memory_space<any>> -> memref<512x1024xi8, #tpu.memory_space<any>>
    %c0_i32_95 = arith.constant 0 : i32
    %c0_i32_96 = arith.constant 0 : i32
    %122 = tpu.memref_slice %arg8[%c1_i32_91, %c0_i32_95, %c0_i32_96] : memref<2x512x1024xi8, #tpu.memory_space<vmem>> -> memref<1x512x1024xi8, #tpu.memory_space<vmem>>
    %123 = tpu.memref_squeeze %122 : memref<1x512x1024xi8, #tpu.memory_space<vmem>> -> memref<512x1024xi8, #tpu.memory_space<vmem>>
    %124 = tpu.memref_slice %arg10[%c1_i32_92] : memref<2x!tpu.dma_semaphore, #tpu.memory_space<semaphore_mem>> -> memref<1x!tpu.dma_semaphore, #tpu.memory_space<semaphore_mem>>
    %125 = tpu.memref_squeeze %124 : memref<1x!tpu.dma_semaphore, #tpu.memory_space<semaphore_mem>> -> memref<!tpu.dma_semaphore, #tpu.memory_space<semaphore_mem>>
    tpu.wait_dma2 semaphore(%125 : memref<!tpu.dma_semaphore, #tpu.memory_space<semaphore_mem>>) src(%121 : memref<512x1024xi8, #tpu.memory_space<any>>) dst(%123 : memref<512x1024xi8, #tpu.memory_space<vmem>>)
    %126 = vector.extract_strided_slice %110 {offsets = [0, 512], sizes = [8, 512], strides = [1, 1]} : vector<8x1024xbf16> to vector<8x512xbf16>
    %c1_97 = arith.constant 1 : index
    %c0_98 = arith.constant 0 : index
    %c0_99 = arith.constant 0 : index
    %127 = vector.load %arg8[%c1_97, %c0_98, %c0_99] : memref<2x512x1024xi8, #tpu.memory_space<vmem>>, vector<1x512x1024xi8>
    %128 = vector.shape_cast %127 : vector<1x512x1024xi8> to vector<512x1024xi8>
    %129 = arith.sitofp %128 : vector<512x1024xi8> to vector<512x1024xbf16>
    %cst_100 = arith.constant dense<0.000000e+00> : vector<8x1024xf32>
    %130 = tpu.matmul %126, %129, %cst_100 {dimension_numbers = #tpu.dot_dimension_numbers<[1], [0], [0], [1], [0, 0, 1, 1], [], []>} : vector<8x512xbf16>, vector<512x1024xbf16>, vector<8x1024xf32> -> vector<8x1024xf32>
    %131 = arith.addf %120, %130 : vector<8x1024xf32>
    %c3_101 = arith.constant 3 : index
    %c1024 = arith.constant 1024 : index
    %132 = vector.load %arg1[%c3_101, %c1024] : memref<8x2048xf32, #tpu.memory_space<vmem>>, vector<5x512xf32>
    %133 = vector.extract_strided_slice %131 {offsets = [0, 0], sizes = [8, 512], strides = [1, 1]} : vector<8x1024xf32> to vector<8x512xf32>
    %134 = vector.extract_strided_slice %131 {offsets = [0, 512], sizes = [8, 512], strides = [1, 1]} : vector<8x1024xf32> to vector<8x512xf32>
    %135 = vector.extract_strided_slice %132 {offsets = [0, 0], sizes = [1, 512], strides = [1, 1]} : vector<5x512xf32> to vector<1x512xf32>
    %136 = vector.broadcast %135 : vector<1x512xf32> to vector<8x512xf32>
    %137 = arith.addf %133, %136 : vector<8x512xf32>
    %cst_102 = arith.constant 0.000000e+00 : f32
    %138 = vector.broadcast %cst_102 : f32 to vector<8x512xf32>
    %139 = arith.maximumf %137, %138 : vector<8x512xf32>
    %140 = vector.extract_strided_slice %132 {offsets = [1, 0], sizes = [1, 512], strides = [1, 1]} : vector<5x512xf32> to vector<1x512xf32>
    %141 = vector.broadcast %140 : vector<1x512xf32> to vector<8x512xf32>
    %142 = arith.mulf %139, %141 : vector<8x512xf32>
    %143 = vector.extract_strided_slice %132 {offsets = [2, 0], sizes = [1, 512], strides = [1, 1]} : vector<5x512xf32> to vector<1x512xf32>
    %144 = vector.broadcast %143 : vector<1x512xf32> to vector<8x512xf32>
    %145 = arith.addf %142, %144 : vector<8x512xf32>
    %146 = vector.extract_strided_slice %132 {offsets = [3, 0], sizes = [1, 512], strides = [1, 1]} : vector<5x512xf32> to vector<1x512xf32>
    %147 = vector.broadcast %146 : vector<1x512xf32> to vector<8x512xf32>
    %148 = arith.mulf %134, %147 : vector<8x512xf32>
    %149 = arith.addf %145, %148 : vector<8x512xf32>
    %150 = vector.extract_strided_slice %132 {offsets = [4, 0], sizes = [1, 512], strides = [1, 1]} : vector<5x512xf32> to vector<1x512xf32>
    %151 = vector.broadcast %150 : vector<1x512xf32> to vector<8x512xf32>
    %152 = arith.addf %149, %151 : vector<8x512xf32>
    %153 = arith.truncf %152 : vector<8x512xf32> to vector<8x512xbf16>
    %c0_103 = arith.constant 0 : index
    %c0_104 = arith.constant 0 : index
    %154 = vector.load %arg3[%c0_103, %c0_104] : memref<512x512xbf16, #tpu.memory_space<vmem>>, vector<512x512xbf16>
    %cst_105 = arith.constant dense<0.000000e+00> : vector<8x512xf32>
    %155 = tpu.matmul %153, %154, %cst_105 {dimension_numbers = #tpu.dot_dimension_numbers<[1], [0], [0], [1], [0, 0, 1, 1], [], []>} : vector<8x512xbf16>, vector<512x512xbf16>, vector<8x512xf32> -> vector<8x512xf32>
    %c3_106 = arith.constant 3 : index
    %c1536 = arith.constant 1536 : index
    %156 = vector.load %arg1[%c3_106, %c1536] : memref<8x2048xf32, #tpu.memory_space<vmem>>, vector<5x256xf32>
    %157 = vector.extract_strided_slice %155 {offsets = [0, 0], sizes = [8, 256], strides = [1, 1]} : vector<8x512xf32> to vector<8x256xf32>
    %158 = vector.extract_strided_slice %155 {offsets = [0, 256], sizes = [8, 256], strides = [1, 1]} : vector<8x512xf32> to vector<8x256xf32>
    %159 = vector.extract_strided_slice %156 {offsets = [0, 0], sizes = [1, 256], strides = [1, 1]} : vector<5x256xf32> to vector<1x256xf32>
    %160 = vector.broadcast %159 : vector<1x256xf32> to vector<8x256xf32>
    %161 = arith.addf %157, %160 : vector<8x256xf32>
    %cst_107 = arith.constant 0.000000e+00 : f32
    %162 = vector.broadcast %cst_107 : f32 to vector<8x256xf32>
    %163 = arith.maximumf %161, %162 : vector<8x256xf32>
    %164 = vector.extract_strided_slice %156 {offsets = [1, 0], sizes = [1, 256], strides = [1, 1]} : vector<5x256xf32> to vector<1x256xf32>
    %165 = vector.broadcast %164 : vector<1x256xf32> to vector<8x256xf32>
    %166 = arith.mulf %163, %165 : vector<8x256xf32>
    %167 = vector.extract_strided_slice %156 {offsets = [2, 0], sizes = [1, 256], strides = [1, 1]} : vector<5x256xf32> to vector<1x256xf32>
    %168 = vector.broadcast %167 : vector<1x256xf32> to vector<8x256xf32>
    %169 = arith.addf %166, %168 : vector<8x256xf32>
    %170 = vector.extract_strided_slice %156 {offsets = [3, 0], sizes = [1, 256], strides = [1, 1]} : vector<5x256xf32> to vector<1x256xf32>
    %171 = vector.broadcast %170 : vector<1x256xf32> to vector<8x256xf32>
    %172 = arith.mulf %158, %171 : vector<8x256xf32>
    %173 = arith.addf %169, %172 : vector<8x256xf32>
    %174 = vector.extract_strided_slice %156 {offsets = [4, 0], sizes = [1, 256], strides = [1, 1]} : vector<5x256xf32> to vector<1x256xf32>
    %175 = vector.broadcast %174 : vector<1x256xf32> to vector<8x256xf32>
    %176 = arith.addf %173, %175 : vector<8x256xf32>
    %c3_108 = arith.constant 3 : index
    %c1792 = arith.constant 1792 : index
    %177 = vector.load %arg1[%c3_108, %c1792] : memref<8x2048xf32, #tpu.memory_space<vmem>>, vector<1x256xf32>
    %c4 = arith.constant 4 : index
    %c1792_109 = arith.constant 1792 : index
    %178 = vector.load %arg1[%c4, %c1792_109] : memref<8x2048xf32, #tpu.memory_space<vmem>>, vector<1x1xf32>
    %179 = vector.broadcast %177 : vector<1x256xf32> to vector<8x256xf32>
    %180 = arith.mulf %176, %179 : vector<8x256xf32>
    %cst_110 = arith.constant dense<0.000000e+00> : vector<8xf32>
    %181 = vector.multi_reduction <add>, %180, %cst_110 [1] : vector<8x256xf32> to vector<8xf32>
    %182 = vector.shape_cast %181 : vector<8xf32> to vector<8x1xf32>
    %183 = vector.broadcast %178 : vector<1x1xf32> to vector<8x1xf32>
    %184 = arith.addf %182, %183 : vector<8x1xf32>
    %c0_111 = arith.constant 0 : index
    %c0_112 = arith.constant 0 : index
    %185 = vector.load %arg6[%c0_111, %c0_112] : memref<8x1xf32, #tpu.memory_space<vmem>>, vector<8x1xf32>
    tpu.vector_store %arg6[%c0_111, %c0_112], %184 {strides = array<i32>} : memref<8x1xf32, #tpu.memory_space<vmem>>, vector<8x1xf32>,
    return
  }
}

</mosaic_0001>

<llo_original>
// kernel: improved_codebert_classifier_fwd.1
$region0: #{improved_codebert_classifier_fwd.1}
  #allocation0 [shape = 'u32[]', space=smem, size = 0x4, offset = 0x4, fixed_abs, tag = 'smem constant byte address 0x4 - core index']
  #allocation1 [shape = 'u32[144,128]{1,0:T(1,128)}', space=vmem, size = 0x12000, scoped, tag = 'internal scratch']
  #allocation2 [shape = 's8[2,512,2048]{2,1,0:T(32,128)(4,1)}', space=vmem, size = 0x200000, scoped, tag = 'scratch operand']
  #allocation3 [shape = 's8[2,512,1024]{2,1,0:T(32,128)(4,1)}', space=vmem, size = 0x100000, scoped, tag = 'scratch operand']
  #allocation4 [shape = 's32[2]{0}', space=sflag, size = 0x8, scoped, tag = 'scratch operand']
  #allocation5 [shape = 's32[2]{0}', space=sflag, size = 0x8, scoped, tag = 'scratch operand']
  #allocation13 [shape = 's32[]', space=sflag, size = 0x4, offset = 0, fixed_abs, tag = 'sflag constant byte address 0x0 - dummy sync flag']
  #allocation14 [shape = 's32[]', space=sflag, size = 0x4, offset = 0, fixed_abs, tag = 'sflag constant byte address 0x0 - dummy sync flag']
  #allocation15 [shape = 'u32[]', space=smem, size = 0x4, offset = 0x44, fixed_abs, tag = 'smem constant byte address 0x44 - assertion arg 0']
  #allocation16 [shape = 'u32[]', space=smem, size = 0x4, offset = 0x48, fixed_abs, tag = 'smem constant byte address 0x48 - assertion arg 1']
  #allocation17 [shape = 's32[]', space=sflag, size = 0x4, offset = 0, fixed_abs, tag = 'sflag constant byte address 0x0 - dummy sync flag']
  #allocation18 [shape = 's32[]', space=sflag, size = 0x4, offset = 0, fixed_abs, tag = 'sflag constant byte address 0x0 - dummy sync flag']
  #allocation19 [shape = 's32[]', space=sflag, size = 0x4, offset = 0, fixed_abs, tag = 'sflag constant byte address 0x0 - dummy sync flag']
  #allocation20 [shape = 's32[]', space=sflag, size = 0x4, offset = 0, fixed_abs, tag = 'sflag constant byte address 0x0 - dummy sync flag']
  #allocation21 [shape = 's32[]', space=sflag, size = 0x4, offset = 0, fixed_abs, tag = 'sflag constant byte address 0x0 - dummy sync flag']
  #allocation22 [shape = 's32[]', space=sflag, size = 0x4, offset = 0, fixed_abs, tag = 'sflag constant byte address 0x0 - dummy sync flag']
  #allocation23 [shape = 's32[]', space=sflag, size = 0x4, offset = 0, fixed_abs, tag = 'sflag constant byte address 0x0 - dummy sync flag']
  #allocation24 [shape = 's32[]', space=sflag, size = 0x4, offset = 0, fixed_abs, tag = 'sflag constant byte address 0x0 - dummy sync flag']
  #allocation25 [shape = 's32[]', space=sflag, size = 0x4, offset = 0, fixed_abs, tag = 'sflag constant byte address 0x0 - dummy sync flag']
  #allocation26 [shape = 's32[]', space=sflag, size = 0x4, offset = 0, fixed_abs, tag = 'sflag constant byte address 0x0 - dummy sync flag']
  %s0 = inlined_call_operand.hbm [shape: f32[8,256], index: 0, kind: input, shape index: {}]
  %s1 = inlined_call_operand.hbm [shape: f32[8,2048], index: 1, kind: input, shape index: {}]
  %s2 = inlined_call_operand.hbm [shape: bf16[256,2048], index: 2, kind: input, shape index: {}]
  %s3 = inlined_call_operand.hbm [shape: bf16[512,512], index: 3, kind: input, shape index: {}]
  %s4 = inlined_call_operand.hbm [shape: s8[2048,2048], index: 4, kind: input, shape index: {}]
  %s5 = inlined_call_operand.hbm [shape: s8[1024,1024], index: 5, kind: input, shape index: {}]
  %s6 = inlined_call_operand.vmem [shape: f32[8,1], index: 6, kind: output, shape index: {}]
  %s7 = sld [smem:[#allocation0]]
  $region66: #{improved_codebert_classifier_fwd.1} parent=0
    _
  %s9 = ssub.s32 1, %s7
  %s10 = scalar_select 0, %s9, %s7
  $region1: #{improved_codebert_classifier_fwd.1} parent=0
    #allocation6 [shape = 'u8[8192]{0}', space=vmem, size = 0x2000, scoped, tag = 'input window, operand 0, single buffered']
    #allocation7 [shape = 's32[1]{0}', space=sflag, size = 0x4, scoped, tag = 'scoped memory for improved_codebert_classifier_fwd.1']
    #allocation8 [shape = 'u8[65536]{0}', space=vmem, size = 0x10000, scoped, tag = 'input window, operand 1, single buffered']
    #allocation9 [shape = 's32[1]{0}', space=sflag, size = 0x4, scoped, tag = 'scoped memory for improved_codebert_classifier_fwd.1']
    #allocation10 [shape = 'u8[1048576]{0}', space=vmem, size = 0x100000, scoped, tag = 'input window, operand 2, single buffered']
    #allocation11 [shape = 'u8[524288]{0}', space=vmem, size = 0x80000, scoped, tag = 'input window, operand 3, single buffered']
    #allocation12 [shape = 's32[1]{0}', space=sflag, size = 0x4, scoped, tag = 'scoped memory for improved_codebert_classifier_fwd.1']
    %11 = vsyncpa [#allocation7], 0
    %12 = vsyncpa [#allocation9], 0
    %13 = vsyncpa [#allocation12], 0
    // Predicated region
    $region2: #{improved_codebert_classifier_fwd.1} parent=1 // pred_check
      _
    $region3: #{improved_codebert_classifier_fwd.1} parent=1 // pred_check_branch
      %15 = sbr.rel (0) target = $region5
    $region4: #{improved_codebert_classifier_fwd.1} parent=1 // pred_region
      %s17 = ssub.s32 256, 256
      %18 = vsyncadd [#allocation7], %s17
      %s20 = sshll.u32 [#allocation6], 4
      %s21 = int_to_ptr.vmem [resolvable:$true] %s20
      %23 = dma.hbm_to_vmem [thread:$0]  %s0, 256, %s21, [#allocation7]
    $region5: #{improved_codebert_classifier_fwd.1} parent=1 // pred_fallthru
      _
    // Predicated region
    $region6: #{improved_codebert_classifier_fwd.1} parent=1 // pred_check
      _
    $region7: #{improved_codebert_classifier_fwd.1} parent=1 // pred_check_branch
      %25 = sbr.rel (0) target = $region9
    $region8: #{improved_codebert_classifier_fwd.1} parent=1 // pred_region
      %s27 = ssub.s32 2048, 2048
      %28 = vsyncadd [#allocation9], %s27
      %s30 = sshll.u32 [#allocation8], 4
      %s31 = int_to_ptr.vmem [resolvable:$true] %s30
      %33 = dma.hbm_to_vmem [thread:$0]  %s1, 2048, %s31, [#allocation9]
    $region9: #{improved_codebert_classifier_fwd.1} parent=1 // pred_fallthru
      _
    // Predicated region
    $region10: #{improved_codebert_classifier_fwd.1} parent=1 // pred_check
      _
    $region11: #{improved_codebert_classifier_fwd.1} parent=1 // pred_check_branch
      %35 = sbr.rel (0) target = $region13
    $region12: #{improved_codebert_classifier_fwd.1} parent=1 // pred_region
      %s37 = ssub.s32 32768, 32768
      %38 = vsyncadd [#allocation9], %s37
      %s39 = sshll.u32 [#allocation10], 4
      %s40 = int_to_ptr.vmem [resolvable:$true] %s39
      %45 = dma.hbm_to_vmem [thread:$0]  %s2, 32768, %s40, [#allocation9], 1024, 1024, 64
    $region13: #{improved_codebert_classifier_fwd.1} parent=1 // pred_fallthru
      _
    // Predicated region
    $region14: #{improved_codebert_classifier_fwd.1} parent=1 // pred_check
      _
    $region15: #{improved_codebert_classifier_fwd.1} parent=1 // pred_check_branch
      %47 = sbr.rel (0) target = $region17
    $region16: #{improved_codebert_classifier_fwd.1} parent=1 // pred_region
      %s49 = ssub.s32 16384, 16384
      %50 = vsyncadd [#allocation12], %s49
      %s51 = sshll.u32 [#allocation11], 4
      %s52 = int_to_ptr.vmem [resolvable:$true] %s51
      %57 = dma.hbm_to_vmem [thread:$0]  %s3, 16384, %s52, [#allocation12], 256, 256, 16
    $region17: #{improved_codebert_classifier_fwd.1} parent=1 // pred_fallthru
      _
    // Predicated region
    $region18: #{improved_codebert_classifier_fwd.1} parent=1 // pred_check
      _
    $region19: #{improved_codebert_classifier_fwd.1} parent=1 // pred_check_branch
      %59 = sbr.rel (0) target = $region21
    $region20: #{improved_codebert_classifier_fwd.1} parent=1 // pred_region
      %60 = dma.done [#allocation7], 256
    $region21: #{improved_codebert_classifier_fwd.1} parent=1 // pred_fallthru
      _
    // Predicated region
    $region22: #{improved_codebert_classifier_fwd.1} parent=1 // pred_check
      _
    $region23: #{improved_codebert_classifier_fwd.1} parent=1 // pred_check_branch
      %62 = sbr.rel (0) target = $region25
    $region24: #{improved_codebert_classifier_fwd.1} parent=1 // pred_region
      %63 = dma.done [#allocation9], 2048
    $region25: #{improved_codebert_classifier_fwd.1} parent=1 // pred_fallthru
      _
    // Predicated region
    $region26: #{improved_codebert_classifier_fwd.1} parent=1 // pred_check
      _
    $region27: #{improved_codebert_classifier_fwd.1} parent=1 // pred_check_branch
      %65 = sbr.rel (0) target = $region29
    $region28: #{improved_codebert_classifier_fwd.1} parent=1 // pred_region
      %66 = dma.done [#allocation9], 32768
    $region29: #{improved_codebert_classifier_fwd.1} parent=1 // pred_fallthru
      _
    // Predicated region
    $region30: #{improved_codebert_classifier_fwd.1} parent=1 // pred_check
      _
    $region31: #{improved_codebert_classifier_fwd.1} parent=1 // pred_check_branch
      %68 = sbr.rel (0) target = $region33
    $region32: #{improved_codebert_classifier_fwd.1} parent=1 // pred_region
      %69 = dma.done [#allocation12], 16384
    $region33: #{improved_codebert_classifier_fwd.1} parent=1 // pred_fallthru
      _
    // Predicated region
    $region34: #{improved_codebert_classifier_fwd.1} parent=1 // pred_check
      _
    $region35: #{improved_codebert_classifier_fwd.1} parent=1 // pred_check_branch
      %71 = sbr.rel target = $region37
    $region36: #{improved_codebert_classifier_fwd.1} parent=1 // pred_region
      %72 = sst [smem:[#allocation15]] [#allocation14]
      %73 = sst [smem:[#allocation16]] [#allocation13]
    $region37: #{improved_codebert_classifier_fwd.1} parent=1 // pred_fallthru
      _
    %75 = shalt.err (0)
    %s77 = sshll.u32 [#allocation2], 4
    %s78 = int_to_ptr.vmem [resolvable:$true] %s77
    %80 = dma.hbm_to_vmem [thread:$0]  %s4, 32768, %s78, [#allocation4]
    %s81 = scalar_lea.hbm %s4, 32768
    %s82 = scalar_lea.vmem [#allocation2], 2048
    %s83 = scalar_lea.sflag [#allocation4], 1
    // Predicated region
    $region38: #{improved_codebert_classifier_fwd.1} parent=1 // pred_check
      _
    $region39: #{improved_codebert_classifier_fwd.1} parent=1 // pred_check_branch
      %85 = sbr.rel target = $region41
    $region40: #{improved_codebert_classifier_fwd.1} parent=1 // pred_region
      %86 = sst [smem:[#allocation15]] [#allocation18]
      %87 = sst [smem:[#allocation16]] [#allocation17]
    $region41: #{improved_codebert_classifier_fwd.1} parent=1 // pred_fallthru
      _
    %89 = shalt.err (0)
    %s91 = sshll.u32 %s82, 4
    %s92 = int_to_ptr.vmem [resolvable:$true] %s91
    %94 = dma.hbm_to_vmem [thread:$0]  %s81, 32768, %s92, %s83
    %v95 = vld [vmem:[#allocation6] sm:$0xff]
    %v96 = vld [vmem:[#allocation6 + $0x8] sm:$0xff]
    %v97 = vpack.c.bf16 %v95, %v95
    %v98 = vpack.c.bf16 %v96, %v96
    %v99 = vld [vmem:[#allocation10] sm:$0xff]
    %v100 = vld [vmem:[#allocation10 + $0x8] sm:$0xff]
    %v101 = vld [vmem:[#allocation10 + $0x10] sm:$0xff]
    %v102 = vld [vmem:[#allocation10 + $0x18] sm:$0xff]
    %v103 = vld [vmem:[#allocation10 + $0x20] sm:$0xff]
    %v104 = vld [vmem:[#allocation10 + $0x28] sm:$0xff]
    %v105 = vld [vmem:[#allocation10 + $0x30] sm:$0xff]
    %v106 = vld [vmem:[#allocation10 + $0x38] sm:$0xff]
    %v107 = vld [vmem:[#allocation10 + $0x40] sm:$0xff]
    %v108 = vld [vmem:[#allocation10 + $0x48] sm:$0xff]
    %v109 = vld [vmem:[#allocation10 + $0x50] sm:$0xff]
    %v110 = vld [vmem:[#allocation10 + $0x58] sm:$0xff]
    %v111 = vld [vmem:[#allocation10 + $0x60] sm:$0xff]
    %v112 = vld [vmem:[#allocation10 + $0x68] sm:$0xff]
    %v113 = vld [vmem:[#allocation10 + $0x70] sm:$0xff]
    %v114 = vld [vmem:[#allocation10 + $0x78] sm:$0xff]
    %v115 = vld [vmem:[#allocation10 + $0x80] sm:$0xff]
    %v116 = vld [vmem:[#allocation10 + $0x88] sm:$0xff]
    %v117 = vld [vmem:[#allocation10 + $0x90] sm:$0xff]
    %v118 = vld [vmem:[#allocation10 + $0x98] sm:$0xff]
    %v119 = vld [vmem:[#allocation10 + $0xa0] sm:$0xff]
    %v120 = vld [vmem:[#allocation10 + $0xa8] sm:$0xff]
    %v121 = vld [vmem:[#allocation10 + $0xb0] sm:$0xff]
    %v122 = vld [vmem:[#allocation10 + $0xb8] sm:$0xff]
    %v123 = vld [vmem:[#allocation10 + $0xc0] sm:$0xff]
    %v124 = vld [vmem:[#allocation10 + $0xc8] sm:$0xff]
    %v125 = vld [vmem:[#allocation10 + $0xd0] sm:$0xff]
    %v126 = vld [vmem:[#allocation10 + $0xd8] sm:$0xff]
    %v127 = vld [vmem:[#allocation10 + $0xe0] sm:$0xff]
    %v128 = vld [vmem:[#allocation10 + $0xe8] sm:$0xff]
    %v129 = vld [vmem:[#allocation10 + $0xf0] sm:$0xff]
    %v130 = vld [vmem:[#allocation10 + $0xf8] sm:$0xff]
    %v131 = vld [vmem:[#allocation10 + $0x100] sm:$0xff]
    %v132 = vld [vmem:[#allocation10 + $0x108] sm:$0xff]
    %v133 = vld [vmem:[#allocation10 + $0x110] sm:$0xff]
    %v134 = vld [vmem:[#allocation10 + $0x118] sm:$0xff]
    %v135 = vld [vmem:[#allocation10 + $0x120] sm:$0xff]
    %v136 = vld [vmem:[#allocation10 + $0x128] sm:$0xff]
    %v137 = vld [vmem:[#allocation10 + $0x130] sm:$0xff]
    %v138 = vld [vmem:[#allocation10 + $0x138] sm:$0xff]
    %v139 = vld [vmem:[#allocation10 + $0x140] sm:$0xff]
    %v140 = vld [vmem:[#allocation10 + $0x148] sm:$0xff]
    %v141 = vld [vmem:[#allocation10 + $0x150] sm:$0xff]
    %v142 = vld [vmem:[#allocation10 + $0x158] sm:$0xff]
    %v143 = vld [vmem:[#allocation10 + $0x160] sm:$0xff]
    %v144 = vld [vmem:[#allocation10 + $0x168] sm:$0xff]
    %v145 = vld [vmem:[#allocation10 + $0x170] sm:$0xff]
    %v146 = vld [vmem:[#allocation10 + $0x178] sm:$0xff]
    %v147 = vld [vmem:[#allocation10 + $0x180] sm:$0xff]
    %v148 = vld [vmem:[#allocation10 + $0x188] sm:$0xff]
    %v149 = vld [vmem:[#allocation10 + $0x190] sm:$0xff]
    %v150 = vld [vmem:[#allocation10 + $0x198] sm:$0xff]
    %v151 = vld [vmem:[#allocation10 + $0x1a0] sm:$0xff]
    %v152 = vld [vmem:[#allocation10 + $0x1a8] sm:$0xff]
    %v153 = vld [vmem:[#allocation10 + $0x1b0] sm:$0xff]
    %v154 = vld [vmem:[#allocation10 + $0x1b8] sm:$0xff]
    %v155 = vld [vmem:[#allocation10 + $0x1c0] sm:$0xff]
    %v156 = vld [vmem:[#allocation10 + $0x1c8] sm:$0xff]
    %v157 = vld [vmem:[#allocation10 + $0x1d0] sm:$0xff]
    %v158 = vld [vmem:[#allocation10 + $0x1d8] sm:$0xff]
    %v159 = vld [vmem:[#allocation10 + $0x1e0] sm:$0xff]
    %v160 = vld [vmem:[#allocation10 + $0x1e8] sm:$0xff]
    %v161 = vld [vmem:[#allocation10 + $0x1f0] sm:$0xff]
    %v162 = vld [vmem:[#allocation10 + $0x1f8] sm:$0xff]
    %v163 = vld [vmem:[#allocation10 + $0x200] sm:$0xff]
    %v164 = vld [vmem:[#allocation10 + $0x208] sm:$0xff]
    %v165 = vld [vmem:[#allocation10 + $0x210] sm:$0xff]
    %v166 = vld [vmem:[#allocation10 + $0x218] sm:$0xff]
    %v167 = vld [vmem:[#allocation10 + $0x220] sm:$0xff]
    %v168 = vld [vmem:[#allocation10 + $0x228] sm:$0xff]
    %v169 = vld [vmem:[#allocation10 + $0x230] sm:$0xff]
    %v170 = vld [vmem:[#allocation10 + $0x238] sm:$0xff]
    %v171 = vld [vmem:[#allocation10 + $0x240] sm:$0xff]
    %v172 = vld [vmem:[#allocation10 + $0x248] sm:$0xff]
    %v173 = vld [vmem:[#allocation10 + $0x250] sm:$0xff]
    %v174 = vld [vmem:[#allocation10 + $0x258] sm:$0xff]
    %v175 = vld [vmem:[#allocation10 + $0x260] sm:$0xff]
    %v176 = vld [vmem:[#allocation10 + $0x268] sm:$0xff]
    %v177 = vld [vmem:[#allocation10 + $0x270] sm:$0xff]
    %v178 = vld [vmem:[#allocation10 + $0x278] sm:$0xff]
    %v179 = vld [vmem:[#allocation10 + $0x280] sm:$0xff]
    %v180 = vld [vmem:[#allocation10 + $0x288] sm:$0xff]
    %v181 = vld [vmem:[#allocation10 + $0x290] sm:$0xff]
    %v182 = vld [vmem:[#allocation10 + $0x298] sm:$0xff]
    %v183 = vld [vmem:[#allocation10 + $0x2a0] sm:$0xff]
    %v184 = vld [vmem:[#allocation10 + $0x2a8] sm:$0xff]
    %v185 = vld [vmem:[#allocation10 + $0x2b0] sm:$0xff]
    %v186 = vld [vmem:[#allocation10 + $0x2b8] sm:$0xff]
    %v187 = vld [vmem:[#allocation10 + $0x2c0] sm:$0xff]
    %v188 = vld [vmem:[#allocation10 + $0x2c8] sm:$0xff]
    %v189 = vld [vmem:[#allocation10 + $0x2d0] sm:$0xff]
    %v190 = vld [vmem:[#allocation10 + $0x2d8] sm:$0xff]
    %v191 = vld [vmem:[#allocation10 + $0x2e0] sm:$0xff]
    %v192 = vld [vmem:[#allocation10 + $0x2e8] sm:$0xff]
    %v193 = vld [vmem:[#allocation10 + $0x2f0] sm:$0xff]
    %v194 = vld [vmem:[#allocation10 + $0x2f8] sm:$0xff]
    %v195 = vld [vmem:[#allocation10 + $0x300] sm:$0xff]
    %v196 = vld [vmem:[#allocation10 + $0x308] sm:$0xff]
    %v197 = vld [vmem:[#allocation10 + $0x310] sm:$0xff]
    %v198 = vld [vmem:[#allocation10 + $0x318] sm:$0xff]
    %v199 = vld [vmem:[#allocation10 + $0x320] sm:$0xff]
    %v200 = vld [vmem:[#allocation10 + $0x328] sm:$0xff]
    %v201 = vld [vmem:[#allocation10 + $0x330] sm:$0xff]
    %v202 = vld [vmem:[#allocation10 + $0x338] sm:$0xff]
    %v203 = vld [vmem:[#allocation10 + $0x340] sm:$0xff]
    %v204 = vld [vmem:[#allocation10 + $0x348] sm:$0xff]
    %v205 = vld [vmem:[#allocation10 + $0x350] sm:$0xff]
    %v206 = vld [vmem:[#allocation10 + $0x358] sm:$0xff]
    %v207 = vld [vmem:[#allocation10 + $0x360] sm:$0xff]
    %v208 = vld [vmem:[#allocation10 + $0x368] sm:$0xff]
    %v209 = vld [vmem:[#allocation10 + $0x370] sm:$0xff]
    %v210 = vld [vmem:[#allocation10 + $0x378] sm:$0xff]
    %v211 = vld [vmem:[#allocation10 + $0x380] sm:$0xff]
    %v212 = vld [vmem:[#allocation10 + $0x388] sm:$0xff]
    %v213 = vld [vmem:[#allocation10 + $0x390] sm:$0xff]
    %v214 = vld [vmem:[#allocation10 + $0x398] sm:$0xff]
    %v215 = vld [vmem:[#allocation10 + $0x3a0] sm:$0xff]
    %v216 = vld [vmem:[#allocation10 + $0x3a8] sm:$0xff]
    %v217 = vld [vmem:[#allocation10 + $0x3b0] sm:$0xff]
    %v218 = vld [vmem:[#allocation10 + $0x3b8] sm:$0xff]
    %v219 = vld [vmem:[#allocation10 + $0x3c0] sm:$0xff]
    %v220 = vld [vmem:[#allocation10 + $0x3c8] sm:$0xff]
    %v221 = vld [vmem:[#allocation10 + $0x3d0] sm:$0xff]
    %v222 = vld [vmem:[#allocation10 + $0x3d8] sm:$0xff]
    %v223 = vld [vmem:[#allocation10 + $0x3e0] sm:$0xff]
    %v224 = vld [vmem:[#allocation10 + $0x3e8] sm:$0xff]
    %v225 = vld [vmem:[#allocation10 + $0x3f0] sm:$0xff]
    %v226 = vld [vmem:[#allocation10 + $0x3f8] sm:$0xff]
    %v227 = vld [vmem:[#allocation10 + $0x400] sm:$0xff]
    %v228 = vld [vmem:[#allocation10 + $0x408] sm:$0xff]
    %v229 = vld [vmem:[#allocation10 + $0x410] sm:$0xff]
    %v230 = vld [vmem:[#allocation10 + $0x418] sm:$0xff]
    %v231 = vld [vmem:[#allocation10 + $0x420] sm:$0xff]
    %v232 = vld [vmem:[#allocation10 + $0x428] sm:$0xff]
    %v233 = vld [vmem:[#allocation10 + $0x430] sm:$0xff]
    %v234 = vld [vmem:[#allocation10 + $0x438] sm:$0xff]
    %v235 = vld [vmem:[#allocation10 + $0x440] sm:$0xff]
    %v236 = vld [vmem:[#allocation10 + $0x448] sm:$0xff]
    %v237 = vld [vmem:[#allocation10 + $0x450] sm:$0xff]
    %v238 = vld [vmem:[#allocation10 + $0x458] sm:$0xff]
    %v239 = vld [vmem:[#allocation10 + $0x460] sm:$0xff]
    %v240 = vld [vmem:[#allocation10 + $0x468] sm:$0xff]
    %v241 = vld [vmem:[#allocation10 + $0x470] sm:$0xff]
    %v242 = vld [vmem:[#allocation10 + $0x478] sm:$0xff]
    %v243 = vld [vmem:[#allocation10 + $0x480] sm:$0xff]
    %v244 = vld [vmem:[#allocation10 + $0x488] sm:$0xff]
    %v245 = vld [vmem:[#allocation10 + $0x490] sm:$0xff]
    %v246 = vld [vmem:[#allocation10 + $0x498] sm:$0xff]
    %v247 = vld [vmem:[#allocation10 + $0x4a0] sm:$0xff]
    %v248 = vld [vmem:[#allocation10 + $0x4a8] sm:$0xff]
    %v249 = vld [vmem:[#allocation10 + $0x4b0] sm:$0xff]
    %v250 = vld [vmem:[#allocation10 + $0x4b8] sm:$0xff]
    %v251 = vld [vmem:[#allocation10 + $0x4c0] sm:$0xff]
    %v252 = vld [vmem:[#allocation10 + $0x4c8] sm:$0xff]
    %v253 = vld [vmem:[#allocation10 + $0x4d0] sm:$0xff]
    %v254 = vld [vmem:[#allocation10 + $0x4d8] sm:$0xff]
    %v255 = vld [vmem:[#allocation10 + $0x4e0] sm:$0xff]
    %v256 = vld [vmem:[#allocation10 + $0x4e8] sm:$0xff]
    %v257 = vld [vmem:[#allocation10 + $0x4f0] sm:$0xff]
    %v258 = vld [vmem:[#allocation10 + $0x4f8] sm:$0xff]
    %v259 = vld [vmem:[#allocation10 + $0x500] sm:$0xff]
    %v260 = vld [vmem:[#allocation10 + $0x508] sm:$0xff]
    %v261 = vld [vmem:[#allocation10 + $0x510] sm:$0xff]
    %v262 = vld [vmem:[#allocation10 + $0x518] sm:$0xff]
    %v263 = vld [vmem:[#allocation10 + $0x520] sm:$0xff]
    %v264 = vld [vmem:[#allocation10 + $0x528] sm:$0xff]
    %v265 = vld [vmem:[#allocation10 + $0x530] sm:$0xff]
    %v266 = vld [vmem:[#allocation10 + $0x538] sm:$0xff]
    %v267 = vld [vmem:[#allocation10 + $0x540] sm:$0xff]
    %v268 = vld [vmem:[#allocation10 + $0x548] sm:$0xff]
    %v269 = vld [vmem:[#allocation10 + $0x550] sm:$0xff]
    %v270 = vld [vmem:[#allocation10 + $0x558] sm:$0xff]
    %v271 = vld [vmem:[#allocation10 + $0x560] sm:$0xff]
    %v272 = vld [vmem:[#allocation10 + $0x568] sm:$0xff]
    %v273 = vld [vmem:[#allocation10 + $0x570] sm:$0xff]
    %v274 = vld [vmem:[#allocation10 + $0x578] sm:$0xff]
    %v275 = vld [vmem:[#allocation10 + $0x580] sm:$0xff]
    %v276 = vld [vmem:[#allocation10 + $0x588] sm:$0xff]
    %v277 = vld [vmem:[#allocation10 + $0x590] sm:$0xff]
    %v278 = vld [vmem:[#allocation10 + $0x598] sm:$0xff]
    %v279 = vld [vmem:[#allocation10 + $0x5a0] sm:$0xff]
    %v280 = vld [vmem:[#allocation10 + $0x5a8] sm:$0xff]
    %v281 = vld [vmem:[#allocation10 + $0x5b0] sm:$0xff]
    %v282 = vld [vmem:[#allocation10 + $0x5b8] sm:$0xff]
    %v283 = vld [vmem:[#allocation10 + $0x5c0] sm:$0xff]
    %v284 = vld [vmem:[#allocation10 + $0x5c8] sm:$0xff]
    %v285 = vld [vmem:[#allocation10 + $0x5d0] sm:$0xff]
    %v286 = vld [vmem:[#allocation10 + $0x5d8] sm:$0xff]
    %v287 = vld [vmem:[#allocation10 + $0x5e0] sm:$0xff]
    %v288 = vld [vmem:[#allocation10 + $0x5e8] sm:$0xff]
    %v289 = vld [vmem:[#allocation10 + $0x5f0] sm:$0xff]
    %v290 = vld [vmem:[#allocation10 + $0x5f8] sm:$0xff]
    %v291 = vld [vmem:[#allocation10 + $0x600] sm:$0xff]
    %v292 = vld [vmem:[#allocation10 + $0x608] sm:$0xff]
    %v293 = vld [vmem:[#allocation10 + $0x610] sm:$0xff]
    %v294 = vld [vmem:[#allocation10 + $0x618] sm:$0xff]
    %v295 = vld [vmem:[#allocation10 + $0x620] sm:$0xff]
    %v296 = vld [vmem:[#allocation10 + $0x628] sm:$0xff]
    %v297 = vld [vmem:[#allocation10 + $0x630] sm:$0xff]
    %v298 = vld [vmem:[#allocation10 + $0x638] sm:$0xff]
    %v299 = vld [vmem:[#allocation10 + $0x640] sm:$0xff]
    %v300 = vld [vmem:[#allocation10 + $0x648] sm:$0xff]
    %v301 = vld [vmem:[#allocation10 + $0x650] sm:$0xff]
    %v302 = vld [vmem:[#allocation10 + $0x658] sm:$0xff]
    %v303 = vld [vmem:[#allocation10 + $0x660] sm:$0xff]
    %v304 = vld [vmem:[#allocation10 + $0x668] sm:$0xff]
    %v305 = vld [vmem:[#allocation10 + $0x670] sm:$0xff]
    %v306 = vld [vmem:[#allocation10 + $0x678] sm:$0xff]
    %v307 = vld [vmem:[#allocation10 + $0x680] sm:$0xff]
    %v308 = vld [vmem:[#allocation10 + $0x688] sm:$0xff]
    %v309 = vld [vmem:[#allocation10 + $0x690] sm:$0xff]
    %v310 = vld [vmem:[#allocation10 + $0x698] sm:$0xff]
    %v311 = vld [vmem:[#allocation10 + $0x6a0] sm:$0xff]
    %v312 = vld [vmem:[#allocation10 + $0x6a8] sm:$0xff]
    %v313 = vld [vmem:[#allocation10 + $0x6b0] sm:$0xff]
    %v314 = vld [vmem:[#allocation10 + $0x6b8] sm:$0xff]
    %v315 = vld [vmem:[#allocation10 + $0x6c0] sm:$0xff]
    %v316 = vld [vmem:[#allocation10 + $0x6c8] sm:$0xff]
    %v317 = vld [vmem:[#allocation10 + $0x6d0] sm:$0xff]
    %v318 = vld [vmem:[#allocation10 + $0x6d8] sm:$0xff]
    %v319 = vld [vmem:[#allocation10 + $0x6e0] sm:$0xff]
    %v320 = vld [vmem:[#allocation10 + $0x6e8] sm:$0xff]
    %v321 = vld [vmem:[#allocation10 + $0x6f0] sm:$0xff]
    %v322 = vld [vmem:[#allocation10 + $0x6f8] sm:$0xff]
    %v323 = vld [vmem:[#allocation10 + $0x700] sm:$0xff]
    %v324 = vld [vmem:[#allocation10 + $0x708] sm:$0xff]
    %v325 = vld [vmem:[#allocation10 + $0x710] sm:$0xff]
    %v326 = vld [vmem:[#allocation10 + $0x718] sm:$0xff]
    %v327 = vld [vmem:[#allocation10 + $0x720] sm:$0xff]
    %v328 = vld [vmem:[#allocation10 + $0x728] sm:$0xff]
    %v329 = vld [vmem:[#allocation10 + $0x730] sm:$0xff]
    %v330 = vld [vmem:[#allocation10 + $0x738] sm:$0xff]
    %v331 = vld [vmem:[#allocation10 + $0x740] sm:$0xff]
    %v332 = vld [vmem:[#allocation10 + $0x748] sm:$0xff]
    %v333 = vld [vmem:[#allocation10 + $0x750] sm:$0xff]
    %v334 = vld [vmem:[#allocation10 + $0x758] sm:$0xff]
    %v335 = vld [vmem:[#allocation10 + $0x760] sm:$0xff]
    %v336 = vld [vmem:[#allocation10 + $0x768] sm:$0xff]
    %v337 = vld [vmem:[#allocation10 + $0x770] sm:$0xff]
    %v338 = vld [vmem:[#allocation10 + $0x778] sm:$0xff]
    %v339 = vld [vmem:[#allocation10 + $0x780] sm:$0xff]
    %v340 = vld [vmem:[#allocation10 + $0x788] sm:$0xff]
    %v341 = vld [vmem:[#allocation10 + $0x790] sm:$0xff]
    %v342 = vld [vmem:[#allocation10 + $0x798] sm:$0xff]
    %v343 = vld [vmem:[#allocation10 + $0x7a0] sm:$0xff]
    %v344 = vld [vmem:[#allocation10 + $0x7a8] sm:$0xff]
    %v345 = vld [vmem:[#allocation10 + $0x7b0] sm:$0xff]
    %v346 = vld [vmem:[#allocation10 + $0x7b8] sm:$0xff]
    %v347 = vld [vmem:[#allocation10 + $0x7c0] sm:$0xff]
    %v348 = vld [vmem:[#allocation10 + $0x7c8] sm:$0xff]
    %v349 = vld [vmem:[#allocation10 + $0x7d0] sm:$0xff]
    %v350 = vld [vmem:[#allocation10 + $0x7d8] sm:$0xff]
    %v351 = vld [vmem:[#allocation10 + $0x7e0] sm:$0xff]
    %v352 = vld [vmem:[#allocation10 + $0x7e8] sm:$0xff]
    %v353 = vld [vmem:[#allocation10 + $0x7f0] sm:$0xff]
    %v354 = vld [vmem:[#allocation10 + $0x7f8] sm:$0xff]
    %v355 = vld [vmem:[#allocation8] ss:$8 sm:$0xf]
    %v356 = vld [vmem:[#allocation8] ss:$8 sm:$0xf0]
    %v357 = vor.u32 %v355, %v356
    %s358 = scalar_lea.vmem [#allocation8], 64
    %v359 = vld [vmem:[%s358] ss:$8 sm:$0xf]
    %v360 = vld [vmem:[%s358] ss:$8 sm:$0xf0]
    %v361 = vor.u32 %v359, %v360
    %v364 = vlaneseq
    %v365 = vshrl.u32 %v364, 7
    %v366 = vsub.s32 0, %v365
    %v367 = vrot.slane %v357, %v366
    %v368 = vlaneseq
    %v369 = vshrl.u32 %v368, 7
    %v370 = vsub.s32 1, %v369
    %v371 = vrot.slane %v357, %v370
    %v372 = vlaneseq
    %v373 = vshrl.u32 %v372, 7
    %v374 = vsub.s32 2, %v373
    %v375 = vrot.slane %v357, %v374
    %v376 = vlaneseq
    %v377 = vshrl.u32 %v376, 7
    %v378 = vsub.s32 3, %v377
    %v379 = vrot.slane %v357, %v378
    %v380 = vlaneseq
    %v381 = vshrl.u32 %v380, 7
    %v382 = vsub.s32 4, %v381
    %v383 = vrot.slane %v357, %v382
    %v384 = vlaneseq
    %v385 = vshrl.u32 %v384, 7
    %v386 = vsub.s32 5, %v385
    %v387 = vrot.slane %v357, %v386
    %v388 = vlaneseq
    %v389 = vshrl.u32 %v388, 7
    %v390 = vsub.s32 6, %v389
    %v391 = vrot.slane %v357, %v390
    %v392 = vlaneseq
    %v393 = vshrl.u32 %v392, 7
    %v394 = vsub.s32 7, %v393
    %v395 = vrot.slane %v357, %v394
    %v396 = vlaneseq
    %v397 = vshrl.u32 %v396, 7
    %v398 = vsub.s32 0, %v397
    %v399 = vrot.slane %v361, %v398
    %v400 = vlaneseq
    %v401 = vshrl.u32 %v400, 7
    %v402 = vsub.s32 1, %v401
    %v403 = vrot.slane %v361, %v402
    %v404 = vlaneseq
    %v405 = vshrl.u32 %v404, 7
    %v406 = vsub.s32 2, %v405
    %v407 = vrot.slane %v361, %v406
    %v408 = vlaneseq
    %v409 = vshrl.u32 %v408, 7
    %v410 = vsub.s32 3, %v409
    %v411 = vrot.slane %v361, %v410
    %v412 = vlaneseq
    %v413 = vshrl.u32 %v412, 7
    %v414 = vsub.s32 4, %v413
    %v415 = vrot.slane %v361, %v414
    %v416 = vlaneseq
    %v417 = vshrl.u32 %v416, 7
    %v418 = vsub.s32 5, %v417
    %v419 = vrot.slane %v361, %v418
    %v420 = vlaneseq
    %v421 = vshrl.u32 %v420, 7
    %v422 = vsub.s32 6, %v421
    %v423 = vrot.slane %v361, %v422
    %v424 = vlaneseq
    %v425 = vshrl.u32 %v424, 7
    %v426 = vsub.s32 7, %v425
    %v427 = vrot.slane %v361, %v426
    %v700 = vunpack.c.l.b16 %v99
    %v701 = vunpack.c.h.b16 %v99
    %v702 = vunpack.c.l.b16 %v100
    %v703 = vunpack.c.h.b16 %v100
    %v704 = vunpack.c.l.b16 %v101
    %v705 = vunpack.c.h.b16 %v101
    %v706 = vunpack.c.l.b16 %v102
    %v707 = vunpack.c.h.b16 %v102
    %v708 = vunpack.c.l.b16 %v103
    %v709 = vunpack.c.h.b16 %v103
    %v710 = vunpack.c.l.b16 %v104
    %v711 = vunpack.c.h.b16 %v104
    %v712 = vunpack.c.l.b16 %v105
    %v713 = vunpack.c.h.b16 %v105
    %v714 = vunpack.c.l.b16 %v106
    %v715 = vunpack.c.h.b16 %v106
    %v716 = vunpack.c.l.b16 %v107
    %v717 = vunpack.c.h.b16 %v107
    %v718 = vunpack.c.l.b16 %v108
    %v719 = vunpack.c.h.b16 %v108
    %v720 = vunpack.c.l.b16 %v109
    %v721 = vunpack.c.h.b16 %v109
    %v722 = vunpack.c.l.b16 %v110
    %v723 = vunpack.c.h.b16 %v110
    %v724 = vunpack.c.l.b16 %v111
    %v725 = vunpack.c.h.b16 %v111
    %v726 = vunpack.c.l.b16 %v112
    %v727 = vunpack.c.h.b16 %v112
    %v728 = vunpack.c.l.b16 %v113
    %v729 = vunpack.c.h.b16 %v113
    %v730 = vunpack.c.l.b16 %v114
    %v731 = vunpack.c.h.b16 %v114
    %v732 = vunpack.c.l.b16 %v115
    %v733 = vunpack.c.h.b16 %v115
    %v734 = vunpack.c.l.b16 %v116
    %v735 = vunpack.c.h.b16 %v116
    %v736 = vunpack.c.l.b16 %v117
    %v737 = vunpack.c.h.b16 %v117
    %v738 = vunpack.c.l.b16 %v118
    %v739 = vunpack.c.h.b16 %v118
    %v740 = vunpack.c.l.b16 %v119
    %v741 = vunpack.c.h.b16 %v119
    %v742 = vunpack.c.l.b16 %v120
    %v743 = vunpack.c.h.b16 %v120
    %v744 = vunpack.c.l.b16 %v121
    %v745 = vunpack.c.h.b16 %v121
    %v746 = vunpack.c.l.b16 %v122
    %v747 = vunpack.c.h.b16 %v122
    %v748 = vunpack.c.l.b16 %v123
    %v749 = vunpack.c.h.b16 %v123
    %v750 = vunpack.c.l.b16 %v124
    %v751 = vunpack.c.h.b16 %v124
    %v752 = vunpack.c.l.b16 %v125
    %v753 = vunpack.c.h.b16 %v125
    %v754 = vunpack.c.l.b16 %v126
    %v755 = vunpack.c.h.b16 %v126
    %v756 = vunpack.c.l.b16 %v127
    %v757 = vunpack.c.h.b16 %v127
    %v758 = vunpack.c.l.b16 %v128
    %v759 = vunpack.c.h.b16 %v128
    %v760 = vunpack.c.l.b16 %v129
    %v761 = vunpack.c.h.b16 %v129
    %v762 = vunpack.c.l.b16 %v130
    %v763 = vunpack.c.h.b16 %v130
    %v764 = vunpack.c.l.b16 %v131
    %v765 = vunpack.c.h.b16 %v131
    %v766 = vunpack.c.l.b16 %v132
    %v767 = vunpack.c.h.b16 %v132
    %v768 = vunpack.c.l.b16 %v133
    %v769 = vunpack.c.h.b16 %v133
    %v770 = vunpack.c.l.b16 %v134
    %v771 = vunpack.c.h.b16 %v134
    %v772 = vunpack.c.l.b16 %v135
    %v773 = vunpack.c.h.b16 %v135
    %v774 = vunpack.c.l.b16 %v136
    %v775 = vunpack.c.h.b16 %v136
    %v776 = vunpack.c.l.b16 %v137
    %v777 = vunpack.c.h.b16 %v137
    %v778 = vunpack.c.l.b16 %v138
    %v779 = vunpack.c.h.b16 %v138
    %v780 = vunpack.c.l.b16 %v139
    %v781 = vunpack.c.h.b16 %v139
    %v782 = vunpack.c.l.b16 %v140
    %v783 = vunpack.c.h.b16 %v140
    %v784 = vunpack.c.l.b16 %v141
    %v785 = vunpack.c.h.b16 %v141
    %v786 = vunpack.c.l.b16 %v142
    %v787 = vunpack.c.h.b16 %v142
    %v788 = vunpack.c.l.b16 %v143
    %v789 = vunpack.c.h.b16 %v143
    %v790 = vunpack.c.l.b16 %v144
    %v791 = vunpack.c.h.b16 %v144
    %v792 = vunpack.c.l.b16 %v145
    %v793 = vunpack.c.h.b16 %v145
    %v794 = vunpack.c.l.b16 %v146
    %v795 = vunpack.c.h.b16 %v146
    %v796 = vunpack.c.l.b16 %v147
    %v797 = vunpack.c.h.b16 %v147
    %v798 = vunpack.c.l.b16 %v148
    %v799 = vunpack.c.h.b16 %v148
    %v800 = vunpack.c.l.b16 %v149
    %v801 = vunpack.c.h.b16 %v149
    %v802 = vunpack.c.l.b16 %v150
    %v803 = vunpack.c.h.b16 %v150
    %v804 = vunpack.c.l.b16 %v151
    %v805 = vunpack.c.h.b16 %v151
    %v806 = vunpack.c.l.b16 %v152
    %v807 = vunpack.c.h.b16 %v152
    %v808 = vunpack.c.l.b16 %v153
    %v809 = vunpack.c.h.b16 %v153
    %v810 = vunpack.c.l.b16 %v154
    %v811 = vunpack.c.h.b16 %v154
    %v812 = vunpack.c.l.b16 %v155
    %v813 = vunpack.c.h.b16 %v155
    %v814 = vunpack.c.l.b16 %v156
    %v815 = vunpack.c.h.b16 %v156
    %v816 = vunpack.c.l.b16 %v157
    %v817 = vunpack.c.h.b16 %v157
    %v818 = vunpack.c.l.b16 %v158
    %v819 = vunpack.c.h.b16 %v158
    %v820 = vunpack.c.l.b16 %v159
    %v821 = vunpack.c.h.b16 %v159
    %v822 = vunpack.c.l.b16 %v160
    %v823 = vunpack.c.h.b16 %v160
    %v824 = vunpack.c.l.b16 %v161
    %v825 = vunpack.c.h.b16 %v161
    %v826 = vunpack.c.l.b16 %v162
    %v827 = vunpack.c.h.b16 %v162
    %v828 = vunpack.c.l.b16 %v163
    %v829 = vunpack.c.h.b16 %v163
    %v830 = vunpack.c.l.b16 %v164
    %v831 = vunpack.c.h.b16 %v164
    %v832 = vunpack.c.l.b16 %v165
    %v833 = vunpack.c.h.b16 %v165
    %v834 = vunpack.c.l.b16 %v166
    %v835 = vunpack.c.h.b16 %v166
    %v836 = vunpack.c.l.b16 %v167
    %v837 = vunpack.c.h.b16 %v167
    %v838 = vunpack.c.l.b16 %v168
    %v839 = vunpack.c.h.b16 %v168
    %v840 = vunpack.c.l.b16 %v169
    %v841 = vunpack.c.h.b16 %v169
    %v842 = vunpack.c.l.b16 %v170
    %v843 = vunpack.c.h.b16 %v170
    %v844 = vunpack.c.l.b16 %v171
    %v845 = vunpack.c.h.b16 %v171
    %v846 = vunpack.c.l.b16 %v172
    %v847 = vunpack.c.h.b16 %v172
    %v848 = vunpack.c.l.b16 %v173
    %v849 = vunpack.c.h.b16 %v173
    %v850 = vunpack.c.l.b16 %v174
    %v851 = vunpack.c.h.b16 %v174
    %v852 = vunpack.c.l.b16 %v175
    %v853 = vunpack.c.h.b16 %v175
    %v854 = vunpack.c.l.b16 %v176
    %v855 = vunpack.c.h.b16 %v176
    %v856 = vunpack.c.l.b16 %v177
    %v857 = vunpack.c.h.b16 %v177
    %v858 = vunpack.c.l.b16 %v178
    %v859 = vunpack.c.h.b16 %v178
    %v860 = vunpack.c.l.b16 %v179
    %v861 = vunpack.c.h.b16 %v179
    %v862 = vunpack.c.l.b16 %v180
    %v863 = vunpack.c.h.b16 %v180
    %v864 = vunpack.c.l.b16 %v181
    %v865 = vunpack.c.h.b16 %v181
    %v866 = vunpack.c.l.b16 %v182
    %v867 = vunpack.c.h.b16 %v182
    %v868 = vunpack.c.l.b16 %v183
    %v869 = vunpack.c.h.b16 %v183
    %v870 = vunpack.c.l.b16 %v184
    %v871 = vunpack.c.h.b16 %v184
    %v872 = vunpack.c.l.b16 %v185
    %v873 = vunpack.c.h.b16 %v185
    %v874 = vunpack.c.l.b16 %v186
    %v875 = vunpack.c.h.b16 %v186
    %v876 = vunpack.c.l.b16 %v187
    %v877 = vunpack.c.h.b16 %v187
    %v878 = vunpack.c.l.b16 %v188
    %v879 = vunpack.c.h.b16 %v188
    %v880 = vunpack.c.l.b16 %v189
    %v881 = vunpack.c.h.b16 %v189
    %v882 = vunpack.c.l.b16 %v190
    %v883 = vunpack.c.h.b16 %v190
    %v884 = vunpack.c.l.b16 %v191
    %v885 = vunpack.c.h.b16 %v191
    %v886 = vunpack.c.l.b16 %v192
    %v887 = vunpack.c.h.b16 %v192
    %v888 = vunpack.c.l.b16 %v193
    %v889 = vunpack.c.h.b16 %v193
    %v890 = vunpack.c.l.b16 %v194
    %v891 = vunpack.c.h.b16 %v194
    %v892 = vunpack.c.l.b16 %v195
    %v893 = vunpack.c.h.b16 %v195
    %v894 = vunpack.c.l.b16 %v196
    %v895 = vunpack.c.h.b16 %v196
    %v896 = vunpack.c.l.b16 %v197
    %v897 = vunpack.c.h.b16 %v197
    %v898 = vunpack.c.l.b16 %v198
    %v899 = vunpack.c.h.b16 %v198
    %v900 = vunpack.c.l.b16 %v199
    %v901 = vunpack.c.h.b16 %v199
    %v902 = vunpack.c.l.b16 %v200
    %v903 = vunpack.c.h.b16 %v200
    %v904 = vunpack.c.l.b16 %v201
    %v905 = vunpack.c.h.b16 %v201
    %v906 = vunpack.c.l.b16 %v202
    %v907 = vunpack.c.h.b16 %v202
    %v908 = vunpack.c.l.b16 %v203
    %v909 = vunpack.c.h.b16 %v203
    %v910 = vunpack.c.l.b16 %v204
    %v911 = vunpack.c.h.b16 %v204
    %v912 = vunpack.c.l.b16 %v205
    %v913 = vunpack.c.h.b16 %v205
    %v914 = vunpack.c.l.b16 %v206
    %v915 = vunpack.c.h.b16 %v206
    %v916 = vunpack.c.l.b16 %v207
    %v917 = vunpack.c.h.b16 %v207
    %v918 = vunpack.c.l.b16 %v208
    %v919 = vunpack.c.h.b16 %v208
    %v920 = vunpack.c.l.b16 %v209
    %v921 = vunpack.c.h.b16 %v209
    %v922 = vunpack.c.l.b16 %v210
    %v923 = vunpack.c.h.b16 %v210
    %v924 = vunpack.c.l.b16 %v211
    %v925 = vunpack.c.h.b16 %v211
    %v926 = vunpack.c.l.b16 %v212
    %v927 = vunpack.c.h.b16 %v212
    %v928 = vunpack.c.l.b16 %v213
    %v929 = vunpack.c.h.b16 %v213
    %v930 = vunpack.c.l.b16 %v214
    %v931 = vunpack.c.h.b16 %v214
    %v932 = vunpack.c.l.b16 %v215
    %v933 = vunpack.c.h.b16 %v215
    %v934 = vunpack.c.l.b16 %v216
    %v935 = vunpack.c.h.b16 %v216
    %v936 = vunpack.c.l.b16 %v217
    %v937 = vunpack.c.h.b16 %v217
    %v938 = vunpack.c.l.b16 %v218
    %v939 = vunpack.c.h.b16 %v218
    %v940 = vunpack.c.l.b16 %v219
    %v941 = vunpack.c.h.b16 %v219
    %v942 = vunpack.c.l.b16 %v220
    %v943 = vunpack.c.h.b16 %v220
    %v944 = vunpack.c.l.b16 %v221
    %v945 = vunpack.c.h.b16 %v221
    %v946 = vunpack.c.l.b16 %v222
    %v947 = vunpack.c.h.b16 %v222
    %v948 = vunpack.c.l.b16 %v223
    %v949 = vunpack.c.h.b16 %v223
    %v950 = vunpack.c.l.b16 %v224
    %v951 = vunpack.c.h.b16 %v224
    %v952 = vunpack.c.l.b16 %v225
    %v953 = vunpack.c.h.b16 %v225
    %v954 = vunpack.c.l.b16 %v226
    %v955 = vunpack.c.h.b16 %v226
    %v956 = vunpack.c.l.b16 %v227
    %v957 = vunpack.c.h.b16 %v227
    %v958 = vunpack.c.l.b16 %v228
    %v959 = vunpack.c.h.b16 %v228
    %v960 = vunpack.c.l.b16 %v229
    %v961 = vunpack.c.h.b16 %v229
    %v962 = vunpack.c.l.b16 %v230
    %v963 = vunpack.c.h.b16 %v230
    %v964 = vunpack.c.l.b16 %v231
    %v965 = vunpack.c.h.b16 %v231
    %v966 = vunpack.c.l.b16 %v232
    %v967 = vunpack.c.h.b16 %v232
    %v968 = vunpack.c.l.b16 %v233
    %v969 = vunpack.c.h.b16 %v233
    %v970 = vunpack.c.l.b16 %v234
    %v971 = vunpack.c.h.b16 %v234
    %v972 = vunpack.c.l.b16 %v235
    %v973 = vunpack.c.h.b16 %v235
    %v974 = vunpack.c.l.b16 %v236
    %v975 = vunpack.c.h.b16 %v236
    %v976 = vunpack.c.l.b16 %v237
    %v977 = vunpack.c.h.b16 %v237
    %v978 = vunpack.c.l.b16 %v238
    %v979 = vunpack.c.h.b16 %v238
    %v980 = vunpack.c.l.b16 %v239
    %v981 = vunpack.c.h.b16 %v239
    %v982 = vunpack.c.l.b16 %v240
    %v983 = vunpack.c.h.b16 %v240
    %v984 = vunpack.c.l.b16 %v241
    %v985 = vunpack.c.h.b16 %v241
    %v986 = vunpack.c.l.b16 %v242
    %v987 = vunpack.c.h.b16 %v242
    %v988 = vunpack.c.l.b16 %v243
    %v989 = vunpack.c.h.b16 %v243
    %v990 = vunpack.c.l.b16 %v244
    %v991 = vunpack.c.h.b16 %v244
    %v992 = vunpack.c.l.b16 %v245
    %v993 = vunpack.c.h.b16 %v245
    %v994 = vunpack.c.l.b16 %v246
    %v995 = vunpack.c.h.b16 %v246
    %v996 = vunpack.c.l.b16 %v247
    %v997 = vunpack.c.h.b16 %v247
    %v998 = vunpack.c.l.b16 %v248
    %v999 = vunpack.c.h.b16 %v248
    %v1000 = vunpack.c.l.b16 %v249
    %v1001 = vunpack.c.h.b16 %v249
    %v1002 = vunpack.c.l.b16 %v250
    %v1003 = vunpack.c.h.b16 %v250
    %v1004 = vunpack.c.l.b16 %v251
    %v1005 = vunpack.c.h.b16 %v251
    %v1006 = vunpack.c.l.b16 %v252
    %v1007 = vunpack.c.h.b16 %v252
    %v1008 = vunpack.c.l.b16 %v253
    %v1009 = vunpack.c.h.b16 %v253
    %v1010 = vunpack.c.l.b16 %v254
    %v1011 = vunpack.c.h.b16 %v254
    %v1012 = vunpack.c.l.b16 %v255
    %v1013 = vunpack.c.h.b16 %v255
    %v1014 = vunpack.c.l.b16 %v256
    %v1015 = vunpack.c.h.b16 %v256
    %v1016 = vunpack.c.l.b16 %v257
    %v1017 = vunpack.c.h.b16 %v257
    %v1018 = vunpack.c.l.b16 %v258
    %v1019 = vunpack.c.h.b16 %v258
    %v1020 = vunpack.c.l.b16 %v259
    %v1021 = vunpack.c.h.b16 %v259
    %v1022 = vunpack.c.l.b16 %v260
    %v1023 = vunpack.c.h.b16 %v260
    %v1024 = vunpack.c.l.b16 %v261
    %v1025 = vunpack.c.h.b16 %v261
    %v1026 = vunpack.c.l.b16 %v262
    %v1027 = vunpack.c.h.b16 %v262
    %v1028 = vunpack.c.l.b16 %v263
    %v1029 = vunpack.c.h.b16 %v263
    %v1030 = vunpack.c.l.b16 %v264
    %v1031 = vunpack.c.h.b16 %v264
    %v1032 = vunpack.c.l.b16 %v265
    %v1033 = vunpack.c.h.b16 %v265
    %v1034 = vunpack.c.l.b16 %v266
    %v1035 = vunpack.c.h.b16 %v266
    %v1036 = vunpack.c.l.b16 %v267
    %v1037 = vunpack.c.h.b16 %v267
    %v1038 = vunpack.c.l.b16 %v268
    %v1039 = vunpack.c.h.b16 %v268
    %v1040 = vunpack.c.l.b16 %v269
    %v1041 = vunpack.c.h.b16 %v269
    %v1042 = vunpack.c.l.b16 %v270
    %v1043 = vunpack.c.h.b16 %v270
    %v1044 = vunpack.c.l.b16 %v271
    %v1045 = vunpack.c.h.b16 %v271
    %v1046 = vunpack.c.l.b16 %v272
    %v1047 = vunpack.c.h.b16 %v272
    %v1048 = vunpack.c.l.b16 %v273
    %v1049 = vunpack.c.h.b16 %v273
    %v1050 = vunpack.c.l.b16 %v274
    %v1051 = vunpack.c.h.b16 %v274
    %v1052 = vunpack.c.l.b16 %v275
    %v1053 = vunpack.c.h.b16 %v275
    %v1054 = vunpack.c.l.b16 %v276
    %v1055 = vunpack.c.h.b16 %v276
    %v1056 = vunpack.c.l.b16 %v277
    %v1057 = vunpack.c.h.b16 %v277
    %v1058 = vunpack.c.l.b16 %v278
    %v1059 = vunpack.c.h.b16 %v278
    %v1060 = vunpack.c.l.b16 %v279
    %v1061 = vunpack.c.h.b16 %v279
    %v1062 = vunpack.c.l.b16 %v280
    %v1063 = vunpack.c.h.b16 %v280
    %v1064 = vunpack.c.l.b16 %v281
    %v1065 = vunpack.c.h.b16 %v281
    %v1066 = vunpack.c.l.b16 %v282
    %v1067 = vunpack.c.h.b16 %v282
    %v1068 = vunpack.c.l.b16 %v283
    %v1069 = vunpack.c.h.b16 %v283
    %v1070 = vunpack.c.l.b16 %v284
    %v1071 = vunpack.c.h.b16 %v284
    %v1072 = vunpack.c.l.b16 %v285
    %v1073 = vunpack.c.h.b16 %v285
    %v1074 = vunpack.c.l.b16 %v286
    %v1075 = vunpack.c.h.b16 %v286
    %v1076 = vunpack.c.l.b16 %v287
    %v1077 = vunpack.c.h.b16 %v287
    %v1078 = vunpack.c.l.b16 %v288
    %v1079 = vunpack.c.h.b16 %v288
    %v1080 = vunpack.c.l.b16 %v289
    %v1081 = vunpack.c.h.b16 %v289
    %v1082 = vunpack.c.l.b16 %v290
    %v1083 = vunpack.c.h.b16 %v290
    %v1084 = vunpack.c.l.b16 %v291
    %v1085 = vunpack.c.h.b16 %v291
    %v1086 = vunpack.c.l.b16 %v292
    %v1087 = vunpack.c.h.b16 %v292
    %v1088 = vunpack.c.l.b16 %v293
    %v1089 = vunpack.c.h.b16 %v293
    %v1090 = vunpack.c.l.b16 %v294
    %v1091 = vunpack.c.h.b16 %v294
    %v1092 = vunpack.c.l.b16 %v295
    %v1093 = vunpack.c.h.b16 %v295
    %v1094 = vunpack.c.l.b16 %v296
    %v1095 = vunpack.c.h.b16 %v296
    %v1096 = vunpack.c.l.b16 %v297
    %v1097 = vunpack.c.h.b16 %v297
    %v1098 = vunpack.c.l.b16 %v298
    %v1099 = vunpack.c.h.b16 %v298
    %v1100 = vunpack.c.l.b16 %v299
    %v1101 = vunpack.c.h.b16 %v299
    %v1102 = vunpack.c.l.b16 %v300
    %v1103 = vunpack.c.h.b16 %v300
    %v1104 = vunpack.c.l.b16 %v301
    %v1105 = vunpack.c.h.b16 %v301
    %v1106 = vunpack.c.l.b16 %v302
    %v1107 = vunpack.c.h.b16 %v302
    %v1108 = vunpack.c.l.b16 %v303
    %v1109 = vunpack.c.h.b16 %v303
    %v1110 = vunpack.c.l.b16 %v304
    %v1111 = vunpack.c.h.b16 %v304
    %v1112 = vunpack.c.l.b16 %v305
    %v1113 = vunpack.c.h.b16 %v305
    %v1114 = vunpack.c.l.b16 %v306
    %v1115 = vunpack.c.h.b16 %v306
    %v1116 = vunpack.c.l.b16 %v307
    %v1117 = vunpack.c.h.b16 %v307
    %v1118 = vunpack.c.l.b16 %v308
    %v1119 = vunpack.c.h.b16 %v308
    %v1120 = vunpack.c.l.b16 %v309
    %v1121 = vunpack.c.h.b16 %v309
    %v1122 = vunpack.c.l.b16 %v310
    %v1123 = vunpack.c.h.b16 %v310
    %v1124 = vunpack.c.l.b16 %v311
    %v1125 = vunpack.c.h.b16 %v311
    %v1126 = vunpack.c.l.b16 %v312
    %v1127 = vunpack.c.h.b16 %v312
    %v1128 = vunpack.c.l.b16 %v313
    %v1129 = vunpack.c.h.b16 %v313
    %v1130 = vunpack.c.l.b16 %v314
    %v1131 = vunpack.c.h.b16 %v314
    %v1132 = vunpack.c.l.b16 %v315
    %v1133 = vunpack.c.h.b16 %v315
    %v1134 = vunpack.c.l.b16 %v316
    %v1135 = vunpack.c.h.b16 %v316
    %v1136 = vunpack.c.l.b16 %v317
    %v1137 = vunpack.c.h.b16 %v317
    %v1138 = vunpack.c.l.b16 %v318
    %v1139 = vunpack.c.h.b16 %v318
    %v1140 = vunpack.c.l.b16 %v319
    %v1141 = vunpack.c.h.b16 %v319
    %v1142 = vunpack.c.l.b16 %v320
    %v1143 = vunpack.c.h.b16 %v320
    %v1144 = vunpack.c.l.b16 %v321
    %v1145 = vunpack.c.h.b16 %v321
    %v1146 = vunpack.c.l.b16 %v322
    %v1147 = vunpack.c.h.b16 %v322
    %v1148 = vunpack.c.l.b16 %v323
    %v1149 = vunpack.c.h.b16 %v323
    %v1150 = vunpack.c.l.b16 %v324
    %v1151 = vunpack.c.h.b16 %v324
    %v1152 = vunpack.c.l.b16 %v325
    %v1153 = vunpack.c.h.b16 %v325
    %v1154 = vunpack.c.l.b16 %v326
    %v1155 = vunpack.c.h.b16 %v326
    %v1156 = vunpack.c.l.b16 %v327
    %v1157 = vunpack.c.h.b16 %v327
    %v1158 = vunpack.c.l.b16 %v328
    %v1159 = vunpack.c.h.b16 %v328
    %v1160 = vunpack.c.l.b16 %v329
    %v1161 = vunpack.c.h.b16 %v329
    %v1162 = vunpack.c.l.b16 %v330
    %v1163 = vunpack.c.h.b16 %v330
    %v1164 = vunpack.c.l.b16 %v331
    %v1165 = vunpack.c.h.b16 %v331
    %v1166 = vunpack.c.l.b16 %v332
    %v1167 = vunpack.c.h.b16 %v332
    %v1168 = vunpack.c.l.b16 %v333
    %v1169 = vunpack.c.h.b16 %v333
    %v1170 = vunpack.c.l.b16 %v334
    %v1171 = vunpack.c.h.b16 %v334
    %v1172 = vunpack.c.l.b16 %v335
    %v1173 = vunpack.c.h.b16 %v335
    %v1174 = vunpack.c.l.b16 %v336
    %v1175 = vunpack.c.h.b16 %v336
    %v1176 = vunpack.c.l.b16 %v337
    %v1177 = vunpack.c.h.b16 %v337
    %v1178 = vunpack.c.l.b16 %v338
    %v1179 = vunpack.c.h.b16 %v338
    %v1180 = vunpack.c.l.b16 %v339
    %v1181 = vunpack.c.h.b16 %v339
    %v1182 = vunpack.c.l.b16 %v340
    %v1183 = vunpack.c.h.b16 %v340
    %v1184 = vunpack.c.l.b16 %v341
    %v1185 = vunpack.c.h.b16 %v341
    %v1186 = vunpack.c.l.b16 %v342
    %v1187 = vunpack.c.h.b16 %v342
    %v1188 = vunpack.c.l.b16 %v343
    %v1189 = vunpack.c.h.b16 %v343
    %v1190 = vunpack.c.l.b16 %v344
    %v1191 = vunpack.c.h.b16 %v344
    %v1192 = vunpack.c.l.b16 %v345
    %v1193 = vunpack.c.h.b16 %v345
    %v1194 = vunpack.c.l.b16 %v346
    %v1195 = vunpack.c.h.b16 %v346
    %v1196 = vunpack.c.l.b16 %v347
    %v1197 = vunpack.c.h.b16 %v347
    %v1198 = vunpack.c.l.b16 %v348
    %v1199 = vunpack.c.h.b16 %v348
    %v1200 = vunpack.c.l.b16 %v349
    %v1201 = vunpack.c.h.b16 %v349
    %v1202 = vunpack.c.l.b16 %v350
    %v1203 = vunpack.c.h.b16 %v350
    %v1204 = vunpack.c.l.b16 %v351
    %v1205 = vunpack.c.h.b16 %v351
    %v1206 = vunpack.c.l.b16 %v352
    %v1207 = vunpack.c.h.b16 %v352
    %v1208 = vunpack.c.l.b16 %v353
    %v1209 = vunpack.c.h.b16 %v353
    %v1210 = vunpack.c.l.b16 %v354
    %v1211 = vunpack.c.h.b16 %v354
    %v1212 = vpack.c.b16 %v716, %v700
    %v1213 = vpack.c.b16 %v717, %v701
    %v1214 = vpack.c.b16 %v718, %v702
    %v1215 = vpack.c.b16 %v719, %v703
    %v1216 = vpack.c.b16 %v720, %v704
    %v1217 = vpack.c.b16 %v721, %v705
    %v1218 = vpack.c.b16 %v722, %v706
    %v1219 = vpack.c.b16 %v723, %v707
    %v1220 = vpack.c.b16 %v724, %v708
    %v1221 = vpack.c.b16 %v725, %v709
    %v1222 = vpack.c.b16 %v726, %v710
    %v1223 = vpack.c.b16 %v727, %v711
    %v1224 = vpack.c.b16 %v728, %v712
    %v1225 = vpack.c.b16 %v729, %v713
    %v1226 = vpack.c.b16 %v730, %v714
    %v1227 = vpack.c.b16 %v731, %v715
    %v1228 = vpack.c.b16 %v748, %v732
    %v1229 = vpack.c.b16 %v749, %v733
    %v1230 = vpack.c.b16 %v750, %v734
    %v1231 = vpack.c.b16 %v751, %v735
    %v1232 = vpack.c.b16 %v752, %v736
    %v1233 = vpack.c.b16 %v753, %v737
    %v1234 = vpack.c.b16 %v754, %v738
    %v1235 = vpack.c.b16 %v755, %v739
    %v1236 = vpack.c.b16 %v756, %v740
    %v1237 = vpack.c.b16 %v757, %v741
    %v1238 = vpack.c.b16 %v758, %v742
    %v1239 = vpack.c.b16 %v759, %v743
    %v1240 = vpack.c.b16 %v760, %v744
    %v1241 = vpack.c.b16 %v761, %v745
    %v1242 = vpack.c.b16 %v762, %v746
    %v1243 = vpack.c.b16 %v763, %v747
    %v1244 = vpack.c.b16 %v780, %v764
    %v1245 = vpack.c.b16 %v781, %v765
    %v1246 = vpack.c.b16 %v782, %v766
    %v1247 = vpack.c.b16 %v783, %v767
    %v1248 = vpack.c.b16 %v784, %v768
    %v1249 = vpack.c.b16 %v785, %v769
    %v1250 = vpack.c.b16 %v786, %v770
    %v1251 = vpack.c.b16 %v787, %v771
    %v1252 = vpack.c.b16 %v788, %v772
    %v1253 = vpack.c.b16 %v789, %v773
    %v1254 = vpack.c.b16 %v790, %v774
    %v1255 = vpack.c.b16 %v791, %v775
    %v1256 = vpack.c.b16 %v792, %v776
    %v1257 = vpack.c.b16 %v793, %v777
    %v1258 = vpack.c.b16 %v794, %v778
    %v1259 = vpack.c.b16 %v795, %v779
    %v1260 = vpack.c.b16 %v812, %v796
    %v1261 = vpack.c.b16 %v813, %v797
    %v1262 = vpack.c.b16 %v814, %v798
    %v1263 = vpack.c.b16 %v815, %v799
    %v1264 = vpack.c.b16 %v816, %v800
    %v1265 = vpack.c.b16 %v817, %v801
    %v1266 = vpack.c.b16 %v818, %v802
    %v1267 = vpack.c.b16 %v819, %v803
    %v1268 = vpack.c.b16 %v820, %v804
    %v1269 = vpack.c.b16 %v821, %v805
    %v1270 = vpack.c.b16 %v822, %v806
    %v1271 = vpack.c.b16 %v823, %v807
    %v1272 = vpack.c.b16 %v824, %v808
    %v1273 = vpack.c.b16 %v825, %v809
    %v1274 = vpack.c.b16 %v826, %v810
    %v1275 = vpack.c.b16 %v827, %v811
    %v1276 = vpack.c.b16 %v844, %v828
    %v1277 = vpack.c.b16 %v845, %v829
    %v1278 = vpack.c.b16 %v846, %v830
    %v1279 = vpack.c.b16 %v847, %v831
    %v1280 = vpack.c.b16 %v848, %v832
    %v1281 = vpack.c.b16 %v849, %v833
    %v1282 = vpack.c.b16 %v850, %v834
    %v1283 = vpack.c.b16 %v851, %v835
    %v1284 = vpack.c.b16 %v852, %v836
    %v1285 = vpack.c.b16 %v853, %v837
    %v1286 = vpack.c.b16 %v854, %v838
    %v1287 = vpack.c.b16 %v855, %v839
    %v1288 = vpack.c.b16 %v856, %v840
    %v1289 = vpack.c.b16 %v857, %v841
    %v1290 = vpack.c.b16 %v858, %v842
    %v1291 = vpack.c.b16 %v859, %v843
    %v1292 = vpack.c.b16 %v876, %v860
    %v1293 = vpack.c.b16 %v877, %v861
    %v1294 = vpack.c.b16 %v878, %v862
    %v1295 = vpack.c.b16 %v879, %v863
    %v1296 = vpack.c.b16 %v880, %v864
    %v1297 = vpack.c.b16 %v881, %v865
    %v1298 = vpack.c.b16 %v882, %v866
    %v1299 = vpack.c.b16 %v883, %v867
    %v1300 = vpack.c.b16 %v884, %v868
    %v1301 = vpack.c.b16 %v885, %v869
    %v1302 = vpack.c.b16 %v886, %v870
    %v1303 = vpack.c.b16 %v887, %v871
    %v1304 = vpack.c.b16 %v888, %v872
    %v1305 = vpack.c.b16 %v889, %v873
    %v1306 = vpack.c.b16 %v890, %v874
    %v1307 = vpack.c.b16 %v891, %v875
    %v1308 = vpack.c.b16 %v908, %v892
    %v1309 = vpack.c.b16 %v909, %v893
    %v1310 = vpack.c.b16 %v910, %v894
    %v1311 = vpack.c.b16 %v911, %v895
    %v1312 = vpack.c.b16 %v912, %v896
    %v1313 = vpack.c.b16 %v913, %v897
    %v1314 = vpack.c.b16 %v914, %v898
    %v1315 = vpack.c.b16 %v915, %v899
    %v1316 = vpack.c.b16 %v916, %v900
    %v1317 = vpack.c.b16 %v917, %v901
    %v1318 = vpack.c.b16 %v918, %v902
    %v1319 = vpack.c.b16 %v919, %v903
    %v1320 = vpack.c.b16 %v920, %v904
    %v1321 = vpack.c.b16 %v921, %v905
    %v1322 = vpack.c.b16 %v922, %v906
    %v1323 = vpack.c.b16 %v923, %v907
    %v1324 = vpack.c.b16 %v940, %v924
    %v1325 = vpack.c.b16 %v941, %v925
    %v1326 = vpack.c.b16 %v942, %v926
    %v1327 = vpack.c.b16 %v943, %v927
    %v1328 = vpack.c.b16 %v944, %v928
    %v1329 = vpack.c.b16 %v945, %v929
    %v1330 = vpack.c.b16 %v946, %v930
    %v1331 = vpack.c.b16 %v947, %v931
    %v1332 = vpack.c.b16 %v948, %v932
    %v1333 = vpack.c.b16 %v949, %v933
    %v1334 = vpack.c.b16 %v950, %v934
    %v1335 = vpack.c.b16 %v951, %v935
    %v1336 = vpack.c.b16 %v952, %v936
    %v1337 = vpack.c.b16 %v953, %v937
    %v1338 = vpack.c.b16 %v954, %v938
    %v1339 = vpack.c.b16 %v955, %v939
    %v1340 = vpack.c.b16 %v972, %v956
    %v1341 = vpack.c.b16 %v973, %v957
    %v1342 = vpack.c.b16 %v974, %v958
    %v1343 = vpack.c.b16 %v975, %v959
    %v1344 = vpack.c.b16 %v976, %v960
    %v1345 = vpack.c.b16 %v977, %v961
    %v1346 = vpack.c.b16 %v978, %v962
    %v1347 = vpack.c.b16 %v979, %v963
    %v1348 = vpack.c.b16 %v980, %v964
    %v1349 = vpack.c.b16 %v981, %v965
    %v1350 = vpack.c.b16 %v982, %v966
    %v1351 = vpack.c.b16 %v983, %v967
    %v1352 = vpack.c.b16 %v984, %v968
    %v1353 = vpack.c.b16 %v985, %v969
    %v1354 = vpack.c.b16 %v986, %v970
    %v1355 = vpack.c.b16 %v987, %v971
    %v1356 = vpack.c.b16 %v1004, %v988
    %v1357 = vpack.c.b16 %v1005, %v989
    %v1358 = vpack.c.b16 %v1006, %v990
    %v1359 = vpack.c.b16 %v1007, %v991
    %v1360 = vpack.c.b16 %v1008, %v992
    %v1361 = vpack.c.b16 %v1009, %v993
    %v1362 = vpack.c.b16 %v1010, %v994
    %v1363 = vpack.c.b16 %v1011, %v995
    %v1364 = vpack.c.b16 %v1012, %v996
    %v1365 = vpack.c.b16 %v1013, %v997
    %v1366 = vpack.c.b16 %v1014, %v998
    %v1367 = vpack.c.b16 %v1015, %v999
    %v1368 = vpack.c.b16 %v1016, %v1000
    %v1369 = vpack.c.b16 %v1017, %v1001
    %v1370 = vpack.c.b16 %v1018, %v1002
    %v1371 = vpack.c.b16 %v1019, %v1003
    %v1372 = vpack.c.b16 %v1036, %v1020
    %v1373 = vpack.c.b16 %v1037, %v1021
    %v1374 = vpack.c.b16 %v1038, %v1022
    %v1375 = vpack.c.b16 %v1039, %v1023
    %v1376 = vpack.c.b16 %v1040, %v1024
    %v1377 = vpack.c.b16 %v1041, %v1025
    %v1378 = vpack.c.b16 %v1042, %v1026
    %v1379 = vpack.c.b16 %v1043, %v1027
    %v1380 = vpack.c.b16 %v1044, %v1028
    %v1381 = vpack.c.b16 %v1045, %v1029
    %v1382 = vpack.c.b16 %v1046, %v1030
    %v1383 = vpack.c.b16 %v1047, %v1031
    %v1384 = vpack.c.b16 %v1048, %v1032
    %v1385 = vpack.c.b16 %v1049, %v1033
    %v1386 = vpack.c.b16 %v1050, %v1034
    %v1387 = vpack.c.b16 %v1051, %v1035
    %v1388 = vpack.c.b16 %v1068, %v1052
    %v1389 = vpack.c.b16 %v1069, %v1053
    %v1390 = vpack.c.b16 %v1070, %v1054
    %v1391 = vpack.c.b16 %v1071, %v1055
    %v1392 = vpack.c.b16 %v1072, %v1056
    %v1393 = vpack.c.b16 %v1073, %v1057
    %v1394 = vpack.c.b16 %v1074, %v1058
    %v1395 = vpack.c.b16 %v1075, %v1059
    %v1396 = vpack.c.b16 %v1076, %v1060
    %v1397 = vpack.c.b16 %v1077, %v1061
    %v1398 = vpack.c.b16 %v1078, %v1062
    %v1399 = vpack.c.b16 %v1079, %v1063
    %v1400 = vpack.c.b16 %v1080, %v1064
    %v1401 = vpack.c.b16 %v1081, %v1065
    %v1402 = vpack.c.b16 %v1082, %v1066
    %v1403 = vpack.c.b16 %v1083, %v1067
    %v1404 = vpack.c.b16 %v1100, %v1084
    %v1405 = vpack.c.b16 %v1101, %v1085
    %v1406 = vpack.c.b16 %v1102, %v1086
    %v1407 = vpack.c.b16 %v1103, %v1087
    %v1408 = vpack.c.b16 %v1104, %v1088
    %v1409 = vpack.c.b16 %v1105, %v1089
    %v1410 = vpack.c.b16 %v1106, %v1090
    %v1411 = vpack.c.b16 %v1107, %v1091
    %v1412 = vpack.c.b16 %v1108, %v1092
    %v1413 = vpack.c.b16 %v1109, %v1093
    %v1414 = vpack.c.b16 %v1110, %v1094
    %v1415 = vpack.c.b16 %v1111, %v1095
    %v1416 = vpack.c.b16 %v1112, %v1096
    %v1417 = vpack.c.b16 %v1113, %v1097
    %v1418 = vpack.c.b16 %v1114, %v1098
    %v1419 = vpack.c.b16 %v1115, %v1099
    %v1420 = vpack.c.b16 %v1132, %v1116
    %v1421 = vpack.c.b16 %v1133, %v1117
    %v1422 = vpack.c.b16 %v1134, %v1118
    %v1423 = vpack.c.b16 %v1135, %v1119
    %v1424 = vpack.c.b16 %v1136, %v1120
    %v1425 = vpack.c.b16 %v1137, %v1121
    %v1426 = vpack.c.b16 %v1138, %v1122
    %v1427 = vpack.c.b16 %v1139, %v1123
    %v1428 = vpack.c.b16 %v1140, %v1124
    %v1429 = vpack.c.b16 %v1141, %v1125
    %v1430 = vpack.c.b16 %v1142, %v1126
    %v1431 = vpack.c.b16 %v1143, %v1127
    %v1432 = vpack.c.b16 %v1144, %v1128
    %v1433 = vpack.c.b16 %v1145, %v1129
    %v1434 = vpack.c.b16 %v1146, %v1130
    %v1435 = vpack.c.b16 %v1147, %v1131
    %v1436 = vpack.c.b16 %v1164, %v1148
    %v1437 = vpack.c.b16 %v1165, %v1149
    %v1438 = vpack.c.b16 %v1166, %v1150
    %v1439 = vpack.c.b16 %v1167, %v1151
    %v1440 = vpack.c.b16 %v1168, %v1152
    %v1441 = vpack.c.b16 %v1169, %v1153
    %v1442 = vpack.c.b16 %v1170, %v1154
    %v1443 = vpack.c.b16 %v1171, %v1155
    %v1444 = vpack.c.b16 %v1172, %v1156
    %v1445 = vpack.c.b16 %v1173, %v1157
    %v1446 = vpack.c.b16 %v1174, %v1158
    %v1447 = vpack.c.b16 %v1175, %v1159
    %v1448 = vpack.c.b16 %v1176, %v1160
    %v1449 = vpack.c.b16 %v1177, %v1161
    %v1450 = vpack.c.b16 %v1178, %v1162
    %v1451 = vpack.c.b16 %v1179, %v1163
    %v1452 = vpack.c.b16 %v1196, %v1180
    %v1453 = vpack.c.b16 %v1197, %v1181
    %v1454 = vpack.c.b16 %v1198, %v1182
    %v1455 = vpack.c.b16 %v1199, %v1183
    %v1456 = vpack.c.b16 %v1200, %v1184
    %v1457 = vpack.c.b16 %v1201, %v1185
    %v1458 = vpack.c.b16 %v1202, %v1186
    %v1459 = vpack.c.b16 %v1203, %v1187
    %v1460 = vpack.c.b16 %v1204, %v1188
    %v1461 = vpack.c.b16 %v1205, %v1189
    %v1462 = vpack.c.b16 %v1206, %v1190
    %v1463 = vpack.c.b16 %v1207, %v1191
    %v1464 = vpack.c.b16 %v1208, %v1192
    %v1465 = vpack.c.b16 %v1209, %v1193
    %v1466 = vpack.c.b16 %v1210, %v1194
    %v1467 = vpack.c.b16 %v1211, %v1195
    %1724 = vmatprep.subr.bf16.mxu0 %v1325
    %1725 = vmatpush1.bf16.msra.mxu0 %v1324
    %1726 = vmatprep.subr.bf16.mxu0 %v1309
    %1727 = vmatpush1.bf16.msra.mxu0 %v1308
    %1728 = vmatprep.subr.bf16.mxu0 %v1293
    %1729 = vmatpush1.bf16.msra.mxu0 %v1292
    %1730 = vmatprep.subr.bf16.mxu0 %v1277
    %1731 = vmatpush1.bf16.msra.mxu0 %v1276
    %1732 = vmatprep.subr.bf16.mxu0 %v1261
    %1733 = vmatpush1.bf16.msra.mxu0 %v1260
    %1734 = vmatprep.subr.bf16.mxu0 %v1245
    %1735 = vmatpush1.bf16.msra.mxu0 %v1244
    %1736 = vmatprep.subr.bf16.mxu0 %v1229
    %1737 = vmatpush1.bf16.msra.mxu0 %v1228
    %1738 = vmatprep.subr.bf16.mxu0 %v1213
    %1739 = vmatpush1.bf16.msra.mxu0 %v1212
    %1740 = vmatprep.subr.bf16.mxu0 %v1453
    %1741 = vmatpush2.bf16.msra.mxu0 %v1452
    %1742 = vmatprep.subr.bf16.mxu0 %v1437
    %1743 = vmatpush2.bf16.msra.mxu0 %v1436
    %1744 = vmatprep.subr.bf16.mxu0 %v1421
    %1745 = vmatpush2.bf16.msra.mxu0 %v1420
    %1746 = vmatprep.subr.bf16.mxu0 %v1405
    %1747 = vmatpush2.bf16.msra.mxu0 %v1404
    %1748 = vmatprep.subr.bf16.mxu0 %v1389
    %1749 = vmatpush2.bf16.msra.mxu0 %v1388
    %1750 = vmatprep.subr.bf16.mxu0 %v1373
    %1751 = vmatpush2.bf16.msra.mxu0 %v1372
    %1752 = vmatprep.subr.bf16.mxu0 %v1357
    %1753 = vmatpush2.bf16.msra.mxu0 %v1356
    %1754 = vmatprep.subr.bf16.mxu0 %v1341
    %1755 = vmatpush2.bf16.msra.mxu0 %v1340
    %1756 = vmatprep.mubr.bf16.mxu0 %v98
    %1757 = vmatmul.mubr.bf16.gmra.mxu0 %v97
    %v1758 = vpop.f32.mrf.mxu0
    %v1759 = vadd.f32 %v367, %v1758
    %v1760 = vpop.f32.mrf.mxu0
    %v1761 = vadd.f32 %v371, %v1760
    %v1762 = vpop.f32.mrf.mxu0
    %v1763 = vpop.f32.mrf.mxu0
    %1764 = vdwg.mxu0
    %1765 = vmatprep.subr.bf16.mxu0 %v1327
    %1766 = vmatpush1.bf16.msra.mxu0 %v1326
    %1767 = vmatprep.subr.bf16.mxu0 %v1311
    %1768 = vmatpush1.bf16.msra.mxu0 %v1310
    %1769 = vmatprep.subr.bf16.mxu0 %v1295
    %1770 = vmatpush1.bf16.msra.mxu0 %v1294
    %1771 = vmatprep.subr.bf16.mxu0 %v1279
    %1772 = vmatpush1.bf16.msra.mxu0 %v1278
    %1773 = vmatprep.subr.bf16.mxu0 %v1263
    %1774 = vmatpush1.bf16.msra.mxu0 %v1262
    %1775 = vmatprep.subr.bf16.mxu0 %v1247
    %1776 = vmatpush1.bf16.msra.mxu0 %v1246
    %1777 = vmatprep.subr.bf16.mxu0 %v1231
    %1778 = vmatpush1.bf16.msra.mxu0 %v1230
    %1779 = vmatprep.subr.bf16.mxu0 %v1215
    %1780 = vmatpush1.bf16.msra.mxu0 %v1214
    %1781 = vmatprep.subr.bf16.mxu0 %v1455
    %1782 = vmatpush2.bf16.msra.mxu0 %v1454
    %1783 = vmatprep.subr.bf16.mxu0 %v1439
    %1784 = vmatpush2.bf16.msra.mxu0 %v1438
    %1785 = vmatprep.subr.bf16.mxu0 %v1423
    %1786 = vmatpush2.bf16.msra.mxu0 %v1422
    %1787 = vmatprep.subr.bf16.mxu0 %v1407
    %1788 = vmatpush2.bf16.msra.mxu0 %v1406
    %1789 = vmatprep.subr.bf16.mxu0 %v1391
    %1790 = vmatpush2.bf16.msra.mxu0 %v1390
    %1791 = vmatprep.subr.bf16.mxu0 %v1375
    %1792 = vmatpush2.bf16.msra.mxu0 %v1374
    %1793 = vmatprep.subr.bf16.mxu0 %v1359
    %1794 = vmatpush2.bf16.msra.mxu0 %v1358
    %1795 = vmatprep.subr.bf16.mxu0 %v1343
    %1796 = vmatpush2.bf16.msra.mxu0 %v1342
    %1797 = vmatprep.mubr.bf16.mxu0 %v98
    %1798 = vmatmul.mubr.bf16.gmra.mxu0 %v97
    %v1799 = vpop.f32.mrf.mxu0
    %v1800 = vadd.f32 %v375, %v1799
    %v1801 = vpop.f32.mrf.mxu0
    %v1802 = vadd.f32 %v379, %v1801
    %v1803 = vpop.f32.mrf.mxu0
    %v1804 = vpop.f32.mrf.mxu0
    %1805 = vdwg.mxu0
    %1806 = vmatprep.subr.bf16.mxu0 %v1329
    %1807 = vmatpush1.bf16.msra.mxu0 %v1328
    %1808 = vmatprep.subr.bf16.mxu0 %v1313
    %1809 = vmatpush1.bf16.msra.mxu0 %v1312
    %1810 = vmatprep.subr.bf16.mxu0 %v1297
    %1811 = vmatpush1.bf16.msra.mxu0 %v1296
    %1812 = vmatprep.subr.bf16.mxu0 %v1281
    %1813 = vmatpush1.bf16.msra.mxu0 %v1280
    %1814 = vmatprep.subr.bf16.mxu0 %v1265
    %1815 = vmatpush1.bf16.msra.mxu0 %v1264
    %1816 = vmatprep.subr.bf16.mxu0 %v1249
    %1817 = vmatpush1.bf16.msra.mxu0 %v1248
    %1818 = vmatprep.subr.bf16.mxu0 %v1233
    %1819 = vmatpush1.bf16.msra.mxu0 %v1232
    %1820 = vmatprep.subr.bf16.mxu0 %v1217
    %1821 = vmatpush1.bf16.msra.mxu0 %v1216
    %1822 = vmatprep.subr.bf16.mxu0 %v1457
    %1823 = vmatpush2.bf16.msra.mxu0 %v1456
    %1824 = vmatprep.subr.bf16.mxu0 %v1441
    %1825 = vmatpush2.bf16.msra.mxu0 %v1440
    %1826 = vmatprep.subr.bf16.mxu0 %v1425
    %1827 = vmatpush2.bf16.msra.mxu0 %v1424
    %1828 = vmatprep.subr.bf16.mxu0 %v1409
    %1829 = vmatpush2.bf16.msra.mxu0 %v1408
    %1830 = vmatprep.subr.bf16.mxu0 %v1393
    %1831 = vmatpush2.bf16.msra.mxu0 %v1392
    %1832 = vmatprep.subr.bf16.mxu0 %v1377
    %1833 = vmatpush2.bf16.msra.mxu0 %v1376
    %1834 = vmatprep.subr.bf16.mxu0 %v1361
    %1835 = vmatpush2.bf16.msra.mxu0 %v1360
    %1836 = vmatprep.subr.bf16.mxu0 %v1345
    %1837 = vmatpush2.bf16.msra.mxu0 %v1344
    %1838 = vmatprep.mubr.bf16.mxu0 %v98
    %1839 = vmatmul.mubr.bf16.gmra.mxu0 %v97
    %v1840 = vpop.f32.mrf.mxu0
    %v1841 = vadd.f32 %v383, %v1840
    %v1842 = vpop.f32.mrf.mxu0
    %v1843 = vadd.f32 %v387, %v1842
    %v1844 = vpop.f32.mrf.mxu0
    %v1845 = vpop.f32.mrf.mxu0
    %1846 = vdwg.mxu0
    %1847 = vmatprep.subr.bf16.mxu0 %v1331
    %1848 = vmatpush1.bf16.msra.mxu0 %v1330
    %1849 = vmatprep.subr.bf16.mxu0 %v1315
    %1850 = vmatpush1.bf16.msra.mxu0 %v1314
    %1851 = vmatprep.subr.bf16.mxu0 %v1299
    %1852 = vmatpush1.bf16.msra.mxu0 %v1298
    %1853 = vmatprep.subr.bf16.mxu0 %v1283
    %1854 = vmatpush1.bf16.msra.mxu0 %v1282
    %1855 = vmatprep.subr.bf16.mxu0 %v1267
    %1856 = vmatpush1.bf16.msra.mxu0 %v1266
    %1857 = vmatprep.subr.bf16.mxu0 %v1251
    %1858 = vmatpush1.bf16.msra.mxu0 %v1250
    %1859 = vmatprep.subr.bf16.mxu0 %v1235
    %1860 = vmatpush1.bf16.msra.mxu0 %v1234
    %1861 = vmatprep.subr.bf16.mxu0 %v1219
    %1862 = vmatpush1.bf16.msra.mxu0 %v1218
    %1863 = vmatprep.subr.bf16.mxu0 %v1459
    %1864 = vmatpush2.bf16.msra.mxu0 %v1458
    %1865 = vmatprep.subr.bf16.mxu0 %v1443
    %1866 = vmatpush2.bf16.msra.mxu0 %v1442
    %1867 = vmatprep.subr.bf16.mxu0 %v1427
    %1868 = vmatpush2.bf16.msra.mxu0 %v1426
    %1869 = vmatprep.subr.bf16.mxu0 %v1411
    %1870 = vmatpush2.bf16.msra.mxu0 %v1410
    %1871 = vmatprep.subr.bf16.mxu0 %v1395
    %1872 = vmatpush2.bf16.msra.mxu0 %v1394
    %1873 = vmatprep.subr.bf16.mxu0 %v1379
    %1874 = vmatpush2.bf16.msra.mxu0 %v1378
    %1875 = vmatprep.subr.bf16.mxu0 %v1363
    %1876 = vmatpush2.bf16.msra.mxu0 %v1362
    %1877 = vmatprep.subr.bf16.mxu0 %v1347
    %1878 = vmatpush2.bf16.msra.mxu0 %v1346
    %1879 = vmatprep.mubr.bf16.mxu0 %v98
    %1880 = vmatmul.mubr.bf16.gmra.mxu0 %v97
    %v1881 = vpop.f32.mrf.mxu0
    %v1882 = vadd.f32 %v391, %v1881
    %v1883 = vpop.f32.mrf.mxu0
    %v1884 = vadd.f32 %v395, %v1883
    %v1885 = vpop.f32.mrf.mxu0
    %v1886 = vpop.f32.mrf.mxu0
    %1887 = vdwg.mxu0
    %1888 = vmatprep.subr.bf16.mxu0 %v1333
    %1889 = vmatpush1.bf16.msra.mxu0 %v1332
    %1890 = vmatprep.subr.bf16.mxu0 %v1317
    %1891 = vmatpush1.bf16.msra.mxu0 %v1316
    %1892 = vmatprep.subr.bf16.mxu0 %v1301
    %1893 = vmatpush1.bf16.msra.mxu0 %v1300
    %1894 = vmatprep.subr.bf16.mxu0 %v1285
    %1895 = vmatpush1.bf16.msra.mxu0 %v1284
    %1896 = vmatprep.subr.bf16.mxu0 %v1269
    %1897 = vmatpush1.bf16.msra.mxu0 %v1268
    %1898 = vmatprep.subr.bf16.mxu0 %v1253
    %1899 = vmatpush1.bf16.msra.mxu0 %v1252
    %1900 = vmatprep.subr.bf16.mxu0 %v1237
    %1901 = vmatpush1.bf16.msra.mxu0 %v1236
    %1902 = vmatprep.subr.bf16.mxu0 %v1221
    %1903 = vmatpush1.bf16.msra.mxu0 %v1220
    %1904 = vmatprep.subr.bf16.mxu0 %v1461
    %1905 = vmatpush2.bf16.msra.mxu0 %v1460
    %1906 = vmatprep.subr.bf16.mxu0 %v1445
    %1907 = vmatpush2.bf16.msra.mxu0 %v1444
    %1908 = vmatprep.subr.bf16.mxu0 %v1429
    %1909 = vmatpush2.bf16.msra.mxu0 %v1428
    %1910 = vmatprep.subr.bf16.mxu0 %v1413
    %1911 = vmatpush2.bf16.msra.mxu0 %v1412
    %1912 = vmatprep.subr.bf16.mxu0 %v1397
    %1913 = vmatpush2.bf16.msra.mxu0 %v1396
    %1914 = vmatprep.subr.bf16.mxu0 %v1381
    %1915 = vmatpush2.bf16.msra.mxu0 %v1380
    %1916 = vmatprep.subr.bf16.mxu0 %v1365
    %1917 = vmatpush2.bf16.msra.mxu0 %v1364
    %1918 = vmatprep.subr.bf16.mxu0 %v1349
    %1919 = vmatpush2.bf16.msra.mxu0 %v1348
    %1920 = vmatprep.mubr.bf16.mxu0 %v98
    %1921 = vmatmul.mubr.bf16.gmra.mxu0 %v97
    %v1922 = vpop.f32.mrf.mxu0
    %v1923 = vadd.f32 %v399, %v1922
    %v1924 = vpop.f32.mrf.mxu0
    %v1925 = vadd.f32 %v403, %v1924
    %v1926 = vpop.f32.mrf.mxu0
    %v1927 = vpop.f32.mrf.mxu0
    %1928 = vdwg.mxu0
    %1929 = vmatprep.subr.bf16.mxu0 %v1335
    %1930 = vmatpush1.bf16.msra.mxu0 %v1334
    %1931 = vmatprep.subr.bf16.mxu0 %v1319
    %1932 = vmatpush1.bf16.msra.mxu0 %v1318
    %1933 = vmatprep.subr.bf16.mxu0 %v1303
    %1934 = vmatpush1.bf16.msra.mxu0 %v1302
    %1935 = vmatprep.subr.bf16.mxu0 %v1287
    %1936 = vmatpush1.bf16.msra.mxu0 %v1286
    %1937 = vmatprep.subr.bf16.mxu0 %v1271
    %1938 = vmatpush1.bf16.msra.mxu0 %v1270
    %1939 = vmatprep.subr.bf16.mxu0 %v1255
    %1940 = vmatpush1.bf16.msra.mxu0 %v1254
    %1941 = vmatprep.subr.bf16.mxu0 %v1239
    %1942 = vmatpush1.bf16.msra.mxu0 %v1238
    %1943 = vmatprep.subr.bf16.mxu0 %v1223
    %1944 = vmatpush1.bf16.msra.mxu0 %v1222
    %1945 = vmatprep.subr.bf16.mxu0 %v1463
    %1946 = vmatpush2.bf16.msra.mxu0 %v1462
    %1947 = vmatprep.subr.bf16.mxu0 %v1447
    %1948 = vmatpush2.bf16.msra.mxu0 %v1446
    %1949 = vmatprep.subr.bf16.mxu0 %v1431
    %1950 = vmatpush2.bf16.msra.mxu0 %v1430
    %1951 = vmatprep.subr.bf16.mxu0 %v1415
    %1952 = vmatpush2.bf16.msra.mxu0 %v1414
    %1953 = vmatprep.subr.bf16.mxu0 %v1399
    %1954 = vmatpush2.bf16.msra.mxu0 %v1398
    %1955 = vmatprep.subr.bf16.mxu0 %v1383
    %1956 = vmatpush2.bf16.msra.mxu0 %v1382
    %1957 = vmatprep.subr.bf16.mxu0 %v1367
    %1958 = vmatpush2.bf16.msra.mxu0 %v1366
    %1959 = vmatprep.subr.bf16.mxu0 %v1351
    %1960 = vmatpush2.bf16.msra.mxu0 %v1350
    %1961 = vmatprep.mubr.bf16.mxu0 %v98
    %1962 = vmatmul.mubr.bf16.gmra.mxu0 %v97
    %v1963 = vpop.f32.mrf.mxu0
    %v1964 = vadd.f32 %v407, %v1963
    %v1965 = vpop.f32.mrf.mxu0
    %v1966 = vadd.f32 %v411, %v1965
    %v1967 = vpop.f32.mrf.mxu0
    %v1968 = vpop.f32.mrf.mxu0
    %1969 = vdwg.mxu0
    %1970 = vmatprep.subr.bf16.mxu0 %v1337
    %1971 = vmatpush1.bf16.msra.mxu0 %v1336
    %1972 = vmatprep.subr.bf16.mxu0 %v1321
    %1973 = vmatpush1.bf16.msra.mxu0 %v1320
    %1974 = vmatprep.subr.bf16.mxu0 %v1305
    %1975 = vmatpush1.bf16.msra.mxu0 %v1304
    %1976 = vmatprep.subr.bf16.mxu0 %v1289
    %1977 = vmatpush1.bf16.msra.mxu0 %v1288
    %1978 = vmatprep.subr.bf16.mxu0 %v1273
    %1979 = vmatpush1.bf16.msra.mxu0 %v1272
    %1980 = vmatprep.subr.bf16.mxu0 %v1257
    %1981 = vmatpush1.bf16.msra.mxu0 %v1256
    %1982 = vmatprep.subr.bf16.mxu0 %v1241
    %1983 = vmatpush1.bf16.msra.mxu0 %v1240
    %1984 = vmatprep.subr.bf16.mxu0 %v1225
    %1985 = vmatpush1.bf16.msra.mxu0 %v1224
    %1986 = vmatprep.subr.bf16.mxu0 %v1465
    %1987 = vmatpush2.bf16.msra.mxu0 %v1464
    %1988 = vmatprep.subr.bf16.mxu0 %v1449
    %1989 = vmatpush2.bf16.msra.mxu0 %v1448
    %1990 = vmatprep.subr.bf16.mxu0 %v1433
    %1991 = vmatpush2.bf16.msra.mxu0 %v1432
    %1992 = vmatprep.subr.bf16.mxu0 %v1417
    %1993 = vmatpush2.bf16.msra.mxu0 %v1416
    %1994 = vmatprep.subr.bf16.mxu0 %v1401
    %1995 = vmatpush2.bf16.msra.mxu0 %v1400
    %1996 = vmatprep.subr.bf16.mxu0 %v1385
    %1997 = vmatpush2.bf16.msra.mxu0 %v1384
    %1998 = vmatprep.subr.bf16.mxu0 %v1369
    %1999 = vmatpush2.bf16.msra.mxu0 %v1368
    %2000 = vmatprep.subr.bf16.mxu0 %v1353
    %2001 = vmatpush2.bf16.msra.mxu0 %v1352
    %2002 = vmatprep.mubr.bf16.mxu0 %v98
    %2003 = vmatmul.mubr.bf16.gmra.mxu0 %v97
    %v2004 = vpop.f32.mrf.mxu0
    %v2005 = vadd.f32 %v415, %v2004
    %v2006 = vpop.f32.mrf.mxu0
    %v2007 = vadd.f32 %v419, %v2006
    %v2008 = vpop.f32.mrf.mxu0
    %v2009 = vpop.f32.mrf.mxu0
    %2010 = vdwg.mxu0
    %2011 = vmatprep.subr.bf16.mxu0 %v1339
    %2012 = vmatpush1.bf16.msra.mxu0 %v1338
    %2013 = vmatprep.subr.bf16.mxu0 %v1323
    %2014 = vmatpush1.bf16.msra.mxu0 %v1322
    %2015 = vmatprep.subr.bf16.mxu0 %v1307
    %2016 = vmatpush1.bf16.msra.mxu0 %v1306
    %2017 = vmatprep.subr.bf16.mxu0 %v1291
    %2018 = vmatpush1.bf16.msra.mxu0 %v1290
    %2019 = vmatprep.subr.bf16.mxu0 %v1275
    %2020 = vmatpush1.bf16.msra.mxu0 %v1274
    %2021 = vmatprep.subr.bf16.mxu0 %v1259
    %2022 = vmatpush1.bf16.msra.mxu0 %v1258
    %2023 = vmatprep.subr.bf16.mxu0 %v1243
    %2024 = vmatpush1.bf16.msra.mxu0 %v1242
    %2025 = vmatprep.subr.bf16.mxu0 %v1227
    %2026 = vmatpush1.bf16.msra.mxu0 %v1226
    %2027 = vmatprep.subr.bf16.mxu0 %v1467
    %2028 = vmatpush2.bf16.msra.mxu0 %v1466
    %2029 = vmatprep.subr.bf16.mxu0 %v1451
    %2030 = vmatpush2.bf16.msra.mxu0 %v1450
    %2031 = vmatprep.subr.bf16.mxu0 %v1435
    %2032 = vmatpush2.bf16.msra.mxu0 %v1434
    %2033 = vmatprep.subr.bf16.mxu0 %v1419
    %2034 = vmatpush2.bf16.msra.mxu0 %v1418
    %2035 = vmatprep.subr.bf16.mxu0 %v1403
    %2036 = vmatpush2.bf16.msra.mxu0 %v1402
    %2037 = vmatprep.subr.bf16.mxu0 %v1387
    %2038 = vmatpush2.bf16.msra.mxu0 %v1386
    %2039 = vmatprep.subr.bf16.mxu0 %v1371
    %2040 = vmatpush2.bf16.msra.mxu0 %v1370
    %2041 = vmatprep.subr.bf16.mxu0 %v1355
    %2042 = vmatpush2.bf16.msra.mxu0 %v1354
    %2043 = vmatprep.mubr.bf16.mxu0 %v98
    %2044 = vmatmul.mubr.bf16.gmra.mxu0 %v97
    %v2045 = vpop.f32.mrf.mxu0
    %v2046 = vadd.f32 %v423, %v2045
    %v2047 = vpop.f32.mrf.mxu0
    %v2048 = vadd.f32 %v427, %v2047
    %v2049 = vpop.f32.mrf.mxu0
    %v2050 = vpop.f32.mrf.mxu0
    %2051 = vdwg.mxu0
    %v2052 = vmax.f32 %v1759, 0.0
    %v2053 = vmax.f32 %v1761, 0.0
    %v2054 = vmax.f32 %v1800, 0.0
    %v2055 = vmax.f32 %v1802, 0.0
    %v2056 = vmax.f32 %v1841, 0.0
    %v2057 = vmax.f32 %v1843, 0.0
    %v2058 = vmax.f32 %v1882, 0.0
    %v2059 = vmax.f32 %v1884, 0.0
    %v2060 = vmax.f32 %v1923, 0.0
    %v2061 = vmax.f32 %v1925, 0.0
    %v2062 = vmax.f32 %v1964, 0.0
    %v2063 = vmax.f32 %v1966, 0.0
    %v2064 = vmax.f32 %v2005, 0.0
    %v2065 = vmax.f32 %v2007, 0.0
    %v2066 = vmax.f32 %v2046, 0.0
    %v2067 = vmax.f32 %v2048, 0.0
    %s2068 = scalar_lea.vmem [#allocation8], 1
    %v2069 = vld [vmem:[%s2068] ss:$8 sm:$0xf]
    %v2070 = vld [vmem:[%s2068] ss:$8 sm:$0xf0]
    %v2071 = vor.u32 %v2069, %v2070
    %s2072 = scalar_lea.vmem [#allocation8], 65
    %v2073 = vld [vmem:[%s2072] ss:$8 sm:$0xf]
    %v2074 = vld [vmem:[%s2072] ss:$8 sm:$0xf0]
    %v2075 = vor.u32 %v2073, %v2074
    %v2078 = vlaneseq
    %v2079 = vshrl.u32 %v2078, 7
    %v2080 = vsub.s32 0, %v2079
    %v2081 = vrot.slane %v2071, %v2080
    %v2082 = vlaneseq
    %v2083 = vshrl.u32 %v2082, 7
    %v2084 = vsub.s32 1, %v2083
    %v2085 = vrot.slane %v2071, %v2084
    %v2086 = vlaneseq
    %v2087 = vshrl.u32 %v2086, 7
    %v2088 = vsub.s32 2, %v2087
    %v2089 = vrot.slane %v2071, %v2088
    %v2090 = vlaneseq
    %v2091 = vshrl.u32 %v2090, 7
    %v2092 = vsub.s32 3, %v2091
    %v2093 = vrot.slane %v2071, %v2092
    %v2094 = vlaneseq
    %v2095 = vshrl.u32 %v2094, 7
    %v2096 = vsub.s32 4, %v2095
    %v2097 = vrot.slane %v2071, %v2096
    %v2098 = vlaneseq
    %v2099 = vshrl.u32 %v2098, 7
    %v2100 = vsub.s32 5, %v2099
    %v2101 = vrot.slane %v2071, %v2100
    %v2102 = vlaneseq
    %v2103 = vshrl.u32 %v2102, 7
    %v2104 = vsub.s32 6, %v2103
    %v2105 = vrot.slane %v2071, %v2104
    %v2106 = vlaneseq
    %v2107 = vshrl.u32 %v2106, 7
    %v2108 = vsub.s32 7, %v2107
    %v2109 = vrot.slane %v2071, %v2108
    %v2110 = vlaneseq
    %v2111 = vshrl.u32 %v2110, 7
    %v2112 = vsub.s32 0, %v2111
    %v2113 = vrot.slane %v2075, %v2112
    %v2114 = vlaneseq
    %v2115 = vshrl.u32 %v2114, 7
    %v2116 = vsub.s32 1, %v2115
    %v2117 = vrot.slane %v2075, %v2116
    %v2118 = vlaneseq
    %v2119 = vshrl.u32 %v2118, 7
    %v2120 = vsub.s32 2, %v2119
    %v2121 = vrot.slane %v2075, %v2120
    %v2122 = vlaneseq
    %v2123 = vshrl.u32 %v2122, 7
    %v2124 = vsub.s32 3, %v2123
    %v2125 = vrot.slane %v2075, %v2124
    %v2126 = vlaneseq
    %v2127 = vshrl.u32 %v2126, 7
    %v2128 = vsub.s32 4, %v2127
    %v2129 = vrot.slane %v2075, %v2128
    %v2130 = vlaneseq
    %v2131 = vshrl.u32 %v2130, 7
    %v2132 = vsub.s32 5, %v2131
    %v2133 = vrot.slane %v2075, %v2132
    %v2134 = vlaneseq
    %v2135 = vshrl.u32 %v2134, 7
    %v2136 = vsub.s32 6, %v2135
    %v2137 = vrot.slane %v2075, %v2136
    %v2138 = vlaneseq
    %v2139 = vshrl.u32 %v2138, 7
    %v2140 = vsub.s32 7, %v2139
    %v2141 = vrot.slane %v2075, %v2140
    %v2158 = vmul.f32 %v2052, %v2081
    %v2159 = vmul.f32 %v2053, %v2085
    %v2160 = vmul.f32 %v2054, %v2089
    %v2161 = vmul.f32 %v2055, %v2093
    %v2162 = vmul.f32 %v2056, %v2097
    %v2163 = vmul.f32 %v2057, %v2101
    %v2164 = vmul.f32 %v2058, %v2105
    %v2165 = vmul.f32 %v2059, %v2109
    %v2166 = vmul.f32 %v2060, %v2113
    %v2167 = vmul.f32 %v2061, %v2117
    %v2168 = vmul.f32 %v2062, %v2121
    %v2169 = vmul.f32 %v2063, %v2125
    %v2170 = vmul.f32 %v2064, %v2129
    %v2171 = vmul.f32 %v2065, %v2133
    %v2172 = vmul.f32 %v2066, %v2137
    %v2173 = vmul.f32 %v2067, %v2141
    %s2174 = scalar_lea.vmem [#allocation8], 2
    %v2175 = vld [vmem:[%s2174] ss:$8 sm:$0xf]
    %v2176 = vld [vmem:[%s2174] ss:$8 sm:$0xf0]
    %v2177 = vor.u32 %v2175, %v2176
    %s2178 = scalar_lea.vmem [#allocation8], 66
    %v2179 = vld [vmem:[%s2178] ss:$8 sm:$0xf]
    %v2180 = vld [vmem:[%s2178] ss:$8 sm:$0xf0]
    %v2181 = vor.u32 %v2179, %v2180
    %v2184 = vlaneseq
    %v2185 = vshrl.u32 %v2184, 7
    %v2186 = vsub.s32 0, %v2185
    %v2187 = vrot.slane %v2177, %v2186
    %v2188 = vlaneseq
    %v2189 = vshrl.u32 %v2188, 7
    %v2190 = vsub.s32 1, %v2189
    %v2191 = vrot.slane %v2177, %v2190
    %v2192 = vlaneseq
    %v2193 = vshrl.u32 %v2192, 7
    %v2194 = vsub.s32 2, %v2193
    %v2195 = vrot.slane %v2177, %v2194
    %v2196 = vlaneseq
    %v2197 = vshrl.u32 %v2196, 7
    %v2198 = vsub.s32 3, %v2197
    %v2199 = vrot.slane %v2177, %v2198
    %v2200 = vlaneseq
    %v2201 = vshrl.u32 %v2200, 7
    %v2202 = vsub.s32 4, %v2201
    %v2203 = vrot.slane %v2177, %v2202
    %v2204 = vlaneseq
    %v2205 = vshrl.u32 %v2204, 7
    %v2206 = vsub.s32 5, %v2205
    %v2207 = vrot.slane %v2177, %v2206
    %v2208 = vlaneseq
    %v2209 = vshrl.u32 %v2208, 7
    %v2210 = vsub.s32 6, %v2209
    %v2211 = vrot.slane %v2177, %v2210
    %v2212 = vlaneseq
    %v2213 = vshrl.u32 %v2212, 7
    %v2214 = vsub.s32 7, %v2213
    %v2215 = vrot.slane %v2177, %v2214
    %v2216 = vlaneseq
    %v2217 = vshrl.u32 %v2216, 7
    %v2218 = vsub.s32 0, %v2217
    %v2219 = vrot.slane %v2181, %v2218
    %v2220 = vlaneseq
    %v2221 = vshrl.u32 %v2220, 7
    %v2222 = vsub.s32 1, %v2221
    %v2223 = vrot.slane %v2181, %v2222
    %v2224 = vlaneseq
    %v2225 = vshrl.u32 %v2224, 7
    %v2226 = vsub.s32 2, %v2225
    %v2227 = vrot.slane %v2181, %v2226
    %v2228 = vlaneseq
    %v2229 = vshrl.u32 %v2228, 7
    %v2230 = vsub.s32 3, %v2229
    %v2231 = vrot.slane %v2181, %v2230
    %v2232 = vlaneseq
    %v2233 = vshrl.u32 %v2232, 7
    %v2234 = vsub.s32 4, %v2233
    %v2235 = vrot.slane %v2181, %v2234
    %v2236 = vlaneseq
    %v2237 = vshrl.u32 %v2236, 7
    %v2238 = vsub.s32 5, %v2237
    %v2239 = vrot.slane %v2181, %v2238
    %v2240 = vlaneseq
    %v2241 = vshrl.u32 %v2240, 7
    %v2242 = vsub.s32 6, %v2241
    %v2243 = vrot.slane %v2181, %v2242
    %v2244 = vlaneseq
    %v2245 = vshrl.u32 %v2244, 7
    %v2246 = vsub.s32 7, %v2245
    %v2247 = vrot.slane %v2181, %v2246
    %v2264 = vadd.f32 %v2158, %v2187
    %v2265 = vadd.f32 %v2159, %v2191
    %v2266 = vadd.f32 %v2160, %v2195
    %v2267 = vadd.f32 %v2161, %v2199
    %v2268 = vadd.f32 %v2162, %v2203
    %v2269 = vadd.f32 %v2163, %v2207
    %v2270 = vadd.f32 %v2164, %v2211
    %v2271 = vadd.f32 %v2165, %v2215
    %v2272 = vadd.f32 %v2166, %v2219
    %v2273 = vadd.f32 %v2167, %v2223
    %v2274 = vadd.f32 %v2168, %v2227
    %v2275 = vadd.f32 %v2169, %v2231
    %v2276 = vadd.f32 %v2170, %v2235
    %v2277 = vadd.f32 %v2171, %v2239
    %v2278 = vadd.f32 %v2172, %v2243
    %v2279 = vadd.f32 %v2173, %v2247
    %v2280 = vpack.c.bf16 %v2264, %v2264
    %v2281 = vpack.c.bf16 %v2265, %v2265
    %v2282 = vpack.c.bf16 %v2266, %v2266
    %v2283 = vpack.c.bf16 %v2267, %v2267
    %v2284 = vpack.c.bf16 %v2268, %v2268
    %v2285 = vpack.c.bf16 %v2269, %v2269
    %v2286 = vpack.c.bf16 %v2270, %v2270
    %v2287 = vpack.c.bf16 %v2271, %v2271
    %v2288 = vpack.c.bf16 %v2272, %v2272
    %v2289 = vpack.c.bf16 %v2273, %v2273
    %v2290 = vpack.c.bf16 %v2274, %v2274
    %v2291 = vpack.c.bf16 %v2275, %v2275
    %v2292 = vpack.c.bf16 %v2276, %v2276
    %v2293 = vpack.c.bf16 %v2277, %v2277
    %v2294 = vpack.c.bf16 %v2278, %v2278
    %v2295 = vpack.c.bf16 %v2279, %v2279
    %s2296 = smul.u32 2, 64
    %s2297 = smul.u32 %s2296, 16
    %s2298 = sshll.u32 %s2297, 4
    %2299 = dma.done [#allocation4], %s2298
    %v2300 = vld [vmem:[#allocation2] sm:$0xff]
    %v2301 = vld [vmem:[#allocation2 + $0x8] sm:$0xff]
    %v2302 = vld [vmem:[#allocation2 + $0x10] sm:$0xff]
    %v2303 = vld [vmem:[#allocation2 + $0x18] sm:$0xff]
    %v2304 = vld [vmem:[#allocation2 + $0x20] sm:$0xff]
    %v2305 = vld [vmem:[#allocation2 + $0x28] sm:$0xff]
    %v2306 = vld [vmem:[#allocation2 + $0x30] sm:$0xff]
    %v2307 = vld [vmem:[#allocation2 + $0x38] sm:$0xff]
    %v2308 = vld [vmem:[#allocation2 + $0x40] sm:$0xff]
    %v2309 = vld [vmem:[#allocation2 + $0x48] sm:$0xff]
    %v2310 = vld [vmem:[#allocation2 + $0x50] sm:$0xff]
    %v2311 = vld [vmem:[#allocation2 + $0x58] sm:$0xff]
    %v2312 = vld [vmem:[#allocation2 + $0x60] sm:$0xff]
    %v2313 = vld [vmem:[#allocation2 + $0x68] sm:$0xff]
    %v2314 = vld [vmem:[#allocation2 + $0x70] sm:$0xff]
    %v2315 = vld [vmem:[#allocation2 + $0x78] sm:$0xff]
    %v2316 = vld [vmem:[#allocation2 + $0x80] sm:$0xff]
    %v2317 = vld [vmem:[#allocation2 + $0x88] sm:$0xff]
    %v2318 = vld [vmem:[#allocation2 + $0x90] sm:$0xff]
    %v2319 = vld [vmem:[#allocation2 + $0x98] sm:$0xff]
    %v2320 = vld [vmem:[#allocation2 + $0xa0] sm:$0xff]
    %v2321 = vld [vmem:[#allocation2 + $0xa8] sm:$0xff]
    %v2322 = vld [vmem:[#allocation2 + $0xb0] sm:$0xff]
    %v2323 = vld [vmem:[#allocation2 + $0xb8] sm:$0xff]
    %v2324 = vld [vmem:[#allocation2 + $0xc0] sm:$0xff]
    %v2325 = vld [vmem:[#allocation2 + $0xc8] sm:$0xff]
    %v2326 = vld [vmem:[#allocation2 + $0xd0] sm:$0xff]
    %v2327 = vld [vmem:[#allocation2 + $0xd8] sm:$0xff]
    %v2328 = vld [vmem:[#allocation2 + $0xe0] sm:$0xff]
    %v2329 = vld [vmem:[#allocation2 + $0xe8] sm:$0xff]
    %v2330 = vld [vmem:[#allocation2 + $0xf0] sm:$0xff]
    %v2331 = vld [vmem:[#allocation2 + $0xf8] sm:$0xff]
    %v2332 = vld [vmem:[#allocation2 + $0x100] sm:$0xff]
    %v2333 = vld [vmem:[#allocation2 + $0x108] sm:$0xff]
    %v2334 = vld [vmem:[#allocation2 + $0x110] sm:$0xff]
    %v2335 = vld [vmem:[#allocation2 + $0x118] sm:$0xff]
    %v2336 = vld [vmem:[#allocation2 + $0x120] sm:$0xff]
    %v2337 = vld [vmem:[#allocation2 + $0x128] sm:$0xff]
    %v2338 = vld [vmem:[#allocation2 + $0x130] sm:$0xff]
    %v2339 = vld [vmem:[#allocation2 + $0x138] sm:$0xff]
    %v2340 = vld [vmem:[#allocation2 + $0x140] sm:$0xff]
    %v2341 = vld [vmem:[#allocation2 + $0x148] sm:$0xff]
    %v2342 = vld [vmem:[#allocation2 + $0x150] sm:$0xff]
    %v2343 = vld [vmem:[#allocation2 + $0x158] sm:$0xff]
    %v2344 = vld [vmem:[#allocation2 + $0x160] sm:$0xff]
    %v2345 = vld [vmem:[#allocation2 + $0x168] sm:$0xff]
    %v2346 = vld [vmem:[#allocation2 + $0x170] sm:$0xff]
    %v2347 = vld [vmem:[#allocation2 + $0x178] sm:$0xff]
    %v2348 = vld [vmem:[#allocation2 + $0x180] sm:$0xff]
    %v2349 = vld [vmem:[#allocation2 + $0x188] sm:$0xff]
    %v2350 = vld [vmem:[#allocation2 + $0x190] sm:$0xff]
    %v2351 = vld [vmem:[#allocation2 + $0x198] sm:$0xff]
    %v2352 = vld [vmem:[#allocation2 + $0x1a0] sm:$0xff]
    %v2353 = vld [vmem:[#allocation2 + $0x1a8] sm:$0xff]
    %v2354 = vld [vmem:[#allocation2 + $0x1b0] sm:$0xff]
    %v2355 = vld [vmem:[#allocation2 + $0x1b8] sm:$0xff]
    %v2356 = vld [vmem:[#allocation2 + $0x1c0] sm:$0xff]
    %v2357 = vld [vmem:[#allocation2 + $0x1c8] sm:$0xff]
    %v2358 = vld [vmem:[#allocation2 + $0x1d0] sm:$0xff]
    %v2359 = vld [vmem:[#allocation2 + $0x1d8] sm:$0xff]
    %v2360 = vld [vmem:[#allocation2 + $0x1e0] sm:$0xff]
    %v2361 = vld [vmem:[#allocation2 + $0x1e8] sm:$0xff]
    %v2362 = vld [vmem:[#allocation2 + $0x1f0] sm:$0xff]
    %v2363 = vld [vmem:[#allocation2 + $0x1f8] sm:$0xff]
    %v2364 = vld [vmem:[#allocation2 + $0x200] sm:$0xff]
    %v2365 = vld [vmem:[#allocation2 + $0x208] sm:$0xff]
    %v2366 = vld [vmem:[#allocation2 + $0x210] sm:$0xff]
    %v2367 = vld [vmem:[#allocation2 + $0x218] sm:$0xff]
    %v2368 = vld [vmem:[#allocation2 + $0x220] sm:$0xff]
    %v2369 = vld [vmem:[#allocation2 + $0x228] sm:$0xff]
    %v2370 = vld [vmem:[#allocation2 + $0x230] sm:$0xff]
    %v2371 = vld [vmem:[#allocation2 + $0x238] sm:$0xff]
    %v2372 = vld [vmem:[#allocation2 + $0x240] sm:$0xff]
    %v2373 = vld [vmem:[#allocation2 + $0x248] sm:$0xff]
    %v2374 = vld [vmem:[#allocation2 + $0x250] sm:$0xff]
    %v2375 = vld [vmem:[#allocation2 + $0x258] sm:$0xff]
    %v2376 = vld [vmem:[#allocation2 + $0x260] sm:$0xff]
    %v2377 = vld [vmem:[#allocation2 + $0x268] sm:$0xff]
    %v2378 = vld [vmem:[#allocation2 + $0x270] sm:$0xff]
    %v2379 = vld [vmem:[#allocation2 + $0x278] sm:$0xff]
    %v2380 = vld [vmem:[#allocation2 + $0x280] sm:$0xff]
    %v2381 = vld [vmem:[#allocation2 + $0x288] sm:$0xff]
    %v2382 = vld [vmem:[#allocation2 + $0x290] sm:$0xff]
    %v2383 = vld [vmem:[#allocation2 + $0x298] sm:$0xff]
    %v2384 = vld [vmem:[#allocation2 + $0x2a0] sm:$0xff]
    %v2385 = vld [vmem:[#allocation2 + $0x2a8] sm:$0xff]
    %v2386 = vld [vmem:[#allocation2 + $0x2b0] sm:$0xff]
    %v2387 = vld [vmem:[#allocation2 + $0x2b8] sm:$0xff]
    %v2388 = vld [vmem:[#allocation2 + $0x2c0] sm:$0xff]
    %v2389 = vld [vmem:[#allocation2 + $0x2c8] sm:$0xff]
    %v2390 = vld [vmem:[#allocation2 + $0x2d0] sm:$0xff]
    %v2391 = vld [vmem:[#allocation2 + $0x2d8] sm:$0xff]
    %v2392 = vld [vmem:[#allocation2 + $0x2e0] sm:$0xff]
    %v2393 = vld [vmem:[#allocation2 + $0x2e8] sm:$0xff]
    %v2394 = vld [vmem:[#allocation2 + $0x2f0] sm:$0xff]
    %v2395 = vld [vmem:[#allocation2 + $0x2f8] sm:$0xff]
    %v2396 = vld [vmem:[#allocation2 + $0x300] sm:$0xff]
    %v2397 = vld [vmem:[#allocation2 + $0x308] sm:$0xff]
    %v2398 = vld [vmem:[#allocation2 + $0x310] sm:$0xff]
    %v2399 = vld [vmem:[#allocation2 + $0x318] sm:$0xff]
    %v2400 = vld [vmem:[#allocation2 + $0x320] sm:$0xff]
    %v2401 = vld [vmem:[#allocation2 + $0x328] sm:$0xff]
    %v2402 = vld [vmem:[#allocation2 + $0x330] sm:$0xff]
    %v2403 = vld [vmem:[#allocation2 + $0x338] sm:$0xff]
    %v2404 = vld [vmem:[#allocation2 + $0x340] sm:$0xff]
    %v2405 = vld [vmem:[#allocation2 + $0x348] sm:$0xff]
    %v2406 = vld [vmem:[#allocation2 + $0x350] sm:$0xff]
    %v2407 = vld [vmem:[#allocation2 + $0x358] sm:$0xff]
    %v2408 = vld [vmem:[#allocation2 + $0x360] sm:$0xff]
    %v2409 = vld [vmem:[#allocation2 + $0x368] sm:$0xff]
    %v2410 = vld [vmem:[#allocation2 + $0x370] sm:$0xff]
    %v2411 = vld [vmem:[#allocation2 + $0x378] sm:$0xff]
    %v2412 = vld [vmem:[#allocation2 + $0x380] sm:$0xff]
    %v2413 = vld [vmem:[#allocation2 + $0x388] sm:$0xff]
    %v2414 = vld [vmem:[#allocation2 + $0x390] sm:$0xff]
    %v2415 = vld [vmem:[#allocation2 + $0x398] sm:$0xff]
    %v2416 = vld [vmem:[#allocation2 + $0x3a0] sm:$0xff]
    %v2417 = vld [vmem:[#allocation2 + $0x3a8] sm:$0xff]
    %v2418 = vld [vmem:[#allocation2 + $0x3b0] sm:$0xff]
    %v2419 = vld [vmem:[#allocation2 + $0x3b8] sm:$0xff]
    %v2420 = vld [vmem:[#allocation2 + $0x3c0] sm:$0xff]
    %v2421 = vld [vmem:[#allocation2 + $0x3c8] sm:$0xff]
    %v2422 = vld [vmem:[#allocation2 + $0x3d0] sm:$0xff]
    %v2423 = vld [vmem:[#allocation2 + $0x3d8] sm:$0xff]
    %v2424 = vld [vmem:[#allocation2 + $0x3e0] sm:$0xff]
    %v2425 = vld [vmem:[#allocation2 + $0x3e8] sm:$0xff]
    %v2426 = vld [vmem:[#allocation2 + $0x3f0] sm:$0xff]
    %v2427 = vld [vmem:[#allocation2 + $0x3f8] sm:$0xff]
    %v2428 = vld [vmem:[#allocation2 + $0x400] sm:$0xff]
    %v2429 = vld [vmem:[#allocation2 + $0x408] sm:$0xff]
    %v2430 = vld [vmem:[#allocation2 + $0x410] sm:$0xff]
    %v2431 = vld [vmem:[#allocation2 + $0x418] sm:$0xff]
    %v2432 = vld [vmem:[#allocation2 + $0x420] sm:$0xff]
    %v2433 = vld [vmem:[#allocation2 + $0x428] sm:$0xff]
    %v2434 = vld [vmem:[#allocation2 + $0x430] sm:$0xff]
    %v2435 = vld [vmem:[#allocation2 + $0x438] sm:$0xff]
    %v2436 = vld [vmem:[#allocation2 + $0x440] sm:$0xff]
    %v2437 = vld [vmem:[#allocation2 + $0x448] sm:$0xff]
    %v2438 = vld [vmem:[#allocation2 + $0x450] sm:$0xff]
    %v2439 = vld [vmem:[#allocation2 + $0x458] sm:$0xff]
    %v2440 = vld [vmem:[#allocation2 + $0x460] sm:$0xff]
    %v2441 = vld [vmem:[#allocation2 + $0x468] sm:$0xff]
    %v2442 = vld [vmem:[#allocation2 + $0x470] sm:$0xff]
    %v2443 = vld [vmem:[#allocation2 + $0x478] sm:$0xff]
    %v2444 = vld [vmem:[#allocation2 + $0x480] sm:$0xff]
    %v2445 = vld [vmem:[#allocation2 + $0x488] sm:$0xff]
    %v2446 = vld [vmem:[#allocation2 + $0x490] sm:$0xff]
    %v2447 = vld [vmem:[#allocation2 + $0x498] sm:$0xff]
    %v2448 = vld [vmem:[#allocation2 + $0x4a0] sm:$0xff]
    %v2449 = vld [vmem:[#allocation2 + $0x4a8] sm:$0xff]
    %v2450 = vld [vmem:[#allocation2 + $0x4b0] sm:$0xff]
    %v2451 = vld [vmem:[#allocation2 + $0x4b8] sm:$0xff]
    %v2452 = vld [vmem:[#allocation2 + $0x4c0] sm:$0xff]
    %v2453 = vld [vmem:[#allocation2 + $0x4c8] sm:$0xff]
    %v2454 = vld [vmem:[#allocation2 + $0x4d0] sm:$0xff]
    %v2455 = vld [vmem:[#allocation2 + $0x4d8] sm:$0xff]
    %v2456 = vld [vmem:[#allocation2 + $0x4e0] sm:$0xff]
    %v2457 = vld [vmem:[#allocation2 + $0x4e8] sm:$0xff]
    %v2458 = vld [vmem:[#allocation2 + $0x4f0] sm:$0xff]
    %v2459 = vld [vmem:[#allocation2 + $0x4f8] sm:$0xff]
    %v2460 = vld [vmem:[#allocation2 + $0x500] sm:$0xff]
    %v2461 = vld [vmem:[#allocation2 + $0x508] sm:$0xff]
    %v2462 = vld [vmem:[#allocation2 + $0x510] sm:$0xff]
    %v2463 = vld [vmem:[#allocation2 + $0x518] sm:$0xff]
    %v2464 = vld [vmem:[#allocation2 + $0x520] sm:$0xff]
    %v2465 = vld [vmem:[#allocation2 + $0x528] sm:$0xff]
    %v2466 = vld [vmem:[#allocation2 + $0x530] sm:$0xff]
    %v2467 = vld [vmem:[#allocation2 + $0x538] sm:$0xff]
    %v2468 = vld [vmem:[#allocation2 + $0x540] sm:$0xff]
    %v2469 = vld [vmem:[#allocation2 + $0x548] sm:$0xff]
    %v2470 = vld [vmem:[#allocation2 + $0x550] sm:$0xff]
    %v2471 = vld [vmem:[#allocation2 + $0x558] sm:$0xff]
    %v2472 = vld [vmem:[#allocation2 + $0x560] sm:$0xff]
    %v2473 = vld [vmem:[#allocation2 + $0x568] sm:$0xff]
    %v2474 = vld [vmem:[#allocation2 + $0x570] sm:$0xff]
    %v2475 = vld [vmem:[#allocation2 + $0x578] sm:$0xff]
    %v2476 = vld [vmem:[#allocation2 + $0x580] sm:$0xff]
    %v2477 = vld [vmem:[#allocation2 + $0x588] sm:$0xff]
    %v2478 = vld [vmem:[#allocation2 + $0x590] sm:$0xff]
    %v2479 = vld [vmem:[#allocation2 + $0x598] sm:$0xff]
    %v2480 = vld [vmem:[#allocation2 + $0x5a0] sm:$0xff]
    %v2481 = vld [vmem:[#allocation2 + $0x5a8] sm:$0xff]
    %v2482 = vld [vmem:[#allocation2 + $0x5b0] sm:$0xff]
    %v2483 = vld [vmem:[#allocation2 + $0x5b8] sm:$0xff]
    %v2484 = vld [vmem:[#allocation2 + $0x5c0] sm:$0xff]
    %v2485 = vld [vmem:[#allocation2 + $0x5c8] sm:$0xff]
    %v2486 = vld [vmem:[#allocation2 + $0x5d0] sm:$0xff]
    %v2487 = vld [vmem:[#allocation2 + $0x5d8] sm:$0xff]
    %v2488 = vld [vmem:[#allocation2 + $0x5e0] sm:$0xff]
    %v2489 = vld [vmem:[#allocation2 + $0x5e8] sm:$0xff]
    %v2490 = vld [vmem:[#allocation2 + $0x5f0] sm:$0xff]
    %v2491 = vld [vmem:[#allocation2 + $0x5f8] sm:$0xff]
    %v2492 = vld [vmem:[#allocation2 + $0x600] sm:$0xff]
    %v2493 = vld [vmem:[#allocation2 + $0x608] sm:$0xff]
    %v2494 = vld [vmem:[#allocation2 + $0x610] sm:$0xff]
    %v2495 = vld [vmem:[#allocation2 + $0x618] sm:$0xff]
    %v2496 = vld [vmem:[#allocation2 + $0x620] sm:$0xff]
    %v2497 = vld [vmem:[#allocation2 + $0x628] sm:$0xff]
    %v2498 = vld [vmem:[#allocation2 + $0x630] sm:$0xff]
    %v2499 = vld [vmem:[#allocation2 + $0x638] sm:$0xff]
    %v2500 = vld [vmem:[#allocation2 + $0x640] sm:$0xff]
    %v2501 = vld [vmem:[#allocation2 + $0x648] sm:$0xff]
    %v2502 = vld [vmem:[#allocation2 + $0x650] sm:$0xff]
    %v2503 = vld [vmem:[#allocation2 + $0x658] sm:$0xff]
    %v2504 = vld [vmem:[#allocation2 + $0x660] sm:$0xff]
    %v2505 = vld [vmem:[#allocation2 + $0x668] sm:$0xff]
    %v2506 = vld [vmem:[#allocation2 + $0x670] sm:$0xff]
    %v2507 = vld [vmem:[#allocation2 + $0x678] sm:$0xff]
    %v2508 = vld [vmem:[#allocation2 + $0x680] sm:$0xff]
    %v2509 = vld [vmem:[#allocation2 + $0x688] sm:$0xff]
    %v2510 = vld [vmem:[#allocation2 + $0x690] sm:$0xff]
    %v2511 = vld [vmem:[#allocation2 + $0x698] sm:$0xff]
    %v2512 = vld [vmem:[#allocation2 + $0x6a0] sm:$0xff]
    %v2513 = vld [vmem:[#allocation2 + $0x6a8] sm:$0xff]
    %v2514 = vld [vmem:[#allocation2 + $0x6b0] sm:$0xff]
    %v2515 = vld [vmem:[#allocation2 + $0x6b8] sm:$0xff]
    %v2516 = vld [vmem:[#allocation2 + $0x6c0] sm:$0xff]
    %v2517 = vld [vmem:[#allocation2 + $0x6c8] sm:$0xff]
    %v2518 = vld [vmem:[#allocation2 + $0x6d0] sm:$0xff]
    %v2519 = vld [vmem:[#allocation2 + $0x6d8] sm:$0xff]
    %v2520 = vld [vmem:[#allocation2 + $0x6e0] sm:$0xff]
    %v2521 = vld [vmem:[#allocation2 + $0x6e8] sm:$0xff]
    %v2522 = vld [vmem:[#allocation2 + $0x6f0] sm:$0xff]
    %v2523 = vld [vmem:[#allocation2 + $0x6f8] sm:$0xff]
    %v2524 = vld [vmem:[#allocation2 + $0x700] sm:$0xff]
    %v2525 = vld [vmem:[#allocation2 + $0x708] sm:$0xff]
    %v2526 = vld [vmem:[#allocation2 + $0x710] sm:$0xff]
    %v2527 = vld [vmem:[#allocation2 + $0x718] sm:$0xff]
    %v2528 = vld [vmem:[#allocation2 + $0x720] sm:$0xff]
    %v2529 = vld [vmem:[#allocation2 + $0x728] sm:$0xff]
    %v2530 = vld [vmem:[#allocation2 + $0x730] sm:$0xff]
    %v2531 = vld [vmem:[#allocation2 + $0x738] sm:$0xff]
    %v2532 = vld [vmem:[#allocation2 + $0x740] sm:$0xff]
    %v2533 = vld [vmem:[#allocation2 + $0x748] sm:$0xff]
    %v2534 = vld [vmem:[#allocation2 + $0x750] sm:$0xff]
    %v2535 = vld [vmem:[#allocation2 + $0x758] sm:$0xff]
    %v2536 = vld [vmem:[#allocation2 + $0x760] sm:$0xff]
    %v2537 = vld [vmem:[#allocation2 + $0x768] sm:$0xff]
    %v2538 = vld [vmem:[#allocation2 + $0x770] sm:$0xff]
    %v2539 = vld [vmem:[#allocation2 + $0x778] sm:$0xff]
    %v2540 = vld [vmem:[#allocation2 + $0x780] sm:$0xff]
    %v2541 = vld [vmem:[#allocation2 + $0x788] sm:$0xff]
    %v2542 = vld [vmem:[#allocation2 + $0x790] sm:$0xff]
    %v2543 = vld [vmem:[#allocation2 + $0x798] sm:$0xff]
    %v2544 = vld [vmem:[#allocation2 + $0x7a0] sm:$0xff]
    %v2545 = vld [vmem:[#allocation2 + $0x7a8] sm:$0xff]
    %v2546 = vld [vmem:[#allocation2 + $0x7b0] sm:$0xff]
    %v2547 = vld [vmem:[#allocation2 + $0x7b8] sm:$0xff]
    %v2548 = vld [vmem:[#allocation2 + $0x7c0] sm:$0xff]
    %v2549 = vld [vmem:[#allocation2 + $0x7c8] sm:$0xff]
    %v2550 = vld [vmem:[#allocation2 + $0x7d0] sm:$0xff]
    %v2551 = vld [vmem:[#allocation2 + $0x7d8] sm:$0xff]
    %v2552 = vld [vmem:[#allocation2 + $0x7e0] sm:$0xff]
    %v2553 = vld [vmem:[#allocation2 + $0x7e8] sm:$0xff]
    %v2554 = vld [vmem:[#allocation2 + $0x7f0] sm:$0xff]
    %v2555 = vld [vmem:[#allocation2 + $0x7f8] sm:$0xff]
    %v2556 = vunpack.c.l.s8.bf16 %v2300
    %v2557 = vunpack.c.l.s8.bf16 %v2301
    %v2558 = vunpack.c.l.s8.bf16 %v2302
    %v2559 = vunpack.c.l.s8.bf16 %v2303
    %v2560 = vunpack.c.l.s8.bf16 %v2304
    %v2561 = vunpack.c.l.s8.bf16 %v2305
    %v2562 = vunpack.c.l.s8.bf16 %v2306
    %v2563 = vunpack.c.l.s8.bf16 %v2307
    %v2564 = vunpack.c.l.s8.bf16 %v2308
    %v2565 = vunpack.c.l.s8.bf16 %v2309
    %v2566 = vunpack.c.l.s8.bf16 %v2310
    %v2567 = vunpack.c.l.s8.bf16 %v2311
    %v2568 = vunpack.c.l.s8.bf16 %v2312
    %v2569 = vunpack.c.l.s8.bf16 %v2313
    %v2570 = vunpack.c.l.s8.bf16 %v2314
    %v2571 = vunpack.c.l.s8.bf16 %v2315
    %v2572 = vunpack.c.h.s8.bf16 %v2300
    %v2573 = vunpack.c.h.s8.bf16 %v2301
    %v2574 = vunpack.c.h.s8.bf16 %v2302
    %v2575 = vunpack.c.h.s8.bf16 %v2303
    %v2576 = vunpack.c.h.s8.bf16 %v2304
    %v2577 = vunpack.c.h.s8.bf16 %v2305
    %v2578 = vunpack.c.h.s8.bf16 %v2306
    %v2579 = vunpack.c.h.s8.bf16 %v2307
    %v2580 = vunpack.c.h.s8.bf16 %v2308
    %v2581 = vunpack.c.h.s8.bf16 %v2309
    %v2582 = vunpack.c.h.s8.bf16 %v2310
    %v2583 = vunpack.c.h.s8.bf16 %v2311
    %v2584 = vunpack.c.h.s8.bf16 %v2312
    %v2585 = vunpack.c.h.s8.bf16 %v2313
    %v2586 = vunpack.c.h.s8.bf16 %v2314
    %v2587 = vunpack.c.h.s8.bf16 %v2315
    %v2588 = vunpack.c.l.s8.bf16 %v2316
    %v2589 = vunpack.c.l.s8.bf16 %v2317
    %v2590 = vunpack.c.l.s8.bf16 %v2318
    %v2591 = vunpack.c.l.s8.bf16 %v2319
    %v2592 = vunpack.c.l.s8.bf16 %v2320
    %v2593 = vunpack.c.l.s8.bf16 %v2321
    %v2594 = vunpack.c.l.s8.bf16 %v2322
    %v2595 = vunpack.c.l.s8.bf16 %v2323
    %v2596 = vunpack.c.l.s8.bf16 %v2324
    %v2597 = vunpack.c.l.s8.bf16 %v2325
    %v2598 = vunpack.c.l.s8.bf16 %v2326
    %v2599 = vunpack.c.l.s8.bf16 %v2327
    %v2600 = vunpack.c.l.s8.bf16 %v2328
    %v2601 = vunpack.c.l.s8.bf16 %v2329
    %v2602 = vunpack.c.l.s8.bf16 %v2330
    %v2603 = vunpack.c.l.s8.bf16 %v2331
    %v2604 = vunpack.c.h.s8.bf16 %v2316
    %v2605 = vunpack.c.h.s8.bf16 %v2317
    %v2606 = vunpack.c.h.s8.bf16 %v2318
    %v2607 = vunpack.c.h.s8.bf16 %v2319
    %v2608 = vunpack.c.h.s8.bf16 %v2320
    %v2609 = vunpack.c.h.s8.bf16 %v2321
    %v2610 = vunpack.c.h.s8.bf16 %v2322
    %v2611 = vunpack.c.h.s8.bf16 %v2323
    %v2612 = vunpack.c.h.s8.bf16 %v2324
    %v2613 = vunpack.c.h.s8.bf16 %v2325
    %v2614 = vunpack.c.h.s8.bf16 %v2326
    %v2615 = vunpack.c.h.s8.bf16 %v2327
    %v2616 = vunpack.c.h.s8.bf16 %v2328
    %v2617 = vunpack.c.h.s8.bf16 %v2329
    %v2618 = vunpack.c.h.s8.bf16 %v2330
    %v2619 = vunpack.c.h.s8.bf16 %v2331
    %v2620 = vunpack.c.l.s8.bf16 %v2332
    %v2621 = vunpack.c.l.s8.bf16 %v2333
    %v2622 = vunpack.c.l.s8.bf16 %v2334
    %v2623 = vunpack.c.l.s8.bf16 %v2335
    %v2624 = vunpack.c.l.s8.bf16 %v2336
    %v2625 = vunpack.c.l.s8.bf16 %v2337
    %v2626 = vunpack.c.l.s8.bf16 %v2338
    %v2627 = vunpack.c.l.s8.bf16 %v2339
    %v2628 = vunpack.c.l.s8.bf16 %v2340
    %v2629 = vunpack.c.l.s8.bf16 %v2341
    %v2630 = vunpack.c.l.s8.bf16 %v2342
    %v2631 = vunpack.c.l.s8.bf16 %v2343
    %v2632 = vunpack.c.l.s8.bf16 %v2344
    %v2633 = vunpack.c.l.s8.bf16 %v2345
    %v2634 = vunpack.c.l.s8.bf16 %v2346
    %v2635 = vunpack.c.l.s8.bf16 %v2347
    %v2636 = vunpack.c.h.s8.bf16 %v2332
    %v2637 = vunpack.c.h.s8.bf16 %v2333
    %v2638 = vunpack.c.h.s8.bf16 %v2334
    %v2639 = vunpack.c.h.s8.bf16 %v2335
    %v2640 = vunpack.c.h.s8.bf16 %v2336
    %v2641 = vunpack.c.h.s8.bf16 %v2337
    %v2642 = vunpack.c.h.s8.bf16 %v2338
    %v2643 = vunpack.c.h.s8.bf16 %v2339
    %v2644 = vunpack.c.h.s8.bf16 %v2340
    %v2645 = vunpack.c.h.s8.bf16 %v2341
    %v2646 = vunpack.c.h.s8.bf16 %v2342
    %v2647 = vunpack.c.h.s8.bf16 %v2343
    %v2648 = vunpack.c.h.s8.bf16 %v2344
    %v2649 = vunpack.c.h.s8.bf16 %v2345
    %v2650 = vunpack.c.h.s8.bf16 %v2346
    %v2651 = vunpack.c.h.s8.bf16 %v2347
    %v2652 = vunpack.c.l.s8.bf16 %v2348
    %v2653 = vunpack.c.l.s8.bf16 %v2349
    %v2654 = vunpack.c.l.s8.bf16 %v2350
    %v2655 = vunpack.c.l.s8.bf16 %v2351
    %v2656 = vunpack.c.l.s8.bf16 %v2352
    %v2657 = vunpack.c.l.s8.bf16 %v2353
    %v2658 = vunpack.c.l.s8.bf16 %v2354
    %v2659 = vunpack.c.l.s8.bf16 %v2355
    %v2660 = vunpack.c.l.s8.bf16 %v2356
    %v2661 = vunpack.c.l.s8.bf16 %v2357
    %v2662 = vunpack.c.l.s8.bf16 %v2358
    %v2663 = vunpack.c.l.s8.bf16 %v2359
    %v2664 = vunpack.c.l.s8.bf16 %v2360
    %v2665 = vunpack.c.l.s8.bf16 %v2361
    %v2666 = vunpack.c.l.s8.bf16 %v2362
    %v2667 = vunpack.c.l.s8.bf16 %v2363
    %v2668 = vunpack.c.h.s8.bf16 %v2348
    %v2669 = vunpack.c.h.s8.bf16 %v2349
    %v2670 = vunpack.c.h.s8.bf16 %v2350
    %v2671 = vunpack.c.h.s8.bf16 %v2351
    %v2672 = vunpack.c.h.s8.bf16 %v2352
    %v2673 = vunpack.c.h.s8.bf16 %v2353
    %v2674 = vunpack.c.h.s8.bf16 %v2354
    %v2675 = vunpack.c.h.s8.bf16 %v2355
    %v2676 = vunpack.c.h.s8.bf16 %v2356
    %v2677 = vunpack.c.h.s8.bf16 %v2357
    %v2678 = vunpack.c.h.s8.bf16 %v2358
    %v2679 = vunpack.c.h.s8.bf16 %v2359
    %v2680 = vunpack.c.h.s8.bf16 %v2360
    %v2681 = vunpack.c.h.s8.bf16 %v2361
    %v2682 = vunpack.c.h.s8.bf16 %v2362
    %v2683 = vunpack.c.h.s8.bf16 %v2363
    %v2684 = vunpack.c.l.s8.bf16 %v2364
    %v2685 = vunpack.c.l.s8.bf16 %v2365
    %v2686 = vunpack.c.l.s8.bf16 %v2366
    %v2687 = vunpack.c.l.s8.bf16 %v2367
    %v2688 = vunpack.c.l.s8.bf16 %v2368
    %v2689 = vunpack.c.l.s8.bf16 %v2369
    %v2690 = vunpack.c.l.s8.bf16 %v2370
    %v2691 = vunpack.c.l.s8.bf16 %v2371
    %v2692 = vunpack.c.l.s8.bf16 %v2372
    %v2693 = vunpack.c.l.s8.bf16 %v2373
    %v2694 = vunpack.c.l.s8.bf16 %v2374
    %v2695 = vunpack.c.l.s8.bf16 %v2375
    %v2696 = vunpack.c.l.s8.bf16 %v2376
    %v2697 = vunpack.c.l.s8.bf16 %v2377
    %v2698 = vunpack.c.l.s8.bf16 %v2378
    %v2699 = vunpack.c.l.s8.bf16 %v2379
    %v2700 = vunpack.c.h.s8.bf16 %v2364
    %v2701 = vunpack.c.h.s8.bf16 %v2365
    %v2702 = vunpack.c.h.s8.bf16 %v2366
    %v2703 = vunpack.c.h.s8.bf16 %v2367
    %v2704 = vunpack.c.h.s8.bf16 %v2368
    %v2705 = vunpack.c.h.s8.bf16 %v2369
    %v2706 = vunpack.c.h.s8.bf16 %v2370
    %v2707 = vunpack.c.h.s8.bf16 %v2371
    %v2708 = vunpack.c.h.s8.bf16 %v2372
    %v2709 = vunpack.c.h.s8.bf16 %v2373
    %v2710 = vunpack.c.h.s8.bf16 %v2374
    %v2711 = vunpack.c.h.s8.bf16 %v2375
    %v2712 = vunpack.c.h.s8.bf16 %v2376
    %v2713 = vunpack.c.h.s8.bf16 %v2377
    %v2714 = vunpack.c.h.s8.bf16 %v2378
    %v2715 = vunpack.c.h.s8.bf16 %v2379
    %v2716 = vunpack.c.l.s8.bf16 %v2380
    %v2717 = vunpack.c.l.s8.bf16 %v2381
    %v2718 = vunpack.c.l.s8.bf16 %v2382
    %v2719 = vunpack.c.l.s8.bf16 %v2383
    %v2720 = vunpack.c.l.s8.bf16 %v2384
    %v2721 = vunpack.c.l.s8.bf16 %v2385
    %v2722 = vunpack.c.l.s8.bf16 %v2386
    %v2723 = vunpack.c.l.s8.bf16 %v2387
    %v2724 = vunpack.c.l.s8.bf16 %v2388
    %v2725 = vunpack.c.l.s8.bf16 %v2389
    %v2726 = vunpack.c.l.s8.bf16 %v2390
    %v2727 = vunpack.c.l.s8.bf16 %v2391
    %v2728 = vunpack.c.l.s8.bf16 %v2392
    %v2729 = vunpack.c.l.s8.bf16 %v2393
    %v2730 = vunpack.c.l.s8.bf16 %v2394
    %v2731 = vunpack.c.l.s8.bf16 %v2395
    %v2732 = vunpack.c.h.s8.bf16 %v2380
    %v2733 = vunpack.c.h.s8.bf16 %v2381
    %v2734 = vunpack.c.h.s8.bf16 %v2382
    %v2735 = vunpack.c.h.s8.bf16 %v2383
    %v2736 = vunpack.c.h.s8.bf16 %v2384
    %v2737 = vunpack.c.h.s8.bf16 %v2385
    %v2738 = vunpack.c.h.s8.bf16 %v2386
    %v2739 = vunpack.c.h.s8.bf16 %v2387
    %v2740 = vunpack.c.h.s8.bf16 %v2388
    %v2741 = vunpack.c.h.s8.bf16 %v2389
    %v2742 = vunpack.c.h.s8.bf16 %v2390
    %v2743 = vunpack.c.h.s8.bf16 %v2391
    %v2744 = vunpack.c.h.s8.bf16 %v2392
    %v2745 = vunpack.c.h.s8.bf16 %v2393
    %v2746 = vunpack.c.h.s8.bf16 %v2394
    %v2747 = vunpack.c.h.s8.bf16 %v2395
    %v2748 = vunpack.c.l.s8.bf16 %v2396
    %v2749 = vunpack.c.l.s8.bf16 %v2397
    %v2750 = vunpack.c.l.s8.bf16 %v2398
    %v2751 = vunpack.c.l.s8.bf16 %v2399
    %v2752 = vunpack.c.l.s8.bf16 %v2400
    %v2753 = vunpack.c.l.s8.bf16 %v2401
    %v2754 = vunpack.c.l.s8.bf16 %v2402
    %v2755 = vunpack.c.l.s8.bf16 %v2403
    %v2756 = vunpack.c.l.s8.bf16 %v2404
    %v2757 = vunpack.c.l.s8.bf16 %v2405
    %v2758 = vunpack.c.l.s8.bf16 %v2406
    %v2759 = vunpack.c.l.s8.bf16 %v2407
    %v2760 = vunpack.c.l.s8.bf16 %v2408
    %v2761 = vunpack.c.l.s8.bf16 %v2409
    %v2762 = vunpack.c.l.s8.bf16 %v2410
    %v2763 = vunpack.c.l.s8.bf16 %v2411
    %v2764 = vunpack.c.h.s8.bf16 %v2396
    %v2765 = vunpack.c.h.s8.bf16 %v2397
    %v2766 = vunpack.c.h.s8.bf16 %v2398
    %v2767 = vunpack.c.h.s8.bf16 %v2399
    %v2768 = vunpack.c.h.s8.bf16 %v2400
    %v2769 = vunpack.c.h.s8.bf16 %v2401
    %v2770 = vunpack.c.h.s8.bf16 %v2402
    %v2771 = vunpack.c.h.s8.bf16 %v2403
    %v2772 = vunpack.c.h.s8.bf16 %v2404
    %v2773 = vunpack.c.h.s8.bf16 %v2405
    %v2774 = vunpack.c.h.s8.bf16 %v2406
    %v2775 = vunpack.c.h.s8.bf16 %v2407
    %v2776 = vunpack.c.h.s8.bf16 %v2408
    %v2777 = vunpack.c.h.s8.bf16 %v2409
    %v2778 = vunpack.c.h.s8.bf16 %v2410
    %v2779 = vunpack.c.h.s8.bf16 %v2411
    %v2780 = vunpack.c.l.s8.bf16 %v2412
    %v2781 = vunpack.c.l.s8.bf16 %v2413
    %v2782 = vunpack.c.l.s8.bf16 %v2414
    %v2783 = vunpack.c.l.s8.bf16 %v2415
    %v2784 = vunpack.c.l.s8.bf16 %v2416
    %v2785 = vunpack.c.l.s8.bf16 %v2417
    %v2786 = vunpack.c.l.s8.bf16 %v2418
    %v2787 = vunpack.c.l.s8.bf16 %v2419
    %v2788 = vunpack.c.l.s8.bf16 %v2420
    %v2789 = vunpack.c.l.s8.bf16 %v2421
    %v2790 = vunpack.c.l.s8.bf16 %v2422
    %v2791 = vunpack.c.l.s8.bf16 %v2423
    %v2792 = vunpack.c.l.s8.bf16 %v2424
    %v2793 = vunpack.c.l.s8.bf16 %v2425
    %v2794 = vunpack.c.l.s8.bf16 %v2426
    %v2795 = vunpack.c.l.s8.bf16 %v2427
    %v2796 = vunpack.c.h.s8.bf16 %v2412
    %v2797 = vunpack.c.h.s8.bf16 %v2413
    %v2798 = vunpack.c.h.s8.bf16 %v2414
    %v2799 = vunpack.c.h.s8.bf16 %v2415
    %v2800 = vunpack.c.h.s8.bf16 %v2416
    %v2801 = vunpack.c.h.s8.bf16 %v2417
    %v2802 = vunpack.c.h.s8.bf16 %v2418
    %v2803 = vunpack.c.h.s8.bf16 %v2419
    %v2804 = vunpack.c.h.s8.bf16 %v2420
    %v2805 = vunpack.c.h.s8.bf16 %v2421
    %v2806 = vunpack.c.h.s8.bf16 %v2422
    %v2807 = vunpack.c.h.s8.bf16 %v2423
    %v2808 = vunpack.c.h.s8.bf16 %v2424
    %v2809 = vunpack.c.h.s8.bf16 %v2425
    %v2810 = vunpack.c.h.s8.bf16 %v2426
    %v2811 = vunpack.c.h.s8.bf16 %v2427
    %v2812 = vunpack.c.l.s8.bf16 %v2428
    %v2813 = vunpack.c.l.s8.bf16 %v2429
    %v2814 = vunpack.c.l.s8.bf16 %v2430
    %v2815 = vunpack.c.l.s8.bf16 %v2431
    %v2816 = vunpack.c.l.s8.bf16 %v2432
    %v2817 = vunpack.c.l.s8.bf16 %v2433
    %v2818 = vunpack.c.l.s8.bf16 %v2434
    %v2819 = vunpack.c.l.s8.bf16 %v2435
    %v2820 = vunpack.c.l.s8.bf16 %v2436
    %v2821 = vunpack.c.l.s8.bf16 %v2437
    %v2822 = vunpack.c.l.s8.bf16 %v2438
    %v2823 = vunpack.c.l.s8.bf16 %v2439
    %v2824 = vunpack.c.l.s8.bf16 %v2440
    %v2825 = vunpack.c.l.s8.bf16 %v2441
    %v2826 = vunpack.c.l.s8.bf16 %v2442
    %v2827 = vunpack.c.l.s8.bf16 %v2443
    %v2828 = vunpack.c.h.s8.bf16 %v2428
    %v2829 = vunpack.c.h.s8.bf16 %v2429
    %v2830 = vunpack.c.h.s8.bf16 %v2430
    %v2831 = vunpack.c.h.s8.bf16 %v2431
    %v2832 = vunpack.c.h.s8.bf16 %v2432
    %v2833 = vunpack.c.h.s8.bf16 %v2433
    %v2834 = vunpack.c.h.s8.bf16 %v2434
    %v2835 = vunpack.c.h.s8.bf16 %v2435
    %v2836 = vunpack.c.h.s8.bf16 %v2436
    %v2837 = vunpack.c.h.s8.bf16 %v2437
    %v2838 = vunpack.c.h.s8.bf16 %v2438
    %v2839 = vunpack.c.h.s8.bf16 %v2439
    %v2840 = vunpack.c.h.s8.bf16 %v2440
    %v2841 = vunpack.c.h.s8.bf16 %v2441
    %v2842 = vunpack.c.h.s8.bf16 %v2442
    %v2843 = vunpack.c.h.s8.bf16 %v2443
    %v2844 = vunpack.c.l.s8.bf16 %v2444
    %v2845 = vunpack.c.l.s8.bf16 %v2445
    %v2846 = vunpack.c.l.s8.bf16 %v2446
    %v2847 = vunpack.c.l.s8.bf16 %v2447
    %v2848 = vunpack.c.l.s8.bf16 %v2448
    %v2849 = vunpack.c.l.s8.bf16 %v2449
    %v2850 = vunpack.c.l.s8.bf16 %v2450
    %v2851 = vunpack.c.l.s8.bf16 %v2451
    %v2852 = vunpack.c.l.s8.bf16 %v2452
    %v2853 = vunpack.c.l.s8.bf16 %v2453
    %v2854 = vunpack.c.l.s8.bf16 %v2454
    %v2855 = vunpack.c.l.s8.bf16 %v2455
    %v2856 = vunpack.c.l.s8.bf16 %v2456
    %v2857 = vunpack.c.l.s8.bf16 %v2457
    %v2858 = vunpack.c.l.s8.bf16 %v2458
    %v2859 = vunpack.c.l.s8.bf16 %v2459
    %v2860 = vunpack.c.h.s8.bf16 %v2444
    %v2861 = vunpack.c.h.s8.bf16 %v2445
    %v2862 = vunpack.c.h.s8.bf16 %v2446
    %v2863 = vunpack.c.h.s8.bf16 %v2447
    %v2864 = vunpack.c.h.s8.bf16 %v2448
    %v2865 = vunpack.c.h.s8.bf16 %v2449
    %v2866 = vunpack.c.h.s8.bf16 %v2450
    %v2867 = vunpack.c.h.s8.bf16 %v2451
    %v2868 = vunpack.c.h.s8.bf16 %v2452
    %v2869 = vunpack.c.h.s8.bf16 %v2453
    %v2870 = vunpack.c.h.s8.bf16 %v2454
    %v2871 = vunpack.c.h.s8.bf16 %v2455
    %v2872 = vunpack.c.h.s8.bf16 %v2456
    %v2873 = vunpack.c.h.s8.bf16 %v2457
    %v2874 = vunpack.c.h.s8.bf16 %v2458
    %v2875 = vunpack.c.h.s8.bf16 %v2459
    %v2876 = vunpack.c.l.s8.bf16 %v2460
    %v2877 = vunpack.c.l.s8.bf16 %v2461
    %v2878 = vunpack.c.l.s8.bf16 %v2462
    %v2879 = vunpack.c.l.s8.bf16 %v2463
    %v2880 = vunpack.c.l.s8.bf16 %v2464
    %v2881 = vunpack.c.l.s8.bf16 %v2465
    %v2882 = vunpack.c.l.s8.bf16 %v2466
    %v2883 = vunpack.c.l.s8.bf16 %v2467
    %v2884 = vunpack.c.l.s8.bf16 %v2468
    %v2885 = vunpack.c.l.s8.bf16 %v2469
    %v2886 = vunpack.c.l.s8.bf16 %v2470
    %v2887 = vunpack.c.l.s8.bf16 %v2471
    %v2888 = vunpack.c.l.s8.bf16 %v2472
    %v2889 = vunpack.c.l.s8.bf16 %v2473
    %v2890 = vunpack.c.l.s8.bf16 %v2474
    %v2891 = vunpack.c.l.s8.bf16 %v2475
    %v2892 = vunpack.c.h.s8.bf16 %v2460
    %v2893 = vunpack.c.h.s8.bf16 %v2461
    %v2894 = vunpack.c.h.s8.bf16 %v2462
    %v2895 = vunpack.c.h.s8.bf16 %v2463
    %v2896 = vunpack.c.h.s8.bf16 %v2464
    %v2897 = vunpack.c.h.s8.bf16 %v2465
    %v2898 = vunpack.c.h.s8.bf16 %v2466
    %v2899 = vunpack.c.h.s8.bf16 %v2467
    %v2900 = vunpack.c.h.s8.bf16 %v2468
    %v2901 = vunpack.c.h.s8.bf16 %v2469
    %v2902 = vunpack.c.h.s8.bf16 %v2470
    %v2903 = vunpack.c.h.s8.bf16 %v2471
    %v2904 = vunpack.c.h.s8.bf16 %v2472
    %v2905 = vunpack.c.h.s8.bf16 %v2473
    %v2906 = vunpack.c.h.s8.bf16 %v2474
    %v2907 = vunpack.c.h.s8.bf16 %v2475
    %v2908 = vunpack.c.l.s8.bf16 %v2476
    %v2909 = vunpack.c.l.s8.bf16 %v2477
    %v2910 = vunpack.c.l.s8.bf16 %v2478
    %v2911 = vunpack.c.l.s8.bf16 %v2479
    %v2912 = vunpack.c.l.s8.bf16 %v2480
    %v2913 = vunpack.c.l.s8.bf16 %v2481
    %v2914 = vunpack.c.l.s8.bf16 %v2482
    %v2915 = vunpack.c.l.s8.bf16 %v2483
    %v2916 = vunpack.c.l.s8.bf16 %v2484
    %v2917 = vunpack.c.l.s8.bf16 %v2485
    %v2918 = vunpack.c.l.s8.bf16 %v2486
    %v2919 = vunpack.c.l.s8.bf16 %v2487
    %v2920 = vunpack.c.l.s8.bf16 %v2488
    %v2921 = vunpack.c.l.s8.bf16 %v2489
    %v2922 = vunpack.c.l.s8.bf16 %v2490
    %v2923 = vunpack.c.l.s8.bf16 %v2491
    %v2924 = vunpack.c.h.s8.bf16 %v2476
    %v2925 = vunpack.c.h.s8.bf16 %v2477
    %v2926 = vunpack.c.h.s8.bf16 %v2478
    %v2927 = vunpack.c.h.s8.bf16 %v2479
    %v2928 = vunpack.c.h.s8.bf16 %v2480
    %v2929 = vunpack.c.h.s8.bf16 %v2481
    %v2930 = vunpack.c.h.s8.bf16 %v2482
    %v2931 = vunpack.c.h.s8.bf16 %v2483
    %v2932 = vunpack.c.h.s8.bf16 %v2484
    %v2933 = vunpack.c.h.s8.bf16 %v2485
    %v2934 = vunpack.c.h.s8.bf16 %v2486
    %v2935 = vunpack.c.h.s8.bf16 %v2487
    %v2936 = vunpack.c.h.s8.bf16 %v2488
    %v2937 = vunpack.c.h.s8.bf16 %v2489
    %v2938 = vunpack.c.h.s8.bf16 %v2490
    %v2939 = vunpack.c.h.s8.bf16 %v2491
    %v2940 = vunpack.c.l.s8.bf16 %v2492
    %v2941 = vunpack.c.l.s8.bf16 %v2493
    %v2942 = vunpack.c.l.s8.bf16 %v2494
    %v2943 = vunpack.c.l.s8.bf16 %v2495
    %v2944 = vunpack.c.l.s8.bf16 %v2496
    %v2945 = vunpack.c.l.s8.bf16 %v2497
    %v2946 = vunpack.c.l.s8.bf16 %v2498
    %v2947 = vunpack.c.l.s8.bf16 %v2499
    %v2948 = vunpack.c.l.s8.bf16 %v2500
    %v2949 = vunpack.c.l.s8.bf16 %v2501
    %v2950 = vunpack.c.l.s8.bf16 %v2502
    %v2951 = vunpack.c.l.s8.bf16 %v2503
    %v2952 = vunpack.c.l.s8.bf16 %v2504
    %v2953 = vunpack.c.l.s8.bf16 %v2505
    %v2954 = vunpack.c.l.s8.bf16 %v2506
    %v2955 = vunpack.c.l.s8.bf16 %v2507
    %v2956 = vunpack.c.h.s8.bf16 %v2492
    %v2957 = vunpack.c.h.s8.bf16 %v2493
    %v2958 = vunpack.c.h.s8.bf16 %v2494
    %v2959 = vunpack.c.h.s8.bf16 %v2495
    %v2960 = vunpack.c.h.s8.bf16 %v2496
    %v2961 = vunpack.c.h.s8.bf16 %v2497
    %v2962 = vunpack.c.h.s8.bf16 %v2498
    %v2963 = vunpack.c.h.s8.bf16 %v2499
    %v2964 = vunpack.c.h.s8.bf16 %v2500
    %v2965 = vunpack.c.h.s8.bf16 %v2501
    %v2966 = vunpack.c.h.s8.bf16 %v2502
    %v2967 = vunpack.c.h.s8.bf16 %v2503
    %v2968 = vunpack.c.h.s8.bf16 %v2504
    %v2969 = vunpack.c.h.s8.bf16 %v2505
    %v2970 = vunpack.c.h.s8.bf16 %v2506
    %v2971 = vunpack.c.h.s8.bf16 %v2507
    %v2972 = vunpack.c.l.s8.bf16 %v2508
    %v2973 = vunpack.c.l.s8.bf16 %v2509
    %v2974 = vunpack.c.l.s8.bf16 %v2510
    %v2975 = vunpack.c.l.s8.bf16 %v2511
    %v2976 = vunpack.c.l.s8.bf16 %v2512
    %v2977 = vunpack.c.l.s8.bf16 %v2513
    %v2978 = vunpack.c.l.s8.bf16 %v2514
    %v2979 = vunpack.c.l.s8.bf16 %v2515
    %v2980 = vunpack.c.l.s8.bf16 %v2516
    %v2981 = vunpack.c.l.s8.bf16 %v2517
    %v2982 = vunpack.c.l.s8.bf16 %v2518
    %v2983 = vunpack.c.l.s8.bf16 %v2519
    %v2984 = vunpack.c.l.s8.bf16 %v2520
    %v2985 = vunpack.c.l.s8.bf16 %v2521
    %v2986 = vunpack.c.l.s8.bf16 %v2522
    %v2987 = vunpack.c.l.s8.bf16 %v2523
    %v2988 = vunpack.c.h.s8.bf16 %v2508
    %v2989 = vunpack.c.h.s8.bf16 %v2509
    %v2990 = vunpack.c.h.s8.bf16 %v2510
    %v2991 = vunpack.c.h.s8.bf16 %v2511
    %v2992 = vunpack.c.h.s8.bf16 %v2512
    %v2993 = vunpack.c.h.s8.bf16 %v2513
    %v2994 = vunpack.c.h.s8.bf16 %v2514
    %v2995 = vunpack.c.h.s8.bf16 %v2515
    %v2996 = vunpack.c.h.s8.bf16 %v2516
    %v2997 = vunpack.c.h.s8.bf16 %v2517
    %v2998 = vunpack.c.h.s8.bf16 %v2518
    %v2999 = vunpack.c.h.s8.bf16 %v2519
    %v3000 = vunpack.c.h.s8.bf16 %v2520
    %v3001 = vunpack.c.h.s8.bf16 %v2521
    %v3002 = vunpack.c.h.s8.bf16 %v2522
    %v3003 = vunpack.c.h.s8.bf16 %v2523
    %v3004 = vunpack.c.l.s8.bf16 %v2524
    %v3005 = vunpack.c.l.s8.bf16 %v2525
    %v3006 = vunpack.c.l.s8.bf16 %v2526
    %v3007 = vunpack.c.l.s8.bf16 %v2527
    %v3008 = vunpack.c.l.s8.bf16 %v2528
    %v3009 = vunpack.c.l.s8.bf16 %v2529
    %v3010 = vunpack.c.l.s8.bf16 %v2530
    %v3011 = vunpack.c.l.s8.bf16 %v2531
    %v3012 = vunpack.c.l.s8.bf16 %v2532
    %v3013 = vunpack.c.l.s8.bf16 %v2533
    %v3014 = vunpack.c.l.s8.bf16 %v2534
    %v3015 = vunpack.c.l.s8.bf16 %v2535
    %v3016 = vunpack.c.l.s8.bf16 %v2536
    %v3017 = vunpack.c.l.s8.bf16 %v2537
    %v3018 = vunpack.c.l.s8.bf16 %v2538
    %v3019 = vunpack.c.l.s8.bf16 %v2539
    %v3020 = vunpack.c.h.s8.bf16 %v2524
    %v3021 = vunpack.c.h.s8.bf16 %v2525
    %v3022 = vunpack.c.h.s8.bf16 %v2526
    %v3023 = vunpack.c.h.s8.bf16 %v2527
    %v3024 = vunpack.c.h.s8.bf16 %v2528
    %v3025 = vunpack.c.h.s8.bf16 %v2529
    %v3026 = vunpack.c.h.s8.bf16 %v2530
    %v3027 = vunpack.c.h.s8.bf16 %v2531
    %v3028 = vunpack.c.h.s8.bf16 %v2532
    %v3029 = vunpack.c.h.s8.bf16 %v2533
    %v3030 = vunpack.c.h.s8.bf16 %v2534
    %v3031 = vunpack.c.h.s8.bf16 %v2535
    %v3032 = vunpack.c.h.s8.bf16 %v2536
    %v3033 = vunpack.c.h.s8.bf16 %v2537
    %v3034 = vunpack.c.h.s8.bf16 %v2538
    %v3035 = vunpack.c.h.s8.bf16 %v2539
    %v3036 = vunpack.c.l.s8.bf16 %v2540
    %v3037 = vunpack.c.l.s8.bf16 %v2541
    %v3038 = vunpack.c.l.s8.bf16 %v2542
    %v3039 = vunpack.c.l.s8.bf16 %v2543
    %v3040 = vunpack.c.l.s8.bf16 %v2544
    %v3041 = vunpack.c.l.s8.bf16 %v2545
    %v3042 = vunpack.c.l.s8.bf16 %v2546
    %v3043 = vunpack.c.l.s8.bf16 %v2547
    %v3044 = vunpack.c.l.s8.bf16 %v2548
    %v3045 = vunpack.c.l.s8.bf16 %v2549
    %v3046 = vunpack.c.l.s8.bf16 %v2550
    %v3047 = vunpack.c.l.s8.bf16 %v2551
    %v3048 = vunpack.c.l.s8.bf16 %v2552
    %v3049 = vunpack.c.l.s8.bf16 %v2553
    %v3050 = vunpack.c.l.s8.bf16 %v2554
    %v3051 = vunpack.c.l.s8.bf16 %v2555
    %v3052 = vunpack.c.h.s8.bf16 %v2540
    %v3053 = vunpack.c.h.s8.bf16 %v2541
    %v3054 = vunpack.c.h.s8.bf16 %v2542
    %v3055 = vunpack.c.h.s8.bf16 %v2543
    %v3056 = vunpack.c.h.s8.bf16 %v2544
    %v3057 = vunpack.c.h.s8.bf16 %v2545
    %v3058 = vunpack.c.h.s8.bf16 %v2546
    %v3059 = vunpack.c.h.s8.bf16 %v2547
    %v3060 = vunpack.c.h.s8.bf16 %v2548
    %v3061 = vunpack.c.h.s8.bf16 %v2549
    %v3062 = vunpack.c.h.s8.bf16 %v2550
    %v3063 = vunpack.c.h.s8.bf16 %v2551
    %v3064 = vunpack.c.h.s8.bf16 %v2552
    %v3065 = vunpack.c.h.s8.bf16 %v2553
    %v3066 = vunpack.c.h.s8.bf16 %v2554
    %v3067 = vunpack.c.h.s8.bf16 %v2555
    %s3068 = scalar_lea.hbm %s4, 65536
    // Predicated region
    $region42: #{improved_codebert_classifier_fwd.1} parent=1 // pred_check
      _
    $region43: #{improved_codebert_classifier_fwd.1} parent=1 // pred_check_branch
      %3070 = sbr.rel target = $region45
    $region44: #{improved_codebert_classifier_fwd.1} parent=1 // pred_region
      %3071 = sst [smem:[#allocation15]] [#allocation20]
      %3072 = sst [smem:[#allocation16]] [#allocation19]
    $region45: #{improved_codebert_classifier_fwd.1} parent=1 // pred_fallthru
      _
    %3074 = shalt.err (0)
    %s3076 = sshll.u32 [#allocation2], 4
    %s3077 = int_to_ptr.vmem [resolvable:$true] %s3076
    %3079 = dma.hbm_to_vmem [thread:$0]  %s3068, 32768, %s3077, [#allocation4]
    %s3080 = sshll.u32 %s2297, 4
    %3081 = dma.done %s83, %s3080
    %v3082 = vld [vmem:[%s82] sm:$0xff]
    %v3083 = vld [vmem:[%s82 + $0x8] sm:$0xff]
    %v3084 = vld [vmem:[%s82 + $0x10] sm:$0xff]
    %v3085 = vld [vmem:[%s82 + $0x18] sm:$0xff]
    %v3086 = vld [vmem:[%s82 + $0x20] sm:$0xff]
    %v3087 = vld [vmem:[%s82 + $0x28] sm:$0xff]
    %v3088 = vld [vmem:[%s82 + $0x30] sm:$0xff]
    %v3089 = vld [vmem:[%s82 + $0x38] sm:$0xff]
    %v3090 = vld [vmem:[%s82 + $0x40] sm:$0xff]
    %v3091 = vld [vmem:[%s82 + $0x48] sm:$0xff]
    %v3092 = vld [vmem:[%s82 + $0x50] sm:$0xff]
    %v3093 = vld [vmem:[%s82 + $0x58] sm:$0xff]
    %v3094 = vld [vmem:[%s82 + $0x60] sm:$0xff]
    %v3095 = vld [vmem:[%s82 + $0x68] sm:$0xff]
    %v3096 = vld [vmem:[%s82 + $0x70] sm:$0xff]
    %v3097 = vld [vmem:[%s82 + $0x78] sm:$0xff]
    %v3098 = vld [vmem:[%s82 + $0x80] sm:$0xff]
    %v3099 = vld [vmem:[%s82 + $0x88] sm:$0xff]
    %v3100 = vld [vmem:[%s82 + $0x90] sm:$0xff]
    %v3101 = vld [vmem:[%s82 + $0x98] sm:$0xff]
    %v3102 = vld [vmem:[%s82 + $0xa0] sm:$0xff]
    %v3103 = vld [vmem:[%s82 + $0xa8] sm:$0xff]
    %v3104 = vld [vmem:[%s82 + $0xb0] sm:$0xff]
    %v3105 = vld [vmem:[%s82 + $0xb8] sm:$0xff]
    %v3106 = vld [vmem:[%s82 + $0xc0] sm:$0xff]
    %v3107 = vld [vmem:[%s82 + $0xc8] sm:$0xff]
    %v3108 = vld [vmem:[%s82 + $0xd0] sm:$0xff]
    %v3109 = vld [vmem:[%s82 + $0xd8] sm:$0xff]
    %v3110 = vld [vmem:[%s82 + $0xe0] sm:$0xff]
    %v3111 = vld [vmem:[%s82 + $0xe8] sm:$0xff]
    %v3112 = vld [vmem:[%s82 + $0xf0] sm:$0xff]
    %v3113 = vld [vmem:[%s82 + $0xf8] sm:$0xff]
    %v3114 = vld [vmem:[%s82 + $0x100] sm:$0xff]
    %v3115 = vld [vmem:[%s82 + $0x108] sm:$0xff]
    %v3116 = vld [vmem:[%s82 + $0x110] sm:$0xff]
    %v3117 = vld [vmem:[%s82 + $0x118] sm:$0xff]
    %v3118 = vld [vmem:[%s82 + $0x120] sm:$0xff]
    %v3119 = vld [vmem:[%s82 + $0x128] sm:$0xff]
    %v3120 = vld [vmem:[%s82 + $0x130] sm:$0xff]
    %v3121 = vld [vmem:[%s82 + $0x138] sm:$0xff]
    %v3122 = vld [vmem:[%s82 + $0x140] sm:$0xff]
    %v3123 = vld [vmem:[%s82 + $0x148] sm:$0xff]
    %v3124 = vld [vmem:[%s82 + $0x150] sm:$0xff]
    %v3125 = vld [vmem:[%s82 + $0x158] sm:$0xff]
    %v3126 = vld [vmem:[%s82 + $0x160] sm:$0xff]
    %v3127 = vld [vmem:[%s82 + $0x168] sm:$0xff]
    %v3128 = vld [vmem:[%s82 + $0x170] sm:$0xff]
    %v3129 = vld [vmem:[%s82 + $0x178] sm:$0xff]
    %v3130 = vld [vmem:[%s82 + $0x180] sm:$0xff]
    %v3131 = vld [vmem:[%s82 + $0x188] sm:$0xff]
    %v3132 = vld [vmem:[%s82 + $0x190] sm:$0xff]
    %v3133 = vld [vmem:[%s82 + $0x198] sm:$0xff]
    %v3134 = vld [vmem:[%s82 + $0x1a0] sm:$0xff]
    %v3135 = vld [vmem:[%s82 + $0x1a8] sm:$0xff]
    %v3136 = vld [vmem:[%s82 + $0x1b0] sm:$0xff]
    %v3137 = vld [vmem:[%s82 + $0x1b8] sm:$0xff]
    %v3138 = vld [vmem:[%s82 + $0x1c0] sm:$0xff]
    %v3139 = vld [vmem:[%s82 + $0x1c8] sm:$0xff]
    %v3140 = vld [vmem:[%s82 + $0x1d0] sm:$0xff]
    %v3141 = vld [vmem:[%s82 + $0x1d8] sm:$0xff]
    %v3142 = vld [vmem:[%s82 + $0x1e0] sm:$0xff]
    %v3143 = vld [vmem:[%s82 + $0x1e8] sm:$0xff]
    %v3144 = vld [vmem:[%s82 + $0x1f0] sm:$0xff]
    %v3145 = vld [vmem:[%s82 + $0x1f8] sm:$0xff]
    %v3146 = vld [vmem:[%s82 + $0x200] sm:$0xff]
    %v3147 = vld [vmem:[%s82 + $0x208] sm:$0xff]
    %v3148 = vld [vmem:[%s82 + $0x210] sm:$0xff]
    %v3149 = vld [vmem:[%s82 + $0x218] sm:$0xff]
    %v3150 = vld [vmem:[%s82 + $0x220] sm:$0xff]
    %v3151 = vld [vmem:[%s82 + $0x228] sm:$0xff]
    %v3152 = vld [vmem:[%s82 + $0x230] sm:$0xff]
    %v3153 = vld [vmem:[%s82 + $0x238] sm:$0xff]
    %v3154 = vld [vmem:[%s82 + $0x240] sm:$0xff]
    %v3155 = vld [vmem:[%s82 + $0x248] sm:$0xff]
    %v3156 = vld [vmem:[%s82 + $0x250] sm:$0xff]
    %v3157 = vld [vmem:[%s82 + $0x258] sm:$0xff]
    %v3158 = vld [vmem:[%s82 + $0x260] sm:$0xff]
    %v3159 = vld [vmem:[%s82 + $0x268] sm:$0xff]
    %v3160 = vld [vmem:[%s82 + $0x270] sm:$0xff]
    %v3161 = vld [vmem:[%s82 + $0x278] sm:$0xff]
    %v3162 = vld [vmem:[%s82 + $0x280] sm:$0xff]
    %v3163 = vld [vmem:[%s82 + $0x288] sm:$0xff]
    %v3164 = vld [vmem:[%s82 + $0x290] sm:$0xff]
    %v3165 = vld [vmem:[%s82 + $0x298] sm:$0xff]
    %v3166 = vld [vmem:[%s82 + $0x2a0] sm:$0xff]
    %v3167 = vld [vmem:[%s82 + $0x2a8] sm:$0xff]
    %v3168 = vld [vmem:[%s82 + $0x2b0] sm:$0xff]
    %v3169 = vld [vmem:[%s82 + $0x2b8] sm:$0xff]
    %v3170 = vld [vmem:[%s82 + $0x2c0] sm:$0xff]
    %v3171 = vld [vmem:[%s82 + $0x2c8] sm:$0xff]
    %v3172 = vld [vmem:[%s82 + $0x2d0] sm:$0xff]
    %v3173 = vld [vmem:[%s82 + $0x2d8] sm:$0xff]
    %v3174 = vld [vmem:[%s82 + $0x2e0] sm:$0xff]
    %v3175 = vld [vmem:[%s82 + $0x2e8] sm:$0xff]
    %v3176 = vld [vmem:[%s82 + $0x2f0] sm:$0xff]
    %v3177 = vld [vmem:[%s82 + $0x2f8] sm:$0xff]
    %v3178 = vld [vmem:[%s82 + $0x300] sm:$0xff]
    %v3179 = vld [vmem:[%s82 + $0x308] sm:$0xff]
    %v3180 = vld [vmem:[%s82 + $0x310] sm:$0xff]
    %v3181 = vld [vmem:[%s82 + $0x318] sm:$0xff]
    %v3182 = vld [vmem:[%s82 + $0x320] sm:$0xff]
    %v3183 = vld [vmem:[%s82 + $0x328] sm:$0xff]
    %v3184 = vld [vmem:[%s82 + $0x330] sm:$0xff]
    %v3185 = vld [vmem:[%s82 + $0x338] sm:$0xff]
    %v3186 = vld [vmem:[%s82 + $0x340] sm:$0xff]
    %v3187 = vld [vmem:[%s82 + $0x348] sm:$0xff]
    %v3188 = vld [vmem:[%s82 + $0x350] sm:$0xff]
    %v3189 = vld [vmem:[%s82 + $0x358] sm:$0xff]
    %v3190 = vld [vmem:[%s82 + $0x360] sm:$0xff]
    %v3191 = vld [vmem:[%s82 + $0x368] sm:$0xff]
    %v3192 = vld [vmem:[%s82 + $0x370] sm:$0xff]
    %v3193 = vld [vmem:[%s82 + $0x378] sm:$0xff]
    %v3194 = vld [vmem:[%s82 + $0x380] sm:$0xff]
    %v3195 = vld [vmem:[%s82 + $0x388] sm:$0xff]
    %v3196 = vld [vmem:[%s82 + $0x390] sm:$0xff]
    %v3197 = vld [vmem:[%s82 + $0x398] sm:$0xff]
    %v3198 = vld [vmem:[%s82 + $0x3a0] sm:$0xff]
    %v3199 = vld [vmem:[%s82 + $0x3a8] sm:$0xff]
    %v3200 = vld [vmem:[%s82 + $0x3b0] sm:$0xff]
    %v3201 = vld [vmem:[%s82 + $0x3b8] sm:$0xff]
    %v3202 = vld [vmem:[%s82 + $0x3c0] sm:$0xff]
    %v3203 = vld [vmem:[%s82 + $0x3c8] sm:$0xff]
    %v3204 = vld [vmem:[%s82 + $0x3d0] sm:$0xff]
    %v3205 = vld [vmem:[%s82 + $0x3d8] sm:$0xff]
    %v3206 = vld [vmem:[%s82 + $0x3e0] sm:$0xff]
    %v3207 = vld [vmem:[%s82 + $0x3e8] sm:$0xff]
    %v3208 = vld [vmem:[%s82 + $0x3f0] sm:$0xff]
    %v3209 = vld [vmem:[%s82 + $0x3f8] sm:$0xff]
    %v3210 = vld [vmem:[%s82 + $0x400] sm:$0xff]
    %v3211 = vld [vmem:[%s82 + $0x408] sm:$0xff]
    %v3212 = vld [vmem:[%s82 + $0x410] sm:$0xff]
    %v3213 = vld [vmem:[%s82 + $0x418] sm:$0xff]
    %v3214 = vld [vmem:[%s82 + $0x420] sm:$0xff]
    %v3215 = vld [vmem:[%s82 + $0x428] sm:$0xff]
    %v3216 = vld [vmem:[%s82 + $0x430] sm:$0xff]
    %v3217 = vld [vmem:[%s82 + $0x438] sm:$0xff]
    %v3218 = vld [vmem:[%s82 + $0x440] sm:$0xff]
    %v3219 = vld [vmem:[%s82 + $0x448] sm:$0xff]
    %v3220 = vld [vmem:[%s82 + $0x450] sm:$0xff]
    %v3221 = vld [vmem:[%s82 + $0x458] sm:$0xff]
    %v3222 = vld [vmem:[%s82 + $0x460] sm:$0xff]
    %v3223 = vld [vmem:[%s82 + $0x468] sm:$0xff]
    %v3224 = vld [vmem:[%s82 + $0x470] sm:$0xff]
    %v3225 = vld [vmem:[%s82 + $0x478] sm:$0xff]
    %v3226 = vld [vmem:[%s82 + $0x480] sm:$0xff]
    %v3227 = vld [vmem:[%s82 + $0x488] sm:$0xff]
    %v3228 = vld [vmem:[%s82 + $0x490] sm:$0xff]
    %v3229 = vld [vmem:[%s82 + $0x498] sm:$0xff]
    %v3230 = vld [vmem:[%s82 + $0x4a0] sm:$0xff]
    %v3231 = vld [vmem:[%s82 + $0x4a8] sm:$0xff]
    %v3232 = vld [vmem:[%s82 + $0x4b0] sm:$0xff]
    %v3233 = vld [vmem:[%s82 + $0x4b8] sm:$0xff]
    %v3234 = vld [vmem:[%s82 + $0x4c0] sm:$0xff]
    %v3235 = vld [vmem:[%s82 + $0x4c8] sm:$0xff]
    %v3236 = vld [vmem:[%s82 + $0x4d0] sm:$0xff]
    %v3237 = vld [vmem:[%s82 + $0x4d8] sm:$0xff]
    %v3238 = vld [vmem:[%s82 + $0x4e0] sm:$0xff]
    %v3239 = vld [vmem:[%s82 + $0x4e8] sm:$0xff]
    %v3240 = vld [vmem:[%s82 + $0x4f0] sm:$0xff]
    %v3241 = vld [vmem:[%s82 + $0x4f8] sm:$0xff]
    %v3242 = vld [vmem:[%s82 + $0x500] sm:$0xff]
    %v3243 = vld [vmem:[%s82 + $0x508] sm:$0xff]
    %v3244 = vld [vmem:[%s82 + $0x510] sm:$0xff]
    %v3245 = vld [vmem:[%s82 + $0x518] sm:$0xff]
    %v3246 = vld [vmem:[%s82 + $0x520] sm:$0xff]
    %v3247 = vld [vmem:[%s82 + $0x528] sm:$0xff]
    %v3248 = vld [vmem:[%s82 + $0x530] sm:$0xff]
    %v3249 = vld [vmem:[%s82 + $0x538] sm:$0xff]
    %v3250 = vld [vmem:[%s82 + $0x540] sm:$0xff]
    %v3251 = vld [vmem:[%s82 + $0x548] sm:$0xff]
    %v3252 = vld [vmem:[%s82 + $0x550] sm:$0xff]
    %v3253 = vld [vmem:[%s82 + $0x558] sm:$0xff]
    %v3254 = vld [vmem:[%s82 + $0x560] sm:$0xff]
    %v3255 = vld [vmem:[%s82 + $0x568] sm:$0xff]
    %v3256 = vld [vmem:[%s82 + $0x570] sm:$0xff]
    %v3257 = vld [vmem:[%s82 + $0x578] sm:$0xff]
    %v3258 = vld [vmem:[%s82 + $0x580] sm:$0xff]
    %v3259 = vld [vmem:[%s82 + $0x588] sm:$0xff]
    %v3260 = vld [vmem:[%s82 + $0x590] sm:$0xff]
    %v3261 = vld [vmem:[%s82 + $0x598] sm:$0xff]
    %v3262 = vld [vmem:[%s82 + $0x5a0] sm:$0xff]
    %v3263 = vld [vmem:[%s82 + $0x5a8] sm:$0xff]
    %v3264 = vld [vmem:[%s82 + $0x5b0] sm:$0xff]
    %v3265 = vld [vmem:[%s82 + $0x5b8] sm:$0xff]
    %v3266 = vld [vmem:[%s82 + $0x5c0] sm:$0xff]
    %v3267 = vld [vmem:[%s82 + $0x5c8] sm:$0xff]
    %v3268 = vld [vmem:[%s82 + $0x5d0] sm:$0xff]
    %v3269 = vld [vmem:[%s82 + $0x5d8] sm:$0xff]
    %v3270 = vld [vmem:[%s82 + $0x5e0] sm:$0xff]
    %v3271 = vld [vmem:[%s82 + $0x5e8] sm:$0xff]
    %v3272 = vld [vmem:[%s82 + $0x5f0] sm:$0xff]
    %v3273 = vld [vmem:[%s82 + $0x5f8] sm:$0xff]
    %v3274 = vld [vmem:[%s82 + $0x600] sm:$0xff]
    %v3275 = vld [vmem:[%s82 + $0x608] sm:$0xff]
    %v3276 = vld [vmem:[%s82 + $0x610] sm:$0xff]
    %v3277 = vld [vmem:[%s82 + $0x618] sm:$0xff]
    %v3278 = vld [vmem:[%s82 + $0x620] sm:$0xff]
    %v3279 = vld [vmem:[%s82 + $0x628] sm:$0xff]
    %v3280 = vld [vmem:[%s82 + $0x630] sm:$0xff]
    %v3281 = vld [vmem:[%s82 + $0x638] sm:$0xff]
    %v3282 = vld [vmem:[%s82 + $0x640] sm:$0xff]
    %v3283 = vld [vmem:[%s82 + $0x648] sm:$0xff]
    %v3284 = vld [vmem:[%s82 + $0x650] sm:$0xff]
    %v3285 = vld [vmem:[%s82 + $0x658] sm:$0xff]
    %v3286 = vld [vmem:[%s82 + $0x660] sm:$0xff]
    %v3287 = vld [vmem:[%s82 + $0x668] sm:$0xff]
    %v3288 = vld [vmem:[%s82 + $0x670] sm:$0xff]
    %v3289 = vld [vmem:[%s82 + $0x678] sm:$0xff]
    %v3290 = vld [vmem:[%s82 + $0x680] sm:$0xff]
    %v3291 = vld [vmem:[%s82 + $0x688] sm:$0xff]
    %v3292 = vld [vmem:[%s82 + $0x690] sm:$0xff]
    %v3293 = vld [vmem:[%s82 + $0x698] sm:$0xff]
    %v3294 = vld [vmem:[%s82 + $0x6a0] sm:$0xff]
    %v3295 = vld [vmem:[%s82 + $0x6a8] sm:$0xff]
    %v3296 = vld [vmem:[%s82 + $0x6b0] sm:$0xff]
    %v3297 = vld [vmem:[%s82 + $0x6b8] sm:$0xff]
    %v3298 = vld [vmem:[%s82 + $0x6c0] sm:$0xff]
    %v3299 = vld [vmem:[%s82 + $0x6c8] sm:$0xff]
    %v3300 = vld [vmem:[%s82 + $0x6d0] sm:$0xff]
    %v3301 = vld [vmem:[%s82 + $0x6d8] sm:$0xff]
    %v3302 = vld [vmem:[%s82 + $0x6e0] sm:$0xff]
    %v3303 = vld [vmem:[%s82 + $0x6e8] sm:$0xff]
    %v3304 = vld [vmem:[%s82 + $0x6f0] sm:$0xff]
    %v3305 = vld [vmem:[%s82 + $0x6f8] sm:$0xff]
    %v3306 = vld [vmem:[%s82 + $0x700] sm:$0xff]
    %v3307 = vld [vmem:[%s82 + $0x708] sm:$0xff]
    %v3308 = vld [vmem:[%s82 + $0x710] sm:$0xff]
    %v3309 = vld [vmem:[%s82 + $0x718] sm:$0xff]
    %v3310 = vld [vmem:[%s82 + $0x720] sm:$0xff]
    %v3311 = vld [vmem:[%s82 + $0x728] sm:$0xff]
    %v3312 = vld [vmem:[%s82 + $0x730] sm:$0xff]
    %v3313 = vld [vmem:[%s82 + $0x738] sm:$0xff]
    %v3314 = vld [vmem:[%s82 + $0x740] sm:$0xff]
    %v3315 = vld [vmem:[%s82 + $0x748] sm:$0xff]
    %v3316 = vld [vmem:[%s82 + $0x750] sm:$0xff]
    %v3317 = vld [vmem:[%s82 + $0x758] sm:$0xff]
    %v3318 = vld [vmem:[%s82 + $0x760] sm:$0xff]
    %v3319 = vld [vmem:[%s82 + $0x768] sm:$0xff]
    %v3320 = vld [vmem:[%s82 + $0x770] sm:$0xff]
    %v3321 = vld [vmem:[%s82 + $0x778] sm:$0xff]
    %v3322 = vld [vmem:[%s82 + $0x780] sm:$0xff]
    %v3323 = vld [vmem:[%s82 + $0x788] sm:$0xff]
    %v3324 = vld [vmem:[%s82 + $0x790] sm:$0xff]
    %v3325 = vld [vmem:[%s82 + $0x798] sm:$0xff]
    %v3326 = vld [vmem:[%s82 + $0x7a0] sm:$0xff]
    %v3327 = vld [vmem:[%s82 + $0x7a8] sm:$0xff]
    %v3328 = vld [vmem:[%s82 + $0x7b0] sm:$0xff]
    %v3329 = vld [vmem:[%s82 + $0x7b8] sm:$0xff]
    %v3330 = vld [vmem:[%s82 + $0x7c0] sm:$0xff]
    %v3331 = vld [vmem:[%s82 + $0x7c8] sm:$0xff]
    %v3332 = vld [vmem:[%s82 + $0x7d0] sm:$0xff]
    %v3333 = vld [vmem:[%s82 + $0x7d8] sm:$0xff]
    %v3334 = vld [vmem:[%s82 + $0x7e0] sm:$0xff]
    %v3335 = vld [vmem:[%s82 + $0x7e8] sm:$0xff]
    %v3336 = vld [vmem:[%s82 + $0x7f0] sm:$0xff]
    %v3337 = vld [vmem:[%s82 + $0x7f8] sm:$0xff]
    %v3338 = vunpack.c.l.s8.bf16 %v3082
    %v3339 = vunpack.c.l.s8.bf16 %v3083
    %v3340 = vunpack.c.l.s8.bf16 %v3084
    %v3341 = vunpack.c.l.s8.bf16 %v3085
    %v3342 = vunpack.c.l.s8.bf16 %v3086
    %v3343 = vunpack.c.l.s8.bf16 %v3087
    %v3344 = vunpack.c.l.s8.bf16 %v3088
    %v3345 = vunpack.c.l.s8.bf16 %v3089
    %v3346 = vunpack.c.l.s8.bf16 %v3090
    %v3347 = vunpack.c.l.s8.bf16 %v3091
    %v3348 = vunpack.c.l.s8.bf16 %v3092
    %v3349 = vunpack.c.l.s8.bf16 %v3093
    %v3350 = vunpack.c.l.s8.bf16 %v3094
    %v3351 = vunpack.c.l.s8.bf16 %v3095
    %v3352 = vunpack.c.l.s8.bf16 %v3096
    %v3353 = vunpack.c.l.s8.bf16 %v3097
    %v3354 = vunpack.c.h.s8.bf16 %v3082
    %v3355 = vunpack.c.h.s8.bf16 %v3083
    %v3356 = vunpack.c.h.s8.bf16 %v3084
    %v3357 = vunpack.c.h.s8.bf16 %v3085
    %v3358 = vunpack.c.h.s8.bf16 %v3086
    %v3359 = vunpack.c.h.s8.bf16 %v3087
    %v3360 = vunpack.c.h.s8.bf16 %v3088
    %v3361 = vunpack.c.h.s8.bf16 %v3089
    %v3362 = vunpack.c.h.s8.bf16 %v3090
    %v3363 = vunpack.c.h.s8.bf16 %v3091
    %v3364 = vunpack.c.h.s8.bf16 %v3092
    %v3365 = vunpack.c.h.s8.bf16 %v3093
    %v3366 = vunpack.c.h.s8.bf16 %v3094
    %v3367 = vunpack.c.h.s8.bf16 %v3095
    %v3368 = vunpack.c.h.s8.bf16 %v3096
    %v3369 = vunpack.c.h.s8.bf16 %v3097
    %v3370 = vunpack.c.l.s8.bf16 %v3098
    %v3371 = vunpack.c.l.s8.bf16 %v3099
    %v3372 = vunpack.c.l.s8.bf16 %v3100
    %v3373 = vunpack.c.l.s8.bf16 %v3101
    %v3374 = vunpack.c.l.s8.bf16 %v3102
    %v3375 = vunpack.c.l.s8.bf16 %v3103
    %v3376 = vunpack.c.l.s8.bf16 %v3104
    %v3377 = vunpack.c.l.s8.bf16 %v3105
    %v3378 = vunpack.c.l.s8.bf16 %v3106
    %v3379 = vunpack.c.l.s8.bf16 %v3107
    %v3380 = vunpack.c.l.s8.bf16 %v3108
    %v3381 = vunpack.c.l.s8.bf16 %v3109
    %v3382 = vunpack.c.l.s8.bf16 %v3110
    %v3383 = vunpack.c.l.s8.bf16 %v3111
    %v3384 = vunpack.c.l.s8.bf16 %v3112
    %v3385 = vunpack.c.l.s8.bf16 %v3113
    %v3386 = vunpack.c.h.s8.bf16 %v3098
    %v3387 = vunpack.c.h.s8.bf16 %v3099
    %v3388 = vunpack.c.h.s8.bf16 %v3100
    %v3389 = vunpack.c.h.s8.bf16 %v3101
    %v3390 = vunpack.c.h.s8.bf16 %v3102
    %v3391 = vunpack.c.h.s8.bf16 %v3103
    %v3392 = vunpack.c.h.s8.bf16 %v3104
    %v3393 = vunpack.c.h.s8.bf16 %v3105
    %v3394 = vunpack.c.h.s8.bf16 %v3106
    %v3395 = vunpack.c.h.s8.bf16 %v3107
    %v3396 = vunpack.c.h.s8.bf16 %v3108
    %v3397 = vunpack.c.h.s8.bf16 %v3109
    %v3398 = vunpack.c.h.s8.bf16 %v3110
    %v3399 = vunpack.c.h.s8.bf16 %v3111
    %v3400 = vunpack.c.h.s8.bf16 %v3112
    %v3401 = vunpack.c.h.s8.bf16 %v3113
    %v3402 = vunpack.c.l.s8.bf16 %v3114
    %v3403 = vunpack.c.l.s8.bf16 %v3115
    %v3404 = vunpack.c.l.s8.bf16 %v3116
    %v3405 = vunpack.c.l.s8.bf16 %v3117
    %v3406 = vunpack.c.l.s8.bf16 %v3118
    %v3407 = vunpack.c.l.s8.bf16 %v3119
    %v3408 = vunpack.c.l.s8.bf16 %v3120
    %v3409 = vunpack.c.l.s8.bf16 %v3121
    %v3410 = vunpack.c.l.s8.bf16 %v3122
    %v3411 = vunpack.c.l.s8.bf16 %v3123
    %v3412 = vunpack.c.l.s8.bf16 %v3124
    %v3413 = vunpack.c.l.s8.bf16 %v3125
    %v3414 = vunpack.c.l.s8.bf16 %v3126
    %v3415 = vunpack.c.l.s8.bf16 %v3127
    %v3416 = vunpack.c.l.s8.bf16 %v3128
    %v3417 = vunpack.c.l.s8.bf16 %v3129
    %v3418 = vunpack.c.h.s8.bf16 %v3114
    %v3419 = vunpack.c.h.s8.bf16 %v3115
    %v3420 = vunpack.c.h.s8.bf16 %v3116
    %v3421 = vunpack.c.h.s8.bf16 %v3117
    %v3422 = vunpack.c.h.s8.bf16 %v3118
    %v3423 = vunpack.c.h.s8.bf16 %v3119
    %v3424 = vunpack.c.h.s8.bf16 %v3120
    %v3425 = vunpack.c.h.s8.bf16 %v3121
    %v3426 = vunpack.c.h.s8.bf16 %v3122
    %v3427 = vunpack.c.h.s8.bf16 %v3123
    %v3428 = vunpack.c.h.s8.bf16 %v3124
    %v3429 = vunpack.c.h.s8.bf16 %v3125
    %v3430 = vunpack.c.h.s8.bf16 %v3126
    %v3431 = vunpack.c.h.s8.bf16 %v3127
    %v3432 = vunpack.c.h.s8.bf16 %v3128
    %v3433 = vunpack.c.h.s8.bf16 %v3129
    %v3434 = vunpack.c.l.s8.bf16 %v3130
    %v3435 = vunpack.c.l.s8.bf16 %v3131
    %v3436 = vunpack.c.l.s8.bf16 %v3132
    %v3437 = vunpack.c.l.s8.bf16 %v3133
    %v3438 = vunpack.c.l.s8.bf16 %v3134
    %v3439 = vunpack.c.l.s8.bf16 %v3135
    %v3440 = vunpack.c.l.s8.bf16 %v3136
    %v3441 = vunpack.c.l.s8.bf16 %v3137
    %v3442 = vunpack.c.l.s8.bf16 %v3138
    %v3443 = vunpack.c.l.s8.bf16 %v3139
    %v3444 = vunpack.c.l.s8.bf16 %v3140
    %v3445 = vunpack.c.l.s8.bf16 %v3141
    %v3446 = vunpack.c.l.s8.bf16 %v3142
    %v3447 = vunpack.c.l.s8.bf16 %v3143
    %v3448 = vunpack.c.l.s8.bf16 %v3144
    %v3449 = vunpack.c.l.s8.bf16 %v3145
    %v3450 = vunpack.c.h.s8.bf16 %v3130
    %v3451 = vunpack.c.h.s8.bf16 %v3131
    %v3452 = vunpack.c.h.s8.bf16 %v3132
    %v3453 = vunpack.c.h.s8.bf16 %v3133
    %v3454 = vunpack.c.h.s8.bf16 %v3134
    %v3455 = vunpack.c.h.s8.bf16 %v3135
    %v3456 = vunpack.c.h.s8.bf16 %v3136
    %v3457 = vunpack.c.h.s8.bf16 %v3137
    %v3458 = vunpack.c.h.s8.bf16 %v3138
    %v3459 = vunpack.c.h.s8.bf16 %v3139
    %v3460 = vunpack.c.h.s8.bf16 %v3140
    %v3461 = vunpack.c.h.s8.bf16 %v3141
    %v3462 = vunpack.c.h.s8.bf16 %v3142
    %v3463 = vunpack.c.h.s8.bf16 %v3143
    %v3464 = vunpack.c.h.s8.bf16 %v3144
    %v3465 = vunpack.c.h.s8.bf16 %v3145
    %v3466 = vunpack.c.l.s8.bf16 %v3146
    %v3467 = vunpack.c.l.s8.bf16 %v3147
    %v3468 = vunpack.c.l.s8.bf16 %v3148
    %v3469 = vunpack.c.l.s8.bf16 %v3149
    %v3470 = vunpack.c.l.s8.bf16 %v3150
    %v3471 = vunpack.c.l.s8.bf16 %v3151
    %v3472 = vunpack.c.l.s8.bf16 %v3152
    %v3473 = vunpack.c.l.s8.bf16 %v3153
    %v3474 = vunpack.c.l.s8.bf16 %v3154
    %v3475 = vunpack.c.l.s8.bf16 %v3155
    %v3476 = vunpack.c.l.s8.bf16 %v3156
    %v3477 = vunpack.c.l.s8.bf16 %v3157
    %v3478 = vunpack.c.l.s8.bf16 %v3158
    %v3479 = vunpack.c.l.s8.bf16 %v3159
    %v3480 = vunpack.c.l.s8.bf16 %v3160
    %v3481 = vunpack.c.l.s8.bf16 %v3161
    %v3482 = vunpack.c.h.s8.bf16 %v3146
    %v3483 = vunpack.c.h.s8.bf16 %v3147
    %v3484 = vunpack.c.h.s8.bf16 %v3148
    %v3485 = vunpack.c.h.s8.bf16 %v3149
    %v3486 = vunpack.c.h.s8.bf16 %v3150
    %v3487 = vunpack.c.h.s8.bf16 %v3151
    %v3488 = vunpack.c.h.s8.bf16 %v3152
    %v3489 = vunpack.c.h.s8.bf16 %v3153
    %v3490 = vunpack.c.h.s8.bf16 %v3154
    %v3491 = vunpack.c.h.s8.bf16 %v3155
    %v3492 = vunpack.c.h.s8.bf16 %v3156
    %v3493 = vunpack.c.h.s8.bf16 %v3157
    %v3494 = vunpack.c.h.s8.bf16 %v3158
    %v3495 = vunpack.c.h.s8.bf16 %v3159
    %v3496 = vunpack.c.h.s8.bf16 %v3160
    %v3497 = vunpack.c.h.s8.bf16 %v3161
    %v3498 = vunpack.c.l.s8.bf16 %v3162
    %v3499 = vunpack.c.l.s8.bf16 %v3163
    %v3500 = vunpack.c.l.s8.bf16 %v3164
    %v3501 = vunpack.c.l.s8.bf16 %v3165
    %v3502 = vunpack.c.l.s8.bf16 %v3166
    %v3503 = vunpack.c.l.s8.bf16 %v3167
    %v3504 = vunpack.c.l.s8.bf16 %v3168
    %v3505 = vunpack.c.l.s8.bf16 %v3169
    %v3506 = vunpack.c.l.s8.bf16 %v3170
    %v3507 = vunpack.c.l.s8.bf16 %v3171
    %v3508 = vunpack.c.l.s8.bf16 %v3172
    %v3509 = vunpack.c.l.s8.bf16 %v3173
    %v3510 = vunpack.c.l.s8.bf16 %v3174
    %v3511 = vunpack.c.l.s8.bf16 %v3175
    %v3512 = vunpack.c.l.s8.bf16 %v3176
    %v3513 = vunpack.c.l.s8.bf16 %v3177
    %v3514 = vunpack.c.h.s8.bf16 %v3162
    %v3515 = vunpack.c.h.s8.bf16 %v3163
    %v3516 = vunpack.c.h.s8.bf16 %v3164
    %v3517 = vunpack.c.h.s8.bf16 %v3165
    %v3518 = vunpack.c.h.s8.bf16 %v3166
    %v3519 = vunpack.c.h.s8.bf16 %v3167
    %v3520 = vunpack.c.h.s8.bf16 %v3168
    %v3521 = vunpack.c.h.s8.bf16 %v3169
    %v3522 = vunpack.c.h.s8.bf16 %v3170
    %v3523 = vunpack.c.h.s8.bf16 %v3171
    %v3524 = vunpack.c.h.s8.bf16 %v3172
    %v3525 = vunpack.c.h.s8.bf16 %v3173
    %v3526 = vunpack.c.h.s8.bf16 %v3174
    %v3527 = vunpack.c.h.s8.bf16 %v3175
    %v3528 = vunpack.c.h.s8.bf16 %v3176
    %v3529 = vunpack.c.h.s8.bf16 %v3177
    %v3530 = vunpack.c.l.s8.bf16 %v3178
    %v3531 = vunpack.c.l.s8.bf16 %v3179
    %v3532 = vunpack.c.l.s8.bf16 %v3180
    %v3533 = vunpack.c.l.s8.bf16 %v3181
    %v3534 = vunpack.c.l.s8.bf16 %v3182
    %v3535 = vunpack.c.l.s8.bf16 %v3183
    %v3536 = vunpack.c.l.s8.bf16 %v3184
    %v3537 = vunpack.c.l.s8.bf16 %v3185
    %v3538 = vunpack.c.l.s8.bf16 %v3186
    %v3539 = vunpack.c.l.s8.bf16 %v3187
    %v3540 = vunpack.c.l.s8.bf16 %v3188
    %v3541 = vunpack.c.l.s8.bf16 %v3189
    %v3542 = vunpack.c.l.s8.bf16 %v3190
    %v3543 = vunpack.c.l.s8.bf16 %v3191
    %v3544 = vunpack.c.l.s8.bf16 %v3192
    %v3545 = vunpack.c.l.s8.bf16 %v3193
    %v3546 = vunpack.c.h.s8.bf16 %v3178
    %v3547 = vunpack.c.h.s8.bf16 %v3179
    %v3548 = vunpack.c.h.s8.bf16 %v3180
    %v3549 = vunpack.c.h.s8.bf16 %v3181
    %v3550 = vunpack.c.h.s8.bf16 %v3182
    %v3551 = vunpack.c.h.s8.bf16 %v3183
    %v3552 = vunpack.c.h.s8.bf16 %v3184
    %v3553 = vunpack.c.h.s8.bf16 %v3185
    %v3554 = vunpack.c.h.s8.bf16 %v3186
    %v3555 = vunpack.c.h.s8.bf16 %v3187
    %v3556 = vunpack.c.h.s8.bf16 %v3188
    %v3557 = vunpack.c.h.s8.bf16 %v3189
    %v3558 = vunpack.c.h.s8.bf16 %v3190
    %v3559 = vunpack.c.h.s8.bf16 %v3191
    %v3560 = vunpack.c.h.s8.bf16 %v3192
    %v3561 = vunpack.c.h.s8.bf16 %v3193
    %v3562 = vunpack.c.l.s8.bf16 %v3194
    %v3563 = vunpack.c.l.s8.bf16 %v3195
    %v3564 = vunpack.c.l.s8.bf16 %v3196
    %v3565 = vunpack.c.l.s8.bf16 %v3197
    %v3566 = vunpack.c.l.s8.bf16 %v3198
    %v3567 = vunpack.c.l.s8.bf16 %v3199
    %v3568 = vunpack.c.l.s8.bf16 %v3200
    %v3569 = vunpack.c.l.s8.bf16 %v3201
    %v3570 = vunpack.c.l.s8.bf16 %v3202
    %v3571 = vunpack.c.l.s8.bf16 %v3203
    %v3572 = vunpack.c.l.s8.bf16 %v3204
    %v3573 = vunpack.c.l.s8.bf16 %v3205
    %v3574 = vunpack.c.l.s8.bf16 %v3206
    %v3575 = vunpack.c.l.s8.bf16 %v3207
    %v3576 = vunpack.c.l.s8.bf16 %v3208
    %v3577 = vunpack.c.l.s8.bf16 %v3209
    %v3578 = vunpack.c.h.s8.bf16 %v3194
    %v3579 = vunpack.c.h.s8.bf16 %v3195
    %v3580 = vunpack.c.h.s8.bf16 %v3196
    %v3581 = vunpack.c.h.s8.bf16 %v3197
    %v3582 = vunpack.c.h.s8.bf16 %v3198
    %v3583 = vunpack.c.h.s8.bf16 %v3199
    %v3584 = vunpack.c.h.s8.bf16 %v3200
    %v3585 = vunpack.c.h.s8.bf16 %v3201
    %v3586 = vunpack.c.h.s8.bf16 %v3202
    %v3587 = vunpack.c.h.s8.bf16 %v3203
    %v3588 = vunpack.c.h.s8.bf16 %v3204
    %v3589 = vunpack.c.h.s8.bf16 %v3205
    %v3590 = vunpack.c.h.s8.bf16 %v3206
    %v3591 = vunpack.c.h.s8.bf16 %v3207
    %v3592 = vunpack.c.h.s8.bf16 %v3208
    %v3593 = vunpack.c.h.s8.bf16 %v3209
    %v3594 = vunpack.c.l.s8.bf16 %v3210
    %v3595 = vunpack.c.l.s8.bf16 %v3211
    %v3596 = vunpack.c.l.s8.bf16 %v3212
    %v3597 = vunpack.c.l.s8.bf16 %v3213
    %v3598 = vunpack.c.l.s8.bf16 %v3214
    %v3599 = vunpack.c.l.s8.bf16 %v3215
    %v3600 = vunpack.c.l.s8.bf16 %v3216
    %v3601 = vunpack.c.l.s8.bf16 %v3217
    %v3602 = vunpack.c.l.s8.bf16 %v3218
    %v3603 = vunpack.c.l.s8.bf16 %v3219
    %v3604 = vunpack.c.l.s8.bf16 %v3220
    %v3605 = vunpack.c.l.s8.bf16 %v3221
    %v3606 = vunpack.c.l.s8.bf16 %v3222
    %v3607 = vunpack.c.l.s8.bf16 %v3223
    %v3608 = vunpack.c.l.s8.bf16 %v3224
    %v3609 = vunpack.c.l.s8.bf16 %v3225
    %v3610 = vunpack.c.h.s8.bf16 %v3210
    %v3611 = vunpack.c.h.s8.bf16 %v3211
    %v3612 = vunpack.c.h.s8.bf16 %v3212
    %v3613 = vunpack.c.h.s8.bf16 %v3213
    %v3614 = vunpack.c.h.s8.bf16 %v3214
    %v3615 = vunpack.c.h.s8.bf16 %v3215
    %v3616 = vunpack.c.h.s8.bf16 %v3216
    %v3617 = vunpack.c.h.s8.bf16 %v3217
    %v3618 = vunpack.c.h.s8.bf16 %v3218
    %v3619 = vunpack.c.h.s8.bf16 %v3219
    %v3620 = vunpack.c.h.s8.bf16 %v3220
    %v3621 = vunpack.c.h.s8.bf16 %v3221
    %v3622 = vunpack.c.h.s8.bf16 %v3222
    %v3623 = vunpack.c.h.s8.bf16 %v3223
    %v3624 = vunpack.c.h.s8.bf16 %v3224
    %v3625 = vunpack.c.h.s8.bf16 %v3225
    %v3626 = vunpack.c.l.s8.bf16 %v3226
    %v3627 = vunpack.c.l.s8.bf16 %v3227
    %v3628 = vunpack.c.l.s8.bf16 %v3228
    %v3629 = vunpack.c.l.s8.bf16 %v3229
    %v3630 = vunpack.c.l.s8.bf16 %v3230
    %v3631 = vunpack.c.l.s8.bf16 %v3231
    %v3632 = vunpack.c.l.s8.bf16 %v3232
    %v3633 = vunpack.c.l.s8.bf16 %v3233
    %v3634 = vunpack.c.l.s8.bf16 %v3234
    %v3635 = vunpack.c.l.s8.bf16 %v3235
    %v3636 = vunpack.c.l.s8.bf16 %v3236
    %v3637 = vunpack.c.l.s8.bf16 %v3237
    %v3638 = vunpack.c.l.s8.bf16 %v3238
    %v3639 = vunpack.c.l.s8.bf16 %v3239
    %v3640 = vunpack.c.l.s8.bf16 %v3240
    %v3641 = vunpack.c.l.s8.bf16 %v3241
    %v3642 = vunpack.c.h.s8.bf16 %v3226
    %v3643 = vunpack.c.h.s8.bf16 %v3227
    %v3644 = vunpack.c.h.s8.bf16 %v3228
    %v3645 = vunpack.c.h.s8.bf16 %v3229
    %v3646 = vunpack.c.h.s8.bf16 %v3230
    %v3647 = vunpack.c.h.s8.bf16 %v3231
    %v3648 = vunpack.c.h.s8.bf16 %v3232
    %v3649 = vunpack.c.h.s8.bf16 %v3233
    %v3650 = vunpack.c.h.s8.bf16 %v3234
    %v3651 = vunpack.c.h.s8.bf16 %v3235
    %v3652 = vunpack.c.h.s8.bf16 %v3236
    %v3653 = vunpack.c.h.s8.bf16 %v3237
    %v3654 = vunpack.c.h.s8.bf16 %v3238
    %v3655 = vunpack.c.h.s8.bf16 %v3239
    %v3656 = vunpack.c.h.s8.bf16 %v3240
    %v3657 = vunpack.c.h.s8.bf16 %v3241
    %v3658 = vunpack.c.l.s8.bf16 %v3242
    %v3659 = vunpack.c.l.s8.bf16 %v3243
    %v3660 = vunpack.c.l.s8.bf16 %v3244
    %v3661 = vunpack.c.l.s8.bf16 %v3245
    %v3662 = vunpack.c.l.s8.bf16 %v3246
    %v3663 = vunpack.c.l.s8.bf16 %v3247
    %v3664 = vunpack.c.l.s8.bf16 %v3248
    %v3665 = vunpack.c.l.s8.bf16 %v3249
    %v3666 = vunpack.c.l.s8.bf16 %v3250
    %v3667 = vunpack.c.l.s8.bf16 %v3251
    %v3668 = vunpack.c.l.s8.bf16 %v3252
    %v3669 = vunpack.c.l.s8.bf16 %v3253
    %v3670 = vunpack.c.l.s8.bf16 %v3254
    %v3671 = vunpack.c.l.s8.bf16 %v3255
    %v3672 = vunpack.c.l.s8.bf16 %v3256
    %v3673 = vunpack.c.l.s8.bf16 %v3257
    %v3674 = vunpack.c.h.s8.bf16 %v3242
    %v3675 = vunpack.c.h.s8.bf16 %v3243
    %v3676 = vunpack.c.h.s8.bf16 %v3244
    %v3677 = vunpack.c.h.s8.bf16 %v3245
    %v3678 = vunpack.c.h.s8.bf16 %v3246
    %v3679 = vunpack.c.h.s8.bf16 %v3247
    %v3680 = vunpack.c.h.s8.bf16 %v3248
    %v3681 = vunpack.c.h.s8.bf16 %v3249
    %v3682 = vunpack.c.h.s8.bf16 %v3250
    %v3683 = vunpack.c.h.s8.bf16 %v3251
    %v3684 = vunpack.c.h.s8.bf16 %v3252
    %v3685 = vunpack.c.h.s8.bf16 %v3253
    %v3686 = vunpack.c.h.s8.bf16 %v3254
    %v3687 = vunpack.c.h.s8.bf16 %v3255
    %v3688 = vunpack.c.h.s8.bf16 %v3256
    %v3689 = vunpack.c.h.s8.bf16 %v3257
    %v3690 = vunpack.c.l.s8.bf16 %v3258
    %v3691 = vunpack.c.l.s8.bf16 %v3259
    %v3692 = vunpack.c.l.s8.bf16 %v3260
    %v3693 = vunpack.c.l.s8.bf16 %v3261
    %v3694 = vunpack.c.l.s8.bf16 %v3262
    %v3695 = vunpack.c.l.s8.bf16 %v3263
    %v3696 = vunpack.c.l.s8.bf16 %v3264
    %v3697 = vunpack.c.l.s8.bf16 %v3265
    %v3698 = vunpack.c.l.s8.bf16 %v3266
    %v3699 = vunpack.c.l.s8.bf16 %v3267
    %v3700 = vunpack.c.l.s8.bf16 %v3268
    %v3701 = vunpack.c.l.s8.bf16 %v3269
    %v3702 = vunpack.c.l.s8.bf16 %v3270
    %v3703 = vunpack.c.l.s8.bf16 %v3271
    %v3704 = vunpack.c.l.s8.bf16 %v3272
    %v3705 = vunpack.c.l.s8.bf16 %v3273
    %v3706 = vunpack.c.h.s8.bf16 %v3258
    %v3707 = vunpack.c.h.s8.bf16 %v3259
    %v3708 = vunpack.c.h.s8.bf16 %v3260
    %v3709 = vunpack.c.h.s8.bf16 %v3261
    %v3710 = vunpack.c.h.s8.bf16 %v3262
    %v3711 = vunpack.c.h.s8.bf16 %v3263
    %v3712 = vunpack.c.h.s8.bf16 %v3264
    %v3713 = vunpack.c.h.s8.bf16 %v3265
    %v3714 = vunpack.c.h.s8.bf16 %v3266
    %v3715 = vunpack.c.h.s8.bf16 %v3267
    %v3716 = vunpack.c.h.s8.bf16 %v3268
    %v3717 = vunpack.c.h.s8.bf16 %v3269
    %v3718 = vunpack.c.h.s8.bf16 %v3270
    %v3719 = vunpack.c.h.s8.bf16 %v3271
    %v3720 = vunpack.c.h.s8.bf16 %v3272
    %v3721 = vunpack.c.h.s8.bf16 %v3273
    %v3722 = vunpack.c.l.s8.bf16 %v3274
    %v3723 = vunpack.c.l.s8.bf16 %v3275
    %v3724 = vunpack.c.l.s8.bf16 %v3276
    %v3725 = vunpack.c.l.s8.bf16 %v3277
    %v3726 = vunpack.c.l.s8.bf16 %v3278
    %v3727 = vunpack.c.l.s8.bf16 %v3279
    %v3728 = vunpack.c.l.s8.bf16 %v3280
    %v3729 = vunpack.c.l.s8.bf16 %v3281
    %v3730 = vunpack.c.l.s8.bf16 %v3282
    %v3731 = vunpack.c.l.s8.bf16 %v3283
    %v3732 = vunpack.c.l.s8.bf16 %v3284
    %v3733 = vunpack.c.l.s8.bf16 %v3285
    %v3734 = vunpack.c.l.s8.bf16 %v3286
    %v3735 = vunpack.c.l.s8.bf16 %v3287
    %v3736 = vunpack.c.l.s8.bf16 %v3288
    %v3737 = vunpack.c.l.s8.bf16 %v3289
    %v3738 = vunpack.c.h.s8.bf16 %v3274
    %v3739 = vunpack.c.h.s8.bf16 %v3275
    %v3740 = vunpack.c.h.s8.bf16 %v3276
    %v3741 = vunpack.c.h.s8.bf16 %v3277
    %v3742 = vunpack.c.h.s8.bf16 %v3278
    %v3743 = vunpack.c.h.s8.bf16 %v3279
    %v3744 = vunpack.c.h.s8.bf16 %v3280
    %v3745 = vunpack.c.h.s8.bf16 %v3281
    %v3746 = vunpack.c.h.s8.bf16 %v3282
    %v3747 = vunpack.c.h.s8.bf16 %v3283
    %v3748 = vunpack.c.h.s8.bf16 %v3284
    %v3749 = vunpack.c.h.s8.bf16 %v3285
    %v3750 = vunpack.c.h.s8.bf16 %v3286
    %v3751 = vunpack.c.h.s8.bf16 %v3287
    %v3752 = vunpack.c.h.s8.bf16 %v3288
    %v3753 = vunpack.c.h.s8.bf16 %v3289
    %v3754 = vunpack.c.l.s8.bf16 %v3290
    %v3755 = vunpack.c.l.s8.bf16 %v3291
    %v3756 = vunpack.c.l.s8.bf16 %v3292
    %v3757 = vunpack.c.l.s8.bf16 %v3293
    %v3758 = vunpack.c.l.s8.bf16 %v3294
    %v3759 = vunpack.c.l.s8.bf16 %v3295
    %v3760 = vunpack.c.l.s8.bf16 %v3296
    %v3761 = vunpack.c.l.s8.bf16 %v3297
    %v3762 = vunpack.c.l.s8.bf16 %v3298
    %v3763 = vunpack.c.l.s8.bf16 %v3299
    %v3764 = vunpack.c.l.s8.bf16 %v3300
    %v3765 = vunpack.c.l.s8.bf16 %v3301
    %v3766 = vunpack.c.l.s8.bf16 %v3302
    %v3767 = vunpack.c.l.s8.bf16 %v3303
    %v3768 = vunpack.c.l.s8.bf16 %v3304
    %v3769 = vunpack.c.l.s8.bf16 %v3305
    %v3770 = vunpack.c.h.s8.bf16 %v3290
    %v3771 = vunpack.c.h.s8.bf16 %v3291
    %v3772 = vunpack.c.h.s8.bf16 %v3292
    %v3773 = vunpack.c.h.s8.bf16 %v3293
    %v3774 = vunpack.c.h.s8.bf16 %v3294
    %v3775 = vunpack.c.h.s8.bf16 %v3295
    %v3776 = vunpack.c.h.s8.bf16 %v3296
    %v3777 = vunpack.c.h.s8.bf16 %v3297
    %v3778 = vunpack.c.h.s8.bf16 %v3298
    %v3779 = vunpack.c.h.s8.bf16 %v3299
    %v3780 = vunpack.c.h.s8.bf16 %v3300
    %v3781 = vunpack.c.h.s8.bf16 %v3301
    %v3782 = vunpack.c.h.s8.bf16 %v3302
    %v3783 = vunpack.c.h.s8.bf16 %v3303
    %v3784 = vunpack.c.h.s8.bf16 %v3304
    %v3785 = vunpack.c.h.s8.bf16 %v3305
    %v3786 = vunpack.c.l.s8.bf16 %v3306
    %v3787 = vunpack.c.l.s8.bf16 %v3307
    %v3788 = vunpack.c.l.s8.bf16 %v3308
    %v3789 = vunpack.c.l.s8.bf16 %v3309
    %v3790 = vunpack.c.l.s8.bf16 %v3310
    %v3791 = vunpack.c.l.s8.bf16 %v3311
    %v3792 = vunpack.c.l.s8.bf16 %v3312
    %v3793 = vunpack.c.l.s8.bf16 %v3313
    %v3794 = vunpack.c.l.s8.bf16 %v3314
    %v3795 = vunpack.c.l.s8.bf16 %v3315
    %v3796 = vunpack.c.l.s8.bf16 %v3316
    %v3797 = vunpack.c.l.s8.bf16 %v3317
    %v3798 = vunpack.c.l.s8.bf16 %v3318
    %v3799 = vunpack.c.l.s8.bf16 %v3319
    %v3800 = vunpack.c.l.s8.bf16 %v3320
    %v3801 = vunpack.c.l.s8.bf16 %v3321
    %v3802 = vunpack.c.h.s8.bf16 %v3306
    %v3803 = vunpack.c.h.s8.bf16 %v3307
    %v3804 = vunpack.c.h.s8.bf16 %v3308
    %v3805 = vunpack.c.h.s8.bf16 %v3309
    %v3806 = vunpack.c.h.s8.bf16 %v3310
    %v3807 = vunpack.c.h.s8.bf16 %v3311
    %v3808 = vunpack.c.h.s8.bf16 %v3312
    %v3809 = vunpack.c.h.s8.bf16 %v3313
    %v3810 = vunpack.c.h.s8.bf16 %v3314
    %v3811 = vunpack.c.h.s8.bf16 %v3315
    %v3812 = vunpack.c.h.s8.bf16 %v3316
    %v3813 = vunpack.c.h.s8.bf16 %v3317
    %v3814 = vunpack.c.h.s8.bf16 %v3318
    %v3815 = vunpack.c.h.s8.bf16 %v3319
    %v3816 = vunpack.c.h.s8.bf16 %v3320
    %v3817 = vunpack.c.h.s8.bf16 %v3321
    %v3818 = vunpack.c.l.s8.bf16 %v3322
    %v3819 = vunpack.c.l.s8.bf16 %v3323
    %v3820 = vunpack.c.l.s8.bf16 %v3324
    %v3821 = vunpack.c.l.s8.bf16 %v3325
    %v3822 = vunpack.c.l.s8.bf16 %v3326
    %v3823 = vunpack.c.l.s8.bf16 %v3327
    %v3824 = vunpack.c.l.s8.bf16 %v3328
    %v3825 = vunpack.c.l.s8.bf16 %v3329
    %v3826 = vunpack.c.l.s8.bf16 %v3330
    %v3827 = vunpack.c.l.s8.bf16 %v3331
    %v3828 = vunpack.c.l.s8.bf16 %v3332
    %v3829 = vunpack.c.l.s8.bf16 %v3333
    %v3830 = vunpack.c.l.s8.bf16 %v3334
    %v3831 = vunpack.c.l.s8.bf16 %v3335
    %v3832 = vunpack.c.l.s8.bf16 %v3336
    %v3833 = vunpack.c.l.s8.bf16 %v3337
    %v3834 = vunpack.c.h.s8.bf16 %v3322
    %v3835 = vunpack.c.h.s8.bf16 %v3323
    %v3836 = vunpack.c.h.s8.bf16 %v3324
    %v3837 = vunpack.c.h.s8.bf16 %v3325
    %v3838 = vunpack.c.h.s8.bf16 %v3326
    %v3839 = vunpack.c.h.s8.bf16 %v3327
    %v3840 = vunpack.c.h.s8.bf16 %v3328
    %v3841 = vunpack.c.h.s8.bf16 %v3329
    %v3842 = vunpack.c.h.s8.bf16 %v3330
    %v3843 = vunpack.c.h.s8.bf16 %v3331
    %v3844 = vunpack.c.h.s8.bf16 %v3332
    %v3845 = vunpack.c.h.s8.bf16 %v3333
    %v3846 = vunpack.c.h.s8.bf16 %v3334
    %v3847 = vunpack.c.h.s8.bf16 %v3335
    %v3848 = vunpack.c.h.s8.bf16 %v3336
    %v3849 = vunpack.c.h.s8.bf16 %v3337
    %3850 = vmatprep.subr.bf16.mxu0 %v3451
    %3851 = vmatpush1.bf16.msra.mxu0 %v3450
    %3852 = vmatprep.subr.bf16.mxu0 %v3435
    %3853 = vmatpush1.bf16.msra.mxu0 %v3434
    %3854 = vmatprep.subr.bf16.mxu0 %v3419
    %3855 = vmatpush1.bf16.msra.mxu0 %v3418
    %3856 = vmatprep.subr.bf16.mxu0 %v3403
    %3857 = vmatpush1.bf16.msra.mxu0 %v3402
    %3858 = vmatprep.subr.bf16.mxu0 %v3387
    %3859 = vmatpush1.bf16.msra.mxu0 %v3386
    %3860 = vmatprep.subr.bf16.mxu0 %v3371
    %3861 = vmatpush1.bf16.msra.mxu0 %v3370
    %3862 = vmatprep.subr.bf16.mxu0 %v3355
    %3863 = vmatpush1.bf16.msra.mxu0 %v3354
    %3864 = vmatprep.subr.bf16.mxu0 %v3339
    %3865 = vmatpush1.bf16.msra.mxu0 %v3338
    %3866 = vmatprep.subr.bf16.mxu0 %v3579
    %3867 = vmatpush2.bf16.msra.mxu0 %v3578
    %3868 = vmatprep.subr.bf16.mxu0 %v3563
    %3869 = vmatpush2.bf16.msra.mxu0 %v3562
    %3870 = vmatprep.subr.bf16.mxu0 %v3547
    %3871 = vmatpush2.bf16.msra.mxu0 %v3546
    %3872 = vmatprep.subr.bf16.mxu0 %v3531
    %3873 = vmatpush2.bf16.msra.mxu0 %v3530
    %3874 = vmatprep.subr.bf16.mxu0 %v3515
    %3875 = vmatpush2.bf16.msra.mxu0 %v3514
    %3876 = vmatprep.subr.bf16.mxu0 %v3499
    %3877 = vmatpush2.bf16.msra.mxu0 %v3498
    %3878 = vmatprep.subr.bf16.mxu0 %v3483
    %3879 = vmatpush2.bf16.msra.mxu0 %v3482
    %3880 = vmatprep.subr.bf16.mxu0 %v3467
    %3881 = vmatpush2.bf16.msra.mxu0 %v3466
    %3882 = vmatprep.mubr.bf16.mxu0 %v2285
    %3883 = vmatmul.mubr.bf16.gmra.mxu0 %v2284
    %v3884 = vpop.f32.mrf.mxu0
    %v3885 = vadd.f32 0.0, %v3884
    %v3886 = vpop.f32.mrf.mxu0
    %v3887 = vadd.f32 0.0, %v3886
    %v3888 = vpop.f32.mrf.mxu0
    %v3889 = vpop.f32.mrf.mxu0
    %3890 = vdwg.mxu0
    %3891 = vmatprep.subr.bf16.mxu0 %v3707
    %3892 = vmatpush1.bf16.msra.mxu0 %v3706
    %3893 = vmatprep.subr.bf16.mxu0 %v3691
    %3894 = vmatpush1.bf16.msra.mxu0 %v3690
    %3895 = vmatprep.subr.bf16.mxu0 %v3675
    %3896 = vmatpush1.bf16.msra.mxu0 %v3674
    %3897 = vmatprep.subr.bf16.mxu0 %v3659
    %3898 = vmatpush1.bf16.msra.mxu0 %v3658
    %3899 = vmatprep.subr.bf16.mxu0 %v3643
    %3900 = vmatpush1.bf16.msra.mxu0 %v3642
    %3901 = vmatprep.subr.bf16.mxu0 %v3627
    %3902 = vmatpush1.bf16.msra.mxu0 %v3626
    %3903 = vmatprep.subr.bf16.mxu0 %v3611
    %3904 = vmatpush1.bf16.msra.mxu0 %v3610
    %3905 = vmatprep.subr.bf16.mxu0 %v3595
    %3906 = vmatpush1.bf16.msra.mxu0 %v3594
    %3907 = vmatprep.subr.bf16.mxu0 %v3835
    %3908 = vmatpush2.bf16.msra.mxu0 %v3834
    %3909 = vmatprep.subr.bf16.mxu0 %v3819
    %3910 = vmatpush2.bf16.msra.mxu0 %v3818
    %3911 = vmatprep.subr.bf16.mxu0 %v3803
    %3912 = vmatpush2.bf16.msra.mxu0 %v3802
    %3913 = vmatprep.subr.bf16.mxu0 %v3787
    %3914 = vmatpush2.bf16.msra.mxu0 %v3786
    %3915 = vmatprep.subr.bf16.mxu0 %v3771
    %3916 = vmatpush2.bf16.msra.mxu0 %v3770
    %3917 = vmatprep.subr.bf16.mxu0 %v3755
    %3918 = vmatpush2.bf16.msra.mxu0 %v3754
    %3919 = vmatprep.subr.bf16.mxu0 %v3739
    %3920 = vmatpush2.bf16.msra.mxu0 %v3738
    %3921 = vmatprep.subr.bf16.mxu0 %v3723
    %3922 = vmatpush2.bf16.msra.mxu0 %v3722
    %3923 = vmatprep.mubr.bf16.mxu0 %v2287
    %3924 = vmatmul.mubr.bf16.gmra.mxu0 %v2286
    %v3925 = vpop.f32.mrf.mxu0
    %v3926 = vadd.f32 %v3885, %v3925
    %v3927 = vpop.f32.mrf.mxu0
    %v3928 = vadd.f32 %v3887, %v3927
    %v3929 = vpop.f32.mrf.mxu0
    %v3930 = vpop.f32.mrf.mxu0
    %3931 = vdwg.mxu0
    %3932 = vmatprep.subr.bf16.mxu0 %v3453
    %3933 = vmatpush1.bf16.msra.mxu0 %v3452
    %3934 = vmatprep.subr.bf16.mxu0 %v3437
    %3935 = vmatpush1.bf16.msra.mxu0 %v3436
    %3936 = vmatprep.subr.bf16.mxu0 %v3421
    %3937 = vmatpush1.bf16.msra.mxu0 %v3420
    %3938 = vmatprep.subr.bf16.mxu0 %v3405
    %3939 = vmatpush1.bf16.msra.mxu0 %v3404
    %3940 = vmatprep.subr.bf16.mxu0 %v3389
    %3941 = vmatpush1.bf16.msra.mxu0 %v3388
    %3942 = vmatprep.subr.bf16.mxu0 %v3373
    %3943 = vmatpush1.bf16.msra.mxu0 %v3372
    %3944 = vmatprep.subr.bf16.mxu0 %v3357
    %3945 = vmatpush1.bf16.msra.mxu0 %v3356
    %3946 = vmatprep.subr.bf16.mxu0 %v3341
    %3947 = vmatpush1.bf16.msra.mxu0 %v3340
    %3948 = vmatprep.subr.bf16.mxu0 %v3581
    %3949 = vmatpush2.bf16.msra.mxu0 %v3580
    %3950 = vmatprep.subr.bf16.mxu0 %v3565
    %3951 = vmatpush2.bf16.msra.mxu0 %v3564
    %3952 = vmatprep.subr.bf16.mxu0 %v3549
    %3953 = vmatpush2.bf16.msra.mxu0 %v3548
    %3954 = vmatprep.subr.bf16.mxu0 %v3533
    %3955 = vmatpush2.bf16.msra.mxu0 %v3532
    %3956 = vmatprep.subr.bf16.mxu0 %v3517
    %3957 = vmatpush2.bf16.msra.mxu0 %v3516
    %3958 = vmatprep.subr.bf16.mxu0 %v3501
    %3959 = vmatpush2.bf16.msra.mxu0 %v3500
    %3960 = vmatprep.subr.bf16.mxu0 %v3485
    %3961 = vmatpush2.bf16.msra.mxu0 %v3484
    %3962 = vmatprep.subr.bf16.mxu0 %v3469
    %3963 = vmatpush2.bf16.msra.mxu0 %v3468
    %3964 = vmatprep.mubr.bf16.mxu0 %v2285
    %3965 = vmatmul.mubr.bf16.gmra.mxu0 %v2284
    %v3966 = vpop.f32.mrf.mxu0
    %v3967 = vadd.f32 0.0, %v3966
    %v3968 = vpop.f32.mrf.mxu0
    %v3969 = vadd.f32 0.0, %v3968
    %v3970 = vpop.f32.mrf.mxu0
    %v3971 = vpop.f32.mrf.mxu0
    %3972 = vdwg.mxu0
    %3973 = vmatprep.subr.bf16.mxu0 %v3709
    %3974 = vmatpush1.bf16.msra.mxu0 %v3708
    %3975 = vmatprep.subr.bf16.mxu0 %v3693
    %3976 = vmatpush1.bf16.msra.mxu0 %v3692
    %3977 = vmatprep.subr.bf16.mxu0 %v3677
    %3978 = vmatpush1.bf16.msra.mxu0 %v3676
    %3979 = vmatprep.subr.bf16.mxu0 %v3661
    %3980 = vmatpush1.bf16.msra.mxu0 %v3660
    %3981 = vmatprep.subr.bf16.mxu0 %v3645
    %3982 = vmatpush1.bf16.msra.mxu0 %v3644
    %3983 = vmatprep.subr.bf16.mxu0 %v3629
    %3984 = vmatpush1.bf16.msra.mxu0 %v3628
    %3985 = vmatprep.subr.bf16.mxu0 %v3613
    %3986 = vmatpush1.bf16.msra.mxu0 %v3612
    %3987 = vmatprep.subr.bf16.mxu0 %v3597
    %3988 = vmatpush1.bf16.msra.mxu0 %v3596
    %3989 = vmatprep.subr.bf16.mxu0 %v3837
    %3990 = vmatpush2.bf16.msra.mxu0 %v3836
    %3991 = vmatprep.subr.bf16.mxu0 %v3821
    %3992 = vmatpush2.bf16.msra.mxu0 %v3820
    %3993 = vmatprep.subr.bf16.mxu0 %v3805
    %3994 = vmatpush2.bf16.msra.mxu0 %v3804
    %3995 = vmatprep.subr.bf16.mxu0 %v3789
    %3996 = vmatpush2.bf16.msra.mxu0 %v3788
    %3997 = vmatprep.subr.bf16.mxu0 %v3773
    %3998 = vmatpush2.bf16.msra.mxu0 %v3772
    %3999 = vmatprep.subr.bf16.mxu0 %v3757
    %4000 = vmatpush2.bf16.msra.mxu0 %v3756
    %4001 = vmatprep.subr.bf16.mxu0 %v3741
    %4002 = vmatpush2.bf16.msra.mxu0 %v3740
    %4003 = vmatprep.subr.bf16.mxu0 %v3725
    %4004 = vmatpush2.bf16.msra.mxu0 %v3724
    %4005 = vmatprep.mubr.bf16.mxu0 %v2287
    %4006 = vmatmul.mubr.bf16.gmra.mxu0 %v2286
    %v4007 = vpop.f32.mrf.mxu0
    %v4008 = vadd.f32 %v3967, %v4007
    %v4009 = vpop.f32.mrf.mxu0
    %v4010 = vadd.f32 %v3969, %v4009
    %v4011 = vpop.f32.mrf.mxu0
    %v4012 = vpop.f32.mrf.mxu0
    %4013 = vdwg.mxu0
    %4014 = vmatprep.subr.bf16.mxu0 %v3455
    %4015 = vmatpush1.bf16.msra.mxu0 %v3454
    %4016 = vmatprep.subr.bf16.mxu0 %v3439
    %4017 = vmatpush1.bf16.msra.mxu0 %v3438
    %4018 = vmatprep.subr.bf16.mxu0 %v3423
    %4019 = vmatpush1.bf16.msra.mxu0 %v3422
    %4020 = vmatprep.subr.bf16.mxu0 %v3407
    %4021 = vmatpush1.bf16.msra.mxu0 %v3406
    %4022 = vmatprep.subr.bf16.mxu0 %v3391
    %4023 = vmatpush1.bf16.msra.mxu0 %v3390
    %4024 = vmatprep.subr.bf16.mxu0 %v3375
    %4025 = vmatpush1.bf16.msra.mxu0 %v3374
    %4026 = vmatprep.subr.bf16.mxu0 %v3359
    %4027 = vmatpush1.bf16.msra.mxu0 %v3358
    %4028 = vmatprep.subr.bf16.mxu0 %v3343
    %4029 = vmatpush1.bf16.msra.mxu0 %v3342
    %4030 = vmatprep.subr.bf16.mxu0 %v3583
    %4031 = vmatpush2.bf16.msra.mxu0 %v3582
    %4032 = vmatprep.subr.bf16.mxu0 %v3567
    %4033 = vmatpush2.bf16.msra.mxu0 %v3566
    %4034 = vmatprep.subr.bf16.mxu0 %v3551
    %4035 = vmatpush2.bf16.msra.mxu0 %v3550
    %4036 = vmatprep.subr.bf16.mxu0 %v3535
    %4037 = vmatpush2.bf16.msra.mxu0 %v3534
    %4038 = vmatprep.subr.bf16.mxu0 %v3519
    %4039 = vmatpush2.bf16.msra.mxu0 %v3518
    %4040 = vmatprep.subr.bf16.mxu0 %v3503
    %4041 = vmatpush2.bf16.msra.mxu0 %v3502
    %4042 = vmatprep.subr.bf16.mxu0 %v3487
    %4043 = vmatpush2.bf16.msra.mxu0 %v3486
    %4044 = vmatprep.subr.bf16.mxu0 %v3471
    %4045 = vmatpush2.bf16.msra.mxu0 %v3470
    %4046 = vmatprep.mubr.bf16.mxu0 %v2285
    %4047 = vmatmul.mubr.bf16.gmra.mxu0 %v2284
    %v4048 = vpop.f32.mrf.mxu0
    %v4049 = vadd.f32 0.0, %v4048
    %v4050 = vpop.f32.mrf.mxu0
    %v4051 = vadd.f32 0.0, %v4050
    %v4052 = vpop.f32.mrf.mxu0
    %v4053 = vpop.f32.mrf.mxu0
    %4054 = vdwg.mxu0
    %4055 = vmatprep.subr.bf16.mxu0 %v3711
    %4056 = vmatpush1.bf16.msra.mxu0 %v3710
    %4057 = vmatprep.subr.bf16.mxu0 %v3695
    %4058 = vmatpush1.bf16.msra.mxu0 %v3694
    %4059 = vmatprep.subr.bf16.mxu0 %v3679
    %4060 = vmatpush1.bf16.msra.mxu0 %v3678
    %4061 = vmatprep.subr.bf16.mxu0 %v3663
    %4062 = vmatpush1.bf16.msra.mxu0 %v3662
    %4063 = vmatprep.subr.bf16.mxu0 %v3647
    %4064 = vmatpush1.bf16.msra.mxu0 %v3646
    %4065 = vmatprep.subr.bf16.mxu0 %v3631
    %4066 = vmatpush1.bf16.msra.mxu0 %v3630
    %4067 = vmatprep.subr.bf16.mxu0 %v3615
    %4068 = vmatpush1.bf16.msra.mxu0 %v3614
    %4069 = vmatprep.subr.bf16.mxu0 %v3599
    %4070 = vmatpush1.bf16.msra.mxu0 %v3598
    %4071 = vmatprep.subr.bf16.mxu0 %v3839
    %4072 = vmatpush2.bf16.msra.mxu0 %v3838
    %4073 = vmatprep.subr.bf16.mxu0 %v3823
    %4074 = vmatpush2.bf16.msra.mxu0 %v3822
    %4075 = vmatprep.subr.bf16.mxu0 %v3807
    %4076 = vmatpush2.bf16.msra.mxu0 %v3806
    %4077 = vmatprep.subr.bf16.mxu0 %v3791
    %4078 = vmatpush2.bf16.msra.mxu0 %v3790
    %4079 = vmatprep.subr.bf16.mxu0 %v3775
    %4080 = vmatpush2.bf16.msra.mxu0 %v3774
    %4081 = vmatprep.subr.bf16.mxu0 %v3759
    %4082 = vmatpush2.bf16.msra.mxu0 %v3758
    %4083 = vmatprep.subr.bf16.mxu0 %v3743
    %4084 = vmatpush2.bf16.msra.mxu0 %v3742
    %4085 = vmatprep.subr.bf16.mxu0 %v3727
    %4086 = vmatpush2.bf16.msra.mxu0 %v3726
    %4087 = vmatprep.mubr.bf16.mxu0 %v2287
    %4088 = vmatmul.mubr.bf16.gmra.mxu0 %v2286
    %v4089 = vpop.f32.mrf.mxu0
    %v4090 = vadd.f32 %v4049, %v4089
    %v4091 = vpop.f32.mrf.mxu0
    %v4092 = vadd.f32 %v4051, %v4091
    %v4093 = vpop.f32.mrf.mxu0
    %v4094 = vpop.f32.mrf.mxu0
    %4095 = vdwg.mxu0
    %4096 = vmatprep.subr.bf16.mxu0 %v3457
    %4097 = vmatpush1.bf16.msra.mxu0 %v3456
    %4098 = vmatprep.subr.bf16.mxu0 %v3441
    %4099 = vmatpush1.bf16.msra.mxu0 %v3440
    %4100 = vmatprep.subr.bf16.mxu0 %v3425
    %4101 = vmatpush1.bf16.msra.mxu0 %v3424
    %4102 = vmatprep.subr.bf16.mxu0 %v3409
    %4103 = vmatpush1.bf16.msra.mxu0 %v3408
    %4104 = vmatprep.subr.bf16.mxu0 %v3393
    %4105 = vmatpush1.bf16.msra.mxu0 %v3392
    %4106 = vmatprep.subr.bf16.mxu0 %v3377
    %4107 = vmatpush1.bf16.msra.mxu0 %v3376
    %4108 = vmatprep.subr.bf16.mxu0 %v3361
    %4109 = vmatpush1.bf16.msra.mxu0 %v3360
    %4110 = vmatprep.subr.bf16.mxu0 %v3345
    %4111 = vmatpush1.bf16.msra.mxu0 %v3344
    %4112 = vmatprep.subr.bf16.mxu0 %v3585
    %4113 = vmatpush2.bf16.msra.mxu0 %v3584
    %4114 = vmatprep.subr.bf16.mxu0 %v3569
    %4115 = vmatpush2.bf16.msra.mxu0 %v3568
    %4116 = vmatprep.subr.bf16.mxu0 %v3553
    %4117 = vmatpush2.bf16.msra.mxu0 %v3552
    %4118 = vmatprep.subr.bf16.mxu0 %v3537
    %4119 = vmatpush2.bf16.msra.mxu0 %v3536
    %4120 = vmatprep.subr.bf16.mxu0 %v3521
    %4121 = vmatpush2.bf16.msra.mxu0 %v3520
    %4122 = vmatprep.subr.bf16.mxu0 %v3505
    %4123 = vmatpush2.bf16.msra.mxu0 %v3504
    %4124 = vmatprep.subr.bf16.mxu0 %v3489
    %4125 = vmatpush2.bf16.msra.mxu0 %v3488
    %4126 = vmatprep.subr.bf16.mxu0 %v3473
    %4127 = vmatpush2.bf16.msra.mxu0 %v3472
    %4128 = vmatprep.mubr.bf16.mxu0 %v2285
    %4129 = vmatmul.mubr.bf16.gmra.mxu0 %v2284
    %v4130 = vpop.f32.mrf.mxu0
    %v4131 = vadd.f32 0.0, %v4130
    %v4132 = vpop.f32.mrf.mxu0
    %v4133 = vadd.f32 0.0, %v4132
    %v4134 = vpop.f32.mrf.mxu0
    %v4135 = vpop.f32.mrf.mxu0
    %4136 = vdwg.mxu0
    %4137 = vmatprep.subr.bf16.mxu0 %v3713
    %4138 = vmatpush1.bf16.msra.mxu0 %v3712
    %4139 = vmatprep.subr.bf16.mxu0 %v3697
    %4140 = vmatpush1.bf16.msra.mxu0 %v3696
    %4141 = vmatprep.subr.bf16.mxu0 %v3681
    %4142 = vmatpush1.bf16.msra.mxu0 %v3680
    %4143 = vmatprep.subr.bf16.mxu0 %v3665
    %4144 = vmatpush1.bf16.msra.mxu0 %v3664
    %4145 = vmatprep.subr.bf16.mxu0 %v3649
    %4146 = vmatpush1.bf16.msra.mxu0 %v3648
    %4147 = vmatprep.subr.bf16.mxu0 %v3633
    %4148 = vmatpush1.bf16.msra.mxu0 %v3632
    %4149 = vmatprep.subr.bf16.mxu0 %v3617
    %4150 = vmatpush1.bf16.msra.mxu0 %v3616
    %4151 = vmatprep.subr.bf16.mxu0 %v3601
    %4152 = vmatpush1.bf16.msra.mxu0 %v3600
    %4153 = vmatprep.subr.bf16.mxu0 %v3841
    %4154 = vmatpush2.bf16.msra.mxu0 %v3840
    %4155 = vmatprep.subr.bf16.mxu0 %v3825
    %4156 = vmatpush2.bf16.msra.mxu0 %v3824
    %4157 = vmatprep.subr.bf16.mxu0 %v3809
    %4158 = vmatpush2.bf16.msra.mxu0 %v3808
    %4159 = vmatprep.subr.bf16.mxu0 %v3793
    %4160 = vmatpush2.bf16.msra.mxu0 %v3792
    %4161 = vmatprep.subr.bf16.mxu0 %v3777
    %4162 = vmatpush2.bf16.msra.mxu0 %v3776
    %4163 = vmatprep.subr.bf16.mxu0 %v3761
    %4164 = vmatpush2.bf16.msra.mxu0 %v3760
    %4165 = vmatprep.subr.bf16.mxu0 %v3745
    %4166 = vmatpush2.bf16.msra.mxu0 %v3744
    %4167 = vmatprep.subr.bf16.mxu0 %v3729
    %4168 = vmatpush2.bf16.msra.mxu0 %v3728
    %4169 = vmatprep.mubr.bf16.mxu0 %v2287
    %4170 = vmatmul.mubr.bf16.gmra.mxu0 %v2286
    %v4171 = vpop.f32.mrf.mxu0
    %v4172 = vadd.f32 %v4131, %v4171
    %v4173 = vpop.f32.mrf.mxu0
    %v4174 = vadd.f32 %v4133, %v4173
    %v4175 = vpop.f32.mrf.mxu0
    %v4176 = vpop.f32.mrf.mxu0
    %4177 = vdwg.mxu0
    %4178 = vmatprep.subr.bf16.mxu0 %v3459
    %4179 = vmatpush1.bf16.msra.mxu0 %v3458
    %4180 = vmatprep.subr.bf16.mxu0 %v3443
    %4181 = vmatpush1.bf16.msra.mxu0 %v3442
    %4182 = vmatprep.subr.bf16.mxu0 %v3427
    %4183 = vmatpush1.bf16.msra.mxu0 %v3426
    %4184 = vmatprep.subr.bf16.mxu0 %v3411
    %4185 = vmatpush1.bf16.msra.mxu0 %v3410
    %4186 = vmatprep.subr.bf16.mxu0 %v3395
    %4187 = vmatpush1.bf16.msra.mxu0 %v3394
    %4188 = vmatprep.subr.bf16.mxu0 %v3379
    %4189 = vmatpush1.bf16.msra.mxu0 %v3378
    %4190 = vmatprep.subr.bf16.mxu0 %v3363
    %4191 = vmatpush1.bf16.msra.mxu0 %v3362
    %4192 = vmatprep.subr.bf16.mxu0 %v3347
    %4193 = vmatpush1.bf16.msra.mxu0 %v3346
    %4194 = vmatprep.subr.bf16.mxu0 %v3587
    %4195 = vmatpush2.bf16.msra.mxu0 %v3586
    %4196 = vmatprep.subr.bf16.mxu0 %v3571
    %4197 = vmatpush2.bf16.msra.mxu0 %v3570
    %4198 = vmatprep.subr.bf16.mxu0 %v3555
    %4199 = vmatpush2.bf16.msra.mxu0 %v3554
    %4200 = vmatprep.subr.bf16.mxu0 %v3539
    %4201 = vmatpush2.bf16.msra.mxu0 %v3538
    %4202 = vmatprep.subr.bf16.mxu0 %v3523
    %4203 = vmatpush2.bf16.msra.mxu0 %v3522
    %4204 = vmatprep.subr.bf16.mxu0 %v3507
    %4205 = vmatpush2.bf16.msra.mxu0 %v3506
    %4206 = vmatprep.subr.bf16.mxu0 %v3491
    %4207 = vmatpush2.bf16.msra.mxu0 %v3490
    %4208 = vmatprep.subr.bf16.mxu0 %v3475
    %4209 = vmatpush2.bf16.msra.mxu0 %v3474
    %4210 = vmatprep.mubr.bf16.mxu0 %v2285
    %4211 = vmatmul.mubr.bf16.gmra.mxu0 %v2284
    %v4212 = vpop.f32.mrf.mxu0
    %v4213 = vadd.f32 0.0, %v4212
    %v4214 = vpop.f32.mrf.mxu0
    %v4215 = vadd.f32 0.0, %v4214
    %v4216 = vpop.f32.mrf.mxu0
    %v4217 = vpop.f32.mrf.mxu0
    %4218 = vdwg.mxu0
    %4219 = vmatprep.subr.bf16.mxu0 %v3715
    %4220 = vmatpush1.bf16.msra.mxu0 %v3714
    %4221 = vmatprep.subr.bf16.mxu0 %v3699
    %4222 = vmatpush1.bf16.msra.mxu0 %v3698
    %4223 = vmatprep.subr.bf16.mxu0 %v3683
    %4224 = vmatpush1.bf16.msra.mxu0 %v3682
    %4225 = vmatprep.subr.bf16.mxu0 %v3667
    %4226 = vmatpush1.bf16.msra.mxu0 %v3666
    %4227 = vmatprep.subr.bf16.mxu0 %v3651
    %4228 = vmatpush1.bf16.msra.mxu0 %v3650
    %4229 = vmatprep.subr.bf16.mxu0 %v3635
    %4230 = vmatpush1.bf16.msra.mxu0 %v3634
    %4231 = vmatprep.subr.bf16.mxu0 %v3619
    %4232 = vmatpush1.bf16.msra.mxu0 %v3618
    %4233 = vmatprep.subr.bf16.mxu0 %v3603
    %4234 = vmatpush1.bf16.msra.mxu0 %v3602
    %4235 = vmatprep.subr.bf16.mxu0 %v3843
    %4236 = vmatpush2.bf16.msra.mxu0 %v3842
    %4237 = vmatprep.subr.bf16.mxu0 %v3827
    %4238 = vmatpush2.bf16.msra.mxu0 %v3826
    %4239 = vmatprep.subr.bf16.mxu0 %v3811
    %4240 = vmatpush2.bf16.msra.mxu0 %v3810
    %4241 = vmatprep.subr.bf16.mxu0 %v3795
    %4242 = vmatpush2.bf16.msra.mxu0 %v3794
    %4243 = vmatprep.subr.bf16.mxu0 %v3779
    %4244 = vmatpush2.bf16.msra.mxu0 %v3778
    %4245 = vmatprep.subr.bf16.mxu0 %v3763
    %4246 = vmatpush2.bf16.msra.mxu0 %v3762
    %4247 = vmatprep.subr.bf16.mxu0 %v3747
    %4248 = vmatpush2.bf16.msra.mxu0 %v3746
    %4249 = vmatprep.subr.bf16.mxu0 %v3731
    %4250 = vmatpush2.bf16.msra.mxu0 %v3730
    %4251 = vmatprep.mubr.bf16.mxu0 %v2287
    %4252 = vmatmul.mubr.bf16.gmra.mxu0 %v2286
    %v4253 = vpop.f32.mrf.mxu0
    %v4254 = vadd.f32 %v4213, %v4253
    %v4255 = vpop.f32.mrf.mxu0
    %v4256 = vadd.f32 %v4215, %v4255
    %v4257 = vpop.f32.mrf.mxu0
    %v4258 = vpop.f32.mrf.mxu0
    %4259 = vdwg.mxu0
    %4260 = vmatprep.subr.bf16.mxu0 %v3461
    %4261 = vmatpush1.bf16.msra.mxu0 %v3460
    %4262 = vmatprep.subr.bf16.mxu0 %v3445
    %4263 = vmatpush1.bf16.msra.mxu0 %v3444
    %4264 = vmatprep.subr.bf16.mxu0 %v3429
    %4265 = vmatpush1.bf16.msra.mxu0 %v3428
    %4266 = vmatprep.subr.bf16.mxu0 %v3413
    %4267 = vmatpush1.bf16.msra.mxu0 %v3412
    %4268 = vmatprep.subr.bf16.mxu0 %v3397
    %4269 = vmatpush1.bf16.msra.mxu0 %v3396
    %4270 = vmatprep.subr.bf16.mxu0 %v3381
    %4271 = vmatpush1.bf16.msra.mxu0 %v3380
    %4272 = vmatprep.subr.bf16.mxu0 %v3365
    %4273 = vmatpush1.bf16.msra.mxu0 %v3364
    %4274 = vmatprep.subr.bf16.mxu0 %v3349
    %4275 = vmatpush1.bf16.msra.mxu0 %v3348
    %4276 = vmatprep.subr.bf16.mxu0 %v3589
    %4277 = vmatpush2.bf16.msra.mxu0 %v3588
    %4278 = vmatprep.subr.bf16.mxu0 %v3573
    %4279 = vmatpush2.bf16.msra.mxu0 %v3572
    %4280 = vmatprep.subr.bf16.mxu0 %v3557
    %4281 = vmatpush2.bf16.msra.mxu0 %v3556
    %4282 = vmatprep.subr.bf16.mxu0 %v3541
    %4283 = vmatpush2.bf16.msra.mxu0 %v3540
    %4284 = vmatprep.subr.bf16.mxu0 %v3525
    %4285 = vmatpush2.bf16.msra.mxu0 %v3524
    %4286 = vmatprep.subr.bf16.mxu0 %v3509
    %4287 = vmatpush2.bf16.msra.mxu0 %v3508
    %4288 = vmatprep.subr.bf16.mxu0 %v3493
    %4289 = vmatpush2.bf16.msra.mxu0 %v3492
    %4290 = vmatprep.subr.bf16.mxu0 %v3477
    %4291 = vmatpush2.bf16.msra.mxu0 %v3476
    %4292 = vmatprep.mubr.bf16.mxu0 %v2285
    %4293 = vmatmul.mubr.bf16.gmra.mxu0 %v2284
    %v4294 = vpop.f32.mrf.mxu0
    %v4295 = vadd.f32 0.0, %v4294
    %v4296 = vpop.f32.mrf.mxu0
    %v4297 = vadd.f32 0.0, %v4296
    %v4298 = vpop.f32.mrf.mxu0
    %v4299 = vpop.f32.mrf.mxu0
    %4300 = vdwg.mxu0
    %4301 = vmatprep.subr.bf16.mxu0 %v3717
    %4302 = vmatpush1.bf16.msra.mxu0 %v3716
    %4303 = vmatprep.subr.bf16.mxu0 %v3701
    %4304 = vmatpush1.bf16.msra.mxu0 %v3700
    %4305 = vmatprep.subr.bf16.mxu0 %v3685
    %4306 = vmatpush1.bf16.msra.mxu0 %v3684
    %4307 = vmatprep.subr.bf16.mxu0 %v3669
    %4308 = vmatpush1.bf16.msra.mxu0 %v3668
    %4309 = vmatprep.subr.bf16.mxu0 %v3653
    %4310 = vmatpush1.bf16.msra.mxu0 %v3652
    %4311 = vmatprep.subr.bf16.mxu0 %v3637
    %4312 = vmatpush1.bf16.msra.mxu0 %v3636
    %4313 = vmatprep.subr.bf16.mxu0 %v3621
    %4314 = vmatpush1.bf16.msra.mxu0 %v3620
    %4315 = vmatprep.subr.bf16.mxu0 %v3605
    %4316 = vmatpush1.bf16.msra.mxu0 %v3604
    %4317 = vmatprep.subr.bf16.mxu0 %v3845
    %4318 = vmatpush2.bf16.msra.mxu0 %v3844
    %4319 = vmatprep.subr.bf16.mxu0 %v3829
    %4320 = vmatpush2.bf16.msra.mxu0 %v3828
    %4321 = vmatprep.subr.bf16.mxu0 %v3813
    %4322 = vmatpush2.bf16.msra.mxu0 %v3812
    %4323 = vmatprep.subr.bf16.mxu0 %v3797
    %4324 = vmatpush2.bf16.msra.mxu0 %v3796
    %4325 = vmatprep.subr.bf16.mxu0 %v3781
    %4326 = vmatpush2.bf16.msra.mxu0 %v3780
    %4327 = vmatprep.subr.bf16.mxu0 %v3765
    %4328 = vmatpush2.bf16.msra.mxu0 %v3764
    %4329 = vmatprep.subr.bf16.mxu0 %v3749
    %4330 = vmatpush2.bf16.msra.mxu0 %v3748
    %4331 = vmatprep.subr.bf16.mxu0 %v3733
    %4332 = vmatpush2.bf16.msra.mxu0 %v3732
    %4333 = vmatprep.mubr.bf16.mxu0 %v2287
    %4334 = vmatmul.mubr.bf16.gmra.mxu0 %v2286
    %v4335 = vpop.f32.mrf.mxu0
    %v4336 = vadd.f32 %v4295, %v4335
    %v4337 = vpop.f32.mrf.mxu0
    %v4338 = vadd.f32 %v4297, %v4337
    %v4339 = vpop.f32.mrf.mxu0
    %v4340 = vpop.f32.mrf.mxu0
    %4341 = vdwg.mxu0
    %4342 = vmatprep.subr.bf16.mxu0 %v3463
    %4343 = vmatpush1.bf16.msra.mxu0 %v3462
    %4344 = vmatprep.subr.bf16.mxu0 %v3447
    %4345 = vmatpush1.bf16.msra.mxu0 %v3446
    %4346 = vmatprep.subr.bf16.mxu0 %v3431
    %4347 = vmatpush1.bf16.msra.mxu0 %v3430
    %4348 = vmatprep.subr.bf16.mxu0 %v3415
    %4349 = vmatpush1.bf16.msra.mxu0 %v3414
    %4350 = vmatprep.subr.bf16.mxu0 %v3399
    %4351 = vmatpush1.bf16.msra.mxu0 %v3398
    %4352 = vmatprep.subr.bf16.mxu0 %v3383
    %4353 = vmatpush1.bf16.msra.mxu0 %v3382
    %4354 = vmatprep.subr.bf16.mxu0 %v3367
    %4355 = vmatpush1.bf16.msra.mxu0 %v3366
    %4356 = vmatprep.subr.bf16.mxu0 %v3351
    %4357 = vmatpush1.bf16.msra.mxu0 %v3350
    %4358 = vmatprep.subr.bf16.mxu0 %v3591
    %4359 = vmatpush2.bf16.msra.mxu0 %v3590
    %4360 = vmatprep.subr.bf16.mxu0 %v3575
    %4361 = vmatpush2.bf16.msra.mxu0 %v3574
    %4362 = vmatprep.subr.bf16.mxu0 %v3559
    %4363 = vmatpush2.bf16.msra.mxu0 %v3558
    %4364 = vmatprep.subr.bf16.mxu0 %v3543
    %4365 = vmatpush2.bf16.msra.mxu0 %v3542
    %4366 = vmatprep.subr.bf16.mxu0 %v3527
    %4367 = vmatpush2.bf16.msra.mxu0 %v3526
    %4368 = vmatprep.subr.bf16.mxu0 %v3511
    %4369 = vmatpush2.bf16.msra.mxu0 %v3510
    %4370 = vmatprep.subr.bf16.mxu0 %v3495
    %4371 = vmatpush2.bf16.msra.mxu0 %v3494
    %4372 = vmatprep.subr.bf16.mxu0 %v3479
    %4373 = vmatpush2.bf16.msra.mxu0 %v3478
    %4374 = vmatprep.mubr.bf16.mxu0 %v2285
    %4375 = vmatmul.mubr.bf16.gmra.mxu0 %v2284
    %v4376 = vpop.f32.mrf.mxu0
    %v4377 = vadd.f32 0.0, %v4376
    %v4378 = vpop.f32.mrf.mxu0
    %v4379 = vadd.f32 0.0, %v4378
    %v4380 = vpop.f32.mrf.mxu0
    %v4381 = vpop.f32.mrf.mxu0
    %4382 = vdwg.mxu0
    %4383 = vmatprep.subr.bf16.mxu0 %v3719
    %4384 = vmatpush1.bf16.msra.mxu0 %v3718
    %4385 = vmatprep.subr.bf16.mxu0 %v3703
    %4386 = vmatpush1.bf16.msra.mxu0 %v3702
    %4387 = vmatprep.subr.bf16.mxu0 %v3687
    %4388 = vmatpush1.bf16.msra.mxu0 %v3686
    %4389 = vmatprep.subr.bf16.mxu0 %v3671
    %4390 = vmatpush1.bf16.msra.mxu0 %v3670
    %4391 = vmatprep.subr.bf16.mxu0 %v3655
    %4392 = vmatpush1.bf16.msra.mxu0 %v3654
    %4393 = vmatprep.subr.bf16.mxu0 %v3639
    %4394 = vmatpush1.bf16.msra.mxu0 %v3638
    %4395 = vmatprep.subr.bf16.mxu0 %v3623
    %4396 = vmatpush1.bf16.msra.mxu0 %v3622
    %4397 = vmatprep.subr.bf16.mxu0 %v3607
    %4398 = vmatpush1.bf16.msra.mxu0 %v3606
    %4399 = vmatprep.subr.bf16.mxu0 %v3847
    %4400 = vmatpush2.bf16.msra.mxu0 %v3846
    %4401 = vmatprep.subr.bf16.mxu0 %v3831
    %4402 = vmatpush2.bf16.msra.mxu0 %v3830
    %4403 = vmatprep.subr.bf16.mxu0 %v3815
    %4404 = vmatpush2.bf16.msra.mxu0 %v3814
    %4405 = vmatprep.subr.bf16.mxu0 %v3799
    %4406 = vmatpush2.bf16.msra.mxu0 %v3798
    %4407 = vmatprep.subr.bf16.mxu0 %v3783
    %4408 = vmatpush2.bf16.msra.mxu0 %v3782
    %4409 = vmatprep.subr.bf16.mxu0 %v3767
    %4410 = vmatpush2.bf16.msra.mxu0 %v3766
    %4411 = vmatprep.subr.bf16.mxu0 %v3751
    %4412 = vmatpush2.bf16.msra.mxu0 %v3750
    %4413 = vmatprep.subr.bf16.mxu0 %v3735
    %4414 = vmatpush2.bf16.msra.mxu0 %v3734
    %4415 = vmatprep.mubr.bf16.mxu0 %v2287
    %4416 = vmatmul.mubr.bf16.gmra.mxu0 %v2286
    %v4417 = vpop.f32.mrf.mxu0
    %v4418 = vadd.f32 %v4377, %v4417
    %v4419 = vpop.f32.mrf.mxu0
    %v4420 = vadd.f32 %v4379, %v4419
    %v4421 = vpop.f32.mrf.mxu0
    %v4422 = vpop.f32.mrf.mxu0
    %4423 = vdwg.mxu0
    %4424 = vmatprep.subr.bf16.mxu0 %v3465
    %4425 = vmatpush1.bf16.msra.mxu0 %v3464
    %4426 = vmatprep.subr.bf16.mxu0 %v3449
    %4427 = vmatpush1.bf16.msra.mxu0 %v3448
    %4428 = vmatprep.subr.bf16.mxu0 %v3433
    %4429 = vmatpush1.bf16.msra.mxu0 %v3432
    %4430 = vmatprep.subr.bf16.mxu0 %v3417
    %4431 = vmatpush1.bf16.msra.mxu0 %v3416
    %4432 = vmatprep.subr.bf16.mxu0 %v3401
    %4433 = vmatpush1.bf16.msra.mxu0 %v3400
    %4434 = vmatprep.subr.bf16.mxu0 %v3385
    %4435 = vmatpush1.bf16.msra.mxu0 %v3384
    %4436 = vmatprep.subr.bf16.mxu0 %v3369
    %4437 = vmatpush1.bf16.msra.mxu0 %v3368
    %4438 = vmatprep.subr.bf16.mxu0 %v3353
    %4439 = vmatpush1.bf16.msra.mxu0 %v3352
    %4440 = vmatprep.subr.bf16.mxu0 %v3593
    %4441 = vmatpush2.bf16.msra.mxu0 %v3592
    %4442 = vmatprep.subr.bf16.mxu0 %v3577
    %4443 = vmatpush2.bf16.msra.mxu0 %v3576
    %4444 = vmatprep.subr.bf16.mxu0 %v3561
    %4445 = vmatpush2.bf16.msra.mxu0 %v3560
    %4446 = vmatprep.subr.bf16.mxu0 %v3545
    %4447 = vmatpush2.bf16.msra.mxu0 %v3544
    %4448 = vmatprep.subr.bf16.mxu0 %v3529
    %4449 = vmatpush2.bf16.msra.mxu0 %v3528
    %4450 = vmatprep.subr.bf16.mxu0 %v3513
    %4451 = vmatpush2.bf16.msra.mxu0 %v3512
    %4452 = vmatprep.subr.bf16.mxu0 %v3497
    %4453 = vmatpush2.bf16.msra.mxu0 %v3496
    %4454 = vmatprep.subr.bf16.mxu0 %v3481
    %4455 = vmatpush2.bf16.msra.mxu0 %v3480
    %4456 = vmatprep.mubr.bf16.mxu0 %v2285
    %4457 = vmatmul.mubr.bf16.gmra.mxu0 %v2284
    %v4458 = vpop.f32.mrf.mxu0
    %v4459 = vadd.f32 0.0, %v4458
    %v4460 = vpop.f32.mrf.mxu0
    %v4461 = vadd.f32 0.0, %v4460
    %v4462 = vpop.f32.mrf.mxu0
    %v4463 = vpop.f32.mrf.mxu0
    %4464 = vdwg.mxu0
    %4465 = vmatprep.subr.bf16.mxu0 %v3721
    %4466 = vmatpush1.bf16.msra.mxu0 %v3720
    %4467 = vmatprep.subr.bf16.mxu0 %v3705
    %4468 = vmatpush1.bf16.msra.mxu0 %v3704
    %4469 = vmatprep.subr.bf16.mxu0 %v3689
    %4470 = vmatpush1.bf16.msra.mxu0 %v3688
    %4471 = vmatprep.subr.bf16.mxu0 %v3673
    %4472 = vmatpush1.bf16.msra.mxu0 %v3672
    %4473 = vmatprep.subr.bf16.mxu0 %v3657
    %4474 = vmatpush1.bf16.msra.mxu0 %v3656
    %4475 = vmatprep.subr.bf16.mxu0 %v3641
    %4476 = vmatpush1.bf16.msra.mxu0 %v3640
    %4477 = vmatprep.subr.bf16.mxu0 %v3625
    %4478 = vmatpush1.bf16.msra.mxu0 %v3624
    %4479 = vmatprep.subr.bf16.mxu0 %v3609
    %4480 = vmatpush1.bf16.msra.mxu0 %v3608
    %4481 = vmatprep.subr.bf16.mxu0 %v3849
    %4482 = vmatpush2.bf16.msra.mxu0 %v3848
    %4483 = vmatprep.subr.bf16.mxu0 %v3833
    %4484 = vmatpush2.bf16.msra.mxu0 %v3832
    %4485 = vmatprep.subr.bf16.mxu0 %v3817
    %4486 = vmatpush2.bf16.msra.mxu0 %v3816
    %4487 = vmatprep.subr.bf16.mxu0 %v3801
    %4488 = vmatpush2.bf16.msra.mxu0 %v3800
    %4489 = vmatprep.subr.bf16.mxu0 %v3785
    %4490 = vmatpush2.bf16.msra.mxu0 %v3784
    %4491 = vmatprep.subr.bf16.mxu0 %v3769
    %4492 = vmatpush2.bf16.msra.mxu0 %v3768
    %4493 = vmatprep.subr.bf16.mxu0 %v3753
    %4494 = vmatpush2.bf16.msra.mxu0 %v3752
    %4495 = vmatprep.subr.bf16.mxu0 %v3737
    %4496 = vmatpush2.bf16.msra.mxu0 %v3736
    %4497 = vmatprep.mubr.bf16.mxu0 %v2287
    %4498 = vmatmul.mubr.bf16.gmra.mxu0 %v2286
    %v4499 = vpop.f32.mrf.mxu0
    %v4500 = vadd.f32 %v4459, %v4499
    %v4501 = vpop.f32.mrf.mxu0
    %v4502 = vadd.f32 %v4461, %v4501
    %v4503 = vpop.f32.mrf.mxu0
    %v4504 = vpop.f32.mrf.mxu0
    %4505 = vdwg.mxu0
    %4506 = vmatprep.subr.bf16.mxu0 %v2669
    %4507 = vmatpush1.bf16.msra.mxu0 %v2668
    %4508 = vmatprep.subr.bf16.mxu0 %v2653
    %4509 = vmatpush1.bf16.msra.mxu0 %v2652
    %4510 = vmatprep.subr.bf16.mxu0 %v2637
    %4511 = vmatpush1.bf16.msra.mxu0 %v2636
    %4512 = vmatprep.subr.bf16.mxu0 %v2621
    %4513 = vmatpush1.bf16.msra.mxu0 %v2620
    %4514 = vmatprep.subr.bf16.mxu0 %v2605
    %4515 = vmatpush1.bf16.msra.mxu0 %v2604
    %4516 = vmatprep.subr.bf16.mxu0 %v2589
    %4517 = vmatpush1.bf16.msra.mxu0 %v2588
    %4518 = vmatprep.subr.bf16.mxu0 %v2573
    %4519 = vmatpush1.bf16.msra.mxu0 %v2572
    %4520 = vmatprep.subr.bf16.mxu0 %v2557
    %4521 = vmatpush1.bf16.msra.mxu0 %v2556
    %4522 = vmatprep.subr.bf16.mxu0 %v2797
    %4523 = vmatpush2.bf16.msra.mxu0 %v2796
    %4524 = vmatprep.subr.bf16.mxu0 %v2781
    %4525 = vmatpush2.bf16.msra.mxu0 %v2780
    %4526 = vmatprep.subr.bf16.mxu0 %v2765
    %4527 = vmatpush2.bf16.msra.mxu0 %v2764
    %4528 = vmatprep.subr.bf16.mxu0 %v2749
    %4529 = vmatpush2.bf16.msra.mxu0 %v2748
    %4530 = vmatprep.subr.bf16.mxu0 %v2733
    %4531 = vmatpush2.bf16.msra.mxu0 %v2732
    %4532 = vmatprep.subr.bf16.mxu0 %v2717
    %4533 = vmatpush2.bf16.msra.mxu0 %v2716
    %4534 = vmatprep.subr.bf16.mxu0 %v2701
    %4535 = vmatpush2.bf16.msra.mxu0 %v2700
    %4536 = vmatprep.subr.bf16.mxu0 %v2685
    %4537 = vmatpush2.bf16.msra.mxu0 %v2684
    %4538 = vmatprep.mubr.bf16.mxu0 %v2281
    %4539 = vmatmul.mubr.bf16.gmra.mxu0 %v2280
    %v4540 = vpop.f32.mrf.mxu0
    %v4541 = vadd.f32 %v3926, %v4540
    %v4542 = vpop.f32.mrf.mxu0
    %v4543 = vadd.f32 %v3928, %v4542
    %v4544 = vpop.f32.mrf.mxu0
    %v4545 = vpop.f32.mrf.mxu0
    %4546 = vdwg.mxu0
    %4547 = vmatprep.subr.bf16.mxu0 %v2925
    %4548 = vmatpush1.bf16.msra.mxu0 %v2924
    %4549 = vmatprep.subr.bf16.mxu0 %v2909
    %4550 = vmatpush1.bf16.msra.mxu0 %v2908
    %4551 = vmatprep.subr.bf16.mxu0 %v2893
    %4552 = vmatpush1.bf16.msra.mxu0 %v2892
    %4553 = vmatprep.subr.bf16.mxu0 %v2877
    %4554 = vmatpush1.bf16.msra.mxu0 %v2876
    %4555 = vmatprep.subr.bf16.mxu0 %v2861
    %4556 = vmatpush1.bf16.msra.mxu0 %v2860
    %4557 = vmatprep.subr.bf16.mxu0 %v2845
    %4558 = vmatpush1.bf16.msra.mxu0 %v2844
    %4559 = vmatprep.subr.bf16.mxu0 %v2829
    %4560 = vmatpush1.bf16.msra.mxu0 %v2828
    %4561 = vmatprep.subr.bf16.mxu0 %v2813
    %4562 = vmatpush1.bf16.msra.mxu0 %v2812
    %4563 = vmatprep.subr.bf16.mxu0 %v3053
    %4564 = vmatpush2.bf16.msra.mxu0 %v3052
    %4565 = vmatprep.subr.bf16.mxu0 %v3037
    %4566 = vmatpush2.bf16.msra.mxu0 %v3036
    %4567 = vmatprep.subr.bf16.mxu0 %v3021
    %4568 = vmatpush2.bf16.msra.mxu0 %v3020
    %4569 = vmatprep.subr.bf16.mxu0 %v3005
    %4570 = vmatpush2.bf16.msra.mxu0 %v3004
    %4571 = vmatprep.subr.bf16.mxu0 %v2989
    %4572 = vmatpush2.bf16.msra.mxu0 %v2988
    %4573 = vmatprep.subr.bf16.mxu0 %v2973
    %4574 = vmatpush2.bf16.msra.mxu0 %v2972
    %4575 = vmatprep.subr.bf16.mxu0 %v2957
    %4576 = vmatpush2.bf16.msra.mxu0 %v2956
    %4577 = vmatprep.subr.bf16.mxu0 %v2941
    %4578 = vmatpush2.bf16.msra.mxu0 %v2940
    %4579 = vmatprep.mubr.bf16.mxu0 %v2283
    %4580 = vmatmul.mubr.bf16.gmra.mxu0 %v2282
    %v4581 = vpop.f32.mrf.mxu0
    %v4582 = vadd.f32 %v4541, %v4581
    %v4583 = vpop.f32.mrf.mxu0
    %v4584 = vadd.f32 %v4543, %v4583
    %v4585 = vpop.f32.mrf.mxu0
    %v4586 = vpop.f32.mrf.mxu0
    %4587 = vdwg.mxu0
    %4588 = vmatprep.subr.bf16.mxu0 %v2671
    %4589 = vmatpush1.bf16.msra.mxu0 %v2670
    %4590 = vmatprep.subr.bf16.mxu0 %v2655
    %4591 = vmatpush1.bf16.msra.mxu0 %v2654
    %4592 = vmatprep.subr.bf16.mxu0 %v2639
    %4593 = vmatpush1.bf16.msra.mxu0 %v2638
    %4594 = vmatprep.subr.bf16.mxu0 %v2623
    %4595 = vmatpush1.bf16.msra.mxu0 %v2622
    %4596 = vmatprep.subr.bf16.mxu0 %v2607
    %4597 = vmatpush1.bf16.msra.mxu0 %v2606
    %4598 = vmatprep.subr.bf16.mxu0 %v2591
    %4599 = vmatpush1.bf16.msra.mxu0 %v2590
    %4600 = vmatprep.subr.bf16.mxu0 %v2575
    %4601 = vmatpush1.bf16.msra.mxu0 %v2574
    %4602 = vmatprep.subr.bf16.mxu0 %v2559
    %4603 = vmatpush1.bf16.msra.mxu0 %v2558
    %4604 = vmatprep.subr.bf16.mxu0 %v2799
    %4605 = vmatpush2.bf16.msra.mxu0 %v2798
    %4606 = vmatprep.subr.bf16.mxu0 %v2783
    %4607 = vmatpush2.bf16.msra.mxu0 %v2782
    %4608 = vmatprep.subr.bf16.mxu0 %v2767
    %4609 = vmatpush2.bf16.msra.mxu0 %v2766
    %4610 = vmatprep.subr.bf16.mxu0 %v2751
    %4611 = vmatpush2.bf16.msra.mxu0 %v2750
    %4612 = vmatprep.subr.bf16.mxu0 %v2735
    %4613 = vmatpush2.bf16.msra.mxu0 %v2734
    %4614 = vmatprep.subr.bf16.mxu0 %v2719
    %4615 = vmatpush2.bf16.msra.mxu0 %v2718
    %4616 = vmatprep.subr.bf16.mxu0 %v2703
    %4617 = vmatpush2.bf16.msra.mxu0 %v2702
    %4618 = vmatprep.subr.bf16.mxu0 %v2687
    %4619 = vmatpush2.bf16.msra.mxu0 %v2686
    %4620 = vmatprep.mubr.bf16.mxu0 %v2281
    %4621 = vmatmul.mubr.bf16.gmra.mxu0 %v2280
    %v4622 = vpop.f32.mrf.mxu0
    %v4623 = vadd.f32 %v4008, %v4622
    %v4624 = vpop.f32.mrf.mxu0
    %v4625 = vadd.f32 %v4010, %v4624
    %v4626 = vpop.f32.mrf.mxu0
    %v4627 = vpop.f32.mrf.mxu0
    %4628 = vdwg.mxu0
    %4629 = vmatprep.subr.bf16.mxu0 %v2927
    %4630 = vmatpush1.bf16.msra.mxu0 %v2926
    %4631 = vmatprep.subr.bf16.mxu0 %v2911
    %4632 = vmatpush1.bf16.msra.mxu0 %v2910
    %4633 = vmatprep.subr.bf16.mxu0 %v2895
    %4634 = vmatpush1.bf16.msra.mxu0 %v2894
    %4635 = vmatprep.subr.bf16.mxu0 %v2879
    %4636 = vmatpush1.bf16.msra.mxu0 %v2878
    %4637 = vmatprep.subr.bf16.mxu0 %v2863
    %4638 = vmatpush1.bf16.msra.mxu0 %v2862
    %4639 = vmatprep.subr.bf16.mxu0 %v2847
    %4640 = vmatpush1.bf16.msra.mxu0 %v2846
    %4641 = vmatprep.subr.bf16.mxu0 %v2831
    %4642 = vmatpush1.bf16.msra.mxu0 %v2830
    %4643 = vmatprep.subr.bf16.mxu0 %v2815
    %4644 = vmatpush1.bf16.msra.mxu0 %v2814
    %4645 = vmatprep.subr.bf16.mxu0 %v3055
    %4646 = vmatpush2.bf16.msra.mxu0 %v3054
    %4647 = vmatprep.subr.bf16.mxu0 %v3039
    %4648 = vmatpush2.bf16.msra.mxu0 %v3038
    %4649 = vmatprep.subr.bf16.mxu0 %v3023
    %4650 = vmatpush2.bf16.msra.mxu0 %v3022
    %4651 = vmatprep.subr.bf16.mxu0 %v3007
    %4652 = vmatpush2.bf16.msra.mxu0 %v3006
    %4653 = vmatprep.subr.bf16.mxu0 %v2991
    %4654 = vmatpush2.bf16.msra.mxu0 %v2990
    %4655 = vmatprep.subr.bf16.mxu0 %v2975
    %4656 = vmatpush2.bf16.msra.mxu0 %v2974
    %4657 = vmatprep.subr.bf16.mxu0 %v2959
    %4658 = vmatpush2.bf16.msra.mxu0 %v2958
    %4659 = vmatprep.subr.bf16.mxu0 %v2943
    %4660 = vmatpush2.bf16.msra.mxu0 %v2942
    %4661 = vmatprep.mubr.bf16.mxu0 %v2283
    %4662 = vmatmul.mubr.bf16.gmra.mxu0 %v2282
    %v4663 = vpop.f32.mrf.mxu0
    %v4664 = vadd.f32 %v4623, %v4663
    %v4665 = vpop.f32.mrf.mxu0
    %v4666 = vadd.f32 %v4625, %v4665
    %v4667 = vpop.f32.mrf.mxu0
    %v4668 = vpop.f32.mrf.mxu0
    %4669 = vdwg.mxu0
    %4670 = vmatprep.subr.bf16.mxu0 %v2673
    %4671 = vmatpush1.bf16.msra.mxu0 %v2672
    %4672 = vmatprep.subr.bf16.mxu0 %v2657
    %4673 = vmatpush1.bf16.msra.mxu0 %v2656
    %4674 = vmatprep.subr.bf16.mxu0 %v2641
    %4675 = vmatpush1.bf16.msra.mxu0 %v2640
    %4676 = vmatprep.subr.bf16.mxu0 %v2625
    %4677 = vmatpush1.bf16.msra.mxu0 %v2624
    %4678 = vmatprep.subr.bf16.mxu0 %v2609
    %4679 = vmatpush1.bf16.msra.mxu0 %v2608
    %4680 = vmatprep.subr.bf16.mxu0 %v2593
    %4681 = vmatpush1.bf16.msra.mxu0 %v2592
    %4682 = vmatprep.subr.bf16.mxu0 %v2577
    %4683 = vmatpush1.bf16.msra.mxu0 %v2576
    %4684 = vmatprep.subr.bf16.mxu0 %v2561
    %4685 = vmatpush1.bf16.msra.mxu0 %v2560
    %4686 = vmatprep.subr.bf16.mxu0 %v2801
    %4687 = vmatpush2.bf16.msra.mxu0 %v2800
    %4688 = vmatprep.subr.bf16.mxu0 %v2785
    %4689 = vmatpush2.bf16.msra.mxu0 %v2784
    %4690 = vmatprep.subr.bf16.mxu0 %v2769
    %4691 = vmatpush2.bf16.msra.mxu0 %v2768
    %4692 = vmatprep.subr.bf16.mxu0 %v2753
    %4693 = vmatpush2.bf16.msra.mxu0 %v2752
    %4694 = vmatprep.subr.bf16.mxu0 %v2737
    %4695 = vmatpush2.bf16.msra.mxu0 %v2736
    %4696 = vmatprep.subr.bf16.mxu0 %v2721
    %4697 = vmatpush2.bf16.msra.mxu0 %v2720
    %4698 = vmatprep.subr.bf16.mxu0 %v2705
    %4699 = vmatpush2.bf16.msra.mxu0 %v2704
    %4700 = vmatprep.subr.bf16.mxu0 %v2689
    %4701 = vmatpush2.bf16.msra.mxu0 %v2688
    %4702 = vmatprep.mubr.bf16.mxu0 %v2281
    %4703 = vmatmul.mubr.bf16.gmra.mxu0 %v2280
    %v4704 = vpop.f32.mrf.mxu0
    %v4705 = vadd.f32 %v4090, %v4704
    %v4706 = vpop.f32.mrf.mxu0
    %v4707 = vadd.f32 %v4092, %v4706
    %v4708 = vpop.f32.mrf.mxu0
    %v4709 = vpop.f32.mrf.mxu0
    %4710 = vdwg.mxu0
    %4711 = vmatprep.subr.bf16.mxu0 %v2929
    %4712 = vmatpush1.bf16.msra.mxu0 %v2928
    %4713 = vmatprep.subr.bf16.mxu0 %v2913
    %4714 = vmatpush1.bf16.msra.mxu0 %v2912
    %4715 = vmatprep.subr.bf16.mxu0 %v2897
    %4716 = vmatpush1.bf16.msra.mxu0 %v2896
    %4717 = vmatprep.subr.bf16.mxu0 %v2881
    %4718 = vmatpush1.bf16.msra.mxu0 %v2880
    %4719 = vmatprep.subr.bf16.mxu0 %v2865
    %4720 = vmatpush1.bf16.msra.mxu0 %v2864
    %4721 = vmatprep.subr.bf16.mxu0 %v2849
    %4722 = vmatpush1.bf16.msra.mxu0 %v2848
    %4723 = vmatprep.subr.bf16.mxu0 %v2833
    %4724 = vmatpush1.bf16.msra.mxu0 %v2832
    %4725 = vmatprep.subr.bf16.mxu0 %v2817
    %4726 = vmatpush1.bf16.msra.mxu0 %v2816
    %4727 = vmatprep.subr.bf16.mxu0 %v3057
    %4728 = vmatpush2.bf16.msra.mxu0 %v3056
    %4729 = vmatprep.subr.bf16.mxu0 %v3041
    %4730 = vmatpush2.bf16.msra.mxu0 %v3040
    %4731 = vmatprep.subr.bf16.mxu0 %v3025
    %4732 = vmatpush2.bf16.msra.mxu0 %v3024
    %4733 = vmatprep.subr.bf16.mxu0 %v3009
    %4734 = vmatpush2.bf16.msra.mxu0 %v3008
    %4735 = vmatprep.subr.bf16.mxu0 %v2993
    %4736 = vmatpush2.bf16.msra.mxu0 %v2992
    %4737 = vmatprep.subr.bf16.mxu0 %v2977
    %4738 = vmatpush2.bf16.msra.mxu0 %v2976
    %4739 = vmatprep.subr.bf16.mxu0 %v2961
    %4740 = vmatpush2.bf16.msra.mxu0 %v2960
    %4741 = vmatprep.subr.bf16.mxu0 %v2945
    %4742 = vmatpush2.bf16.msra.mxu0 %v2944
    %4743 = vmatprep.mubr.bf16.mxu0 %v2283
    %4744 = vmatmul.mubr.bf16.gmra.mxu0 %v2282
    %v4745 = vpop.f32.mrf.mxu0
    %v4746 = vadd.f32 %v4705, %v4745
    %v4747 = vpop.f32.mrf.mxu0
    %v4748 = vadd.f32 %v4707, %v4747
    %v4749 = vpop.f32.mrf.mxu0
    %v4750 = vpop.f32.mrf.mxu0
    %4751 = vdwg.mxu0
    %4752 = vmatprep.subr.bf16.mxu0 %v2675
    %4753 = vmatpush1.bf16.msra.mxu0 %v2674
    %4754 = vmatprep.subr.bf16.mxu0 %v2659
    %4755 = vmatpush1.bf16.msra.mxu0 %v2658
    %4756 = vmatprep.subr.bf16.mxu0 %v2643
    %4757 = vmatpush1.bf16.msra.mxu0 %v2642
    %4758 = vmatprep.subr.bf16.mxu0 %v2627
    %4759 = vmatpush1.bf16.msra.mxu0 %v2626
    %4760 = vmatprep.subr.bf16.mxu0 %v2611
    %4761 = vmatpush1.bf16.msra.mxu0 %v2610
    %4762 = vmatprep.subr.bf16.mxu0 %v2595
    %4763 = vmatpush1.bf16.msra.mxu0 %v2594
    %4764 = vmatprep.subr.bf16.mxu0 %v2579
    %4765 = vmatpush1.bf16.msra.mxu0 %v2578
    %4766 = vmatprep.subr.bf16.mxu0 %v2563
    %4767 = vmatpush1.bf16.msra.mxu0 %v2562
    %4768 = vmatprep.subr.bf16.mxu0 %v2803
    %4769 = vmatpush2.bf16.msra.mxu0 %v2802
    %4770 = vmatprep.subr.bf16.mxu0 %v2787
    %4771 = vmatpush2.bf16.msra.mxu0 %v2786
    %4772 = vmatprep.subr.bf16.mxu0 %v2771
    %4773 = vmatpush2.bf16.msra.mxu0 %v2770
    %4774 = vmatprep.subr.bf16.mxu0 %v2755
    %4775 = vmatpush2.bf16.msra.mxu0 %v2754
    %4776 = vmatprep.subr.bf16.mxu0 %v2739
    %4777 = vmatpush2.bf16.msra.mxu0 %v2738
    %4778 = vmatprep.subr.bf16.mxu0 %v2723
    %4779 = vmatpush2.bf16.msra.mxu0 %v2722
    %4780 = vmatprep.subr.bf16.mxu0 %v2707
    %4781 = vmatpush2.bf16.msra.mxu0 %v2706
    %4782 = vmatprep.subr.bf16.mxu0 %v2691
    %4783 = vmatpush2.bf16.msra.mxu0 %v2690
    %4784 = vmatprep.mubr.bf16.mxu0 %v2281
    %4785 = vmatmul.mubr.bf16.gmra.mxu0 %v2280
    %v4786 = vpop.f32.mrf.mxu0
    %v4787 = vadd.f32 %v4172, %v4786
    %v4788 = vpop.f32.mrf.mxu0
    %v4789 = vadd.f32 %v4174, %v4788
    %v4790 = vpop.f32.mrf.mxu0
    %v4791 = vpop.f32.mrf.mxu0
    %4792 = vdwg.mxu0
    %4793 = vmatprep.subr.bf16.mxu0 %v2931
    %4794 = vmatpush1.bf16.msra.mxu0 %v2930
    %4795 = vmatprep.subr.bf16.mxu0 %v2915
    %4796 = vmatpush1.bf16.msra.mxu0 %v2914
    %4797 = vmatprep.subr.bf16.mxu0 %v2899
    %4798 = vmatpush1.bf16.msra.mxu0 %v2898
    %4799 = vmatprep.subr.bf16.mxu0 %v2883
    %4800 = vmatpush1.bf16.msra.mxu0 %v2882
    %4801 = vmatprep.subr.bf16.mxu0 %v2867
    %4802 = vmatpush1.bf16.msra.mxu0 %v2866
    %4803 = vmatprep.subr.bf16.mxu0 %v2851
    %4804 = vmatpush1.bf16.msra.mxu0 %v2850
    %4805 = vmatprep.subr.bf16.mxu0 %v2835
    %4806 = vmatpush1.bf16.msra.mxu0 %v2834
    %4807 = vmatprep.subr.bf16.mxu0 %v2819
    %4808 = vmatpush1.bf16.msra.mxu0 %v2818
    %4809 = vmatprep.subr.bf16.mxu0 %v3059
    %4810 = vmatpush2.bf16.msra.mxu0 %v3058
    %4811 = vmatprep.subr.bf16.mxu0 %v3043
    %4812 = vmatpush2.bf16.msra.mxu0 %v3042
    %4813 = vmatprep.subr.bf16.mxu0 %v3027
    %4814 = vmatpush2.bf16.msra.mxu0 %v3026
    %4815 = vmatprep.subr.bf16.mxu0 %v3011
    %4816 = vmatpush2.bf16.msra.mxu0 %v3010
    %4817 = vmatprep.subr.bf16.mxu0 %v2995
    %4818 = vmatpush2.bf16.msra.mxu0 %v2994
    %4819 = vmatprep.subr.bf16.mxu0 %v2979
    %4820 = vmatpush2.bf16.msra.mxu0 %v2978
    %4821 = vmatprep.subr.bf16.mxu0 %v2963
    %4822 = vmatpush2.bf16.msra.mxu0 %v2962
    %4823 = vmatprep.subr.bf16.mxu0 %v2947
    %4824 = vmatpush2.bf16.msra.mxu0 %v2946
    %4825 = vmatprep.mubr.bf16.mxu0 %v2283
    %4826 = vmatmul.mubr.bf16.gmra.mxu0 %v2282
    %v4827 = vpop.f32.mrf.mxu0
    %v4828 = vadd.f32 %v4787, %v4827
    %v4829 = vpop.f32.mrf.mxu0
    %v4830 = vadd.f32 %v4789, %v4829
    %v4831 = vpop.f32.mrf.mxu0
    %v4832 = vpop.f32.mrf.mxu0
    %4833 = vdwg.mxu0
    %4834 = vmatprep.subr.bf16.mxu0 %v2677
    %4835 = vmatpush1.bf16.msra.mxu0 %v2676
    %4836 = vmatprep.subr.bf16.mxu0 %v2661
    %4837 = vmatpush1.bf16.msra.mxu0 %v2660
    %4838 = vmatprep.subr.bf16.mxu0 %v2645
    %4839 = vmatpush1.bf16.msra.mxu0 %v2644
    %4840 = vmatprep.subr.bf16.mxu0 %v2629
    %4841 = vmatpush1.bf16.msra.mxu0 %v2628
    %4842 = vmatprep.subr.bf16.mxu0 %v2613
    %4843 = vmatpush1.bf16.msra.mxu0 %v2612
    %4844 = vmatprep.subr.bf16.mxu0 %v2597
    %4845 = vmatpush1.bf16.msra.mxu0 %v2596
    %4846 = vmatprep.subr.bf16.mxu0 %v2581
    %4847 = vmatpush1.bf16.msra.mxu0 %v2580
    %4848 = vmatprep.subr.bf16.mxu0 %v2565
    %4849 = vmatpush1.bf16.msra.mxu0 %v2564
    %4850 = vmatprep.subr.bf16.mxu0 %v2805
    %4851 = vmatpush2.bf16.msra.mxu0 %v2804
    %4852 = vmatprep.subr.bf16.mxu0 %v2789
    %4853 = vmatpush2.bf16.msra.mxu0 %v2788
    %4854 = vmatprep.subr.bf16.mxu0 %v2773
    %4855 = vmatpush2.bf16.msra.mxu0 %v2772
    %4856 = vmatprep.subr.bf16.mxu0 %v2757
    %4857 = vmatpush2.bf16.msra.mxu0 %v2756
    %4858 = vmatprep.subr.bf16.mxu0 %v2741
    %4859 = vmatpush2.bf16.msra.mxu0 %v2740
    %4860 = vmatprep.subr.bf16.mxu0 %v2725
    %4861 = vmatpush2.bf16.msra.mxu0 %v2724
    %4862 = vmatprep.subr.bf16.mxu0 %v2709
    %4863 = vmatpush2.bf16.msra.mxu0 %v2708
    %4864 = vmatprep.subr.bf16.mxu0 %v2693
    %4865 = vmatpush2.bf16.msra.mxu0 %v2692
    %4866 = vmatprep.mubr.bf16.mxu0 %v2281
    %4867 = vmatmul.mubr.bf16.gmra.mxu0 %v2280
    %v4868 = vpop.f32.mrf.mxu0
    %v4869 = vadd.f32 %v4254, %v4868
    %v4870 = vpop.f32.mrf.mxu0
    %v4871 = vadd.f32 %v4256, %v4870
    %v4872 = vpop.f32.mrf.mxu0
    %v4873 = vpop.f32.mrf.mxu0
    %4874 = vdwg.mxu0
    %4875 = vmatprep.subr.bf16.mxu0 %v2933
    %4876 = vmatpush1.bf16.msra.mxu0 %v2932
    %4877 = vmatprep.subr.bf16.mxu0 %v2917
    %4878 = vmatpush1.bf16.msra.mxu0 %v2916
    %4879 = vmatprep.subr.bf16.mxu0 %v2901
    %4880 = vmatpush1.bf16.msra.mxu0 %v2900
    %4881 = vmatprep.subr.bf16.mxu0 %v2885
    %4882 = vmatpush1.bf16.msra.mxu0 %v2884
    %4883 = vmatprep.subr.bf16.mxu0 %v2869
    %4884 = vmatpush1.bf16.msra.mxu0 %v2868
    %4885 = vmatprep.subr.bf16.mxu0 %v2853
    %4886 = vmatpush1.bf16.msra.mxu0 %v2852
    %4887 = vmatprep.subr.bf16.mxu0 %v2837
    %4888 = vmatpush1.bf16.msra.mxu0 %v2836
    %4889 = vmatprep.subr.bf16.mxu0 %v2821
    %4890 = vmatpush1.bf16.msra.mxu0 %v2820
    %4891 = vmatprep.subr.bf16.mxu0 %v3061
    %4892 = vmatpush2.bf16.msra.mxu0 %v3060
    %4893 = vmatprep.subr.bf16.mxu0 %v3045
    %4894 = vmatpush2.bf16.msra.mxu0 %v3044
    %4895 = vmatprep.subr.bf16.mxu0 %v3029
    %4896 = vmatpush2.bf16.msra.mxu0 %v3028
    %4897 = vmatprep.subr.bf16.mxu0 %v3013
    %4898 = vmatpush2.bf16.msra.mxu0 %v3012
    %4899 = vmatprep.subr.bf16.mxu0 %v2997
    %4900 = vmatpush2.bf16.msra.mxu0 %v2996
    %4901 = vmatprep.subr.bf16.mxu0 %v2981
    %4902 = vmatpush2.bf16.msra.mxu0 %v2980
    %4903 = vmatprep.subr.bf16.mxu0 %v2965
    %4904 = vmatpush2.bf16.msra.mxu0 %v2964
    %4905 = vmatprep.subr.bf16.mxu0 %v2949
    %4906 = vmatpush2.bf16.msra.mxu0 %v2948
    %4907 = vmatprep.mubr.bf16.mxu0 %v2283
    %4908 = vmatmul.mubr.bf16.gmra.mxu0 %v2282
    %v4909 = vpop.f32.mrf.mxu0
    %v4910 = vadd.f32 %v4869, %v4909
    %v4911 = vpop.f32.mrf.mxu0
    %v4912 = vadd.f32 %v4871, %v4911
    %v4913 = vpop.f32.mrf.mxu0
    %v4914 = vpop.f32.mrf.mxu0
    %4915 = vdwg.mxu0
    %4916 = vmatprep.subr.bf16.mxu0 %v2679
    %4917 = vmatpush1.bf16.msra.mxu0 %v2678
    %4918 = vmatprep.subr.bf16.mxu0 %v2663
    %4919 = vmatpush1.bf16.msra.mxu0 %v2662
    %4920 = vmatprep.subr.bf16.mxu0 %v2647
    %4921 = vmatpush1.bf16.msra.mxu0 %v2646
    %4922 = vmatprep.subr.bf16.mxu0 %v2631
    %4923 = vmatpush1.bf16.msra.mxu0 %v2630
    %4924 = vmatprep.subr.bf16.mxu0 %v2615
    %4925 = vmatpush1.bf16.msra.mxu0 %v2614
    %4926 = vmatprep.subr.bf16.mxu0 %v2599
    %4927 = vmatpush1.bf16.msra.mxu0 %v2598
    %4928 = vmatprep.subr.bf16.mxu0 %v2583
    %4929 = vmatpush1.bf16.msra.mxu0 %v2582
    %4930 = vmatprep.subr.bf16.mxu0 %v2567
    %4931 = vmatpush1.bf16.msra.mxu0 %v2566
    %4932 = vmatprep.subr.bf16.mxu0 %v2807
    %4933 = vmatpush2.bf16.msra.mxu0 %v2806
    %4934 = vmatprep.subr.bf16.mxu0 %v2791
    %4935 = vmatpush2.bf16.msra.mxu0 %v2790
    %4936 = vmatprep.subr.bf16.mxu0 %v2775
    %4937 = vmatpush2.bf16.msra.mxu0 %v2774
    %4938 = vmatprep.subr.bf16.mxu0 %v2759
    %4939 = vmatpush2.bf16.msra.mxu0 %v2758
    %4940 = vmatprep.subr.bf16.mxu0 %v2743
    %4941 = vmatpush2.bf16.msra.mxu0 %v2742
    %4942 = vmatprep.subr.bf16.mxu0 %v2727
    %4943 = vmatpush2.bf16.msra.mxu0 %v2726
    %4944 = vmatprep.subr.bf16.mxu0 %v2711
    %4945 = vmatpush2.bf16.msra.mxu0 %v2710
    %4946 = vmatprep.subr.bf16.mxu0 %v2695
    %4947 = vmatpush2.bf16.msra.mxu0 %v2694
    %4948 = vmatprep.mubr.bf16.mxu0 %v2281
    %4949 = vmatmul.mubr.bf16.gmra.mxu0 %v2280
    %v4950 = vpop.f32.mrf.mxu0
    %v4951 = vadd.f32 %v4336, %v4950
    %v4952 = vpop.f32.mrf.mxu0
    %v4953 = vadd.f32 %v4338, %v4952
    %v4954 = vpop.f32.mrf.mxu0
    %v4955 = vpop.f32.mrf.mxu0
    %4956 = vdwg.mxu0
    %4957 = vmatprep.subr.bf16.mxu0 %v2935
    %4958 = vmatpush1.bf16.msra.mxu0 %v2934
    %4959 = vmatprep.subr.bf16.mxu0 %v2919
    %4960 = vmatpush1.bf16.msra.mxu0 %v2918
    %4961 = vmatprep.subr.bf16.mxu0 %v2903
    %4962 = vmatpush1.bf16.msra.mxu0 %v2902
    %4963 = vmatprep.subr.bf16.mxu0 %v2887
    %4964 = vmatpush1.bf16.msra.mxu0 %v2886
    %4965 = vmatprep.subr.bf16.mxu0 %v2871
    %4966 = vmatpush1.bf16.msra.mxu0 %v2870
    %4967 = vmatprep.subr.bf16.mxu0 %v2855
    %4968 = vmatpush1.bf16.msra.mxu0 %v2854
    %4969 = vmatprep.subr.bf16.mxu0 %v2839
    %4970 = vmatpush1.bf16.msra.mxu0 %v2838
    %4971 = vmatprep.subr.bf16.mxu0 %v2823
    %4972 = vmatpush1.bf16.msra.mxu0 %v2822
    %4973 = vmatprep.subr.bf16.mxu0 %v3063
    %4974 = vmatpush2.bf16.msra.mxu0 %v3062
    %4975 = vmatprep.subr.bf16.mxu0 %v3047
    %4976 = vmatpush2.bf16.msra.mxu0 %v3046
    %4977 = vmatprep.subr.bf16.mxu0 %v3031
    %4978 = vmatpush2.bf16.msra.mxu0 %v3030
    %4979 = vmatprep.subr.bf16.mxu0 %v3015
    %4980 = vmatpush2.bf16.msra.mxu0 %v3014
    %4981 = vmatprep.subr.bf16.mxu0 %v2999
    %4982 = vmatpush2.bf16.msra.mxu0 %v2998
    %4983 = vmatprep.subr.bf16.mxu0 %v2983
    %4984 = vmatpush2.bf16.msra.mxu0 %v2982
    %4985 = vmatprep.subr.bf16.mxu0 %v2967
    %4986 = vmatpush2.bf16.msra.mxu0 %v2966
    %4987 = vmatprep.subr.bf16.mxu0 %v2951
    %4988 = vmatpush2.bf16.msra.mxu0 %v2950
    %4989 = vmatprep.mubr.bf16.mxu0 %v2283
    %4990 = vmatmul.mubr.bf16.gmra.mxu0 %v2282
    %v4991 = vpop.f32.mrf.mxu0
    %v4992 = vadd.f32 %v4951, %v4991
    %v4993 = vpop.f32.mrf.mxu0
    %v4994 = vadd.f32 %v4953, %v4993
    %v4995 = vpop.f32.mrf.mxu0
    %v4996 = vpop.f32.mrf.mxu0
    %4997 = vdwg.mxu0
    %4998 = vmatprep.subr.bf16.mxu0 %v2681
    %4999 = vmatpush1.bf16.msra.mxu0 %v2680
    %5000 = vmatprep.subr.bf16.mxu0 %v2665
    %5001 = vmatpush1.bf16.msra.mxu0 %v2664
    %5002 = vmatprep.subr.bf16.mxu0 %v2649
    %5003 = vmatpush1.bf16.msra.mxu0 %v2648
    %5004 = vmatprep.subr.bf16.mxu0 %v2633
    %5005 = vmatpush1.bf16.msra.mxu0 %v2632
    %5006 = vmatprep.subr.bf16.mxu0 %v2617
    %5007 = vmatpush1.bf16.msra.mxu0 %v2616
    %5008 = vmatprep.subr.bf16.mxu0 %v2601
    %5009 = vmatpush1.bf16.msra.mxu0 %v2600
    %5010 = vmatprep.subr.bf16.mxu0 %v2585
    %5011 = vmatpush1.bf16.msra.mxu0 %v2584
    %5012 = vmatprep.subr.bf16.mxu0 %v2569
    %5013 = vmatpush1.bf16.msra.mxu0 %v2568
    %5014 = vmatprep.subr.bf16.mxu0 %v2809
    %5015 = vmatpush2.bf16.msra.mxu0 %v2808
    %5016 = vmatprep.subr.bf16.mxu0 %v2793
    %5017 = vmatpush2.bf16.msra.mxu0 %v2792
    %5018 = vmatprep.subr.bf16.mxu0 %v2777
    %5019 = vmatpush2.bf16.msra.mxu0 %v2776
    %5020 = vmatprep.subr.bf16.mxu0 %v2761
    %5021 = vmatpush2.bf16.msra.mxu0 %v2760
    %5022 = vmatprep.subr.bf16.mxu0 %v2745
    %5023 = vmatpush2.bf16.msra.mxu0 %v2744
    %5024 = vmatprep.subr.bf16.mxu0 %v2729
    %5025 = vmatpush2.bf16.msra.mxu0 %v2728
    %5026 = vmatprep.subr.bf16.mxu0 %v2713
    %5027 = vmatpush2.bf16.msra.mxu0 %v2712
    %5028 = vmatprep.subr.bf16.mxu0 %v2697
    %5029 = vmatpush2.bf16.msra.mxu0 %v2696
    %5030 = vmatprep.mubr.bf16.mxu0 %v2281
    %5031 = vmatmul.mubr.bf16.gmra.mxu0 %v2280
    %v5032 = vpop.f32.mrf.mxu0
    %v5033 = vadd.f32 %v4418, %v5032
    %v5034 = vpop.f32.mrf.mxu0
    %v5035 = vadd.f32 %v4420, %v5034
    %v5036 = vpop.f32.mrf.mxu0
    %v5037 = vpop.f32.mrf.mxu0
    %5038 = vdwg.mxu0
    %5039 = vmatprep.subr.bf16.mxu0 %v2937
    %5040 = vmatpush1.bf16.msra.mxu0 %v2936
    %5041 = vmatprep.subr.bf16.mxu0 %v2921
    %5042 = vmatpush1.bf16.msra.mxu0 %v2920
    %5043 = vmatprep.subr.bf16.mxu0 %v2905
    %5044 = vmatpush1.bf16.msra.mxu0 %v2904
    %5045 = vmatprep.subr.bf16.mxu0 %v2889
    %5046 = vmatpush1.bf16.msra.mxu0 %v2888
    %5047 = vmatprep.subr.bf16.mxu0 %v2873
    %5048 = vmatpush1.bf16.msra.mxu0 %v2872
    %5049 = vmatprep.subr.bf16.mxu0 %v2857
    %5050 = vmatpush1.bf16.msra.mxu0 %v2856
    %5051 = vmatprep.subr.bf16.mxu0 %v2841
    %5052 = vmatpush1.bf16.msra.mxu0 %v2840
    %5053 = vmatprep.subr.bf16.mxu0 %v2825
    %5054 = vmatpush1.bf16.msra.mxu0 %v2824
    %5055 = vmatprep.subr.bf16.mxu0 %v3065
    %5056 = vmatpush2.bf16.msra.mxu0 %v3064
    %5057 = vmatprep.subr.bf16.mxu0 %v3049
    %5058 = vmatpush2.bf16.msra.mxu0 %v3048
    %5059 = vmatprep.subr.bf16.mxu0 %v3033
    %5060 = vmatpush2.bf16.msra.mxu0 %v3032
    %5061 = vmatprep.subr.bf16.mxu0 %v3017
    %5062 = vmatpush2.bf16.msra.mxu0 %v3016
    %5063 = vmatprep.subr.bf16.mxu0 %v3001
    %5064 = vmatpush2.bf16.msra.mxu0 %v3000
    %5065 = vmatprep.subr.bf16.mxu0 %v2985
    %5066 = vmatpush2.bf16.msra.mxu0 %v2984
    %5067 = vmatprep.subr.bf16.mxu0 %v2969
    %5068 = vmatpush2.bf16.msra.mxu0 %v2968
    %5069 = vmatprep.subr.bf16.mxu0 %v2953
    %5070 = vmatpush2.bf16.msra.mxu0 %v2952
    %5071 = vmatprep.mubr.bf16.mxu0 %v2283
    %5072 = vmatmul.mubr.bf16.gmra.mxu0 %v2282
    %v5073 = vpop.f32.mrf.mxu0
    %v5074 = vadd.f32 %v5033, %v5073
    %v5075 = vpop.f32.mrf.mxu0
    %v5076 = vadd.f32 %v5035, %v5075
    %v5077 = vpop.f32.mrf.mxu0
    %v5078 = vpop.f32.mrf.mxu0
    %5079 = vdwg.mxu0
    %5080 = vmatprep.subr.bf16.mxu0 %v2683
    %5081 = vmatpush1.bf16.msra.mxu0 %v2682
    %5082 = vmatprep.subr.bf16.mxu0 %v2667
    %5083 = vmatpush1.bf16.msra.mxu0 %v2666
    %5084 = vmatprep.subr.bf16.mxu0 %v2651
    %5085 = vmatpush1.bf16.msra.mxu0 %v2650
    %5086 = vmatprep.subr.bf16.mxu0 %v2635
    %5087 = vmatpush1.bf16.msra.mxu0 %v2634
    %5088 = vmatprep.subr.bf16.mxu0 %v2619
    %5089 = vmatpush1.bf16.msra.mxu0 %v2618
    %5090 = vmatprep.subr.bf16.mxu0 %v2603
    %5091 = vmatpush1.bf16.msra.mxu0 %v2602
    %5092 = vmatprep.subr.bf16.mxu0 %v2587
    %5093 = vmatpush1.bf16.msra.mxu0 %v2586
    %5094 = vmatprep.subr.bf16.mxu0 %v2571
    %5095 = vmatpush1.bf16.msra.mxu0 %v2570
    %5096 = vmatprep.subr.bf16.mxu0 %v2811
    %5097 = vmatpush2.bf16.msra.mxu0 %v2810
    %5098 = vmatprep.subr.bf16.mxu0 %v2795
    %5099 = vmatpush2.bf16.msra.mxu0 %v2794
    %5100 = vmatprep.subr.bf16.mxu0 %v2779
    %5101 = vmatpush2.bf16.msra.mxu0 %v2778
    %5102 = vmatprep.subr.bf16.mxu0 %v2763
    %5103 = vmatpush2.bf16.msra.mxu0 %v2762
    %5104 = vmatprep.subr.bf16.mxu0 %v2747
    %5105 = vmatpush2.bf16.msra.mxu0 %v2746
    %5106 = vmatprep.subr.bf16.mxu0 %v2731
    %5107 = vmatpush2.bf16.msra.mxu0 %v2730
    %5108 = vmatprep.subr.bf16.mxu0 %v2715
    %5109 = vmatpush2.bf16.msra.mxu0 %v2714
    %5110 = vmatprep.subr.bf16.mxu0 %v2699
    %5111 = vmatpush2.bf16.msra.mxu0 %v2698
    %5112 = vmatprep.mubr.bf16.mxu0 %v2281
    %5113 = vmatmul.mubr.bf16.gmra.mxu0 %v2280
    %v5114 = vpop.f32.mrf.mxu0
    %v5115 = vadd.f32 %v4500, %v5114
    %v5116 = vpop.f32.mrf.mxu0
    %v5117 = vadd.f32 %v4502, %v5116
    %v5118 = vpop.f32.mrf.mxu0
    %v5119 = vpop.f32.mrf.mxu0
    %5120 = vdwg.mxu0
    %5121 = vmatprep.subr.bf16.mxu0 %v2939
    %5122 = vmatpush1.bf16.msra.mxu0 %v2938
    %5123 = vmatprep.subr.bf16.mxu0 %v2923
    %5124 = vmatpush1.bf16.msra.mxu0 %v2922
    %5125 = vmatprep.subr.bf16.mxu0 %v2907
    %5126 = vmatpush1.bf16.msra.mxu0 %v2906
    %5127 = vmatprep.subr.bf16.mxu0 %v2891
    %5128 = vmatpush1.bf16.msra.mxu0 %v2890
    %5129 = vmatprep.subr.bf16.mxu0 %v2875
    %5130 = vmatpush1.bf16.msra.mxu0 %v2874
    %5131 = vmatprep.subr.bf16.mxu0 %v2859
    %5132 = vmatpush1.bf16.msra.mxu0 %v2858
    %5133 = vmatprep.subr.bf16.mxu0 %v2843
    %5134 = vmatpush1.bf16.msra.mxu0 %v2842
    %5135 = vmatprep.subr.bf16.mxu0 %v2827
    %5136 = vmatpush1.bf16.msra.mxu0 %v2826
    %5137 = vmatprep.subr.bf16.mxu0 %v3067
    %5138 = vmatpush2.bf16.msra.mxu0 %v3066
    %5139 = vmatprep.subr.bf16.mxu0 %v3051
    %5140 = vmatpush2.bf16.msra.mxu0 %v3050
    %5141 = vmatprep.subr.bf16.mxu0 %v3035
    %5142 = vmatpush2.bf16.msra.mxu0 %v3034
    %5143 = vmatprep.subr.bf16.mxu0 %v3019
    %5144 = vmatpush2.bf16.msra.mxu0 %v3018
    %5145 = vmatprep.subr.bf16.mxu0 %v3003
    %5146 = vmatpush2.bf16.msra.mxu0 %v3002
    %5147 = vmatprep.subr.bf16.mxu0 %v2987
    %5148 = vmatpush2.bf16.msra.mxu0 %v2986
    %5149 = vmatprep.subr.bf16.mxu0 %v2971
    %5150 = vmatpush2.bf16.msra.mxu0 %v2970
    %5151 = vmatprep.subr.bf16.mxu0 %v2955
    %5152 = vmatpush2.bf16.msra.mxu0 %v2954
    %5153 = vmatprep.mubr.bf16.mxu0 %v2283
    %5154 = vmatmul.mubr.bf16.gmra.mxu0 %v2282
    %v5155 = vpop.f32.mrf.mxu0
    %v5156 = vadd.f32 %v5115, %v5155
    %v5157 = vpop.f32.mrf.mxu0
    %v5158 = vadd.f32 %v5117, %v5157
    %v5159 = vpop.f32.mrf.mxu0
    %v5160 = vpop.f32.mrf.mxu0
    %5161 = vdwg.mxu0
    %s5162 = scalar_lea.hbm %s4, 98304
    // Predicated region
    $region46: #{improved_codebert_classifier_fwd.1} parent=1 // pred_check
      _
    $region47: #{improved_codebert_classifier_fwd.1} parent=1 // pred_check_branch
      %5164 = sbr.rel target = $region49
    $region48: #{improved_codebert_classifier_fwd.1} parent=1 // pred_region
      %5165 = sst [smem:[#allocation15]] [#allocation22]
      %5166 = sst [smem:[#allocation16]] [#allocation21]
    $region49: #{improved_codebert_classifier_fwd.1} parent=1 // pred_fallthru
      _
    %5168 = shalt.err (0)
    %s5170 = sshll.u32 %s82, 4
    %s5171 = int_to_ptr.vmem [resolvable:$true] %s5170
    %5173 = dma.hbm_to_vmem [thread:$0]  %s5162, 32768, %s5171, %s83
    %s5174 = sshll.u32 %s2297, 4
    %5175 = dma.done [#allocation4], %s5174
    %v5176 = vld [vmem:[#allocation2] sm:$0xff]
    %v5177 = vld [vmem:[#allocation2 + $0x8] sm:$0xff]
    %v5178 = vld [vmem:[#allocation2 + $0x10] sm:$0xff]
    %v5179 = vld [vmem:[#allocation2 + $0x18] sm:$0xff]
    %v5180 = vld [vmem:[#allocation2 + $0x20] sm:$0xff]
    %v5181 = vld [vmem:[#allocation2 + $0x28] sm:$0xff]
    %v5182 = vld [vmem:[#allocation2 + $0x30] sm:$0xff]
    %v5183 = vld [vmem:[#allocation2 + $0x38] sm:$0xff]
    %v5184 = vld [vmem:[#allocation2 + $0x40] sm:$0xff]
    %v5185 = vld [vmem:[#allocation2 + $0x48] sm:$0xff]
    %v5186 = vld [vmem:[#allocation2 + $0x50] sm:$0xff]
    %v5187 = vld [vmem:[#allocation2 + $0x58] sm:$0xff]
    %v5188 = vld [vmem:[#allocation2 + $0x60] sm:$0xff]
    %v5189 = vld [vmem:[#allocation2 + $0x68] sm:$0xff]
    %v5190 = vld [vmem:[#allocation2 + $0x70] sm:$0xff]
    %v5191 = vld [vmem:[#allocation2 + $0x78] sm:$0xff]
    %v5192 = vld [vmem:[#allocation2 + $0x80] sm:$0xff]
    %v5193 = vld [vmem:[#allocation2 + $0x88] sm:$0xff]
    %v5194 = vld [vmem:[#allocation2 + $0x90] sm:$0xff]
    %v5195 = vld [vmem:[#allocation2 + $0x98] sm:$0xff]
    %v5196 = vld [vmem:[#allocation2 + $0xa0] sm:$0xff]
    %v5197 = vld [vmem:[#allocation2 + $0xa8] sm:$0xff]
    %v5198 = vld [vmem:[#allocation2 + $0xb0] sm:$0xff]
    %v5199 = vld [vmem:[#allocation2 + $0xb8] sm:$0xff]
    %v5200 = vld [vmem:[#allocation2 + $0xc0] sm:$0xff]
    %v5201 = vld [vmem:[#allocation2 + $0xc8] sm:$0xff]
    %v5202 = vld [vmem:[#allocation2 + $0xd0] sm:$0xff]
    %v5203 = vld [vmem:[#allocation2 + $0xd8] sm:$0xff]
    %v5204 = vld [vmem:[#allocation2 + $0xe0] sm:$0xff]
    %v5205 = vld [vmem:[#allocation2 + $0xe8] sm:$0xff]
    %v5206 = vld [vmem:[#allocation2 + $0xf0] sm:$0xff]
    %v5207 = vld [vmem:[#allocation2 + $0xf8] sm:$0xff]
    %v5208 = vld [vmem:[#allocation2 + $0x100] sm:$0xff]
    %v5209 = vld [vmem:[#allocation2 + $0x108] sm:$0xff]
    %v5210 = vld [vmem:[#allocation2 + $0x110] sm:$0xff]
    %v5211 = vld [vmem:[#allocation2 + $0x118] sm:$0xff]
    %v5212 = vld [vmem:[#allocation2 + $0x120] sm:$0xff]
    %v5213 = vld [vmem:[#allocation2 + $0x128] sm:$0xff]
    %v5214 = vld [vmem:[#allocation2 + $0x130] sm:$0xff]
    %v5215 = vld [vmem:[#allocation2 + $0x138] sm:$0xff]
    %v5216 = vld [vmem:[#allocation2 + $0x140] sm:$0xff]
    %v5217 = vld [vmem:[#allocation2 + $0x148] sm:$0xff]
    %v5218 = vld [vmem:[#allocation2 + $0x150] sm:$0xff]
    %v5219 = vld [vmem:[#allocation2 + $0x158] sm:$0xff]
    %v5220 = vld [vmem:[#allocation2 + $0x160] sm:$0xff]
    %v5221 = vld [vmem:[#allocation2 + $0x168] sm:$0xff]
    %v5222 = vld [vmem:[#allocation2 + $0x170] sm:$0xff]
    %v5223 = vld [vmem:[#allocation2 + $0x178] sm:$0xff]
    %v5224 = vld [vmem:[#allocation2 + $0x180] sm:$0xff]
    %v5225 = vld [vmem:[#allocation2 + $0x188] sm:$0xff]
    %v5226 = vld [vmem:[#allocation2 + $0x190] sm:$0xff]
    %v5227 = vld [vmem:[#allocation2 + $0x198] sm:$0xff]
    %v5228 = vld [vmem:[#allocation2 + $0x1a0] sm:$0xff]
    %v5229 = vld [vmem:[#allocation2 + $0x1a8] sm:$0xff]
    %v5230 = vld [vmem:[#allocation2 + $0x1b0] sm:$0xff]
    %v5231 = vld [vmem:[#allocation2 + $0x1b8] sm:$0xff]
    %v5232 = vld [vmem:[#allocation2 + $0x1c0] sm:$0xff]
    %v5233 = vld [vmem:[#allocation2 + $0x1c8] sm:$0xff]
    %v5234 = vld [vmem:[#allocation2 + $0x1d0] sm:$0xff]
    %v5235 = vld [vmem:[#allocation2 + $0x1d8] sm:$0xff]
    %v5236 = vld [vmem:[#allocation2 + $0x1e0] sm:$0xff]
    %v5237 = vld [vmem:[#allocation2 + $0x1e8] sm:$0xff]
    %v5238 = vld [vmem:[#allocation2 + $0x1f0] sm:$0xff]
    %v5239 = vld [vmem:[#allocation2 + $0x1f8] sm:$0xff]
    %v5240 = vld [vmem:[#allocation2 + $0x200] sm:$0xff]
    %v5241 = vld [vmem:[#allocation2 + $0x208] sm:$0xff]
    %v5242 = vld [vmem:[#allocation2 + $0x210] sm:$0xff]
    %v5243 = vld [vmem:[#allocation2 + $0x218] sm:$0xff]
    %v5244 = vld [vmem:[#allocation2 + $0x220] sm:$0xff]
    %v5245 = vld [vmem:[#allocation2 + $0x228] sm:$0xff]
    %v5246 = vld [vmem:[#allocation2 + $0x230] sm:$0xff]
    %v5247 = vld [vmem:[#allocation2 + $0x238] sm:$0xff]
    %v5248 = vld [vmem:[#allocation2 + $0x240] sm:$0xff]
    %v5249 = vld [vmem:[#allocation2 + $0x248] sm:$0xff]
    %v5250 = vld [vmem:[#allocation2 + $0x250] sm:$0xff]
    %v5251 = vld [vmem:[#allocation2 + $0x258] sm:$0xff]
    %v5252 = vld [vmem:[#allocation2 + $0x260] sm:$0xff]
    %v5253 = vld [vmem:[#allocation2 + $0x268] sm:$0xff]
    %v5254 = vld [vmem:[#allocation2 + $0x270] sm:$0xff]
    %v5255 = vld [vmem:[#allocation2 + $0x278] sm:$0xff]
    %v5256 = vld [vmem:[#allocation2 + $0x280] sm:$0xff]
    %v5257 = vld [vmem:[#allocation2 + $0x288] sm:$0xff]
    %v5258 = vld [vmem:[#allocation2 + $0x290] sm:$0xff]
    %v5259 = vld [vmem:[#allocation2 + $0x298] sm:$0xff]
    %v5260 = vld [vmem:[#allocation2 + $0x2a0] sm:$0xff]
    %v5261 = vld [vmem:[#allocation2 + $0x2a8] sm:$0xff]
    %v5262 = vld [vmem:[#allocation2 + $0x2b0] sm:$0xff]
    %v5263 = vld [vmem:[#allocation2 + $0x2b8] sm:$0xff]
    %v5264 = vld [vmem:[#allocation2 + $0x2c0] sm:$0xff]
    %v5265 = vld [vmem:[#allocation2 + $0x2c8] sm:$0xff]
    %v5266 = vld [vmem:[#allocation2 + $0x2d0] sm:$0xff]
    %v5267 = vld [vmem:[#allocation2 + $0x2d8] sm:$0xff]
    %v5268 = vld [vmem:[#allocation2 + $0x2e0] sm:$0xff]
    %v5269 = vld [vmem:[#allocation2 + $0x2e8] sm:$0xff]
    %v5270 = vld [vmem:[#allocation2 + $0x2f0] sm:$0xff]
    %v5271 = vld [vmem:[#allocation2 + $0x2f8] sm:$0xff]
    %v5272 = vld [vmem:[#allocation2 + $0x300] sm:$0xff]
    %v5273 = vld [vmem:[#allocation2 + $0x308] sm:$0xff]
    %v5274 = vld [vmem:[#allocation2 + $0x310] sm:$0xff]
    %v5275 = vld [vmem:[#allocation2 + $0x318] sm:$0xff]
    %v5276 = vld [vmem:[#allocation2 + $0x320] sm:$0xff]
    %v5277 = vld [vmem:[#allocation2 + $0x328] sm:$0xff]
    %v5278 = vld [vmem:[#allocation2 + $0x330] sm:$0xff]
    %v5279 = vld [vmem:[#allocation2 + $0x338] sm:$0xff]
    %v5280 = vld [vmem:[#allocation2 + $0x340] sm:$0xff]
    %v5281 = vld [vmem:[#allocation2 + $0x348] sm:$0xff]
    %v5282 = vld [vmem:[#allocation2 + $0x350] sm:$0xff]
    %v5283 = vld [vmem:[#allocation2 + $0x358] sm:$0xff]
    %v5284 = vld [vmem:[#allocation2 + $0x360] sm:$0xff]
    %v5285 = vld [vmem:[#allocation2 + $0x368] sm:$0xff]
    %v5286 = vld [vmem:[#allocation2 + $0x370] sm:$0xff]
    %v5287 = vld [vmem:[#allocation2 + $0x378] sm:$0xff]
    %v5288 = vld [vmem:[#allocation2 + $0x380] sm:$0xff]
    %v5289 = vld [vmem:[#allocation2 + $0x388] sm:$0xff]
    %v5290 = vld [vmem:[#allocation2 + $0x390] sm:$0xff]
    %v5291 = vld [vmem:[#allocation2 + $0x398] sm:$0xff]
    %v5292 = vld [vmem:[#allocation2 + $0x3a0] sm:$0xff]
    %v5293 = vld [vmem:[#allocation2 + $0x3a8] sm:$0xff]
    %v5294 = vld [vmem:[#allocation2 + $0x3b0] sm:$0xff]
    %v5295 = vld [vmem:[#allocation2 + $0x3b8] sm:$0xff]
    %v5296 = vld [vmem:[#allocation2 + $0x3c0] sm:$0xff]
    %v5297 = vld [vmem:[#allocation2 + $0x3c8] sm:$0xff]
    %v5298 = vld [vmem:[#allocation2 + $0x3d0] sm:$0xff]
    %v5299 = vld [vmem:[#allocation2 + $0x3d8] sm:$0xff]
    %v5300 = vld [vmem:[#allocation2 + $0x3e0] sm:$0xff]
    %v5301 = vld [vmem:[#allocation2 + $0x3e8] sm:$0xff]
    %v5302 = vld [vmem:[#allocation2 + $0x3f0] sm:$0xff]
    %v5303 = vld [vmem:[#allocation2 + $0x3f8] sm:$0xff]
    %v5304 = vld [vmem:[#allocation2 + $0x400] sm:$0xff]
    %v5305 = vld [vmem:[#allocation2 + $0x408] sm:$0xff]
    %v5306 = vld [vmem:[#allocation2 + $0x410] sm:$0xff]
    %v5307 = vld [vmem:[#allocation2 + $0x418] sm:$0xff]
    %v5308 = vld [vmem:[#allocation2 + $0x420] sm:$0xff]
    %v5309 = vld [vmem:[#allocation2 + $0x428] sm:$0xff]
    %v5310 = vld [vmem:[#allocation2 + $0x430] sm:$0xff]
    %v5311 = vld [vmem:[#allocation2 + $0x438] sm:$0xff]
    %v5312 = vld [vmem:[#allocation2 + $0x440] sm:$0xff]
    %v5313 = vld [vmem:[#allocation2 + $0x448] sm:$0xff]
    %v5314 = vld [vmem:[#allocation2 + $0x450] sm:$0xff]
    %v5315 = vld [vmem:[#allocation2 + $0x458] sm:$0xff]
    %v5316 = vld [vmem:[#allocation2 + $0x460] sm:$0xff]
    %v5317 = vld [vmem:[#allocation2 + $0x468] sm:$0xff]
    %v5318 = vld [vmem:[#allocation2 + $0x470] sm:$0xff]
    %v5319 = vld [vmem:[#allocation2 + $0x478] sm:$0xff]
    %v5320 = vld [vmem:[#allocation2 + $0x480] sm:$0xff]
    %v5321 = vld [vmem:[#allocation2 + $0x488] sm:$0xff]
    %v5322 = vld [vmem:[#allocation2 + $0x490] sm:$0xff]
    %v5323 = vld [vmem:[#allocation2 + $0x498] sm:$0xff]
    %v5324 = vld [vmem:[#allocation2 + $0x4a0] sm:$0xff]
    %v5325 = vld [vmem:[#allocation2 + $0x4a8] sm:$0xff]
    %v5326 = vld [vmem:[#allocation2 + $0x4b0] sm:$0xff]
    %v5327 = vld [vmem:[#allocation2 + $0x4b8] sm:$0xff]
    %v5328 = vld [vmem:[#allocation2 + $0x4c0] sm:$0xff]
    %v5329 = vld [vmem:[#allocation2 + $0x4c8] sm:$0xff]
    %v5330 = vld [vmem:[#allocation2 + $0x4d0] sm:$0xff]
    %v5331 = vld [vmem:[#allocation2 + $0x4d8] sm:$0xff]
    %v5332 = vld [vmem:[#allocation2 + $0x4e0] sm:$0xff]
    %v5333 = vld [vmem:[#allocation2 + $0x4e8] sm:$0xff]
    %v5334 = vld [vmem:[#allocation2 + $0x4f0] sm:$0xff]
    %v5335 = vld [vmem:[#allocation2 + $0x4f8] sm:$0xff]
    %v5336 = vld [vmem:[#allocation2 + $0x500] sm:$0xff]
    %v5337 = vld [vmem:[#allocation2 + $0x508] sm:$0xff]
    %v5338 = vld [vmem:[#allocation2 + $0x510] sm:$0xff]
    %v5339 = vld [vmem:[#allocation2 + $0x518] sm:$0xff]
    %v5340 = vld [vmem:[#allocation2 + $0x520] sm:$0xff]
    %v5341 = vld [vmem:[#allocation2 + $0x528] sm:$0xff]
    %v5342 = vld [vmem:[#allocation2 + $0x530] sm:$0xff]
    %v5343 = vld [vmem:[#allocation2 + $0x538] sm:$0xff]
    %v5344 = vld [vmem:[#allocation2 + $0x540] sm:$0xff]
    %v5345 = vld [vmem:[#allocation2 + $0x548] sm:$0xff]
    %v5346 = vld [vmem:[#allocation2 + $0x550] sm:$0xff]
    %v5347 = vld [vmem:[#allocation2 + $0x558] sm:$0xff]
    %v5348 = vld [vmem:[#allocation2 + $0x560] sm:$0xff]
    %v5349 = vld [vmem:[#allocation2 + $0x568] sm:$0xff]
    %v5350 = vld [vmem:[#allocation2 + $0x570] sm:$0xff]
    %v5351 = vld [vmem:[#allocation2 + $0x578] sm:$0xff]
    %v5352 = vld [vmem:[#allocation2 + $0x580] sm:$0xff]
    %v5353 = vld [vmem:[#allocation2 + $0x588] sm:$0xff]
    %v5354 = vld [vmem:[#allocation2 + $0x590] sm:$0xff]
    %v5355 = vld [vmem:[#allocation2 + $0x598] sm:$0xff]
    %v5356 = vld [vmem:[#allocation2 + $0x5a0] sm:$0xff]
    %v5357 = vld [vmem:[#allocation2 + $0x5a8] sm:$0xff]
    %v5358 = vld [vmem:[#allocation2 + $0x5b0] sm:$0xff]
    %v5359 = vld [vmem:[#allocation2 + $0x5b8] sm:$0xff]
    %v5360 = vld [vmem:[#allocation2 + $0x5c0] sm:$0xff]
    %v5361 = vld [vmem:[#allocation2 + $0x5c8] sm:$0xff]
    %v5362 = vld [vmem:[#allocation2 + $0x5d0] sm:$0xff]
    %v5363 = vld [vmem:[#allocation2 + $0x5d8] sm:$0xff]
    %v5364 = vld [vmem:[#allocation2 + $0x5e0] sm:$0xff]
    %v5365 = vld [vmem:[#allocation2 + $0x5e8] sm:$0xff]
    %v5366 = vld [vmem:[#allocation2 + $0x5f0] sm:$0xff]
    %v5367 = vld [vmem:[#allocation2 + $0x5f8] sm:$0xff]
    %v5368 = vld [vmem:[#allocation2 + $0x600] sm:$0xff]
    %v5369 = vld [vmem:[#allocation2 + $0x608] sm:$0xff]
    %v5370 = vld [vmem:[#allocation2 + $0x610] sm:$0xff]
    %v5371 = vld [vmem:[#allocation2 + $0x618] sm:$0xff]
    %v5372 = vld [vmem:[#allocation2 + $0x620] sm:$0xff]
    %v5373 = vld [vmem:[#allocation2 + $0x628] sm:$0xff]
    %v5374 = vld [vmem:[#allocation2 + $0x630] sm:$0xff]
    %v5375 = vld [vmem:[#allocation2 + $0x638] sm:$0xff]
    %v5376 = vld [vmem:[#allocation2 + $0x640] sm:$0xff]
    %v5377 = vld [vmem:[#allocation2 + $0x648] sm:$0xff]
    %v5378 = vld [vmem:[#allocation2 + $0x650] sm:$0xff]
    %v5379 = vld [vmem:[#allocation2 + $0x658] sm:$0xff]
    %v5380 = vld [vmem:[#allocation2 + $0x660] sm:$0xff]
    %v5381 = vld [vmem:[#allocation2 + $0x668] sm:$0xff]
    %v5382 = vld [vmem:[#allocation2 + $0x670] sm:$0xff]
    %v5383 = vld [vmem:[#allocation2 + $0x678] sm:$0xff]
    %v5384 = vld [vmem:[#allocation2 + $0x680] sm:$0xff]
    %v5385 = vld [vmem:[#allocation2 + $0x688] sm:$0xff]
    %v5386 = vld [vmem:[#allocation2 + $0x690] sm:$0xff]
    %v5387 = vld [vmem:[#allocation2 + $0x698] sm:$0xff]
    %v5388 = vld [vmem:[#allocation2 + $0x6a0] sm:$0xff]
    %v5389 = vld [vmem:[#allocation2 + $0x6a8] sm:$0xff]
    %v5390 = vld [vmem:[#allocation2 + $0x6b0] sm:$0xff]
    %v5391 = vld [vmem:[#allocation2 + $0x6b8] sm:$0xff]
    %v5392 = vld [vmem:[#allocation2 + $0x6c0] sm:$0xff]
    %v5393 = vld [vmem:[#allocation2 + $0x6c8] sm:$0xff]
    %v5394 = vld [vmem:[#allocation2 + $0x6d0] sm:$0xff]
    %v5395 = vld [vmem:[#allocation2 + $0x6d8] sm:$0xff]
    %v5396 = vld [vmem:[#allocation2 + $0x6e0] sm:$0xff]
    %v5397 = vld [vmem:[#allocation2 + $0x6e8] sm:$0xff]
    %v5398 = vld [vmem:[#allocation2 + $0x6f0] sm:$0xff]
    %v5399 = vld [vmem:[#allocation2 + $0x6f8] sm:$0xff]
    %v5400 = vld [vmem:[#allocation2 + $0x700] sm:$0xff]
    %v5401 = vld [vmem:[#allocation2 + $0x708] sm:$0xff]
    %v5402 = vld [vmem:[#allocation2 + $0x710] sm:$0xff]
    %v5403 = vld [vmem:[#allocation2 + $0x718] sm:$0xff]
    %v5404 = vld [vmem:[#allocation2 + $0x720] sm:$0xff]
    %v5405 = vld [vmem:[#allocation2 + $0x728] sm:$0xff]
    %v5406 = vld [vmem:[#allocation2 + $0x730] sm:$0xff]
    %v5407 = vld [vmem:[#allocation2 + $0x738] sm:$0xff]
    %v5408 = vld [vmem:[#allocation2 + $0x740] sm:$0xff]
    %v5409 = vld [vmem:[#allocation2 + $0x748] sm:$0xff]
    %v5410 = vld [vmem:[#allocation2 + $0x750] sm:$0xff]
    %v5411 = vld [vmem:[#allocation2 + $0x758] sm:$0xff]
    %v5412 = vld [vmem:[#allocation2 + $0x760] sm:$0xff]
    %v5413 = vld [vmem:[#allocation2 + $0x768] sm:$0xff]
    %v5414 = vld [vmem:[#allocation2 + $0x770] sm:$0xff]
    %v5415 = vld [vmem:[#allocation2 + $0x778] sm:$0xff]
    %v5416 = vld [vmem:[#allocation2 + $0x780] sm:$0xff]
    %v5417 = vld [vmem:[#allocation2 + $0x788] sm:$0xff]
    %v5418 = vld [vmem:[#allocation2 + $0x790] sm:$0xff]
    %v5419 = vld [vmem:[#allocation2 + $0x798] sm:$0xff]
    %v5420 = vld [vmem:[#allocation2 + $0x7a0] sm:$0xff]
    %v5421 = vld [vmem:[#allocation2 + $0x7a8] sm:$0xff]
    %v5422 = vld [vmem:[#allocation2 + $0x7b0] sm:$0xff]
    %v5423 = vld [vmem:[#allocation2 + $0x7b8] sm:$0xff]
    %v5424 = vld [vmem:[#allocation2 + $0x7c0] sm:$0xff]
    %v5425 = vld [vmem:[#allocation2 + $0x7c8] sm:$0xff]
    %v5426 = vld [vmem:[#allocation2 + $0x7d0] sm:$0xff]
    %v5427 = vld [vmem:[#allocation2 + $0x7d8] sm:$0xff]
    %v5428 = vld [vmem:[#allocation2 + $0x7e0] sm:$0xff]
    %v5429 = vld [vmem:[#allocation2 + $0x7e8] sm:$0xff]
    %v5430 = vld [vmem:[#allocation2 + $0x7f0] sm:$0xff]
    %v5431 = vld [vmem:[#allocation2 + $0x7f8] sm:$0xff]
    %v5432 = vunpack.c.l.s8.bf16 %v5176
    %v5433 = vunpack.c.l.s8.bf16 %v5177
    %v5434 = vunpack.c.l.s8.bf16 %v5178
    %v5435 = vunpack.c.l.s8.bf16 %v5179
    %v5436 = vunpack.c.l.s8.bf16 %v5180
    %v5437 = vunpack.c.l.s8.bf16 %v5181
    %v5438 = vunpack.c.l.s8.bf16 %v5182
    %v5439 = vunpack.c.l.s8.bf16 %v5183
    %v5440 = vunpack.c.l.s8.bf16 %v5184
    %v5441 = vunpack.c.l.s8.bf16 %v5185
    %v5442 = vunpack.c.l.s8.bf16 %v5186
    %v5443 = vunpack.c.l.s8.bf16 %v5187
    %v5444 = vunpack.c.l.s8.bf16 %v5188
    %v5445 = vunpack.c.l.s8.bf16 %v5189
    %v5446 = vunpack.c.l.s8.bf16 %v5190
    %v5447 = vunpack.c.l.s8.bf16 %v5191
    %v5448 = vunpack.c.h.s8.bf16 %v5176
    %v5449 = vunpack.c.h.s8.bf16 %v5177
    %v5450 = vunpack.c.h.s8.bf16 %v5178
    %v5451 = vunpack.c.h.s8.bf16 %v5179
    %v5452 = vunpack.c.h.s8.bf16 %v5180
    %v5453 = vunpack.c.h.s8.bf16 %v5181
    %v5454 = vunpack.c.h.s8.bf16 %v5182
    %v5455 = vunpack.c.h.s8.bf16 %v5183
    %v5456 = vunpack.c.h.s8.bf16 %v5184
    %v5457 = vunpack.c.h.s8.bf16 %v5185
    %v5458 = vunpack.c.h.s8.bf16 %v5186
    %v5459 = vunpack.c.h.s8.bf16 %v5187
    %v5460 = vunpack.c.h.s8.bf16 %v5188
    %v5461 = vunpack.c.h.s8.bf16 %v5189
    %v5462 = vunpack.c.h.s8.bf16 %v5190
    %v5463 = vunpack.c.h.s8.bf16 %v5191
    %v5464 = vunpack.c.l.s8.bf16 %v5192
    %v5465 = vunpack.c.l.s8.bf16 %v5193
    %v5466 = vunpack.c.l.s8.bf16 %v5194
    %v5467 = vunpack.c.l.s8.bf16 %v5195
    %v5468 = vunpack.c.l.s8.bf16 %v5196
    %v5469 = vunpack.c.l.s8.bf16 %v5197
    %v5470 = vunpack.c.l.s8.bf16 %v5198
    %v5471 = vunpack.c.l.s8.bf16 %v5199
    %v5472 = vunpack.c.l.s8.bf16 %v5200
    %v5473 = vunpack.c.l.s8.bf16 %v5201
    %v5474 = vunpack.c.l.s8.bf16 %v5202
    %v5475 = vunpack.c.l.s8.bf16 %v5203
    %v5476 = vunpack.c.l.s8.bf16 %v5204
    %v5477 = vunpack.c.l.s8.bf16 %v5205
    %v5478 = vunpack.c.l.s8.bf16 %v5206
    %v5479 = vunpack.c.l.s8.bf16 %v5207
    %v5480 = vunpack.c.h.s8.bf16 %v5192
    %v5481 = vunpack.c.h.s8.bf16 %v5193
    %v5482 = vunpack.c.h.s8.bf16 %v5194
    %v5483 = vunpack.c.h.s8.bf16 %v5195
    %v5484 = vunpack.c.h.s8.bf16 %v5196
    %v5485 = vunpack.c.h.s8.bf16 %v5197
    %v5486 = vunpack.c.h.s8.bf16 %v5198
    %v5487 = vunpack.c.h.s8.bf16 %v5199
    %v5488 = vunpack.c.h.s8.bf16 %v5200
    %v5489 = vunpack.c.h.s8.bf16 %v5201
    %v5490 = vunpack.c.h.s8.bf16 %v5202
    %v5491 = vunpack.c.h.s8.bf16 %v5203
    %v5492 = vunpack.c.h.s8.bf16 %v5204
    %v5493 = vunpack.c.h.s8.bf16 %v5205
    %v5494 = vunpack.c.h.s8.bf16 %v5206
    %v5495 = vunpack.c.h.s8.bf16 %v5207
    %v5496 = vunpack.c.l.s8.bf16 %v5208
    %v5497 = vunpack.c.l.s8.bf16 %v5209
    %v5498 = vunpack.c.l.s8.bf16 %v5210
    %v5499 = vunpack.c.l.s8.bf16 %v5211
    %v5500 = vunpack.c.l.s8.bf16 %v5212
    %v5501 = vunpack.c.l.s8.bf16 %v5213
    %v5502 = vunpack.c.l.s8.bf16 %v5214
    %v5503 = vunpack.c.l.s8.bf16 %v5215
    %v5504 = vunpack.c.l.s8.bf16 %v5216
    %v5505 = vunpack.c.l.s8.bf16 %v5217
    %v5506 = vunpack.c.l.s8.bf16 %v5218
    %v5507 = vunpack.c.l.s8.bf16 %v5219
    %v5508 = vunpack.c.l.s8.bf16 %v5220
    %v5509 = vunpack.c.l.s8.bf16 %v5221
    %v5510 = vunpack.c.l.s8.bf16 %v5222
    %v5511 = vunpack.c.l.s8.bf16 %v5223
    %v5512 = vunpack.c.h.s8.bf16 %v5208
    %v5513 = vunpack.c.h.s8.bf16 %v5209
    %v5514 = vunpack.c.h.s8.bf16 %v5210
    %v5515 = vunpack.c.h.s8.bf16 %v5211
    %v5516 = vunpack.c.h.s8.bf16 %v5212
    %v5517 = vunpack.c.h.s8.bf16 %v5213
    %v5518 = vunpack.c.h.s8.bf16 %v5214
    %v5519 = vunpack.c.h.s8.bf16 %v5215
    %v5520 = vunpack.c.h.s8.bf16 %v5216
    %v5521 = vunpack.c.h.s8.bf16 %v5217
    %v5522 = vunpack.c.h.s8.bf16 %v5218
    %v5523 = vunpack.c.h.s8.bf16 %v5219
    %v5524 = vunpack.c.h.s8.bf16 %v5220
    %v5525 = vunpack.c.h.s8.bf16 %v5221
    %v5526 = vunpack.c.h.s8.bf16 %v5222
    %v5527 = vunpack.c.h.s8.bf16 %v5223
    %v5528 = vunpack.c.l.s8.bf16 %v5224
    %v5529 = vunpack.c.l.s8.bf16 %v5225
    %v5530 = vunpack.c.l.s8.bf16 %v5226
    %v5531 = vunpack.c.l.s8.bf16 %v5227
    %v5532 = vunpack.c.l.s8.bf16 %v5228
    %v5533 = vunpack.c.l.s8.bf16 %v5229
    %v5534 = vunpack.c.l.s8.bf16 %v5230
    %v5535 = vunpack.c.l.s8.bf16 %v5231
    %v5536 = vunpack.c.l.s8.bf16 %v5232
    %v5537 = vunpack.c.l.s8.bf16 %v5233
    %v5538 = vunpack.c.l.s8.bf16 %v5234
    %v5539 = vunpack.c.l.s8.bf16 %v5235
    %v5540 = vunpack.c.l.s8.bf16 %v5236
    %v5541 = vunpack.c.l.s8.bf16 %v5237
    %v5542 = vunpack.c.l.s8.bf16 %v5238
    %v5543 = vunpack.c.l.s8.bf16 %v5239
    %v5544 = vunpack.c.h.s8.bf16 %v5224
    %v5545 = vunpack.c.h.s8.bf16 %v5225
    %v5546 = vunpack.c.h.s8.bf16 %v5226
    %v5547 = vunpack.c.h.s8.bf16 %v5227
    %v5548 = vunpack.c.h.s8.bf16 %v5228
    %v5549 = vunpack.c.h.s8.bf16 %v5229
    %v5550 = vunpack.c.h.s8.bf16 %v5230
    %v5551 = vunpack.c.h.s8.bf16 %v5231
    %v5552 = vunpack.c.h.s8.bf16 %v5232
    %v5553 = vunpack.c.h.s8.bf16 %v5233
    %v5554 = vunpack.c.h.s8.bf16 %v5234
    %v5555 = vunpack.c.h.s8.bf16 %v5235
    %v5556 = vunpack.c.h.s8.bf16 %v5236
    %v5557 = vunpack.c.h.s8.bf16 %v5237
    %v5558 = vunpack.c.h.s8.bf16 %v5238
    %v5559 = vunpack.c.h.s8.bf16 %v5239
    %v5560 = vunpack.c.l.s8.bf16 %v5240
    %v5561 = vunpack.c.l.s8.bf16 %v5241
    %v5562 = vunpack.c.l.s8.bf16 %v5242
    %v5563 = vunpack.c.l.s8.bf16 %v5243
    %v5564 = vunpack.c.l.s8.bf16 %v5244
    %v5565 = vunpack.c.l.s8.bf16 %v5245
    %v5566 = vunpack.c.l.s8.bf16 %v5246
    %v5567 = vunpack.c.l.s8.bf16 %v5247
    %v5568 = vunpack.c.l.s8.bf16 %v5248
    %v5569 = vunpack.c.l.s8.bf16 %v5249
    %v5570 = vunpack.c.l.s8.bf16 %v5250
    %v5571 = vunpack.c.l.s8.bf16 %v5251
    %v5572 = vunpack.c.l.s8.bf16 %v5252
    %v5573 = vunpack.c.l.s8.bf16 %v5253
    %v5574 = vunpack.c.l.s8.bf16 %v5254
    %v5575 = vunpack.c.l.s8.bf16 %v5255
    %v5576 = vunpack.c.h.s8.bf16 %v5240
    %v5577 = vunpack.c.h.s8.bf16 %v5241
    %v5578 = vunpack.c.h.s8.bf16 %v5242
    %v5579 = vunpack.c.h.s8.bf16 %v5243
    %v5580 = vunpack.c.h.s8.bf16 %v5244
    %v5581 = vunpack.c.h.s8.bf16 %v5245
    %v5582 = vunpack.c.h.s8.bf16 %v5246
    %v5583 = vunpack.c.h.s8.bf16 %v5247
    %v5584 = vunpack.c.h.s8.bf16 %v5248
    %v5585 = vunpack.c.h.s8.bf16 %v5249
    %v5586 = vunpack.c.h.s8.bf16 %v5250
    %v5587 = vunpack.c.h.s8.bf16 %v5251
    %v5588 = vunpack.c.h.s8.bf16 %v5252
    %v5589 = vunpack.c.h.s8.bf16 %v5253
    %v5590 = vunpack.c.h.s8.bf16 %v5254
    %v5591 = vunpack.c.h.s8.bf16 %v5255
    %v5592 = vunpack.c.l.s8.bf16 %v5256
    %v5593 = vunpack.c.l.s8.bf16 %v5257
    %v5594 = vunpack.c.l.s8.bf16 %v5258
    %v5595 = vunpack.c.l.s8.bf16 %v5259
    %v5596 = vunpack.c.l.s8.bf16 %v5260
    %v5597 = vunpack.c.l.s8.bf16 %v5261
    %v5598 = vunpack.c.l.s8.bf16 %v5262
    %v5599 = vunpack.c.l.s8.bf16 %v5263
    %v5600 = vunpack.c.l.s8.bf16 %v5264
    %v5601 = vunpack.c.l.s8.bf16 %v5265
    %v5602 = vunpack.c.l.s8.bf16 %v5266
    %v5603 = vunpack.c.l.s8.bf16 %v5267
    %v5604 = vunpack.c.l.s8.bf16 %v5268
    %v5605 = vunpack.c.l.s8.bf16 %v5269
    %v5606 = vunpack.c.l.s8.bf16 %v5270
    %v5607 = vunpack.c.l.s8.bf16 %v5271
    %v5608 = vunpack.c.h.s8.bf16 %v5256
    %v5609 = vunpack.c.h.s8.bf16 %v5257
    %v5610 = vunpack.c.h.s8.bf16 %v5258
    %v5611 = vunpack.c.h.s8.bf16 %v5259
    %v5612 = vunpack.c.h.s8.bf16 %v5260
    %v5613 = vunpack.c.h.s8.bf16 %v5261
    %v5614 = vunpack.c.h.s8.bf16 %v5262
    %v5615 = vunpack.c.h.s8.bf16 %v5263
    %v5616 = vunpack.c.h.s8.bf16 %v5264
    %v5617 = vunpack.c.h.s8.bf16 %v5265
    %v5618 = vunpack.c.h.s8.bf16 %v5266
    %v5619 = vunpack.c.h.s8.bf16 %v5267
    %v5620 = vunpack.c.h.s8.bf16 %v5268
    %v5621 = vunpack.c.h.s8.bf16 %v5269
    %v5622 = vunpack.c.h.s8.bf16 %v5270
    %v5623 = vunpack.c.h.s8.bf16 %v5271
    %v5624 = vunpack.c.l.s8.bf16 %v5272
    %v5625 = vunpack.c.l.s8.bf16 %v5273
    %v5626 = vunpack.c.l.s8.bf16 %v5274
    %v5627 = vunpack.c.l.s8.bf16 %v5275
    %v5628 = vunpack.c.l.s8.bf16 %v5276
    %v5629 = vunpack.c.l.s8.bf16 %v5277
    %v5630 = vunpack.c.l.s8.bf16 %v5278
    %v5631 = vunpack.c.l.s8.bf16 %v5279
    %v5632 = vunpack.c.l.s8.bf16 %v5280
    %v5633 = vunpack.c.l.s8.bf16 %v5281
    %v5634 = vunpack.c.l.s8.bf16 %v5282
    %v5635 = vunpack.c.l.s8.bf16 %v5283
    %v5636 = vunpack.c.l.s8.bf16 %v5284
    %v5637 = vunpack.c.l.s8.bf16 %v5285
    %v5638 = vunpack.c.l.s8.bf16 %v5286
    %v5639 = vunpack.c.l.s8.bf16 %v5287
    %v5640 = vunpack.c.h.s8.bf16 %v5272
    %v5641 = vunpack.c.h.s8.bf16 %v5273
    %v5642 = vunpack.c.h.s8.bf16 %v5274
    %v5643 = vunpack.c.h.s8.bf16 %v5275
    %v5644 = vunpack.c.h.s8.bf16 %v5276
    %v5645 = vunpack.c.h.s8.bf16 %v5277
    %v5646 = vunpack.c.h.s8.bf16 %v5278
    %v5647 = vunpack.c.h.s8.bf16 %v5279
    %v5648 = vunpack.c.h.s8.bf16 %v5280
    %v5649 = vunpack.c.h.s8.bf16 %v5281
    %v5650 = vunpack.c.h.s8.bf16 %v5282
    %v5651 = vunpack.c.h.s8.bf16 %v5283
    %v5652 = vunpack.c.h.s8.bf16 %v5284
    %v5653 = vunpack.c.h.s8.bf16 %v5285
    %v5654 = vunpack.c.h.s8.bf16 %v5286
    %v5655 = vunpack.c.h.s8.bf16 %v5287
    %v5656 = vunpack.c.l.s8.bf16 %v5288
    %v5657 = vunpack.c.l.s8.bf16 %v5289
    %v5658 = vunpack.c.l.s8.bf16 %v5290
    %v5659 = vunpack.c.l.s8.bf16 %v5291
    %v5660 = vunpack.c.l.s8.bf16 %v5292
    %v5661 = vunpack.c.l.s8.bf16 %v5293
    %v5662 = vunpack.c.l.s8.bf16 %v5294
    %v5663 = vunpack.c.l.s8.bf16 %v5295
    %v5664 = vunpack.c.l.s8.bf16 %v5296
    %v5665 = vunpack.c.l.s8.bf16 %v5297
    %v5666 = vunpack.c.l.s8.bf16 %v5298
    %v5667 = vunpack.c.l.s8.bf16 %v5299
    %v5668 = vunpack.c.l.s8.bf16 %v5300
    %v5669 = vunpack.c.l.s8.bf16 %v5301
    %v5670 = vunpack.c.l.s8.bf16 %v5302
    %v5671 = vunpack.c.l.s8.bf16 %v5303
    %v5672 = vunpack.c.h.s8.bf16 %v5288
    %v5673 = vunpack.c.h.s8.bf16 %v5289
    %v5674 = vunpack.c.h.s8.bf16 %v5290
    %v5675 = vunpack.c.h.s8.bf16 %v5291
    %v5676 = vunpack.c.h.s8.bf16 %v5292
    %v5677 = vunpack.c.h.s8.bf16 %v5293
    %v5678 = vunpack.c.h.s8.bf16 %v5294
    %v5679 = vunpack.c.h.s8.bf16 %v5295
    %v5680 = vunpack.c.h.s8.bf16 %v5296
    %v5681 = vunpack.c.h.s8.bf16 %v5297
    %v5682 = vunpack.c.h.s8.bf16 %v5298
    %v5683 = vunpack.c.h.s8.bf16 %v5299
    %v5684 = vunpack.c.h.s8.bf16 %v5300
    %v5685 = vunpack.c.h.s8.bf16 %v5301
    %v5686 = vunpack.c.h.s8.bf16 %v5302
    %v5687 = vunpack.c.h.s8.bf16 %v5303
    %v5688 = vunpack.c.l.s8.bf16 %v5304
    %v5689 = vunpack.c.l.s8.bf16 %v5305
    %v5690 = vunpack.c.l.s8.bf16 %v5306
    %v5691 = vunpack.c.l.s8.bf16 %v5307
    %v5692 = vunpack.c.l.s8.bf16 %v5308
    %v5693 = vunpack.c.l.s8.bf16 %v5309
    %v5694 = vunpack.c.l.s8.bf16 %v5310
    %v5695 = vunpack.c.l.s8.bf16 %v5311
    %v5696 = vunpack.c.l.s8.bf16 %v5312
    %v5697 = vunpack.c.l.s8.bf16 %v5313
    %v5698 = vunpack.c.l.s8.bf16 %v5314
    %v5699 = vunpack.c.l.s8.bf16 %v5315
    %v5700 = vunpack.c.l.s8.bf16 %v5316
    %v5701 = vunpack.c.l.s8.bf16 %v5317
    %v5702 = vunpack.c.l.s8.bf16 %v5318
    %v5703 = vunpack.c.l.s8.bf16 %v5319
    %v5704 = vunpack.c.h.s8.bf16 %v5304
    %v5705 = vunpack.c.h.s8.bf16 %v5305
    %v5706 = vunpack.c.h.s8.bf16 %v5306
    %v5707 = vunpack.c.h.s8.bf16 %v5307
    %v5708 = vunpack.c.h.s8.bf16 %v5308
    %v5709 = vunpack.c.h.s8.bf16 %v5309
    %v5710 = vunpack.c.h.s8.bf16 %v5310
    %v5711 = vunpack.c.h.s8.bf16 %v5311
    %v5712 = vunpack.c.h.s8.bf16 %v5312
    %v5713 = vunpack.c.h.s8.bf16 %v5313
    %v5714 = vunpack.c.h.s8.bf16 %v5314
    %v5715 = vunpack.c.h.s8.bf16 %v5315
    %v5716 = vunpack.c.h.s8.bf16 %v5316
    %v5717 = vunpack.c.h.s8.bf16 %v5317
    %v5718 = vunpack.c.h.s8.bf16 %v5318
    %v5719 = vunpack.c.h.s8.bf16 %v5319
    %v5720 = vunpack.c.l.s8.bf16 %v5320
    %v5721 = vunpack.c.l.s8.bf16 %v5321
    %v5722 = vunpack.c.l.s8.bf16 %v5322
    %v5723 = vunpack.c.l.s8.bf16 %v5323
    %v5724 = vunpack.c.l.s8.bf16 %v5324
    %v5725 = vunpack.c.l.s8.bf16 %v5325
    %v5726 = vunpack.c.l.s8.bf16 %v5326
    %v5727 = vunpack.c.l.s8.bf16 %v5327
    %v5728 = vunpack.c.l.s8.bf16 %v5328
    %v5729 = vunpack.c.l.s8.bf16 %v5329
    %v5730 = vunpack.c.l.s8.bf16 %v5330
    %v5731 = vunpack.c.l.s8.bf16 %v5331
    %v5732 = vunpack.c.l.s8.bf16 %v5332
    %v5733 = vunpack.c.l.s8.bf16 %v5333
    %v5734 = vunpack.c.l.s8.bf16 %v5334
    %v5735 = vunpack.c.l.s8.bf16 %v5335
    %v5736 = vunpack.c.h.s8.bf16 %v5320
    %v5737 = vunpack.c.h.s8.bf16 %v5321
    %v5738 = vunpack.c.h.s8.bf16 %v5322
    %v5739 = vunpack.c.h.s8.bf16 %v5323
    %v5740 = vunpack.c.h.s8.bf16 %v5324
    %v5741 = vunpack.c.h.s8.bf16 %v5325
    %v5742 = vunpack.c.h.s8.bf16 %v5326
    %v5743 = vunpack.c.h.s8.bf16 %v5327
    %v5744 = vunpack.c.h.s8.bf16 %v5328
    %v5745 = vunpack.c.h.s8.bf16 %v5329
    %v5746 = vunpack.c.h.s8.bf16 %v5330
    %v5747 = vunpack.c.h.s8.bf16 %v5331
    %v5748 = vunpack.c.h.s8.bf16 %v5332
    %v5749 = vunpack.c.h.s8.bf16 %v5333
    %v5750 = vunpack.c.h.s8.bf16 %v5334
    %v5751 = vunpack.c.h.s8.bf16 %v5335
    %v5752 = vunpack.c.l.s8.bf16 %v5336
    %v5753 = vunpack.c.l.s8.bf16 %v5337
    %v5754 = vunpack.c.l.s8.bf16 %v5338
    %v5755 = vunpack.c.l.s8.bf16 %v5339
    %v5756 = vunpack.c.l.s8.bf16 %v5340
    %v5757 = vunpack.c.l.s8.bf16 %v5341
    %v5758 = vunpack.c.l.s8.bf16 %v5342
    %v5759 = vunpack.c.l.s8.bf16 %v5343
    %v5760 = vunpack.c.l.s8.bf16 %v5344
    %v5761 = vunpack.c.l.s8.bf16 %v5345
    %v5762 = vunpack.c.l.s8.bf16 %v5346
    %v5763 = vunpack.c.l.s8.bf16 %v5347
    %v5764 = vunpack.c.l.s8.bf16 %v5348
    %v5765 = vunpack.c.l.s8.bf16 %v5349
    %v5766 = vunpack.c.l.s8.bf16 %v5350
    %v5767 = vunpack.c.l.s8.bf16 %v5351
    %v5768 = vunpack.c.h.s8.bf16 %v5336
    %v5769 = vunpack.c.h.s8.bf16 %v5337
    %v5770 = vunpack.c.h.s8.bf16 %v5338
    %v5771 = vunpack.c.h.s8.bf16 %v5339
    %v5772 = vunpack.c.h.s8.bf16 %v5340
    %v5773 = vunpack.c.h.s8.bf16 %v5341
    %v5774 = vunpack.c.h.s8.bf16 %v5342
    %v5775 = vunpack.c.h.s8.bf16 %v5343
    %v5776 = vunpack.c.h.s8.bf16 %v5344
    %v5777 = vunpack.c.h.s8.bf16 %v5345
    %v5778 = vunpack.c.h.s8.bf16 %v5346
    %v5779 = vunpack.c.h.s8.bf16 %v5347
    %v5780 = vunpack.c.h.s8.bf16 %v5348
    %v5781 = vunpack.c.h.s8.bf16 %v5349
    %v5782 = vunpack.c.h.s8.bf16 %v5350
    %v5783 = vunpack.c.h.s8.bf16 %v5351
    %v5784 = vunpack.c.l.s8.bf16 %v5352
    %v5785 = vunpack.c.l.s8.bf16 %v5353
    %v5786 = vunpack.c.l.s8.bf16 %v5354
    %v5787 = vunpack.c.l.s8.bf16 %v5355
    %v5788 = vunpack.c.l.s8.bf16 %v5356
    %v5789 = vunpack.c.l.s8.bf16 %v5357
    %v5790 = vunpack.c.l.s8.bf16 %v5358
    %v5791 = vunpack.c.l.s8.bf16 %v5359
    %v5792 = vunpack.c.l.s8.bf16 %v5360
    %v5793 = vunpack.c.l.s8.bf16 %v5361
    %v5794 = vunpack.c.l.s8.bf16 %v5362
    %v5795 = vunpack.c.l.s8.bf16 %v5363
    %v5796 = vunpack.c.l.s8.bf16 %v5364
    %v5797 = vunpack.c.l.s8.bf16 %v5365
    %v5798 = vunpack.c.l.s8.bf16 %v5366
    %v5799 = vunpack.c.l.s8.bf16 %v5367
    %v5800 = vunpack.c.h.s8.bf16 %v5352
    %v5801 = vunpack.c.h.s8.bf16 %v5353
    %v5802 = vunpack.c.h.s8.bf16 %v5354
    %v5803 = vunpack.c.h.s8.bf16 %v5355
    %v5804 = vunpack.c.h.s8.bf16 %v5356
    %v5805 = vunpack.c.h.s8.bf16 %v5357
    %v5806 = vunpack.c.h.s8.bf16 %v5358
    %v5807 = vunpack.c.h.s8.bf16 %v5359
    %v5808 = vunpack.c.h.s8.bf16 %v5360
    %v5809 = vunpack.c.h.s8.bf16 %v5361
    %v5810 = vunpack.c.h.s8.bf16 %v5362
    %v5811 = vunpack.c.h.s8.bf16 %v5363
    %v5812 = vunpack.c.h.s8.bf16 %v5364
    %v5813 = vunpack.c.h.s8.bf16 %v5365
    %v5814 = vunpack.c.h.s8.bf16 %v5366
    %v5815 = vunpack.c.h.s8.bf16 %v5367
    %v5816 = vunpack.c.l.s8.bf16 %v5368
    %v5817 = vunpack.c.l.s8.bf16 %v5369
    %v5818 = vunpack.c.l.s8.bf16 %v5370
    %v5819 = vunpack.c.l.s8.bf16 %v5371
    %v5820 = vunpack.c.l.s8.bf16 %v5372
    %v5821 = vunpack.c.l.s8.bf16 %v5373
    %v5822 = vunpack.c.l.s8.bf16 %v5374
    %v5823 = vunpack.c.l.s8.bf16 %v5375
    %v5824 = vunpack.c.l.s8.bf16 %v5376
    %v5825 = vunpack.c.l.s8.bf16 %v5377
    %v5826 = vunpack.c.l.s8.bf16 %v5378
    %v5827 = vunpack.c.l.s8.bf16 %v5379
    %v5828 = vunpack.c.l.s8.bf16 %v5380
    %v5829 = vunpack.c.l.s8.bf16 %v5381
    %v5830 = vunpack.c.l.s8.bf16 %v5382
    %v5831 = vunpack.c.l.s8.bf16 %v5383
    %v5832 = vunpack.c.h.s8.bf16 %v5368
    %v5833 = vunpack.c.h.s8.bf16 %v5369
    %v5834 = vunpack.c.h.s8.bf16 %v5370
    %v5835 = vunpack.c.h.s8.bf16 %v5371
    %v5836 = vunpack.c.h.s8.bf16 %v5372
    %v5837 = vunpack.c.h.s8.bf16 %v5373
    %v5838 = vunpack.c.h.s8.bf16 %v5374
    %v5839 = vunpack.c.h.s8.bf16 %v5375
    %v5840 = vunpack.c.h.s8.bf16 %v5376
    %v5841 = vunpack.c.h.s8.bf16 %v5377
    %v5842 = vunpack.c.h.s8.bf16 %v5378
    %v5843 = vunpack.c.h.s8.bf16 %v5379
    %v5844 = vunpack.c.h.s8.bf16 %v5380
    %v5845 = vunpack.c.h.s8.bf16 %v5381
    %v5846 = vunpack.c.h.s8.bf16 %v5382
    %v5847 = vunpack.c.h.s8.bf16 %v5383
    %v5848 = vunpack.c.l.s8.bf16 %v5384
    %v5849 = vunpack.c.l.s8.bf16 %v5385
    %v5850 = vunpack.c.l.s8.bf16 %v5386
    %v5851 = vunpack.c.l.s8.bf16 %v5387
    %v5852 = vunpack.c.l.s8.bf16 %v5388
    %v5853 = vunpack.c.l.s8.bf16 %v5389
    %v5854 = vunpack.c.l.s8.bf16 %v5390
    %v5855 = vunpack.c.l.s8.bf16 %v5391
    %v5856 = vunpack.c.l.s8.bf16 %v5392
    %v5857 = vunpack.c.l.s8.bf16 %v5393
    %v5858 = vunpack.c.l.s8.bf16 %v5394
    %v5859 = vunpack.c.l.s8.bf16 %v5395
    %v5860 = vunpack.c.l.s8.bf16 %v5396
    %v5861 = vunpack.c.l.s8.bf16 %v5397
    %v5862 = vunpack.c.l.s8.bf16 %v5398
    %v5863 = vunpack.c.l.s8.bf16 %v5399
    %v5864 = vunpack.c.h.s8.bf16 %v5384
    %v5865 = vunpack.c.h.s8.bf16 %v5385
    %v5866 = vunpack.c.h.s8.bf16 %v5386
    %v5867 = vunpack.c.h.s8.bf16 %v5387
    %v5868 = vunpack.c.h.s8.bf16 %v5388
    %v5869 = vunpack.c.h.s8.bf16 %v5389
    %v5870 = vunpack.c.h.s8.bf16 %v5390
    %v5871 = vunpack.c.h.s8.bf16 %v5391
    %v5872 = vunpack.c.h.s8.bf16 %v5392
    %v5873 = vunpack.c.h.s8.bf16 %v5393
    %v5874 = vunpack.c.h.s8.bf16 %v5394
    %v5875 = vunpack.c.h.s8.bf16 %v5395
    %v5876 = vunpack.c.h.s8.bf16 %v5396
    %v5877 = vunpack.c.h.s8.bf16 %v5397
    %v5878 = vunpack.c.h.s8.bf16 %v5398
    %v5879 = vunpack.c.h.s8.bf16 %v5399
    %v5880 = vunpack.c.l.s8.bf16 %v5400
    %v5881 = vunpack.c.l.s8.bf16 %v5401
    %v5882 = vunpack.c.l.s8.bf16 %v5402
    %v5883 = vunpack.c.l.s8.bf16 %v5403
    %v5884 = vunpack.c.l.s8.bf16 %v5404
    %v5885 = vunpack.c.l.s8.bf16 %v5405
    %v5886 = vunpack.c.l.s8.bf16 %v5406
    %v5887 = vunpack.c.l.s8.bf16 %v5407
    %v5888 = vunpack.c.l.s8.bf16 %v5408
    %v5889 = vunpack.c.l.s8.bf16 %v5409
    %v5890 = vunpack.c.l.s8.bf16 %v5410
    %v5891 = vunpack.c.l.s8.bf16 %v5411
    %v5892 = vunpack.c.l.s8.bf16 %v5412
    %v5893 = vunpack.c.l.s8.bf16 %v5413
    %v5894 = vunpack.c.l.s8.bf16 %v5414
    %v5895 = vunpack.c.l.s8.bf16 %v5415
    %v5896 = vunpack.c.h.s8.bf16 %v5400
    %v5897 = vunpack.c.h.s8.bf16 %v5401
    %v5898 = vunpack.c.h.s8.bf16 %v5402
    %v5899 = vunpack.c.h.s8.bf16 %v5403
    %v5900 = vunpack.c.h.s8.bf16 %v5404
    %v5901 = vunpack.c.h.s8.bf16 %v5405
    %v5902 = vunpack.c.h.s8.bf16 %v5406
    %v5903 = vunpack.c.h.s8.bf16 %v5407
    %v5904 = vunpack.c.h.s8.bf16 %v5408
    %v5905 = vunpack.c.h.s8.bf16 %v5409
    %v5906 = vunpack.c.h.s8.bf16 %v5410
    %v5907 = vunpack.c.h.s8.bf16 %v5411
    %v5908 = vunpack.c.h.s8.bf16 %v5412
    %v5909 = vunpack.c.h.s8.bf16 %v5413
    %v5910 = vunpack.c.h.s8.bf16 %v5414
    %v5911 = vunpack.c.h.s8.bf16 %v5415
    %v5912 = vunpack.c.l.s8.bf16 %v5416
    %v5913 = vunpack.c.l.s8.bf16 %v5417
    %v5914 = vunpack.c.l.s8.bf16 %v5418
    %v5915 = vunpack.c.l.s8.bf16 %v5419
    %v5916 = vunpack.c.l.s8.bf16 %v5420
    %v5917 = vunpack.c.l.s8.bf16 %v5421
    %v5918 = vunpack.c.l.s8.bf16 %v5422
    %v5919 = vunpack.c.l.s8.bf16 %v5423
    %v5920 = vunpack.c.l.s8.bf16 %v5424
    %v5921 = vunpack.c.l.s8.bf16 %v5425
    %v5922 = vunpack.c.l.s8.bf16 %v5426
    %v5923 = vunpack.c.l.s8.bf16 %v5427
    %v5924 = vunpack.c.l.s8.bf16 %v5428
    %v5925 = vunpack.c.l.s8.bf16 %v5429
    %v5926 = vunpack.c.l.s8.bf16 %v5430
    %v5927 = vunpack.c.l.s8.bf16 %v5431
    %v5928 = vunpack.c.h.s8.bf16 %v5416
    %v5929 = vunpack.c.h.s8.bf16 %v5417
    %v5930 = vunpack.c.h.s8.bf16 %v5418
    %v5931 = vunpack.c.h.s8.bf16 %v5419
    %v5932 = vunpack.c.h.s8.bf16 %v5420
    %v5933 = vunpack.c.h.s8.bf16 %v5421
    %v5934 = vunpack.c.h.s8.bf16 %v5422
    %v5935 = vunpack.c.h.s8.bf16 %v5423
    %v5936 = vunpack.c.h.s8.bf16 %v5424
    %v5937 = vunpack.c.h.s8.bf16 %v5425
    %v5938 = vunpack.c.h.s8.bf16 %v5426
    %v5939 = vunpack.c.h.s8.bf16 %v5427
    %v5940 = vunpack.c.h.s8.bf16 %v5428
    %v5941 = vunpack.c.h.s8.bf16 %v5429
    %v5942 = vunpack.c.h.s8.bf16 %v5430
    %v5943 = vunpack.c.h.s8.bf16 %v5431
    %5944 = vmatprep.subr.bf16.mxu0 %v5545
    %5945 = vmatpush1.bf16.msra.mxu0 %v5544
    %5946 = vmatprep.subr.bf16.mxu0 %v5529
    %5947 = vmatpush1.bf16.msra.mxu0 %v5528
    %5948 = vmatprep.subr.bf16.mxu0 %v5513
    %5949 = vmatpush1.bf16.msra.mxu0 %v5512
    %5950 = vmatprep.subr.bf16.mxu0 %v5497
    %5951 = vmatpush1.bf16.msra.mxu0 %v5496
    %5952 = vmatprep.subr.bf16.mxu0 %v5481
    %5953 = vmatpush1.bf16.msra.mxu0 %v5480
    %5954 = vmatprep.subr.bf16.mxu0 %v5465
    %5955 = vmatpush1.bf16.msra.mxu0 %v5464
    %5956 = vmatprep.subr.bf16.mxu0 %v5449
    %5957 = vmatpush1.bf16.msra.mxu0 %v5448
    %5958 = vmatprep.subr.bf16.mxu0 %v5433
    %5959 = vmatpush1.bf16.msra.mxu0 %v5432
    %5960 = vmatprep.subr.bf16.mxu0 %v5673
    %5961 = vmatpush2.bf16.msra.mxu0 %v5672
    %5962 = vmatprep.subr.bf16.mxu0 %v5657
    %5963 = vmatpush2.bf16.msra.mxu0 %v5656
    %5964 = vmatprep.subr.bf16.mxu0 %v5641
    %5965 = vmatpush2.bf16.msra.mxu0 %v5640
    %5966 = vmatprep.subr.bf16.mxu0 %v5625
    %5967 = vmatpush2.bf16.msra.mxu0 %v5624
    %5968 = vmatprep.subr.bf16.mxu0 %v5609
    %5969 = vmatpush2.bf16.msra.mxu0 %v5608
    %5970 = vmatprep.subr.bf16.mxu0 %v5593
    %5971 = vmatpush2.bf16.msra.mxu0 %v5592
    %5972 = vmatprep.subr.bf16.mxu0 %v5577
    %5973 = vmatpush2.bf16.msra.mxu0 %v5576
    %5974 = vmatprep.subr.bf16.mxu0 %v5561
    %5975 = vmatpush2.bf16.msra.mxu0 %v5560
    %5976 = vmatprep.mubr.bf16.mxu0 %v2289
    %5977 = vmatmul.mubr.bf16.gmra.mxu0 %v2288
    %v5978 = vpop.f32.mrf.mxu0
    %v5979 = vadd.f32 0.0, %v5978
    %v5980 = vpop.f32.mrf.mxu0
    %v5981 = vadd.f32 0.0, %v5980
    %v5982 = vpop.f32.mrf.mxu0
    %v5983 = vpop.f32.mrf.mxu0
    %5984 = vdwg.mxu0
    %5985 = vmatprep.subr.bf16.mxu0 %v5801
    %5986 = vmatpush1.bf16.msra.mxu0 %v5800
    %5987 = vmatprep.subr.bf16.mxu0 %v5785
    %5988 = vmatpush1.bf16.msra.mxu0 %v5784
    %5989 = vmatprep.subr.bf16.mxu0 %v5769
    %5990 = vmatpush1.bf16.msra.mxu0 %v5768
    %5991 = vmatprep.subr.bf16.mxu0 %v5753
    %5992 = vmatpush1.bf16.msra.mxu0 %v5752
    %5993 = vmatprep.subr.bf16.mxu0 %v5737
    %5994 = vmatpush1.bf16.msra.mxu0 %v5736
    %5995 = vmatprep.subr.bf16.mxu0 %v5721
    %5996 = vmatpush1.bf16.msra.mxu0 %v5720
    %5997 = vmatprep.subr.bf16.mxu0 %v5705
    %5998 = vmatpush1.bf16.msra.mxu0 %v5704
    %5999 = vmatprep.subr.bf16.mxu0 %v5689
    %6000 = vmatpush1.bf16.msra.mxu0 %v5688
    %6001 = vmatprep.subr.bf16.mxu0 %v5929
    %6002 = vmatpush2.bf16.msra.mxu0 %v5928
    %6003 = vmatprep.subr.bf16.mxu0 %v5913
    %6004 = vmatpush2.bf16.msra.mxu0 %v5912
    %6005 = vmatprep.subr.bf16.mxu0 %v5897
    %6006 = vmatpush2.bf16.msra.mxu0 %v5896
    %6007 = vmatprep.subr.bf16.mxu0 %v5881
    %6008 = vmatpush2.bf16.msra.mxu0 %v5880
    %6009 = vmatprep.subr.bf16.mxu0 %v5865
    %6010 = vmatpush2.bf16.msra.mxu0 %v5864
    %6011 = vmatprep.subr.bf16.mxu0 %v5849
    %6012 = vmatpush2.bf16.msra.mxu0 %v5848
    %6013 = vmatprep.subr.bf16.mxu0 %v5833
    %6014 = vmatpush2.bf16.msra.mxu0 %v5832
    %6015 = vmatprep.subr.bf16.mxu0 %v5817
    %6016 = vmatpush2.bf16.msra.mxu0 %v5816
    %6017 = vmatprep.mubr.bf16.mxu0 %v2291
    %6018 = vmatmul.mubr.bf16.gmra.mxu0 %v2290
    %v6019 = vpop.f32.mrf.mxu0
    %v6020 = vadd.f32 %v5979, %v6019
    %v6021 = vpop.f32.mrf.mxu0
    %v6022 = vadd.f32 %v5981, %v6021
    %v6023 = vpop.f32.mrf.mxu0
    %v6024 = vpop.f32.mrf.mxu0
    %6025 = vdwg.mxu0
    %6026 = vmatprep.subr.bf16.mxu0 %v5547
    %6027 = vmatpush1.bf16.msra.mxu0 %v5546
    %6028 = vmatprep.subr.bf16.mxu0 %v5531
    %6029 = vmatpush1.bf16.msra.mxu0 %v5530
    %6030 = vmatprep.subr.bf16.mxu0 %v5515
    %6031 = vmatpush1.bf16.msra.mxu0 %v5514
    %6032 = vmatprep.subr.bf16.mxu0 %v5499
    %6033 = vmatpush1.bf16.msra.mxu0 %v5498
    %6034 = vmatprep.subr.bf16.mxu0 %v5483
    %6035 = vmatpush1.bf16.msra.mxu0 %v5482
    %6036 = vmatprep.subr.bf16.mxu0 %v5467
    %6037 = vmatpush1.bf16.msra.mxu0 %v5466
    %6038 = vmatprep.subr.bf16.mxu0 %v5451
    %6039 = vmatpush1.bf16.msra.mxu0 %v5450
    %6040 = vmatprep.subr.bf16.mxu0 %v5435
    %6041 = vmatpush1.bf16.msra.mxu0 %v5434
    %6042 = vmatprep.subr.bf16.mxu0 %v5675
    %6043 = vmatpush2.bf16.msra.mxu0 %v5674
    %6044 = vmatprep.subr.bf16.mxu0 %v5659
    %6045 = vmatpush2.bf16.msra.mxu0 %v5658
    %6046 = vmatprep.subr.bf16.mxu0 %v5643
    %6047 = vmatpush2.bf16.msra.mxu0 %v5642
    %6048 = vmatprep.subr.bf16.mxu0 %v5627
    %6049 = vmatpush2.bf16.msra.mxu0 %v5626
    %6050 = vmatprep.subr.bf16.mxu0 %v5611
    %6051 = vmatpush2.bf16.msra.mxu0 %v5610
    %6052 = vmatprep.subr.bf16.mxu0 %v5595
    %6053 = vmatpush2.bf16.msra.mxu0 %v5594
    %6054 = vmatprep.subr.bf16.mxu0 %v5579
    %6055 = vmatpush2.bf16.msra.mxu0 %v5578
    %6056 = vmatprep.subr.bf16.mxu0 %v5563
    %6057 = vmatpush2.bf16.msra.mxu0 %v5562
    %6058 = vmatprep.mubr.bf16.mxu0 %v2289
    %6059 = vmatmul.mubr.bf16.gmra.mxu0 %v2288
    %v6060 = vpop.f32.mrf.mxu0
    %v6061 = vadd.f32 0.0, %v6060
    %v6062 = vpop.f32.mrf.mxu0
    %v6063 = vadd.f32 0.0, %v6062
    %v6064 = vpop.f32.mrf.mxu0
    %v6065 = vpop.f32.mrf.mxu0
    %6066 = vdwg.mxu0
    %6067 = vmatprep.subr.bf16.mxu0 %v5803
    %6068 = vmatpush1.bf16.msra.mxu0 %v5802
    %6069 = vmatprep.subr.bf16.mxu0 %v5787
    %6070 = vmatpush1.bf16.msra.mxu0 %v5786
    %6071 = vmatprep.subr.bf16.mxu0 %v5771
    %6072 = vmatpush1.bf16.msra.mxu0 %v5770
    %6073 = vmatprep.subr.bf16.mxu0 %v5755
    %6074 = vmatpush1.bf16.msra.mxu0 %v5754
    %6075 = vmatprep.subr.bf16.mxu0 %v5739
    %6076 = vmatpush1.bf16.msra.mxu0 %v5738
    %6077 = vmatprep.subr.bf16.mxu0 %v5723
    %6078 = vmatpush1.bf16.msra.mxu0 %v5722
    %6079 = vmatprep.subr.bf16.mxu0 %v5707
    %6080 = vmatpush1.bf16.msra.mxu0 %v5706
    %6081 = vmatprep.subr.bf16.mxu0 %v5691
    %6082 = vmatpush1.bf16.msra.mxu0 %v5690
    %6083 = vmatprep.subr.bf16.mxu0 %v5931
    %6084 = vmatpush2.bf16.msra.mxu0 %v5930
    %6085 = vmatprep.subr.bf16.mxu0 %v5915
    %6086 = vmatpush2.bf16.msra.mxu0 %v5914
    %6087 = vmatprep.subr.bf16.mxu0 %v5899
    %6088 = vmatpush2.bf16.msra.mxu0 %v5898
    %6089 = vmatprep.subr.bf16.mxu0 %v5883
    %6090 = vmatpush2.bf16.msra.mxu0 %v5882
    %6091 = vmatprep.subr.bf16.mxu0 %v5867
    %6092 = vmatpush2.bf16.msra.mxu0 %v5866
    %6093 = vmatprep.subr.bf16.mxu0 %v5851
    %6094 = vmatpush2.bf16.msra.mxu0 %v5850
    %6095 = vmatprep.subr.bf16.mxu0 %v5835
    %6096 = vmatpush2.bf16.msra.mxu0 %v5834
    %6097 = vmatprep.subr.bf16.mxu0 %v5819
    %6098 = vmatpush2.bf16.msra.mxu0 %v5818
    %6099 = vmatprep.mubr.bf16.mxu0 %v2291
    %6100 = vmatmul.mubr.bf16.gmra.mxu0 %v2290
    %v6101 = vpop.f32.mrf.mxu0
    %v6102 = vadd.f32 %v6061, %v6101
    %v6103 = vpop.f32.mrf.mxu0
    %v6104 = vadd.f32 %v6063, %v6103
    %v6105 = vpop.f32.mrf.mxu0
    %v6106 = vpop.f32.mrf.mxu0
    %6107 = vdwg.mxu0
    %6108 = vmatprep.subr.bf16.mxu0 %v5549
    %6109 = vmatpush1.bf16.msra.mxu0 %v5548
    %6110 = vmatprep.subr.bf16.mxu0 %v5533
    %6111 = vmatpush1.bf16.msra.mxu0 %v5532
    %6112 = vmatprep.subr.bf16.mxu0 %v5517
    %6113 = vmatpush1.bf16.msra.mxu0 %v5516
    %6114 = vmatprep.subr.bf16.mxu0 %v5501
    %6115 = vmatpush1.bf16.msra.mxu0 %v5500
    %6116 = vmatprep.subr.bf16.mxu0 %v5485
    %6117 = vmatpush1.bf16.msra.mxu0 %v5484
    %6118 = vmatprep.subr.bf16.mxu0 %v5469
    %6119 = vmatpush1.bf16.msra.mxu0 %v5468
    %6120 = vmatprep.subr.bf16.mxu0 %v5453
    %6121 = vmatpush1.bf16.msra.mxu0 %v5452
    %6122 = vmatprep.subr.bf16.mxu0 %v5437
    %6123 = vmatpush1.bf16.msra.mxu0 %v5436
    %6124 = vmatprep.subr.bf16.mxu0 %v5677
    %6125 = vmatpush2.bf16.msra.mxu0 %v5676
    %6126 = vmatprep.subr.bf16.mxu0 %v5661
    %6127 = vmatpush2.bf16.msra.mxu0 %v5660
    %6128 = vmatprep.subr.bf16.mxu0 %v5645
    %6129 = vmatpush2.bf16.msra.mxu0 %v5644
    %6130 = vmatprep.subr.bf16.mxu0 %v5629
    %6131 = vmatpush2.bf16.msra.mxu0 %v5628
    %6132 = vmatprep.subr.bf16.mxu0 %v5613
    %6133 = vmatpush2.bf16.msra.mxu0 %v5612
    %6134 = vmatprep.subr.bf16.mxu0 %v5597
    %6135 = vmatpush2.bf16.msra.mxu0 %v5596
    %6136 = vmatprep.subr.bf16.mxu0 %v5581
    %6137 = vmatpush2.bf16.msra.mxu0 %v5580
    %6138 = vmatprep.subr.bf16.mxu0 %v5565
    %6139 = vmatpush2.bf16.msra.mxu0 %v5564
    %6140 = vmatprep.mubr.bf16.mxu0 %v2289
    %6141 = vmatmul.mubr.bf16.gmra.mxu0 %v2288
    %v6142 = vpop.f32.mrf.mxu0
    %v6143 = vadd.f32 0.0, %v6142
    %v6144 = vpop.f32.mrf.mxu0
    %v6145 = vadd.f32 0.0, %v6144
    %v6146 = vpop.f32.mrf.mxu0
    %v6147 = vpop.f32.mrf.mxu0
    %6148 = vdwg.mxu0
    %6149 = vmatprep.subr.bf16.mxu0 %v5805
    %6150 = vmatpush1.bf16.msra.mxu0 %v5804
    %6151 = vmatprep.subr.bf16.mxu0 %v5789
    %6152 = vmatpush1.bf16.msra.mxu0 %v5788
    %6153 = vmatprep.subr.bf16.mxu0 %v5773
    %6154 = vmatpush1.bf16.msra.mxu0 %v5772
    %6155 = vmatprep.subr.bf16.mxu0 %v5757
    %6156 = vmatpush1.bf16.msra.mxu0 %v5756
    %6157 = vmatprep.subr.bf16.mxu0 %v5741
    %6158 = vmatpush1.bf16.msra.mxu0 %v5740
    %6159 = vmatprep.subr.bf16.mxu0 %v5725
    %6160 = vmatpush1.bf16.msra.mxu0 %v5724
    %6161 = vmatprep.subr.bf16.mxu0 %v5709
    %6162 = vmatpush1.bf16.msra.mxu0 %v5708
    %6163 = vmatprep.subr.bf16.mxu0 %v5693
    %6164 = vmatpush1.bf16.msra.mxu0 %v5692
    %6165 = vmatprep.subr.bf16.mxu0 %v5933
    %6166 = vmatpush2.bf16.msra.mxu0 %v5932
    %6167 = vmatprep.subr.bf16.mxu0 %v5917
    %6168 = vmatpush2.bf16.msra.mxu0 %v5916
    %6169 = vmatprep.subr.bf16.mxu0 %v5901
    %6170 = vmatpush2.bf16.msra.mxu0 %v5900
    %6171 = vmatprep.subr.bf16.mxu0 %v5885
    %6172 = vmatpush2.bf16.msra.mxu0 %v5884
    %6173 = vmatprep.subr.bf16.mxu0 %v5869
    %6174 = vmatpush2.bf16.msra.mxu0 %v5868
    %6175 = vmatprep.subr.bf16.mxu0 %v5853
    %6176 = vmatpush2.bf16.msra.mxu0 %v5852
    %6177 = vmatprep.subr.bf16.mxu0 %v5837
    %6178 = vmatpush2.bf16.msra.mxu0 %v5836
    %6179 = vmatprep.subr.bf16.mxu0 %v5821
    %6180 = vmatpush2.bf16.msra.mxu0 %v5820
    %6181 = vmatprep.mubr.bf16.mxu0 %v2291
    %6182 = vmatmul.mubr.bf16.gmra.mxu0 %v2290
    %v6183 = vpop.f32.mrf.mxu0
    %v6184 = vadd.f32 %v6143, %v6183
    %v6185 = vpop.f32.mrf.mxu0
    %v6186 = vadd.f32 %v6145, %v6185
    %v6187 = vpop.f32.mrf.mxu0
    %v6188 = vpop.f32.mrf.mxu0
    %6189 = vdwg.mxu0
    %6190 = vmatprep.subr.bf16.mxu0 %v5551
    %6191 = vmatpush1.bf16.msra.mxu0 %v5550
    %6192 = vmatprep.subr.bf16.mxu0 %v5535
    %6193 = vmatpush1.bf16.msra.mxu0 %v5534
    %6194 = vmatprep.subr.bf16.mxu0 %v5519
    %6195 = vmatpush1.bf16.msra.mxu0 %v5518
    %6196 = vmatprep.subr.bf16.mxu0 %v5503
    %6197 = vmatpush1.bf16.msra.mxu0 %v5502
    %6198 = vmatprep.subr.bf16.mxu0 %v5487
    %6199 = vmatpush1.bf16.msra.mxu0 %v5486
    %6200 = vmatprep.subr.bf16.mxu0 %v5471
    %6201 = vmatpush1.bf16.msra.mxu0 %v5470
    %6202 = vmatprep.subr.bf16.mxu0 %v5455
    %6203 = vmatpush1.bf16.msra.mxu0 %v5454
    %6204 = vmatprep.subr.bf16.mxu0 %v5439
    %6205 = vmatpush1.bf16.msra.mxu0 %v5438
    %6206 = vmatprep.subr.bf16.mxu0 %v5679
    %6207 = vmatpush2.bf16.msra.mxu0 %v5678
    %6208 = vmatprep.subr.bf16.mxu0 %v5663
    %6209 = vmatpush2.bf16.msra.mxu0 %v5662
    %6210 = vmatprep.subr.bf16.mxu0 %v5647
    %6211 = vmatpush2.bf16.msra.mxu0 %v5646
    %6212 = vmatprep.subr.bf16.mxu0 %v5631
    %6213 = vmatpush2.bf16.msra.mxu0 %v5630
    %6214 = vmatprep.subr.bf16.mxu0 %v5615
    %6215 = vmatpush2.bf16.msra.mxu0 %v5614
    %6216 = vmatprep.subr.bf16.mxu0 %v5599
    %6217 = vmatpush2.bf16.msra.mxu0 %v5598
    %6218 = vmatprep.subr.bf16.mxu0 %v5583
    %6219 = vmatpush2.bf16.msra.mxu0 %v5582
    %6220 = vmatprep.subr.bf16.mxu0 %v5567
    %6221 = vmatpush2.bf16.msra.mxu0 %v5566
    %6222 = vmatprep.mubr.bf16.mxu0 %v2289
    %6223 = vmatmul.mubr.bf16.gmra.mxu0 %v2288
    %v6224 = vpop.f32.mrf.mxu0
    %v6225 = vadd.f32 0.0, %v6224
    %v6226 = vpop.f32.mrf.mxu0
    %v6227 = vadd.f32 0.0, %v6226
    %v6228 = vpop.f32.mrf.mxu0
    %v6229 = vpop.f32.mrf.mxu0
    %6230 = vdwg.mxu0
    %6231 = vmatprep.subr.bf16.mxu0 %v5807
    %6232 = vmatpush1.bf16.msra.mxu0 %v5806
    %6233 = vmatprep.subr.bf16.mxu0 %v5791
    %6234 = vmatpush1.bf16.msra.mxu0 %v5790
    %6235 = vmatprep.subr.bf16.mxu0 %v5775
    %6236 = vmatpush1.bf16.msra.mxu0 %v5774
    %6237 = vmatprep.subr.bf16.mxu0 %v5759
    %6238 = vmatpush1.bf16.msra.mxu0 %v5758
    %6239 = vmatprep.subr.bf16.mxu0 %v5743
    %6240 = vmatpush1.bf16.msra.mxu0 %v5742
    %6241 = vmatprep.subr.bf16.mxu0 %v5727
    %6242 = vmatpush1.bf16.msra.mxu0 %v5726
    %6243 = vmatprep.subr.bf16.mxu0 %v5711
    %6244 = vmatpush1.bf16.msra.mxu0 %v5710
    %6245 = vmatprep.subr.bf16.mxu0 %v5695
    %6246 = vmatpush1.bf16.msra.mxu0 %v5694
    %6247 = vmatprep.subr.bf16.mxu0 %v5935
    %6248 = vmatpush2.bf16.msra.mxu0 %v5934
    %6249 = vmatprep.subr.bf16.mxu0 %v5919
    %6250 = vmatpush2.bf16.msra.mxu0 %v5918
    %6251 = vmatprep.subr.bf16.mxu0 %v5903
    %6252 = vmatpush2.bf16.msra.mxu0 %v5902
    %6253 = vmatprep.subr.bf16.mxu0 %v5887
    %6254 = vmatpush2.bf16.msra.mxu0 %v5886
    %6255 = vmatprep.subr.bf16.mxu0 %v5871
    %6256 = vmatpush2.bf16.msra.mxu0 %v5870
    %6257 = vmatprep.subr.bf16.mxu0 %v5855
    %6258 = vmatpush2.bf16.msra.mxu0 %v5854
    %6259 = vmatprep.subr.bf16.mxu0 %v5839
    %6260 = vmatpush2.bf16.msra.mxu0 %v5838
    %6261 = vmatprep.subr.bf16.mxu0 %v5823
    %6262 = vmatpush2.bf16.msra.mxu0 %v5822
    %6263 = vmatprep.mubr.bf16.mxu0 %v2291
    %6264 = vmatmul.mubr.bf16.gmra.mxu0 %v2290
    %v6265 = vpop.f32.mrf.mxu0
    %v6266 = vadd.f32 %v6225, %v6265
    %v6267 = vpop.f32.mrf.mxu0
    %v6268 = vadd.f32 %v6227, %v6267
    %v6269 = vpop.f32.mrf.mxu0
    %v6270 = vpop.f32.mrf.mxu0
    %6271 = vdwg.mxu0
    %6272 = vmatprep.subr.bf16.mxu0 %v5553
    %6273 = vmatpush1.bf16.msra.mxu0 %v5552
    %6274 = vmatprep.subr.bf16.mxu0 %v5537
    %6275 = vmatpush1.bf16.msra.mxu0 %v5536
    %6276 = vmatprep.subr.bf16.mxu0 %v5521
    %6277 = vmatpush1.bf16.msra.mxu0 %v5520
    %6278 = vmatprep.subr.bf16.mxu0 %v5505
    %6279 = vmatpush1.bf16.msra.mxu0 %v5504
    %6280 = vmatprep.subr.bf16.mxu0 %v5489
    %6281 = vmatpush1.bf16.msra.mxu0 %v5488
    %6282 = vmatprep.subr.bf16.mxu0 %v5473
    %6283 = vmatpush1.bf16.msra.mxu0 %v5472
    %6284 = vmatprep.subr.bf16.mxu0 %v5457
    %6285 = vmatpush1.bf16.msra.mxu0 %v5456
    %6286 = vmatprep.subr.bf16.mxu0 %v5441
    %6287 = vmatpush1.bf16.msra.mxu0 %v5440
    %6288 = vmatprep.subr.bf16.mxu0 %v5681
    %6289 = vmatpush2.bf16.msra.mxu0 %v5680
    %6290 = vmatprep.subr.bf16.mxu0 %v5665
    %6291 = vmatpush2.bf16.msra.mxu0 %v5664
    %6292 = vmatprep.subr.bf16.mxu0 %v5649
    %6293 = vmatpush2.bf16.msra.mxu0 %v5648
    %6294 = vmatprep.subr.bf16.mxu0 %v5633
    %6295 = vmatpush2.bf16.msra.mxu0 %v5632
    %6296 = vmatprep.subr.bf16.mxu0 %v5617
    %6297 = vmatpush2.bf16.msra.mxu0 %v5616
    %6298 = vmatprep.subr.bf16.mxu0 %v5601
    %6299 = vmatpush2.bf16.msra.mxu0 %v5600
    %6300 = vmatprep.subr.bf16.mxu0 %v5585
    %6301 = vmatpush2.bf16.msra.mxu0 %v5584
    %6302 = vmatprep.subr.bf16.mxu0 %v5569
    %6303 = vmatpush2.bf16.msra.mxu0 %v5568
    %6304 = vmatprep.mubr.bf16.mxu0 %v2289
    %6305 = vmatmul.mubr.bf16.gmra.mxu0 %v2288
    %v6306 = vpop.f32.mrf.mxu0
    %v6307 = vadd.f32 0.0, %v6306
    %v6308 = vpop.f32.mrf.mxu0
    %v6309 = vadd.f32 0.0, %v6308
    %v6310 = vpop.f32.mrf.mxu0
    %v6311 = vpop.f32.mrf.mxu0
    %6312 = vdwg.mxu0
    %6313 = vmatprep.subr.bf16.mxu0 %v5809
    %6314 = vmatpush1.bf16.msra.mxu0 %v5808
    %6315 = vmatprep.subr.bf16.mxu0 %v5793
    %6316 = vmatpush1.bf16.msra.mxu0 %v5792
    %6317 = vmatprep.subr.bf16.mxu0 %v5777
    %6318 = vmatpush1.bf16.msra.mxu0 %v5776
    %6319 = vmatprep.subr.bf16.mxu0 %v5761
    %6320 = vmatpush1.bf16.msra.mxu0 %v5760
    %6321 = vmatprep.subr.bf16.mxu0 %v5745
    %6322 = vmatpush1.bf16.msra.mxu0 %v5744
    %6323 = vmatprep.subr.bf16.mxu0 %v5729
    %6324 = vmatpush1.bf16.msra.mxu0 %v5728
    %6325 = vmatprep.subr.bf16.mxu0 %v5713
    %6326 = vmatpush1.bf16.msra.mxu0 %v5712
    %6327 = vmatprep.subr.bf16.mxu0 %v5697
    %6328 = vmatpush1.bf16.msra.mxu0 %v5696
    %6329 = vmatprep.subr.bf16.mxu0 %v5937
    %6330 = vmatpush2.bf16.msra.mxu0 %v5936
    %6331 = vmatprep.subr.bf16.mxu0 %v5921
    %6332 = vmatpush2.bf16.msra.mxu0 %v5920
    %6333 = vmatprep.subr.bf16.mxu0 %v5905
    %6334 = vmatpush2.bf16.msra.mxu0 %v5904
    %6335 = vmatprep.subr.bf16.mxu0 %v5889
    %6336 = vmatpush2.bf16.msra.mxu0 %v5888
    %6337 = vmatprep.subr.bf16.mxu0 %v5873
    %6338 = vmatpush2.bf16.msra.mxu0 %v5872
    %6339 = vmatprep.subr.bf16.mxu0 %v5857
    %6340 = vmatpush2.bf16.msra.mxu0 %v5856
    %6341 = vmatprep.subr.bf16.mxu0 %v5841
    %6342 = vmatpush2.bf16.msra.mxu0 %v5840
    %6343 = vmatprep.subr.bf16.mxu0 %v5825
    %6344 = vmatpush2.bf16.msra.mxu0 %v5824
    %6345 = vmatprep.mubr.bf16.mxu0 %v2291
    %6346 = vmatmul.mubr.bf16.gmra.mxu0 %v2290
    %v6347 = vpop.f32.mrf.mxu0
    %v6348 = vadd.f32 %v6307, %v6347
    %v6349 = vpop.f32.mrf.mxu0
    %v6350 = vadd.f32 %v6309, %v6349
    %v6351 = vpop.f32.mrf.mxu0
    %v6352 = vpop.f32.mrf.mxu0
    %6353 = vdwg.mxu0
    %6354 = vmatprep.subr.bf16.mxu0 %v5555
    %6355 = vmatpush1.bf16.msra.mxu0 %v5554
    %6356 = vmatprep.subr.bf16.mxu0 %v5539
    %6357 = vmatpush1.bf16.msra.mxu0 %v5538
    %6358 = vmatprep.subr.bf16.mxu0 %v5523
    %6359 = vmatpush1.bf16.msra.mxu0 %v5522
    %6360 = vmatprep.subr.bf16.mxu0 %v5507
    %6361 = vmatpush1.bf16.msra.mxu0 %v5506
    %6362 = vmatprep.subr.bf16.mxu0 %v5491
    %6363 = vmatpush1.bf16.msra.mxu0 %v5490
    %6364 = vmatprep.subr.bf16.mxu0 %v5475
    %6365 = vmatpush1.bf16.msra.mxu0 %v5474
    %6366 = vmatprep.subr.bf16.mxu0 %v5459
    %6367 = vmatpush1.bf16.msra.mxu0 %v5458
    %6368 = vmatprep.subr.bf16.mxu0 %v5443
    %6369 = vmatpush1.bf16.msra.mxu0 %v5442
    %6370 = vmatprep.subr.bf16.mxu0 %v5683
    %6371 = vmatpush2.bf16.msra.mxu0 %v5682
    %6372 = vmatprep.subr.bf16.mxu0 %v5667
    %6373 = vmatpush2.bf16.msra.mxu0 %v5666
    %6374 = vmatprep.subr.bf16.mxu0 %v5651
    %6375 = vmatpush2.bf16.msra.mxu0 %v5650
    %6376 = vmatprep.subr.bf16.mxu0 %v5635
    %6377 = vmatpush2.bf16.msra.mxu0 %v5634
    %6378 = vmatprep.subr.bf16.mxu0 %v5619
    %6379 = vmatpush2.bf16.msra.mxu0 %v5618
    %6380 = vmatprep.subr.bf16.mxu0 %v5603
    %6381 = vmatpush2.bf16.msra.mxu0 %v5602
    %6382 = vmatprep.subr.bf16.mxu0 %v5587
    %6383 = vmatpush2.bf16.msra.mxu0 %v5586
    %6384 = vmatprep.subr.bf16.mxu0 %v5571
    %6385 = vmatpush2.bf16.msra.mxu0 %v5570
    %6386 = vmatprep.mubr.bf16.mxu0 %v2289
    %6387 = vmatmul.mubr.bf16.gmra.mxu0 %v2288
    %v6388 = vpop.f32.mrf.mxu0
    %v6389 = vadd.f32 0.0, %v6388
    %v6390 = vpop.f32.mrf.mxu0
    %v6391 = vadd.f32 0.0, %v6390
    %v6392 = vpop.f32.mrf.mxu0
    %v6393 = vpop.f32.mrf.mxu0
    %6394 = vdwg.mxu0
    %6395 = vmatprep.subr.bf16.mxu0 %v5811
    %6396 = vmatpush1.bf16.msra.mxu0 %v5810
    %6397 = vmatprep.subr.bf16.mxu0 %v5795
    %6398 = vmatpush1.bf16.msra.mxu0 %v5794
    %6399 = vmatprep.subr.bf16.mxu0 %v5779
    %6400 = vmatpush1.bf16.msra.mxu0 %v5778
    %6401 = vmatprep.subr.bf16.mxu0 %v5763
    %6402 = vmatpush1.bf16.msra.mxu0 %v5762
    %6403 = vmatprep.subr.bf16.mxu0 %v5747
    %6404 = vmatpush1.bf16.msra.mxu0 %v5746
    %6405 = vmatprep.subr.bf16.mxu0 %v5731
    %6406 = vmatpush1.bf16.msra.mxu0 %v5730
    %6407 = vmatprep.subr.bf16.mxu0 %v5715
    %6408 = vmatpush1.bf16.msra.mxu0 %v5714
    %6409 = vmatprep.subr.bf16.mxu0 %v5699
    %6410 = vmatpush1.bf16.msra.mxu0 %v5698
    %6411 = vmatprep.subr.bf16.mxu0 %v5939
    %6412 = vmatpush2.bf16.msra.mxu0 %v5938
    %6413 = vmatprep.subr.bf16.mxu0 %v5923
    %6414 = vmatpush2.bf16.msra.mxu0 %v5922
    %6415 = vmatprep.subr.bf16.mxu0 %v5907
    %6416 = vmatpush2.bf16.msra.mxu0 %v5906
    %6417 = vmatprep.subr.bf16.mxu0 %v5891
    %6418 = vmatpush2.bf16.msra.mxu0 %v5890
    %6419 = vmatprep.subr.bf16.mxu0 %v5875
    %6420 = vmatpush2.bf16.msra.mxu0 %v5874
    %6421 = vmatprep.subr.bf16.mxu0 %v5859
    %6422 = vmatpush2.bf16.msra.mxu0 %v5858
    %6423 = vmatprep.subr.bf16.mxu0 %v5843
    %6424 = vmatpush2.bf16.msra.mxu0 %v5842
    %6425 = vmatprep.subr.bf16.mxu0 %v5827
    %6426 = vmatpush2.bf16.msra.mxu0 %v5826
    %6427 = vmatprep.mubr.bf16.mxu0 %v2291
    %6428 = vmatmul.mubr.bf16.gmra.mxu0 %v2290
    %v6429 = vpop.f32.mrf.mxu0
    %v6430 = vadd.f32 %v6389, %v6429
    %v6431 = vpop.f32.mrf.mxu0
    %v6432 = vadd.f32 %v6391, %v6431
    %v6433 = vpop.f32.mrf.mxu0
    %v6434 = vpop.f32.mrf.mxu0
    %6435 = vdwg.mxu0
    %6436 = vmatprep.subr.bf16.mxu0 %v5557
    %6437 = vmatpush1.bf16.msra.mxu0 %v5556
    %6438 = vmatprep.subr.bf16.mxu0 %v5541
    %6439 = vmatpush1.bf16.msra.mxu0 %v5540
    %6440 = vmatprep.subr.bf16.mxu0 %v5525
    %6441 = vmatpush1.bf16.msra.mxu0 %v5524
    %6442 = vmatprep.subr.bf16.mxu0 %v5509
    %6443 = vmatpush1.bf16.msra.mxu0 %v5508
    %6444 = vmatprep.subr.bf16.mxu0 %v5493
    %6445 = vmatpush1.bf16.msra.mxu0 %v5492
    %6446 = vmatprep.subr.bf16.mxu0 %v5477
    %6447 = vmatpush1.bf16.msra.mxu0 %v5476
    %6448 = vmatprep.subr.bf16.mxu0 %v5461
    %6449 = vmatpush1.bf16.msra.mxu0 %v5460
    %6450 = vmatprep.subr.bf16.mxu0 %v5445
    %6451 = vmatpush1.bf16.msra.mxu0 %v5444
    %6452 = vmatprep.subr.bf16.mxu0 %v5685
    %6453 = vmatpush2.bf16.msra.mxu0 %v5684
    %6454 = vmatprep.subr.bf16.mxu0 %v5669
    %6455 = vmatpush2.bf16.msra.mxu0 %v5668
    %6456 = vmatprep.subr.bf16.mxu0 %v5653
    %6457 = vmatpush2.bf16.msra.mxu0 %v5652
    %6458 = vmatprep.subr.bf16.mxu0 %v5637
    %6459 = vmatpush2.bf16.msra.mxu0 %v5636
    %6460 = vmatprep.subr.bf16.mxu0 %v5621
    %6461 = vmatpush2.bf16.msra.mxu0 %v5620
    %6462 = vmatprep.subr.bf16.mxu0 %v5605
    %6463 = vmatpush2.bf16.msra.mxu0 %v5604
    %6464 = vmatprep.subr.bf16.mxu0 %v5589
    %6465 = vmatpush2.bf16.msra.mxu0 %v5588
    %6466 = vmatprep.subr.bf16.mxu0 %v5573
    %6467 = vmatpush2.bf16.msra.mxu0 %v5572
    %6468 = vmatprep.mubr.bf16.mxu0 %v2289
    %6469 = vmatmul.mubr.bf16.gmra.mxu0 %v2288
    %v6470 = vpop.f32.mrf.mxu0
    %v6471 = vadd.f32 0.0, %v6470
    %v6472 = vpop.f32.mrf.mxu0
    %v6473 = vadd.f32 0.0, %v6472
    %v6474 = vpop.f32.mrf.mxu0
    %v6475 = vpop.f32.mrf.mxu0
    %6476 = vdwg.mxu0
    %6477 = vmatprep.subr.bf16.mxu0 %v5813
    %6478 = vmatpush1.bf16.msra.mxu0 %v5812
    %6479 = vmatprep.subr.bf16.mxu0 %v5797
    %6480 = vmatpush1.bf16.msra.mxu0 %v5796
    %6481 = vmatprep.subr.bf16.mxu0 %v5781
    %6482 = vmatpush1.bf16.msra.mxu0 %v5780
    %6483 = vmatprep.subr.bf16.mxu0 %v5765
    %6484 = vmatpush1.bf16.msra.mxu0 %v5764
    %6485 = vmatprep.subr.bf16.mxu0 %v5749
    %6486 = vmatpush1.bf16.msra.mxu0 %v5748
    %6487 = vmatprep.subr.bf16.mxu0 %v5733
    %6488 = vmatpush1.bf16.msra.mxu0 %v5732
    %6489 = vmatprep.subr.bf16.mxu0 %v5717
    %6490 = vmatpush1.bf16.msra.mxu0 %v5716
    %6491 = vmatprep.subr.bf16.mxu0 %v5701
    %6492 = vmatpush1.bf16.msra.mxu0 %v5700
    %6493 = vmatprep.subr.bf16.mxu0 %v5941
    %6494 = vmatpush2.bf16.msra.mxu0 %v5940
    %6495 = vmatprep.subr.bf16.mxu0 %v5925
    %6496 = vmatpush2.bf16.msra.mxu0 %v5924
    %6497 = vmatprep.subr.bf16.mxu0 %v5909
    %6498 = vmatpush2.bf16.msra.mxu0 %v5908
    %6499 = vmatprep.subr.bf16.mxu0 %v5893
    %6500 = vmatpush2.bf16.msra.mxu0 %v5892
    %6501 = vmatprep.subr.bf16.mxu0 %v5877
    %6502 = vmatpush2.bf16.msra.mxu0 %v5876
    %6503 = vmatprep.subr.bf16.mxu0 %v5861
    %6504 = vmatpush2.bf16.msra.mxu0 %v5860
    %6505 = vmatprep.subr.bf16.mxu0 %v5845
    %6506 = vmatpush2.bf16.msra.mxu0 %v5844
    %6507 = vmatprep.subr.bf16.mxu0 %v5829
    %6508 = vmatpush2.bf16.msra.mxu0 %v5828
    %6509 = vmatprep.mubr.bf16.mxu0 %v2291
    %6510 = vmatmul.mubr.bf16.gmra.mxu0 %v2290
    %v6511 = vpop.f32.mrf.mxu0
    %v6512 = vadd.f32 %v6471, %v6511
    %v6513 = vpop.f32.mrf.mxu0
    %v6514 = vadd.f32 %v6473, %v6513
    %v6515 = vpop.f32.mrf.mxu0
    %v6516 = vpop.f32.mrf.mxu0
    %6517 = vdwg.mxu0
    %6518 = vmatprep.subr.bf16.mxu0 %v5559
    %6519 = vmatpush1.bf16.msra.mxu0 %v5558
    %6520 = vmatprep.subr.bf16.mxu0 %v5543
    %6521 = vmatpush1.bf16.msra.mxu0 %v5542
    %6522 = vmatprep.subr.bf16.mxu0 %v5527
    %6523 = vmatpush1.bf16.msra.mxu0 %v5526
    %6524 = vmatprep.subr.bf16.mxu0 %v5511
    %6525 = vmatpush1.bf16.msra.mxu0 %v5510
    %6526 = vmatprep.subr.bf16.mxu0 %v5495
    %6527 = vmatpush1.bf16.msra.mxu0 %v5494
    %6528 = vmatprep.subr.bf16.mxu0 %v5479
    %6529 = vmatpush1.bf16.msra.mxu0 %v5478
    %6530 = vmatprep.subr.bf16.mxu0 %v5463
    %6531 = vmatpush1.bf16.msra.mxu0 %v5462
    %6532 = vmatprep.subr.bf16.mxu0 %v5447
    %6533 = vmatpush1.bf16.msra.mxu0 %v5446
    %6534 = vmatprep.subr.bf16.mxu0 %v5687
    %6535 = vmatpush2.bf16.msra.mxu0 %v5686
    %6536 = vmatprep.subr.bf16.mxu0 %v5671
    %6537 = vmatpush2.bf16.msra.mxu0 %v5670
    %6538 = vmatprep.subr.bf16.mxu0 %v5655
    %6539 = vmatpush2.bf16.msra.mxu0 %v5654
    %6540 = vmatprep.subr.bf16.mxu0 %v5639
    %6541 = vmatpush2.bf16.msra.mxu0 %v5638
    %6542 = vmatprep.subr.bf16.mxu0 %v5623
    %6543 = vmatpush2.bf16.msra.mxu0 %v5622
    %6544 = vmatprep.subr.bf16.mxu0 %v5607
    %6545 = vmatpush2.bf16.msra.mxu0 %v5606
    %6546 = vmatprep.subr.bf16.mxu0 %v5591
    %6547 = vmatpush2.bf16.msra.mxu0 %v5590
    %6548 = vmatprep.subr.bf16.mxu0 %v5575
    %6549 = vmatpush2.bf16.msra.mxu0 %v5574
    %6550 = vmatprep.mubr.bf16.mxu0 %v2289
    %6551 = vmatmul.mubr.bf16.gmra.mxu0 %v2288
    %v6552 = vpop.f32.mrf.mxu0
    %v6553 = vadd.f32 0.0, %v6552
    %v6554 = vpop.f32.mrf.mxu0
    %v6555 = vadd.f32 0.0, %v6554
    %v6556 = vpop.f32.mrf.mxu0
    %v6557 = vpop.f32.mrf.mxu0
    %6558 = vdwg.mxu0
    %6559 = vmatprep.subr.bf16.mxu0 %v5815
    %6560 = vmatpush1.bf16.msra.mxu0 %v5814
    %6561 = vmatprep.subr.bf16.mxu0 %v5799
    %6562 = vmatpush1.bf16.msra.mxu0 %v5798
    %6563 = vmatprep.subr.bf16.mxu0 %v5783
    %6564 = vmatpush1.bf16.msra.mxu0 %v5782
    %6565 = vmatprep.subr.bf16.mxu0 %v5767
    %6566 = vmatpush1.bf16.msra.mxu0 %v5766
    %6567 = vmatprep.subr.bf16.mxu0 %v5751
    %6568 = vmatpush1.bf16.msra.mxu0 %v5750
    %6569 = vmatprep.subr.bf16.mxu0 %v5735
    %6570 = vmatpush1.bf16.msra.mxu0 %v5734
    %6571 = vmatprep.subr.bf16.mxu0 %v5719
    %6572 = vmatpush1.bf16.msra.mxu0 %v5718
    %6573 = vmatprep.subr.bf16.mxu0 %v5703
    %6574 = vmatpush1.bf16.msra.mxu0 %v5702
    %6575 = vmatprep.subr.bf16.mxu0 %v5943
    %6576 = vmatpush2.bf16.msra.mxu0 %v5942
    %6577 = vmatprep.subr.bf16.mxu0 %v5927
    %6578 = vmatpush2.bf16.msra.mxu0 %v5926
    %6579 = vmatprep.subr.bf16.mxu0 %v5911
    %6580 = vmatpush2.bf16.msra.mxu0 %v5910
    %6581 = vmatprep.subr.bf16.mxu0 %v5895
    %6582 = vmatpush2.bf16.msra.mxu0 %v5894
    %6583 = vmatprep.subr.bf16.mxu0 %v5879
    %6584 = vmatpush2.bf16.msra.mxu0 %v5878
    %6585 = vmatprep.subr.bf16.mxu0 %v5863
    %6586 = vmatpush2.bf16.msra.mxu0 %v5862
    %6587 = vmatprep.subr.bf16.mxu0 %v5847
    %6588 = vmatpush2.bf16.msra.mxu0 %v5846
    %6589 = vmatprep.subr.bf16.mxu0 %v5831
    %6590 = vmatpush2.bf16.msra.mxu0 %v5830
    %6591 = vmatprep.mubr.bf16.mxu0 %v2291
    %6592 = vmatmul.mubr.bf16.gmra.mxu0 %v2290
    %v6593 = vpop.f32.mrf.mxu0
    %v6594 = vadd.f32 %v6553, %v6593
    %v6595 = vpop.f32.mrf.mxu0
    %v6596 = vadd.f32 %v6555, %v6595
    %v6597 = vpop.f32.mrf.mxu0
    %v6598 = vpop.f32.mrf.mxu0
    %6599 = vdwg.mxu0
    %v6600 = vadd.f32 %v4582, %v6020
    %v6601 = vadd.f32 %v4584, %v6022
    %v6602 = vadd.f32 %v4664, %v6102
    %v6603 = vadd.f32 %v4666, %v6104
    %v6604 = vadd.f32 %v4746, %v6184
    %v6605 = vadd.f32 %v4748, %v6186
    %v6606 = vadd.f32 %v4828, %v6266
    %v6607 = vadd.f32 %v4830, %v6268
    %v6608 = vadd.f32 %v4910, %v6348
    %v6609 = vadd.f32 %v4912, %v6350
    %v6610 = vadd.f32 %v4992, %v6430
    %v6611 = vadd.f32 %v4994, %v6432
    %v6612 = vadd.f32 %v5074, %v6512
    %v6613 = vadd.f32 %v5076, %v6514
    %v6614 = vadd.f32 %v5156, %v6594
    %v6615 = vadd.f32 %v5158, %v6596
    // Predicated region
    $region50: #{improved_codebert_classifier_fwd.1} parent=1 // pred_check
      _
    $region51: #{improved_codebert_classifier_fwd.1} parent=1 // pred_check_branch
      %6617 = sbr.rel target = $region53
    $region52: #{improved_codebert_classifier_fwd.1} parent=1 // pred_region
      %6618 = sst [smem:[#allocation15]] [#allocation24]
      %6619 = sst [smem:[#allocation16]] [#allocation23]
    $region53: #{improved_codebert_classifier_fwd.1} parent=1 // pred_fallthru
      _
    %6621 = shalt.err (0)
    %s6623 = sshll.u32 [#allocation3], 4
    %s6624 = int_to_ptr.vmem [resolvable:$true] %s6623
    %6626 = dma.hbm_to_vmem [thread:$0]  %s5, 16384, %s6624, [#allocation5]
    %s6627 = sshll.u32 %s2297, 4
    %6628 = dma.done %s83, %s6627
    %v6629 = vld [vmem:[%s82] sm:$0xff]
    %v6630 = vld [vmem:[%s82 + $0x8] sm:$0xff]
    %v6631 = vld [vmem:[%s82 + $0x10] sm:$0xff]
    %v6632 = vld [vmem:[%s82 + $0x18] sm:$0xff]
    %v6633 = vld [vmem:[%s82 + $0x20] sm:$0xff]
    %v6634 = vld [vmem:[%s82 + $0x28] sm:$0xff]
    %v6635 = vld [vmem:[%s82 + $0x30] sm:$0xff]
    %v6636 = vld [vmem:[%s82 + $0x38] sm:$0xff]
    %v6637 = vld [vmem:[%s82 + $0x40] sm:$0xff]
    %v6638 = vld [vmem:[%s82 + $0x48] sm:$0xff]
    %v6639 = vld [vmem:[%s82 + $0x50] sm:$0xff]
    %v6640 = vld [vmem:[%s82 + $0x58] sm:$0xff]
    %v6641 = vld [vmem:[%s82 + $0x60] sm:$0xff]
    %v6642 = vld [vmem:[%s82 + $0x68] sm:$0xff]
    %v6643 = vld [vmem:[%s82 + $0x70] sm:$0xff]
    %v6644 = vld [vmem:[%s82 + $0x78] sm:$0xff]
    %v6645 = vld [vmem:[%s82 + $0x80] sm:$0xff]
    %v6646 = vld [vmem:[%s82 + $0x88] sm:$0xff]
    %v6647 = vld [vmem:[%s82 + $0x90] sm:$0xff]
    %v6648 = vld [vmem:[%s82 + $0x98] sm:$0xff]
    %v6649 = vld [vmem:[%s82 + $0xa0] sm:$0xff]
    %v6650 = vld [vmem:[%s82 + $0xa8] sm:$0xff]
    %v6651 = vld [vmem:[%s82 + $0xb0] sm:$0xff]
    %v6652 = vld [vmem:[%s82 + $0xb8] sm:$0xff]
    %v6653 = vld [vmem:[%s82 + $0xc0] sm:$0xff]
    %v6654 = vld [vmem:[%s82 + $0xc8] sm:$0xff]
    %v6655 = vld [vmem:[%s82 + $0xd0] sm:$0xff]
    %v6656 = vld [vmem:[%s82 + $0xd8] sm:$0xff]
    %v6657 = vld [vmem:[%s82 + $0xe0] sm:$0xff]
    %v6658 = vld [vmem:[%s82 + $0xe8] sm:$0xff]
    %v6659 = vld [vmem:[%s82 + $0xf0] sm:$0xff]
    %v6660 = vld [vmem:[%s82 + $0xf8] sm:$0xff]
    %v6661 = vld [vmem:[%s82 + $0x100] sm:$0xff]
    %v6662 = vld [vmem:[%s82 + $0x108] sm:$0xff]
    %v6663 = vld [vmem:[%s82 + $0x110] sm:$0xff]
    %v6664 = vld [vmem:[%s82 + $0x118] sm:$0xff]
    %v6665 = vld [vmem:[%s82 + $0x120] sm:$0xff]
    %v6666 = vld [vmem:[%s82 + $0x128] sm:$0xff]
    %v6667 = vld [vmem:[%s82 + $0x130] sm:$0xff]
    %v6668 = vld [vmem:[%s82 + $0x138] sm:$0xff]
    %v6669 = vld [vmem:[%s82 + $0x140] sm:$0xff]
    %v6670 = vld [vmem:[%s82 + $0x148] sm:$0xff]
    %v6671 = vld [vmem:[%s82 + $0x150] sm:$0xff]
    %v6672 = vld [vmem:[%s82 + $0x158] sm:$0xff]
    %v6673 = vld [vmem:[%s82 + $0x160] sm:$0xff]
    %v6674 = vld [vmem:[%s82 + $0x168] sm:$0xff]
    %v6675 = vld [vmem:[%s82 + $0x170] sm:$0xff]
    %v6676 = vld [vmem:[%s82 + $0x178] sm:$0xff]
    %v6677 = vld [vmem:[%s82 + $0x180] sm:$0xff]
    %v6678 = vld [vmem:[%s82 + $0x188] sm:$0xff]
    %v6679 = vld [vmem:[%s82 + $0x190] sm:$0xff]
    %v6680 = vld [vmem:[%s82 + $0x198] sm:$0xff]
    %v6681 = vld [vmem:[%s82 + $0x1a0] sm:$0xff]
    %v6682 = vld [vmem:[%s82 + $0x1a8] sm:$0xff]
    %v6683 = vld [vmem:[%s82 + $0x1b0] sm:$0xff]
    %v6684 = vld [vmem:[%s82 + $0x1b8] sm:$0xff]
    %v6685 = vld [vmem:[%s82 + $0x1c0] sm:$0xff]
    %v6686 = vld [vmem:[%s82 + $0x1c8] sm:$0xff]
    %v6687 = vld [vmem:[%s82 + $0x1d0] sm:$0xff]
    %v6688 = vld [vmem:[%s82 + $0x1d8] sm:$0xff]
    %v6689 = vld [vmem:[%s82 + $0x1e0] sm:$0xff]
    %v6690 = vld [vmem:[%s82 + $0x1e8] sm:$0xff]
    %v6691 = vld [vmem:[%s82 + $0x1f0] sm:$0xff]
    %v6692 = vld [vmem:[%s82 + $0x1f8] sm:$0xff]
    %v6693 = vld [vmem:[%s82 + $0x200] sm:$0xff]
    %v6694 = vld [vmem:[%s82 + $0x208] sm:$0xff]
    %v6695 = vld [vmem:[%s82 + $0x210] sm:$0xff]
    %v6696 = vld [vmem:[%s82 + $0x218] sm:$0xff]
    %v6697 = vld [vmem:[%s82 + $0x220] sm:$0xff]
    %v6698 = vld [vmem:[%s82 + $0x228] sm:$0xff]
    %v6699 = vld [vmem:[%s82 + $0x230] sm:$0xff]
    %v6700 = vld [vmem:[%s82 + $0x238] sm:$0xff]
    %v6701 = vld [vmem:[%s82 + $0x240] sm:$0xff]
    %v6702 = vld [vmem:[%s82 + $0x248] sm:$0xff]
    %v6703 = vld [vmem:[%s82 + $0x250] sm:$0xff]
    %v6704 = vld [vmem:[%s82 + $0x258] sm:$0xff]
    %v6705 = vld [vmem:[%s82 + $0x260] sm:$0xff]
    %v6706 = vld [vmem:[%s82 + $0x268] sm:$0xff]
    %v6707 = vld [vmem:[%s82 + $0x270] sm:$0xff]
    %v6708 = vld [vmem:[%s82 + $0x278] sm:$0xff]
    %v6709 = vld [vmem:[%s82 + $0x280] sm:$0xff]
    %v6710 = vld [vmem:[%s82 + $0x288] sm:$0xff]
    %v6711 = vld [vmem:[%s82 + $0x290] sm:$0xff]
    %v6712 = vld [vmem:[%s82 + $0x298] sm:$0xff]
    %v6713 = vld [vmem:[%s82 + $0x2a0] sm:$0xff]
    %v6714 = vld [vmem:[%s82 + $0x2a8] sm:$0xff]
    %v6715 = vld [vmem:[%s82 + $0x2b0] sm:$0xff]
    %v6716 = vld [vmem:[%s82 + $0x2b8] sm:$0xff]
    %v6717 = vld [vmem:[%s82 + $0x2c0] sm:$0xff]
    %v6718 = vld [vmem:[%s82 + $0x2c8] sm:$0xff]
    %v6719 = vld [vmem:[%s82 + $0x2d0] sm:$0xff]
    %v6720 = vld [vmem:[%s82 + $0x2d8] sm:$0xff]
    %v6721 = vld [vmem:[%s82 + $0x2e0] sm:$0xff]
    %v6722 = vld [vmem:[%s82 + $0x2e8] sm:$0xff]
    %v6723 = vld [vmem:[%s82 + $0x2f0] sm:$0xff]
    %v6724 = vld [vmem:[%s82 + $0x2f8] sm:$0xff]
    %v6725 = vld [vmem:[%s82 + $0x300] sm:$0xff]
    %v6726 = vld [vmem:[%s82 + $0x308] sm:$0xff]
    %v6727 = vld [vmem:[%s82 + $0x310] sm:$0xff]
    %v6728 = vld [vmem:[%s82 + $0x318] sm:$0xff]
    %v6729 = vld [vmem:[%s82 + $0x320] sm:$0xff]
    %v6730 = vld [vmem:[%s82 + $0x328] sm:$0xff]
    %v6731 = vld [vmem:[%s82 + $0x330] sm:$0xff]
    %v6732 = vld [vmem:[%s82 + $0x338] sm:$0xff]
    %v6733 = vld [vmem:[%s82 + $0x340] sm:$0xff]
    %v6734 = vld [vmem:[%s82 + $0x348] sm:$0xff]
    %v6735 = vld [vmem:[%s82 + $0x350] sm:$0xff]
    %v6736 = vld [vmem:[%s82 + $0x358] sm:$0xff]
    %v6737 = vld [vmem:[%s82 + $0x360] sm:$0xff]
    %v6738 = vld [vmem:[%s82 + $0x368] sm:$0xff]
    %v6739 = vld [vmem:[%s82 + $0x370] sm:$0xff]
    %v6740 = vld [vmem:[%s82 + $0x378] sm:$0xff]
    %v6741 = vld [vmem:[%s82 + $0x380] sm:$0xff]
    %v6742 = vld [vmem:[%s82 + $0x388] sm:$0xff]
    %v6743 = vld [vmem:[%s82 + $0x390] sm:$0xff]
    %v6744 = vld [vmem:[%s82 + $0x398] sm:$0xff]
    %v6745 = vld [vmem:[%s82 + $0x3a0] sm:$0xff]
    %v6746 = vld [vmem:[%s82 + $0x3a8] sm:$0xff]
    %v6747 = vld [vmem:[%s82 + $0x3b0] sm:$0xff]
    %v6748 = vld [vmem:[%s82 + $0x3b8] sm:$0xff]
    %v6749 = vld [vmem:[%s82 + $0x3c0] sm:$0xff]
    %v6750 = vld [vmem:[%s82 + $0x3c8] sm:$0xff]
    %v6751 = vld [vmem:[%s82 + $0x3d0] sm:$0xff]
    %v6752 = vld [vmem:[%s82 + $0x3d8] sm:$0xff]
    %v6753 = vld [vmem:[%s82 + $0x3e0] sm:$0xff]
    %v6754 = vld [vmem:[%s82 + $0x3e8] sm:$0xff]
    %v6755 = vld [vmem:[%s82 + $0x3f0] sm:$0xff]
    %v6756 = vld [vmem:[%s82 + $0x3f8] sm:$0xff]
    %v6757 = vld [vmem:[%s82 + $0x400] sm:$0xff]
    %v6758 = vld [vmem:[%s82 + $0x408] sm:$0xff]
    %v6759 = vld [vmem:[%s82 + $0x410] sm:$0xff]
    %v6760 = vld [vmem:[%s82 + $0x418] sm:$0xff]
    %v6761 = vld [vmem:[%s82 + $0x420] sm:$0xff]
    %v6762 = vld [vmem:[%s82 + $0x428] sm:$0xff]
    %v6763 = vld [vmem:[%s82 + $0x430] sm:$0xff]
    %v6764 = vld [vmem:[%s82 + $0x438] sm:$0xff]
    %v6765 = vld [vmem:[%s82 + $0x440] sm:$0xff]
    %v6766 = vld [vmem:[%s82 + $0x448] sm:$0xff]
    %v6767 = vld [vmem:[%s82 + $0x450] sm:$0xff]
    %v6768 = vld [vmem:[%s82 + $0x458] sm:$0xff]
    %v6769 = vld [vmem:[%s82 + $0x460] sm:$0xff]
    %v6770 = vld [vmem:[%s82 + $0x468] sm:$0xff]
    %v6771 = vld [vmem:[%s82 + $0x470] sm:$0xff]
    %v6772 = vld [vmem:[%s82 + $0x478] sm:$0xff]
    %v6773 = vld [vmem:[%s82 + $0x480] sm:$0xff]
    %v6774 = vld [vmem:[%s82 + $0x488] sm:$0xff]
    %v6775 = vld [vmem:[%s82 + $0x490] sm:$0xff]
    %v6776 = vld [vmem:[%s82 + $0x498] sm:$0xff]
    %v6777 = vld [vmem:[%s82 + $0x4a0] sm:$0xff]
    %v6778 = vld [vmem:[%s82 + $0x4a8] sm:$0xff]
    %v6779 = vld [vmem:[%s82 + $0x4b0] sm:$0xff]
    %v6780 = vld [vmem:[%s82 + $0x4b8] sm:$0xff]
    %v6781 = vld [vmem:[%s82 + $0x4c0] sm:$0xff]
    %v6782 = vld [vmem:[%s82 + $0x4c8] sm:$0xff]
    %v6783 = vld [vmem:[%s82 + $0x4d0] sm:$0xff]
    %v6784 = vld [vmem:[%s82 + $0x4d8] sm:$0xff]
    %v6785 = vld [vmem:[%s82 + $0x4e0] sm:$0xff]
    %v6786 = vld [vmem:[%s82 + $0x4e8] sm:$0xff]
    %v6787 = vld [vmem:[%s82 + $0x4f0] sm:$0xff]
    %v6788 = vld [vmem:[%s82 + $0x4f8] sm:$0xff]
    %v6789 = vld [vmem:[%s82 + $0x500] sm:$0xff]
    %v6790 = vld [vmem:[%s82 + $0x508] sm:$0xff]
    %v6791 = vld [vmem:[%s82 + $0x510] sm:$0xff]
    %v6792 = vld [vmem:[%s82 + $0x518] sm:$0xff]
    %v6793 = vld [vmem:[%s82 + $0x520] sm:$0xff]
    %v6794 = vld [vmem:[%s82 + $0x528] sm:$0xff]
    %v6795 = vld [vmem:[%s82 + $0x530] sm:$0xff]
    %v6796 = vld [vmem:[%s82 + $0x538] sm:$0xff]
    %v6797 = vld [vmem:[%s82 + $0x540] sm:$0xff]
    %v6798 = vld [vmem:[%s82 + $0x548] sm:$0xff]
    %v6799 = vld [vmem:[%s82 + $0x550] sm:$0xff]
    %v6800 = vld [vmem:[%s82 + $0x558] sm:$0xff]
    %v6801 = vld [vmem:[%s82 + $0x560] sm:$0xff]
    %v6802 = vld [vmem:[%s82 + $0x568] sm:$0xff]
    %v6803 = vld [vmem:[%s82 + $0x570] sm:$0xff]
    %v6804 = vld [vmem:[%s82 + $0x578] sm:$0xff]
    %v6805 = vld [vmem:[%s82 + $0x580] sm:$0xff]
    %v6806 = vld [vmem:[%s82 + $0x588] sm:$0xff]
    %v6807 = vld [vmem:[%s82 + $0x590] sm:$0xff]
    %v6808 = vld [vmem:[%s82 + $0x598] sm:$0xff]
    %v6809 = vld [vmem:[%s82 + $0x5a0] sm:$0xff]
    %v6810 = vld [vmem:[%s82 + $0x5a8] sm:$0xff]
    %v6811 = vld [vmem:[%s82 + $0x5b0] sm:$0xff]
    %v6812 = vld [vmem:[%s82 + $0x5b8] sm:$0xff]
    %v6813 = vld [vmem:[%s82 + $0x5c0] sm:$0xff]
    %v6814 = vld [vmem:[%s82 + $0x5c8] sm:$0xff]
    %v6815 = vld [vmem:[%s82 + $0x5d0] sm:$0xff]
    %v6816 = vld [vmem:[%s82 + $0x5d8] sm:$0xff]
    %v6817 = vld [vmem:[%s82 + $0x5e0] sm:$0xff]
    %v6818 = vld [vmem:[%s82 + $0x5e8] sm:$0xff]
    %v6819 = vld [vmem:[%s82 + $0x5f0] sm:$0xff]
    %v6820 = vld [vmem:[%s82 + $0x5f8] sm:$0xff]
    %v6821 = vld [vmem:[%s82 + $0x600] sm:$0xff]
    %v6822 = vld [vmem:[%s82 + $0x608] sm:$0xff]
    %v6823 = vld [vmem:[%s82 + $0x610] sm:$0xff]
    %v6824 = vld [vmem:[%s82 + $0x618] sm:$0xff]
    %v6825 = vld [vmem:[%s82 + $0x620] sm:$0xff]
    %v6826 = vld [vmem:[%s82 + $0x628] sm:$0xff]
    %v6827 = vld [vmem:[%s82 + $0x630] sm:$0xff]
    %v6828 = vld [vmem:[%s82 + $0x638] sm:$0xff]
    %v6829 = vld [vmem:[%s82 + $0x640] sm:$0xff]
    %v6830 = vld [vmem:[%s82 + $0x648] sm:$0xff]
    %v6831 = vld [vmem:[%s82 + $0x650] sm:$0xff]
    %v6832 = vld [vmem:[%s82 + $0x658] sm:$0xff]
    %v6833 = vld [vmem:[%s82 + $0x660] sm:$0xff]
    %v6834 = vld [vmem:[%s82 + $0x668] sm:$0xff]
    %v6835 = vld [vmem:[%s82 + $0x670] sm:$0xff]
    %v6836 = vld [vmem:[%s82 + $0x678] sm:$0xff]
    %v6837 = vld [vmem:[%s82 + $0x680] sm:$0xff]
    %v6838 = vld [vmem:[%s82 + $0x688] sm:$0xff]
    %v6839 = vld [vmem:[%s82 + $0x690] sm:$0xff]
    %v6840 = vld [vmem:[%s82 + $0x698] sm:$0xff]
    %v6841 = vld [vmem:[%s82 + $0x6a0] sm:$0xff]
    %v6842 = vld [vmem:[%s82 + $0x6a8] sm:$0xff]
    %v6843 = vld [vmem:[%s82 + $0x6b0] sm:$0xff]
    %v6844 = vld [vmem:[%s82 + $0x6b8] sm:$0xff]
    %v6845 = vld [vmem:[%s82 + $0x6c0] sm:$0xff]
    %v6846 = vld [vmem:[%s82 + $0x6c8] sm:$0xff]
    %v6847 = vld [vmem:[%s82 + $0x6d0] sm:$0xff]
    %v6848 = vld [vmem:[%s82 + $0x6d8] sm:$0xff]
    %v6849 = vld [vmem:[%s82 + $0x6e0] sm:$0xff]
    %v6850 = vld [vmem:[%s82 + $0x6e8] sm:$0xff]
    %v6851 = vld [vmem:[%s82 + $0x6f0] sm:$0xff]
    %v6852 = vld [vmem:[%s82 + $0x6f8] sm:$0xff]
    %v6853 = vld [vmem:[%s82 + $0x700] sm:$0xff]
    %v6854 = vld [vmem:[%s82 + $0x708] sm:$0xff]
    %v6855 = vld [vmem:[%s82 + $0x710] sm:$0xff]
    %v6856 = vld [vmem:[%s82 + $0x718] sm:$0xff]
    %v6857 = vld [vmem:[%s82 + $0x720] sm:$0xff]
    %v6858 = vld [vmem:[%s82 + $0x728] sm:$0xff]
    %v6859 = vld [vmem:[%s82 + $0x730] sm:$0xff]
    %v6860 = vld [vmem:[%s82 + $0x738] sm:$0xff]
    %v6861 = vld [vmem:[%s82 + $0x740] sm:$0xff]
    %v6862 = vld [vmem:[%s82 + $0x748] sm:$0xff]
    %v6863 = vld [vmem:[%s82 + $0x750] sm:$0xff]
    %v6864 = vld [vmem:[%s82 + $0x758] sm:$0xff]
    %v6865 = vld [vmem:[%s82 + $0x760] sm:$0xff]
    %v6866 = vld [vmem:[%s82 + $0x768] sm:$0xff]
    %v6867 = vld [vmem:[%s82 + $0x770] sm:$0xff]
    %v6868 = vld [vmem:[%s82 + $0x778] sm:$0xff]
    %v6869 = vld [vmem:[%s82 + $0x780] sm:$0xff]
    %v6870 = vld [vmem:[%s82 + $0x788] sm:$0xff]
    %v6871 = vld [vmem:[%s82 + $0x790] sm:$0xff]
    %v6872 = vld [vmem:[%s82 + $0x798] sm:$0xff]
    %v6873 = vld [vmem:[%s82 + $0x7a0] sm:$0xff]
    %v6874 = vld [vmem:[%s82 + $0x7a8] sm:$0xff]
    %v6875 = vld [vmem:[%s82 + $0x7b0] sm:$0xff]
    %v6876 = vld [vmem:[%s82 + $0x7b8] sm:$0xff]
    %v6877 = vld [vmem:[%s82 + $0x7c0] sm:$0xff]
    %v6878 = vld [vmem:[%s82 + $0x7c8] sm:$0xff]
    %v6879 = vld [vmem:[%s82 + $0x7d0] sm:$0xff]
    %v6880 = vld [vmem:[%s82 + $0x7d8] sm:$0xff]
    %v6881 = vld [vmem:[%s82 + $0x7e0] sm:$0xff]
    %v6882 = vld [vmem:[%s82 + $0x7e8] sm:$0xff]
    %v6883 = vld [vmem:[%s82 + $0x7f0] sm:$0xff]
    %v6884 = vld [vmem:[%s82 + $0x7f8] sm:$0xff]
    %v6885 = vunpack.c.l.s8.bf16 %v6629
    %v6886 = vunpack.c.l.s8.bf16 %v6630
    %v6887 = vunpack.c.l.s8.bf16 %v6631
    %v6888 = vunpack.c.l.s8.bf16 %v6632
    %v6889 = vunpack.c.l.s8.bf16 %v6633
    %v6890 = vunpack.c.l.s8.bf16 %v6634
    %v6891 = vunpack.c.l.s8.bf16 %v6635
    %v6892 = vunpack.c.l.s8.bf16 %v6636
    %v6893 = vunpack.c.l.s8.bf16 %v6637
    %v6894 = vunpack.c.l.s8.bf16 %v6638
    %v6895 = vunpack.c.l.s8.bf16 %v6639
    %v6896 = vunpack.c.l.s8.bf16 %v6640
    %v6897 = vunpack.c.l.s8.bf16 %v6641
    %v6898 = vunpack.c.l.s8.bf16 %v6642
    %v6899 = vunpack.c.l.s8.bf16 %v6643
    %v6900 = vunpack.c.l.s8.bf16 %v6644
    %v6901 = vunpack.c.h.s8.bf16 %v6629
    %v6902 = vunpack.c.h.s8.bf16 %v6630
    %v6903 = vunpack.c.h.s8.bf16 %v6631
    %v6904 = vunpack.c.h.s8.bf16 %v6632
    %v6905 = vunpack.c.h.s8.bf16 %v6633
    %v6906 = vunpack.c.h.s8.bf16 %v6634
    %v6907 = vunpack.c.h.s8.bf16 %v6635
    %v6908 = vunpack.c.h.s8.bf16 %v6636
    %v6909 = vunpack.c.h.s8.bf16 %v6637
    %v6910 = vunpack.c.h.s8.bf16 %v6638
    %v6911 = vunpack.c.h.s8.bf16 %v6639
    %v6912 = vunpack.c.h.s8.bf16 %v6640
    %v6913 = vunpack.c.h.s8.bf16 %v6641
    %v6914 = vunpack.c.h.s8.bf16 %v6642
    %v6915 = vunpack.c.h.s8.bf16 %v6643
    %v6916 = vunpack.c.h.s8.bf16 %v6644
    %v6917 = vunpack.c.l.s8.bf16 %v6645
    %v6918 = vunpack.c.l.s8.bf16 %v6646
    %v6919 = vunpack.c.l.s8.bf16 %v6647
    %v6920 = vunpack.c.l.s8.bf16 %v6648
    %v6921 = vunpack.c.l.s8.bf16 %v6649
    %v6922 = vunpack.c.l.s8.bf16 %v6650
    %v6923 = vunpack.c.l.s8.bf16 %v6651
    %v6924 = vunpack.c.l.s8.bf16 %v6652
    %v6925 = vunpack.c.l.s8.bf16 %v6653
    %v6926 = vunpack.c.l.s8.bf16 %v6654
    %v6927 = vunpack.c.l.s8.bf16 %v6655
    %v6928 = vunpack.c.l.s8.bf16 %v6656
    %v6929 = vunpack.c.l.s8.bf16 %v6657
    %v6930 = vunpack.c.l.s8.bf16 %v6658
    %v6931 = vunpack.c.l.s8.bf16 %v6659
    %v6932 = vunpack.c.l.s8.bf16 %v6660
    %v6933 = vunpack.c.h.s8.bf16 %v6645
    %v6934 = vunpack.c.h.s8.bf16 %v6646
    %v6935 = vunpack.c.h.s8.bf16 %v6647
    %v6936 = vunpack.c.h.s8.bf16 %v6648
    %v6937 = vunpack.c.h.s8.bf16 %v6649
    %v6938 = vunpack.c.h.s8.bf16 %v6650
    %v6939 = vunpack.c.h.s8.bf16 %v6651
    %v6940 = vunpack.c.h.s8.bf16 %v6652
    %v6941 = vunpack.c.h.s8.bf16 %v6653
    %v6942 = vunpack.c.h.s8.bf16 %v6654
    %v6943 = vunpack.c.h.s8.bf16 %v6655
    %v6944 = vunpack.c.h.s8.bf16 %v6656
    %v6945 = vunpack.c.h.s8.bf16 %v6657
    %v6946 = vunpack.c.h.s8.bf16 %v6658
    %v6947 = vunpack.c.h.s8.bf16 %v6659
    %v6948 = vunpack.c.h.s8.bf16 %v6660
    %v6949 = vunpack.c.l.s8.bf16 %v6661
    %v6950 = vunpack.c.l.s8.bf16 %v6662
    %v6951 = vunpack.c.l.s8.bf16 %v6663
    %v6952 = vunpack.c.l.s8.bf16 %v6664
    %v6953 = vunpack.c.l.s8.bf16 %v6665
    %v6954 = vunpack.c.l.s8.bf16 %v6666
    %v6955 = vunpack.c.l.s8.bf16 %v6667
    %v6956 = vunpack.c.l.s8.bf16 %v6668
    %v6957 = vunpack.c.l.s8.bf16 %v6669
    %v6958 = vunpack.c.l.s8.bf16 %v6670
    %v6959 = vunpack.c.l.s8.bf16 %v6671
    %v6960 = vunpack.c.l.s8.bf16 %v6672
    %v6961 = vunpack.c.l.s8.bf16 %v6673
    %v6962 = vunpack.c.l.s8.bf16 %v6674
    %v6963 = vunpack.c.l.s8.bf16 %v6675
    %v6964 = vunpack.c.l.s8.bf16 %v6676
    %v6965 = vunpack.c.h.s8.bf16 %v6661
    %v6966 = vunpack.c.h.s8.bf16 %v6662
    %v6967 = vunpack.c.h.s8.bf16 %v6663
    %v6968 = vunpack.c.h.s8.bf16 %v6664
    %v6969 = vunpack.c.h.s8.bf16 %v6665
    %v6970 = vunpack.c.h.s8.bf16 %v6666
    %v6971 = vunpack.c.h.s8.bf16 %v6667
    %v6972 = vunpack.c.h.s8.bf16 %v6668
    %v6973 = vunpack.c.h.s8.bf16 %v6669
    %v6974 = vunpack.c.h.s8.bf16 %v6670
    %v6975 = vunpack.c.h.s8.bf16 %v6671
    %v6976 = vunpack.c.h.s8.bf16 %v6672
    %v6977 = vunpack.c.h.s8.bf16 %v6673
    %v6978 = vunpack.c.h.s8.bf16 %v6674
    %v6979 = vunpack.c.h.s8.bf16 %v6675
    %v6980 = vunpack.c.h.s8.bf16 %v6676
    %v6981 = vunpack.c.l.s8.bf16 %v6677
    %v6982 = vunpack.c.l.s8.bf16 %v6678
    %v6983 = vunpack.c.l.s8.bf16 %v6679
    %v6984 = vunpack.c.l.s8.bf16 %v6680
    %v6985 = vunpack.c.l.s8.bf16 %v6681
    %v6986 = vunpack.c.l.s8.bf16 %v6682
    %v6987 = vunpack.c.l.s8.bf16 %v6683
    %v6988 = vunpack.c.l.s8.bf16 %v6684
    %v6989 = vunpack.c.l.s8.bf16 %v6685
    %v6990 = vunpack.c.l.s8.bf16 %v6686
    %v6991 = vunpack.c.l.s8.bf16 %v6687
    %v6992 = vunpack.c.l.s8.bf16 %v6688
    %v6993 = vunpack.c.l.s8.bf16 %v6689
    %v6994 = vunpack.c.l.s8.bf16 %v6690
    %v6995 = vunpack.c.l.s8.bf16 %v6691
    %v6996 = vunpack.c.l.s8.bf16 %v6692
    %v6997 = vunpack.c.h.s8.bf16 %v6677
    %v6998 = vunpack.c.h.s8.bf16 %v6678
    %v6999 = vunpack.c.h.s8.bf16 %v6679
    %v7000 = vunpack.c.h.s8.bf16 %v6680
    %v7001 = vunpack.c.h.s8.bf16 %v6681
    %v7002 = vunpack.c.h.s8.bf16 %v6682
    %v7003 = vunpack.c.h.s8.bf16 %v6683
    %v7004 = vunpack.c.h.s8.bf16 %v6684
    %v7005 = vunpack.c.h.s8.bf16 %v6685
    %v7006 = vunpack.c.h.s8.bf16 %v6686
    %v7007 = vunpack.c.h.s8.bf16 %v6687
    %v7008 = vunpack.c.h.s8.bf16 %v6688
    %v7009 = vunpack.c.h.s8.bf16 %v6689
    %v7010 = vunpack.c.h.s8.bf16 %v6690
    %v7011 = vunpack.c.h.s8.bf16 %v6691
    %v7012 = vunpack.c.h.s8.bf16 %v6692
    %v7013 = vunpack.c.l.s8.bf16 %v6693
    %v7014 = vunpack.c.l.s8.bf16 %v6694
    %v7015 = vunpack.c.l.s8.bf16 %v6695
    %v7016 = vunpack.c.l.s8.bf16 %v6696
    %v7017 = vunpack.c.l.s8.bf16 %v6697
    %v7018 = vunpack.c.l.s8.bf16 %v6698
    %v7019 = vunpack.c.l.s8.bf16 %v6699
    %v7020 = vunpack.c.l.s8.bf16 %v6700
    %v7021 = vunpack.c.l.s8.bf16 %v6701
    %v7022 = vunpack.c.l.s8.bf16 %v6702
    %v7023 = vunpack.c.l.s8.bf16 %v6703
    %v7024 = vunpack.c.l.s8.bf16 %v6704
    %v7025 = vunpack.c.l.s8.bf16 %v6705
    %v7026 = vunpack.c.l.s8.bf16 %v6706
    %v7027 = vunpack.c.l.s8.bf16 %v6707
    %v7028 = vunpack.c.l.s8.bf16 %v6708
    %v7029 = vunpack.c.h.s8.bf16 %v6693
    %v7030 = vunpack.c.h.s8.bf16 %v6694
    %v7031 = vunpack.c.h.s8.bf16 %v6695
    %v7032 = vunpack.c.h.s8.bf16 %v6696
    %v7033 = vunpack.c.h.s8.bf16 %v6697
    %v7034 = vunpack.c.h.s8.bf16 %v6698
    %v7035 = vunpack.c.h.s8.bf16 %v6699
    %v7036 = vunpack.c.h.s8.bf16 %v6700
    %v7037 = vunpack.c.h.s8.bf16 %v6701
    %v7038 = vunpack.c.h.s8.bf16 %v6702
    %v7039 = vunpack.c.h.s8.bf16 %v6703
    %v7040 = vunpack.c.h.s8.bf16 %v6704
    %v7041 = vunpack.c.h.s8.bf16 %v6705
    %v7042 = vunpack.c.h.s8.bf16 %v6706
    %v7043 = vunpack.c.h.s8.bf16 %v6707
    %v7044 = vunpack.c.h.s8.bf16 %v6708
    %v7045 = vunpack.c.l.s8.bf16 %v6709
    %v7046 = vunpack.c.l.s8.bf16 %v6710
    %v7047 = vunpack.c.l.s8.bf16 %v6711
    %v7048 = vunpack.c.l.s8.bf16 %v6712
    %v7049 = vunpack.c.l.s8.bf16 %v6713
    %v7050 = vunpack.c.l.s8.bf16 %v6714
    %v7051 = vunpack.c.l.s8.bf16 %v6715
    %v7052 = vunpack.c.l.s8.bf16 %v6716
    %v7053 = vunpack.c.l.s8.bf16 %v6717
    %v7054 = vunpack.c.l.s8.bf16 %v6718
    %v7055 = vunpack.c.l.s8.bf16 %v6719
    %v7056 = vunpack.c.l.s8.bf16 %v6720
    %v7057 = vunpack.c.l.s8.bf16 %v6721
    %v7058 = vunpack.c.l.s8.bf16 %v6722
    %v7059 = vunpack.c.l.s8.bf16 %v6723
    %v7060 = vunpack.c.l.s8.bf16 %v6724
    %v7061 = vunpack.c.h.s8.bf16 %v6709
    %v7062 = vunpack.c.h.s8.bf16 %v6710
    %v7063 = vunpack.c.h.s8.bf16 %v6711
    %v7064 = vunpack.c.h.s8.bf16 %v6712
    %v7065 = vunpack.c.h.s8.bf16 %v6713
    %v7066 = vunpack.c.h.s8.bf16 %v6714
    %v7067 = vunpack.c.h.s8.bf16 %v6715
    %v7068 = vunpack.c.h.s8.bf16 %v6716
    %v7069 = vunpack.c.h.s8.bf16 %v6717
    %v7070 = vunpack.c.h.s8.bf16 %v6718
    %v7071 = vunpack.c.h.s8.bf16 %v6719
    %v7072 = vunpack.c.h.s8.bf16 %v6720
    %v7073 = vunpack.c.h.s8.bf16 %v6721
    %v7074 = vunpack.c.h.s8.bf16 %v6722
    %v7075 = vunpack.c.h.s8.bf16 %v6723
    %v7076 = vunpack.c.h.s8.bf16 %v6724
    %v7077 = vunpack.c.l.s8.bf16 %v6725
    %v7078 = vunpack.c.l.s8.bf16 %v6726
    %v7079 = vunpack.c.l.s8.bf16 %v6727
    %v7080 = vunpack.c.l.s8.bf16 %v6728
    %v7081 = vunpack.c.l.s8.bf16 %v6729
    %v7082 = vunpack.c.l.s8.bf16 %v6730
    %v7083 = vunpack.c.l.s8.bf16 %v6731
    %v7084 = vunpack.c.l.s8.bf16 %v6732
    %v7085 = vunpack.c.l.s8.bf16 %v6733
    %v7086 = vunpack.c.l.s8.bf16 %v6734
    %v7087 = vunpack.c.l.s8.bf16 %v6735
    %v7088 = vunpack.c.l.s8.bf16 %v6736
    %v7089 = vunpack.c.l.s8.bf16 %v6737
    %v7090 = vunpack.c.l.s8.bf16 %v6738
    %v7091 = vunpack.c.l.s8.bf16 %v6739
    %v7092 = vunpack.c.l.s8.bf16 %v6740
    %v7093 = vunpack.c.h.s8.bf16 %v6725
    %v7094 = vunpack.c.h.s8.bf16 %v6726
    %v7095 = vunpack.c.h.s8.bf16 %v6727
    %v7096 = vunpack.c.h.s8.bf16 %v6728
    %v7097 = vunpack.c.h.s8.bf16 %v6729
    %v7098 = vunpack.c.h.s8.bf16 %v6730
    %v7099 = vunpack.c.h.s8.bf16 %v6731
    %v7100 = vunpack.c.h.s8.bf16 %v6732
    %v7101 = vunpack.c.h.s8.bf16 %v6733
    %v7102 = vunpack.c.h.s8.bf16 %v6734
    %v7103 = vunpack.c.h.s8.bf16 %v6735
    %v7104 = vunpack.c.h.s8.bf16 %v6736
    %v7105 = vunpack.c.h.s8.bf16 %v6737
    %v7106 = vunpack.c.h.s8.bf16 %v6738
    %v7107 = vunpack.c.h.s8.bf16 %v6739
    %v7108 = vunpack.c.h.s8.bf16 %v6740
    %v7109 = vunpack.c.l.s8.bf16 %v6741
    %v7110 = vunpack.c.l.s8.bf16 %v6742
    %v7111 = vunpack.c.l.s8.bf16 %v6743
    %v7112 = vunpack.c.l.s8.bf16 %v6744
    %v7113 = vunpack.c.l.s8.bf16 %v6745
    %v7114 = vunpack.c.l.s8.bf16 %v6746
    %v7115 = vunpack.c.l.s8.bf16 %v6747
    %v7116 = vunpack.c.l.s8.bf16 %v6748
    %v7117 = vunpack.c.l.s8.bf16 %v6749
    %v7118 = vunpack.c.l.s8.bf16 %v6750
    %v7119 = vunpack.c.l.s8.bf16 %v6751
    %v7120 = vunpack.c.l.s8.bf16 %v6752
    %v7121 = vunpack.c.l.s8.bf16 %v6753
    %v7122 = vunpack.c.l.s8.bf16 %v6754
    %v7123 = vunpack.c.l.s8.bf16 %v6755
    %v7124 = vunpack.c.l.s8.bf16 %v6756
    %v7125 = vunpack.c.h.s8.bf16 %v6741
    %v7126 = vunpack.c.h.s8.bf16 %v6742
    %v7127 = vunpack.c.h.s8.bf16 %v6743
    %v7128 = vunpack.c.h.s8.bf16 %v6744
    %v7129 = vunpack.c.h.s8.bf16 %v6745
    %v7130 = vunpack.c.h.s8.bf16 %v6746
    %v7131 = vunpack.c.h.s8.bf16 %v6747
    %v7132 = vunpack.c.h.s8.bf16 %v6748
    %v7133 = vunpack.c.h.s8.bf16 %v6749
    %v7134 = vunpack.c.h.s8.bf16 %v6750
    %v7135 = vunpack.c.h.s8.bf16 %v6751
    %v7136 = vunpack.c.h.s8.bf16 %v6752
    %v7137 = vunpack.c.h.s8.bf16 %v6753
    %v7138 = vunpack.c.h.s8.bf16 %v6754
    %v7139 = vunpack.c.h.s8.bf16 %v6755
    %v7140 = vunpack.c.h.s8.bf16 %v6756
    %v7141 = vunpack.c.l.s8.bf16 %v6757
    %v7142 = vunpack.c.l.s8.bf16 %v6758
    %v7143 = vunpack.c.l.s8.bf16 %v6759
    %v7144 = vunpack.c.l.s8.bf16 %v6760
    %v7145 = vunpack.c.l.s8.bf16 %v6761
    %v7146 = vunpack.c.l.s8.bf16 %v6762
    %v7147 = vunpack.c.l.s8.bf16 %v6763
    %v7148 = vunpack.c.l.s8.bf16 %v6764
    %v7149 = vunpack.c.l.s8.bf16 %v6765
    %v7150 = vunpack.c.l.s8.bf16 %v6766
    %v7151 = vunpack.c.l.s8.bf16 %v6767
    %v7152 = vunpack.c.l.s8.bf16 %v6768
    %v7153 = vunpack.c.l.s8.bf16 %v6769
    %v7154 = vunpack.c.l.s8.bf16 %v6770
    %v7155 = vunpack.c.l.s8.bf16 %v6771
    %v7156 = vunpack.c.l.s8.bf16 %v6772
    %v7157 = vunpack.c.h.s8.bf16 %v6757
    %v7158 = vunpack.c.h.s8.bf16 %v6758
    %v7159 = vunpack.c.h.s8.bf16 %v6759
    %v7160 = vunpack.c.h.s8.bf16 %v6760
    %v7161 = vunpack.c.h.s8.bf16 %v6761
    %v7162 = vunpack.c.h.s8.bf16 %v6762
    %v7163 = vunpack.c.h.s8.bf16 %v6763
    %v7164 = vunpack.c.h.s8.bf16 %v6764
    %v7165 = vunpack.c.h.s8.bf16 %v6765
    %v7166 = vunpack.c.h.s8.bf16 %v6766
    %v7167 = vunpack.c.h.s8.bf16 %v6767
    %v7168 = vunpack.c.h.s8.bf16 %v6768
    %v7169 = vunpack.c.h.s8.bf16 %v6769
    %v7170 = vunpack.c.h.s8.bf16 %v6770
    %v7171 = vunpack.c.h.s8.bf16 %v6771
    %v7172 = vunpack.c.h.s8.bf16 %v6772
    %v7173 = vunpack.c.l.s8.bf16 %v6773
    %v7174 = vunpack.c.l.s8.bf16 %v6774
    %v7175 = vunpack.c.l.s8.bf16 %v6775
    %v7176 = vunpack.c.l.s8.bf16 %v6776
    %v7177 = vunpack.c.l.s8.bf16 %v6777
    %v7178 = vunpack.c.l.s8.bf16 %v6778
    %v7179 = vunpack.c.l.s8.bf16 %v6779
    %v7180 = vunpack.c.l.s8.bf16 %v6780
    %v7181 = vunpack.c.l.s8.bf16 %v6781
    %v7182 = vunpack.c.l.s8.bf16 %v6782
    %v7183 = vunpack.c.l.s8.bf16 %v6783
    %v7184 = vunpack.c.l.s8.bf16 %v6784
    %v7185 = vunpack.c.l.s8.bf16 %v6785
    %v7186 = vunpack.c.l.s8.bf16 %v6786
    %v7187 = vunpack.c.l.s8.bf16 %v6787
    %v7188 = vunpack.c.l.s8.bf16 %v6788
    %v7189 = vunpack.c.h.s8.bf16 %v6773
    %v7190 = vunpack.c.h.s8.bf16 %v6774
    %v7191 = vunpack.c.h.s8.bf16 %v6775
    %v7192 = vunpack.c.h.s8.bf16 %v6776
    %v7193 = vunpack.c.h.s8.bf16 %v6777
    %v7194 = vunpack.c.h.s8.bf16 %v6778
    %v7195 = vunpack.c.h.s8.bf16 %v6779
    %v7196 = vunpack.c.h.s8.bf16 %v6780
    %v7197 = vunpack.c.h.s8.bf16 %v6781
    %v7198 = vunpack.c.h.s8.bf16 %v6782
    %v7199 = vunpack.c.h.s8.bf16 %v6783
    %v7200 = vunpack.c.h.s8.bf16 %v6784
    %v7201 = vunpack.c.h.s8.bf16 %v6785
    %v7202 = vunpack.c.h.s8.bf16 %v6786
    %v7203 = vunpack.c.h.s8.bf16 %v6787
    %v7204 = vunpack.c.h.s8.bf16 %v6788
    %v7205 = vunpack.c.l.s8.bf16 %v6789
    %v7206 = vunpack.c.l.s8.bf16 %v6790
    %v7207 = vunpack.c.l.s8.bf16 %v6791
    %v7208 = vunpack.c.l.s8.bf16 %v6792
    %v7209 = vunpack.c.l.s8.bf16 %v6793
    %v7210 = vunpack.c.l.s8.bf16 %v6794
    %v7211 = vunpack.c.l.s8.bf16 %v6795
    %v7212 = vunpack.c.l.s8.bf16 %v6796
    %v7213 = vunpack.c.l.s8.bf16 %v6797
    %v7214 = vunpack.c.l.s8.bf16 %v6798
    %v7215 = vunpack.c.l.s8.bf16 %v6799
    %v7216 = vunpack.c.l.s8.bf16 %v6800
    %v7217 = vunpack.c.l.s8.bf16 %v6801
    %v7218 = vunpack.c.l.s8.bf16 %v6802
    %v7219 = vunpack.c.l.s8.bf16 %v6803
    %v7220 = vunpack.c.l.s8.bf16 %v6804
    %v7221 = vunpack.c.h.s8.bf16 %v6789
    %v7222 = vunpack.c.h.s8.bf16 %v6790
    %v7223 = vunpack.c.h.s8.bf16 %v6791
    %v7224 = vunpack.c.h.s8.bf16 %v6792
    %v7225 = vunpack.c.h.s8.bf16 %v6793
    %v7226 = vunpack.c.h.s8.bf16 %v6794
    %v7227 = vunpack.c.h.s8.bf16 %v6795
    %v7228 = vunpack.c.h.s8.bf16 %v6796
    %v7229 = vunpack.c.h.s8.bf16 %v6797
    %v7230 = vunpack.c.h.s8.bf16 %v6798
    %v7231 = vunpack.c.h.s8.bf16 %v6799
    %v7232 = vunpack.c.h.s8.bf16 %v6800
    %v7233 = vunpack.c.h.s8.bf16 %v6801
    %v7234 = vunpack.c.h.s8.bf16 %v6802
    %v7235 = vunpack.c.h.s8.bf16 %v6803
    %v7236 = vunpack.c.h.s8.bf16 %v6804
    %v7237 = vunpack.c.l.s8.bf16 %v6805
    %v7238 = vunpack.c.l.s8.bf16 %v6806
    %v7239 = vunpack.c.l.s8.bf16 %v6807
    %v7240 = vunpack.c.l.s8.bf16 %v6808
    %v7241 = vunpack.c.l.s8.bf16 %v6809
    %v7242 = vunpack.c.l.s8.bf16 %v6810
    %v7243 = vunpack.c.l.s8.bf16 %v6811
    %v7244 = vunpack.c.l.s8.bf16 %v6812
    %v7245 = vunpack.c.l.s8.bf16 %v6813
    %v7246 = vunpack.c.l.s8.bf16 %v6814
    %v7247 = vunpack.c.l.s8.bf16 %v6815
    %v7248 = vunpack.c.l.s8.bf16 %v6816
    %v7249 = vunpack.c.l.s8.bf16 %v6817
    %v7250 = vunpack.c.l.s8.bf16 %v6818
    %v7251 = vunpack.c.l.s8.bf16 %v6819
    %v7252 = vunpack.c.l.s8.bf16 %v6820
    %v7253 = vunpack.c.h.s8.bf16 %v6805
    %v7254 = vunpack.c.h.s8.bf16 %v6806
    %v7255 = vunpack.c.h.s8.bf16 %v6807
    %v7256 = vunpack.c.h.s8.bf16 %v6808
    %v7257 = vunpack.c.h.s8.bf16 %v6809
    %v7258 = vunpack.c.h.s8.bf16 %v6810
    %v7259 = vunpack.c.h.s8.bf16 %v6811
    %v7260 = vunpack.c.h.s8.bf16 %v6812
    %v7261 = vunpack.c.h.s8.bf16 %v6813
    %v7262 = vunpack.c.h.s8.bf16 %v6814
    %v7263 = vunpack.c.h.s8.bf16 %v6815
    %v7264 = vunpack.c.h.s8.bf16 %v6816
    %v7265 = vunpack.c.h.s8.bf16 %v6817
    %v7266 = vunpack.c.h.s8.bf16 %v6818
    %v7267 = vunpack.c.h.s8.bf16 %v6819
    %v7268 = vunpack.c.h.s8.bf16 %v6820
    %v7269 = vunpack.c.l.s8.bf16 %v6821
    %v7270 = vunpack.c.l.s8.bf16 %v6822
    %v7271 = vunpack.c.l.s8.bf16 %v6823
    %v7272 = vunpack.c.l.s8.bf16 %v6824
    %v7273 = vunpack.c.l.s8.bf16 %v6825
    %v7274 = vunpack.c.l.s8.bf16 %v6826
    %v7275 = vunpack.c.l.s8.bf16 %v6827
    %v7276 = vunpack.c.l.s8.bf16 %v6828
    %v7277 = vunpack.c.l.s8.bf16 %v6829
    %v7278 = vunpack.c.l.s8.bf16 %v6830
    %v7279 = vunpack.c.l.s8.bf16 %v6831
    %v7280 = vunpack.c.l.s8.bf16 %v6832
    %v7281 = vunpack.c.l.s8.bf16 %v6833
    %v7282 = vunpack.c.l.s8.bf16 %v6834
    %v7283 = vunpack.c.l.s8.bf16 %v6835
    %v7284 = vunpack.c.l.s8.bf16 %v6836
    %v7285 = vunpack.c.h.s8.bf16 %v6821
    %v7286 = vunpack.c.h.s8.bf16 %v6822
    %v7287 = vunpack.c.h.s8.bf16 %v6823
    %v7288 = vunpack.c.h.s8.bf16 %v6824
    %v7289 = vunpack.c.h.s8.bf16 %v6825
    %v7290 = vunpack.c.h.s8.bf16 %v6826
    %v7291 = vunpack.c.h.s8.bf16 %v6827
    %v7292 = vunpack.c.h.s8.bf16 %v6828
    %v7293 = vunpack.c.h.s8.bf16 %v6829
    %v7294 = vunpack.c.h.s8.bf16 %v6830
    %v7295 = vunpack.c.h.s8.bf16 %v6831
    %v7296 = vunpack.c.h.s8.bf16 %v6832
    %v7297 = vunpack.c.h.s8.bf16 %v6833
    %v7298 = vunpack.c.h.s8.bf16 %v6834
    %v7299 = vunpack.c.h.s8.bf16 %v6835
    %v7300 = vunpack.c.h.s8.bf16 %v6836
    %v7301 = vunpack.c.l.s8.bf16 %v6837
    %v7302 = vunpack.c.l.s8.bf16 %v6838
    %v7303 = vunpack.c.l.s8.bf16 %v6839
    %v7304 = vunpack.c.l.s8.bf16 %v6840
    %v7305 = vunpack.c.l.s8.bf16 %v6841
    %v7306 = vunpack.c.l.s8.bf16 %v6842
    %v7307 = vunpack.c.l.s8.bf16 %v6843
    %v7308 = vunpack.c.l.s8.bf16 %v6844
    %v7309 = vunpack.c.l.s8.bf16 %v6845
    %v7310 = vunpack.c.l.s8.bf16 %v6846
    %v7311 = vunpack.c.l.s8.bf16 %v6847
    %v7312 = vunpack.c.l.s8.bf16 %v6848
    %v7313 = vunpack.c.l.s8.bf16 %v6849
    %v7314 = vunpack.c.l.s8.bf16 %v6850
    %v7315 = vunpack.c.l.s8.bf16 %v6851
    %v7316 = vunpack.c.l.s8.bf16 %v6852
    %v7317 = vunpack.c.h.s8.bf16 %v6837
    %v7318 = vunpack.c.h.s8.bf16 %v6838
    %v7319 = vunpack.c.h.s8.bf16 %v6839
    %v7320 = vunpack.c.h.s8.bf16 %v6840
    %v7321 = vunpack.c.h.s8.bf16 %v6841
    %v7322 = vunpack.c.h.s8.bf16 %v6842
    %v7323 = vunpack.c.h.s8.bf16 %v6843
    %v7324 = vunpack.c.h.s8.bf16 %v6844
    %v7325 = vunpack.c.h.s8.bf16 %v6845
    %v7326 = vunpack.c.h.s8.bf16 %v6846
    %v7327 = vunpack.c.h.s8.bf16 %v6847
    %v7328 = vunpack.c.h.s8.bf16 %v6848
    %v7329 = vunpack.c.h.s8.bf16 %v6849
    %v7330 = vunpack.c.h.s8.bf16 %v6850
    %v7331 = vunpack.c.h.s8.bf16 %v6851
    %v7332 = vunpack.c.h.s8.bf16 %v6852
    %v7333 = vunpack.c.l.s8.bf16 %v6853
    %v7334 = vunpack.c.l.s8.bf16 %v6854
    %v7335 = vunpack.c.l.s8.bf16 %v6855
    %v7336 = vunpack.c.l.s8.bf16 %v6856
    %v7337 = vunpack.c.l.s8.bf16 %v6857
    %v7338 = vunpack.c.l.s8.bf16 %v6858
    %v7339 = vunpack.c.l.s8.bf16 %v6859
    %v7340 = vunpack.c.l.s8.bf16 %v6860
    %v7341 = vunpack.c.l.s8.bf16 %v6861
    %v7342 = vunpack.c.l.s8.bf16 %v6862
    %v7343 = vunpack.c.l.s8.bf16 %v6863
    %v7344 = vunpack.c.l.s8.bf16 %v6864
    %v7345 = vunpack.c.l.s8.bf16 %v6865
    %v7346 = vunpack.c.l.s8.bf16 %v6866
    %v7347 = vunpack.c.l.s8.bf16 %v6867
    %v7348 = vunpack.c.l.s8.bf16 %v6868
    %v7349 = vunpack.c.h.s8.bf16 %v6853
    %v7350 = vunpack.c.h.s8.bf16 %v6854
    %v7351 = vunpack.c.h.s8.bf16 %v6855
    %v7352 = vunpack.c.h.s8.bf16 %v6856
    %v7353 = vunpack.c.h.s8.bf16 %v6857
    %v7354 = vunpack.c.h.s8.bf16 %v6858
    %v7355 = vunpack.c.h.s8.bf16 %v6859
    %v7356 = vunpack.c.h.s8.bf16 %v6860
    %v7357 = vunpack.c.h.s8.bf16 %v6861
    %v7358 = vunpack.c.h.s8.bf16 %v6862
    %v7359 = vunpack.c.h.s8.bf16 %v6863
    %v7360 = vunpack.c.h.s8.bf16 %v6864
    %v7361 = vunpack.c.h.s8.bf16 %v6865
    %v7362 = vunpack.c.h.s8.bf16 %v6866
    %v7363 = vunpack.c.h.s8.bf16 %v6867
    %v7364 = vunpack.c.h.s8.bf16 %v6868
    %v7365 = vunpack.c.l.s8.bf16 %v6869
    %v7366 = vunpack.c.l.s8.bf16 %v6870
    %v7367 = vunpack.c.l.s8.bf16 %v6871
    %v7368 = vunpack.c.l.s8.bf16 %v6872
    %v7369 = vunpack.c.l.s8.bf16 %v6873
    %v7370 = vunpack.c.l.s8.bf16 %v6874
    %v7371 = vunpack.c.l.s8.bf16 %v6875
    %v7372 = vunpack.c.l.s8.bf16 %v6876
    %v7373 = vunpack.c.l.s8.bf16 %v6877
    %v7374 = vunpack.c.l.s8.bf16 %v6878
    %v7375 = vunpack.c.l.s8.bf16 %v6879
    %v7376 = vunpack.c.l.s8.bf16 %v6880
    %v7377 = vunpack.c.l.s8.bf16 %v6881
    %v7378 = vunpack.c.l.s8.bf16 %v6882
    %v7379 = vunpack.c.l.s8.bf16 %v6883
    %v7380 = vunpack.c.l.s8.bf16 %v6884
    %v7381 = vunpack.c.h.s8.bf16 %v6869
    %v7382 = vunpack.c.h.s8.bf16 %v6870
    %v7383 = vunpack.c.h.s8.bf16 %v6871
    %v7384 = vunpack.c.h.s8.bf16 %v6872
    %v7385 = vunpack.c.h.s8.bf16 %v6873
    %v7386 = vunpack.c.h.s8.bf16 %v6874
    %v7387 = vunpack.c.h.s8.bf16 %v6875
    %v7388 = vunpack.c.h.s8.bf16 %v6876
    %v7389 = vunpack.c.h.s8.bf16 %v6877
    %v7390 = vunpack.c.h.s8.bf16 %v6878
    %v7391 = vunpack.c.h.s8.bf16 %v6879
    %v7392 = vunpack.c.h.s8.bf16 %v6880
    %v7393 = vunpack.c.h.s8.bf16 %v6881
    %v7394 = vunpack.c.h.s8.bf16 %v6882
    %v7395 = vunpack.c.h.s8.bf16 %v6883
    %v7396 = vunpack.c.h.s8.bf16 %v6884
    %7397 = vmatprep.subr.bf16.mxu0 %v6998
    %7398 = vmatpush1.bf16.msra.mxu0 %v6997
    %7399 = vmatprep.subr.bf16.mxu0 %v6982
    %7400 = vmatpush1.bf16.msra.mxu0 %v6981
    %7401 = vmatprep.subr.bf16.mxu0 %v6966
    %7402 = vmatpush1.bf16.msra.mxu0 %v6965
    %7403 = vmatprep.subr.bf16.mxu0 %v6950
    %7404 = vmatpush1.bf16.msra.mxu0 %v6949
    %7405 = vmatprep.subr.bf16.mxu0 %v6934
    %7406 = vmatpush1.bf16.msra.mxu0 %v6933
    %7407 = vmatprep.subr.bf16.mxu0 %v6918
    %7408 = vmatpush1.bf16.msra.mxu0 %v6917
    %7409 = vmatprep.subr.bf16.mxu0 %v6902
    %7410 = vmatpush1.bf16.msra.mxu0 %v6901
    %7411 = vmatprep.subr.bf16.mxu0 %v6886
    %7412 = vmatpush1.bf16.msra.mxu0 %v6885
    %7413 = vmatprep.subr.bf16.mxu0 %v7126
    %7414 = vmatpush2.bf16.msra.mxu0 %v7125
    %7415 = vmatprep.subr.bf16.mxu0 %v7110
    %7416 = vmatpush2.bf16.msra.mxu0 %v7109
    %7417 = vmatprep.subr.bf16.mxu0 %v7094
    %7418 = vmatpush2.bf16.msra.mxu0 %v7093
    %7419 = vmatprep.subr.bf16.mxu0 %v7078
    %7420 = vmatpush2.bf16.msra.mxu0 %v7077
    %7421 = vmatprep.subr.bf16.mxu0 %v7062
    %7422 = vmatpush2.bf16.msra.mxu0 %v7061
    %7423 = vmatprep.subr.bf16.mxu0 %v7046
    %7424 = vmatpush2.bf16.msra.mxu0 %v7045
    %7425 = vmatprep.subr.bf16.mxu0 %v7030
    %7426 = vmatpush2.bf16.msra.mxu0 %v7029
    %7427 = vmatprep.subr.bf16.mxu0 %v7014
    %7428 = vmatpush2.bf16.msra.mxu0 %v7013
    %7429 = vmatprep.mubr.bf16.mxu0 %v2293
    %7430 = vmatmul.mubr.bf16.gmra.mxu0 %v2292
    %v7431 = vpop.f32.mrf.mxu0
    %v7432 = vadd.f32 0.0, %v7431
    %v7433 = vpop.f32.mrf.mxu0
    %v7434 = vadd.f32 0.0, %v7433
    %v7435 = vpop.f32.mrf.mxu0
    %v7436 = vpop.f32.mrf.mxu0
    %7437 = vdwg.mxu0
    %7438 = vmatprep.subr.bf16.mxu0 %v7254
    %7439 = vmatpush1.bf16.msra.mxu0 %v7253
    %7440 = vmatprep.subr.bf16.mxu0 %v7238
    %7441 = vmatpush1.bf16.msra.mxu0 %v7237
    %7442 = vmatprep.subr.bf16.mxu0 %v7222
    %7443 = vmatpush1.bf16.msra.mxu0 %v7221
    %7444 = vmatprep.subr.bf16.mxu0 %v7206
    %7445 = vmatpush1.bf16.msra.mxu0 %v7205
    %7446 = vmatprep.subr.bf16.mxu0 %v7190
    %7447 = vmatpush1.bf16.msra.mxu0 %v7189
    %7448 = vmatprep.subr.bf16.mxu0 %v7174
    %7449 = vmatpush1.bf16.msra.mxu0 %v7173
    %7450 = vmatprep.subr.bf16.mxu0 %v7158
    %7451 = vmatpush1.bf16.msra.mxu0 %v7157
    %7452 = vmatprep.subr.bf16.mxu0 %v7142
    %7453 = vmatpush1.bf16.msra.mxu0 %v7141
    %7454 = vmatprep.subr.bf16.mxu0 %v7382
    %7455 = vmatpush2.bf16.msra.mxu0 %v7381
    %7456 = vmatprep.subr.bf16.mxu0 %v7366
    %7457 = vmatpush2.bf16.msra.mxu0 %v7365
    %7458 = vmatprep.subr.bf16.mxu0 %v7350
    %7459 = vmatpush2.bf16.msra.mxu0 %v7349
    %7460 = vmatprep.subr.bf16.mxu0 %v7334
    %7461 = vmatpush2.bf16.msra.mxu0 %v7333
    %7462 = vmatprep.subr.bf16.mxu0 %v7318
    %7463 = vmatpush2.bf16.msra.mxu0 %v7317
    %7464 = vmatprep.subr.bf16.mxu0 %v7302
    %7465 = vmatpush2.bf16.msra.mxu0 %v7301
    %7466 = vmatprep.subr.bf16.mxu0 %v7286
    %7467 = vmatpush2.bf16.msra.mxu0 %v7285
    %7468 = vmatprep.subr.bf16.mxu0 %v7270
    %7469 = vmatpush2.bf16.msra.mxu0 %v7269
    %7470 = vmatprep.mubr.bf16.mxu0 %v2295
    %7471 = vmatmul.mubr.bf16.gmra.mxu0 %v2294
    %v7472 = vpop.f32.mrf.mxu0
    %v7473 = vadd.f32 %v7432, %v7472
    %v7474 = vpop.f32.mrf.mxu0
    %v7475 = vadd.f32 %v7434, %v7474
    %v7476 = vpop.f32.mrf.mxu0
    %v7477 = vpop.f32.mrf.mxu0
    %7478 = vdwg.mxu0
    %7479 = vmatprep.subr.bf16.mxu0 %v7000
    %7480 = vmatpush1.bf16.msra.mxu0 %v6999
    %7481 = vmatprep.subr.bf16.mxu0 %v6984
    %7482 = vmatpush1.bf16.msra.mxu0 %v6983
    %7483 = vmatprep.subr.bf16.mxu0 %v6968
    %7484 = vmatpush1.bf16.msra.mxu0 %v6967
    %7485 = vmatprep.subr.bf16.mxu0 %v6952
    %7486 = vmatpush1.bf16.msra.mxu0 %v6951
    %7487 = vmatprep.subr.bf16.mxu0 %v6936
    %7488 = vmatpush1.bf16.msra.mxu0 %v6935
    %7489 = vmatprep.subr.bf16.mxu0 %v6920
    %7490 = vmatpush1.bf16.msra.mxu0 %v6919
    %7491 = vmatprep.subr.bf16.mxu0 %v6904
    %7492 = vmatpush1.bf16.msra.mxu0 %v6903
    %7493 = vmatprep.subr.bf16.mxu0 %v6888
    %7494 = vmatpush1.bf16.msra.mxu0 %v6887
    %7495 = vmatprep.subr.bf16.mxu0 %v7128
    %7496 = vmatpush2.bf16.msra.mxu0 %v7127
    %7497 = vmatprep.subr.bf16.mxu0 %v7112
    %7498 = vmatpush2.bf16.msra.mxu0 %v7111
    %7499 = vmatprep.subr.bf16.mxu0 %v7096
    %7500 = vmatpush2.bf16.msra.mxu0 %v7095
    %7501 = vmatprep.subr.bf16.mxu0 %v7080
    %7502 = vmatpush2.bf16.msra.mxu0 %v7079
    %7503 = vmatprep.subr.bf16.mxu0 %v7064
    %7504 = vmatpush2.bf16.msra.mxu0 %v7063
    %7505 = vmatprep.subr.bf16.mxu0 %v7048
    %7506 = vmatpush2.bf16.msra.mxu0 %v7047
    %7507 = vmatprep.subr.bf16.mxu0 %v7032
    %7508 = vmatpush2.bf16.msra.mxu0 %v7031
    %7509 = vmatprep.subr.bf16.mxu0 %v7016
    %7510 = vmatpush2.bf16.msra.mxu0 %v7015
    %7511 = vmatprep.mubr.bf16.mxu0 %v2293
    %7512 = vmatmul.mubr.bf16.gmra.mxu0 %v2292
    %v7513 = vpop.f32.mrf.mxu0
    %v7514 = vadd.f32 0.0, %v7513
    %v7515 = vpop.f32.mrf.mxu0
    %v7516 = vadd.f32 0.0, %v7515
    %v7517 = vpop.f32.mrf.mxu0
    %v7518 = vpop.f32.mrf.mxu0
    %7519 = vdwg.mxu0
    %7520 = vmatprep.subr.bf16.mxu0 %v7256
    %7521 = vmatpush1.bf16.msra.mxu0 %v7255
    %7522 = vmatprep.subr.bf16.mxu0 %v7240
    %7523 = vmatpush1.bf16.msra.mxu0 %v7239
    %7524 = vmatprep.subr.bf16.mxu0 %v7224
    %7525 = vmatpush1.bf16.msra.mxu0 %v7223
    %7526 = vmatprep.subr.bf16.mxu0 %v7208
    %7527 = vmatpush1.bf16.msra.mxu0 %v7207
    %7528 = vmatprep.subr.bf16.mxu0 %v7192
    %7529 = vmatpush1.bf16.msra.mxu0 %v7191
    %7530 = vmatprep.subr.bf16.mxu0 %v7176
    %7531 = vmatpush1.bf16.msra.mxu0 %v7175
    %7532 = vmatprep.subr.bf16.mxu0 %v7160
    %7533 = vmatpush1.bf16.msra.mxu0 %v7159
    %7534 = vmatprep.subr.bf16.mxu0 %v7144
    %7535 = vmatpush1.bf16.msra.mxu0 %v7143
    %7536 = vmatprep.subr.bf16.mxu0 %v7384
    %7537 = vmatpush2.bf16.msra.mxu0 %v7383
    %7538 = vmatprep.subr.bf16.mxu0 %v7368
    %7539 = vmatpush2.bf16.msra.mxu0 %v7367
    %7540 = vmatprep.subr.bf16.mxu0 %v7352
    %7541 = vmatpush2.bf16.msra.mxu0 %v7351
    %7542 = vmatprep.subr.bf16.mxu0 %v7336
    %7543 = vmatpush2.bf16.msra.mxu0 %v7335
    %7544 = vmatprep.subr.bf16.mxu0 %v7320
    %7545 = vmatpush2.bf16.msra.mxu0 %v7319
    %7546 = vmatprep.subr.bf16.mxu0 %v7304
    %7547 = vmatpush2.bf16.msra.mxu0 %v7303
    %7548 = vmatprep.subr.bf16.mxu0 %v7288
    %7549 = vmatpush2.bf16.msra.mxu0 %v7287
    %7550 = vmatprep.subr.bf16.mxu0 %v7272
    %7551 = vmatpush2.bf16.msra.mxu0 %v7271
    %7552 = vmatprep.mubr.bf16.mxu0 %v2295
    %7553 = vmatmul.mubr.bf16.gmra.mxu0 %v2294
    %v7554 = vpop.f32.mrf.mxu0
    %v7555 = vadd.f32 %v7514, %v7554
    %v7556 = vpop.f32.mrf.mxu0
    %v7557 = vadd.f32 %v7516, %v7556
    %v7558 = vpop.f32.mrf.mxu0
    %v7559 = vpop.f32.mrf.mxu0
    %7560 = vdwg.mxu0
    %7561 = vmatprep.subr.bf16.mxu0 %v7002
    %7562 = vmatpush1.bf16.msra.mxu0 %v7001
    %7563 = vmatprep.subr.bf16.mxu0 %v6986
    %7564 = vmatpush1.bf16.msra.mxu0 %v6985
    %7565 = vmatprep.subr.bf16.mxu0 %v6970
    %7566 = vmatpush1.bf16.msra.mxu0 %v6969
    %7567 = vmatprep.subr.bf16.mxu0 %v6954
    %7568 = vmatpush1.bf16.msra.mxu0 %v6953
    %7569 = vmatprep.subr.bf16.mxu0 %v6938
    %7570 = vmatpush1.bf16.msra.mxu0 %v6937
    %7571 = vmatprep.subr.bf16.mxu0 %v6922
    %7572 = vmatpush1.bf16.msra.mxu0 %v6921
    %7573 = vmatprep.subr.bf16.mxu0 %v6906
    %7574 = vmatpush1.bf16.msra.mxu0 %v6905
    %7575 = vmatprep.subr.bf16.mxu0 %v6890
    %7576 = vmatpush1.bf16.msra.mxu0 %v6889
    %7577 = vmatprep.subr.bf16.mxu0 %v7130
    %7578 = vmatpush2.bf16.msra.mxu0 %v7129
    %7579 = vmatprep.subr.bf16.mxu0 %v7114
    %7580 = vmatpush2.bf16.msra.mxu0 %v7113
    %7581 = vmatprep.subr.bf16.mxu0 %v7098
    %7582 = vmatpush2.bf16.msra.mxu0 %v7097
    %7583 = vmatprep.subr.bf16.mxu0 %v7082
    %7584 = vmatpush2.bf16.msra.mxu0 %v7081
    %7585 = vmatprep.subr.bf16.mxu0 %v7066
    %7586 = vmatpush2.bf16.msra.mxu0 %v7065
    %7587 = vmatprep.subr.bf16.mxu0 %v7050
    %7588 = vmatpush2.bf16.msra.mxu0 %v7049
    %7589 = vmatprep.subr.bf16.mxu0 %v7034
    %7590 = vmatpush2.bf16.msra.mxu0 %v7033
    %7591 = vmatprep.subr.bf16.mxu0 %v7018
    %7592 = vmatpush2.bf16.msra.mxu0 %v7017
    %7593 = vmatprep.mubr.bf16.mxu0 %v2293
    %7594 = vmatmul.mubr.bf16.gmra.mxu0 %v2292
    %v7595 = vpop.f32.mrf.mxu0
    %v7596 = vadd.f32 0.0, %v7595
    %v7597 = vpop.f32.mrf.mxu0
    %v7598 = vadd.f32 0.0, %v7597
    %v7599 = vpop.f32.mrf.mxu0
    %v7600 = vpop.f32.mrf.mxu0
    %7601 = vdwg.mxu0
    %7602 = vmatprep.subr.bf16.mxu0 %v7258
    %7603 = vmatpush1.bf16.msra.mxu0 %v7257
    %7604 = vmatprep.subr.bf16.mxu0 %v7242
    %7605 = vmatpush1.bf16.msra.mxu0 %v7241
    %7606 = vmatprep.subr.bf16.mxu0 %v7226
    %7607 = vmatpush1.bf16.msra.mxu0 %v7225
    %7608 = vmatprep.subr.bf16.mxu0 %v7210
    %7609 = vmatpush1.bf16.msra.mxu0 %v7209
    %7610 = vmatprep.subr.bf16.mxu0 %v7194
    %7611 = vmatpush1.bf16.msra.mxu0 %v7193
    %7612 = vmatprep.subr.bf16.mxu0 %v7178
    %7613 = vmatpush1.bf16.msra.mxu0 %v7177
    %7614 = vmatprep.subr.bf16.mxu0 %v7162
    %7615 = vmatpush1.bf16.msra.mxu0 %v7161
    %7616 = vmatprep.subr.bf16.mxu0 %v7146
    %7617 = vmatpush1.bf16.msra.mxu0 %v7145
    %7618 = vmatprep.subr.bf16.mxu0 %v7386
    %7619 = vmatpush2.bf16.msra.mxu0 %v7385
    %7620 = vmatprep.subr.bf16.mxu0 %v7370
    %7621 = vmatpush2.bf16.msra.mxu0 %v7369
    %7622 = vmatprep.subr.bf16.mxu0 %v7354
    %7623 = vmatpush2.bf16.msra.mxu0 %v7353
    %7624 = vmatprep.subr.bf16.mxu0 %v7338
    %7625 = vmatpush2.bf16.msra.mxu0 %v7337
    %7626 = vmatprep.subr.bf16.mxu0 %v7322
    %7627 = vmatpush2.bf16.msra.mxu0 %v7321
    %7628 = vmatprep.subr.bf16.mxu0 %v7306
    %7629 = vmatpush2.bf16.msra.mxu0 %v7305
    %7630 = vmatprep.subr.bf16.mxu0 %v7290
    %7631 = vmatpush2.bf16.msra.mxu0 %v7289
    %7632 = vmatprep.subr.bf16.mxu0 %v7274
    %7633 = vmatpush2.bf16.msra.mxu0 %v7273
    %7634 = vmatprep.mubr.bf16.mxu0 %v2295
    %7635 = vmatmul.mubr.bf16.gmra.mxu0 %v2294
    %v7636 = vpop.f32.mrf.mxu0
    %v7637 = vadd.f32 %v7596, %v7636
    %v7638 = vpop.f32.mrf.mxu0
    %v7639 = vadd.f32 %v7598, %v7638
    %v7640 = vpop.f32.mrf.mxu0
    %v7641 = vpop.f32.mrf.mxu0
    %7642 = vdwg.mxu0
    %7643 = vmatprep.subr.bf16.mxu0 %v7004
    %7644 = vmatpush1.bf16.msra.mxu0 %v7003
    %7645 = vmatprep.subr.bf16.mxu0 %v6988
    %7646 = vmatpush1.bf16.msra.mxu0 %v6987
    %7647 = vmatprep.subr.bf16.mxu0 %v6972
    %7648 = vmatpush1.bf16.msra.mxu0 %v6971
    %7649 = vmatprep.subr.bf16.mxu0 %v6956
    %7650 = vmatpush1.bf16.msra.mxu0 %v6955
    %7651 = vmatprep.subr.bf16.mxu0 %v6940
    %7652 = vmatpush1.bf16.msra.mxu0 %v6939
    %7653 = vmatprep.subr.bf16.mxu0 %v6924
    %7654 = vmatpush1.bf16.msra.mxu0 %v6923
    %7655 = vmatprep.subr.bf16.mxu0 %v6908
    %7656 = vmatpush1.bf16.msra.mxu0 %v6907
    %7657 = vmatprep.subr.bf16.mxu0 %v6892
    %7658 = vmatpush1.bf16.msra.mxu0 %v6891
    %7659 = vmatprep.subr.bf16.mxu0 %v7132
    %7660 = vmatpush2.bf16.msra.mxu0 %v7131
    %7661 = vmatprep.subr.bf16.mxu0 %v7116
    %7662 = vmatpush2.bf16.msra.mxu0 %v7115
    %7663 = vmatprep.subr.bf16.mxu0 %v7100
    %7664 = vmatpush2.bf16.msra.mxu0 %v7099
    %7665 = vmatprep.subr.bf16.mxu0 %v7084
    %7666 = vmatpush2.bf16.msra.mxu0 %v7083
    %7667 = vmatprep.subr.bf16.mxu0 %v7068
    %7668 = vmatpush2.bf16.msra.mxu0 %v7067
    %7669 = vmatprep.subr.bf16.mxu0 %v7052
    %7670 = vmatpush2.bf16.msra.mxu0 %v7051
    %7671 = vmatprep.subr.bf16.mxu0 %v7036
    %7672 = vmatpush2.bf16.msra.mxu0 %v7035
    %7673 = vmatprep.subr.bf16.mxu0 %v7020
    %7674 = vmatpush2.bf16.msra.mxu0 %v7019
    %7675 = vmatprep.mubr.bf16.mxu0 %v2293
    %7676 = vmatmul.mubr.bf16.gmra.mxu0 %v2292
    %v7677 = vpop.f32.mrf.mxu0
    %v7678 = vadd.f32 0.0, %v7677
    %v7679 = vpop.f32.mrf.mxu0
    %v7680 = vadd.f32 0.0, %v7679
    %v7681 = vpop.f32.mrf.mxu0
    %v7682 = vpop.f32.mrf.mxu0
    %7683 = vdwg.mxu0
    %7684 = vmatprep.subr.bf16.mxu0 %v7260
    %7685 = vmatpush1.bf16.msra.mxu0 %v7259
    %7686 = vmatprep.subr.bf16.mxu0 %v7244
    %7687 = vmatpush1.bf16.msra.mxu0 %v7243
    %7688 = vmatprep.subr.bf16.mxu0 %v7228
    %7689 = vmatpush1.bf16.msra.mxu0 %v7227
    %7690 = vmatprep.subr.bf16.mxu0 %v7212
    %7691 = vmatpush1.bf16.msra.mxu0 %v7211
    %7692 = vmatprep.subr.bf16.mxu0 %v7196
    %7693 = vmatpush1.bf16.msra.mxu0 %v7195
    %7694 = vmatprep.subr.bf16.mxu0 %v7180
    %7695 = vmatpush1.bf16.msra.mxu0 %v7179
    %7696 = vmatprep.subr.bf16.mxu0 %v7164
    %7697 = vmatpush1.bf16.msra.mxu0 %v7163
    %7698 = vmatprep.subr.bf16.mxu0 %v7148
    %7699 = vmatpush1.bf16.msra.mxu0 %v7147
    %7700 = vmatprep.subr.bf16.mxu0 %v7388
    %7701 = vmatpush2.bf16.msra.mxu0 %v7387
    %7702 = vmatprep.subr.bf16.mxu0 %v7372
    %7703 = vmatpush2.bf16.msra.mxu0 %v7371
    %7704 = vmatprep.subr.bf16.mxu0 %v7356
    %7705 = vmatpush2.bf16.msra.mxu0 %v7355
    %7706 = vmatprep.subr.bf16.mxu0 %v7340
    %7707 = vmatpush2.bf16.msra.mxu0 %v7339
    %7708 = vmatprep.subr.bf16.mxu0 %v7324
    %7709 = vmatpush2.bf16.msra.mxu0 %v7323
    %7710 = vmatprep.subr.bf16.mxu0 %v7308
    %7711 = vmatpush2.bf16.msra.mxu0 %v7307
    %7712 = vmatprep.subr.bf16.mxu0 %v7292
    %7713 = vmatpush2.bf16.msra.mxu0 %v7291
    %7714 = vmatprep.subr.bf16.mxu0 %v7276
    %7715 = vmatpush2.bf16.msra.mxu0 %v7275
    %7716 = vmatprep.mubr.bf16.mxu0 %v2295
    %7717 = vmatmul.mubr.bf16.gmra.mxu0 %v2294
    %v7718 = vpop.f32.mrf.mxu0
    %v7719 = vadd.f32 %v7678, %v7718
    %v7720 = vpop.f32.mrf.mxu0
    %v7721 = vadd.f32 %v7680, %v7720
    %v7722 = vpop.f32.mrf.mxu0
    %v7723 = vpop.f32.mrf.mxu0
    %7724 = vdwg.mxu0
    %7725 = vmatprep.subr.bf16.mxu0 %v7006
    %7726 = vmatpush1.bf16.msra.mxu0 %v7005
    %7727 = vmatprep.subr.bf16.mxu0 %v6990
    %7728 = vmatpush1.bf16.msra.mxu0 %v6989
    %7729 = vmatprep.subr.bf16.mxu0 %v6974
    %7730 = vmatpush1.bf16.msra.mxu0 %v6973
    %7731 = vmatprep.subr.bf16.mxu0 %v6958
    %7732 = vmatpush1.bf16.msra.mxu0 %v6957
    %7733 = vmatprep.subr.bf16.mxu0 %v6942
    %7734 = vmatpush1.bf16.msra.mxu0 %v6941
    %7735 = vmatprep.subr.bf16.mxu0 %v6926
    %7736 = vmatpush1.bf16.msra.mxu0 %v6925
    %7737 = vmatprep.subr.bf16.mxu0 %v6910
    %7738 = vmatpush1.bf16.msra.mxu0 %v6909
    %7739 = vmatprep.subr.bf16.mxu0 %v6894
    %7740 = vmatpush1.bf16.msra.mxu0 %v6893
    %7741 = vmatprep.subr.bf16.mxu0 %v7134
    %7742 = vmatpush2.bf16.msra.mxu0 %v7133
    %7743 = vmatprep.subr.bf16.mxu0 %v7118
    %7744 = vmatpush2.bf16.msra.mxu0 %v7117
    %7745 = vmatprep.subr.bf16.mxu0 %v7102
    %7746 = vmatpush2.bf16.msra.mxu0 %v7101
    %7747 = vmatprep.subr.bf16.mxu0 %v7086
    %7748 = vmatpush2.bf16.msra.mxu0 %v7085
    %7749 = vmatprep.subr.bf16.mxu0 %v7070
    %7750 = vmatpush2.bf16.msra.mxu0 %v7069
    %7751 = vmatprep.subr.bf16.mxu0 %v7054
    %7752 = vmatpush2.bf16.msra.mxu0 %v7053
    %7753 = vmatprep.subr.bf16.mxu0 %v7038
    %7754 = vmatpush2.bf16.msra.mxu0 %v7037
    %7755 = vmatprep.subr.bf16.mxu0 %v7022
    %7756 = vmatpush2.bf16.msra.mxu0 %v7021
    %7757 = vmatprep.mubr.bf16.mxu0 %v2293
    %7758 = vmatmul.mubr.bf16.gmra.mxu0 %v2292
    %v7759 = vpop.f32.mrf.mxu0
    %v7760 = vadd.f32 0.0, %v7759
    %v7761 = vpop.f32.mrf.mxu0
    %v7762 = vadd.f32 0.0, %v7761
    %v7763 = vpop.f32.mrf.mxu0
    %v7764 = vpop.f32.mrf.mxu0
    %7765 = vdwg.mxu0
    %7766 = vmatprep.subr.bf16.mxu0 %v7262
    %7767 = vmatpush1.bf16.msra.mxu0 %v7261
    %7768 = vmatprep.subr.bf16.mxu0 %v7246
    %7769 = vmatpush1.bf16.msra.mxu0 %v7245
    %7770 = vmatprep.subr.bf16.mxu0 %v7230
    %7771 = vmatpush1.bf16.msra.mxu0 %v7229
    %7772 = vmatprep.subr.bf16.mxu0 %v7214
    %7773 = vmatpush1.bf16.msra.mxu0 %v7213
    %7774 = vmatprep.subr.bf16.mxu0 %v7198
    %7775 = vmatpush1.bf16.msra.mxu0 %v7197
    %7776 = vmatprep.subr.bf16.mxu0 %v7182
    %7777 = vmatpush1.bf16.msra.mxu0 %v7181
    %7778 = vmatprep.subr.bf16.mxu0 %v7166
    %7779 = vmatpush1.bf16.msra.mxu0 %v7165
    %7780 = vmatprep.subr.bf16.mxu0 %v7150
    %7781 = vmatpush1.bf16.msra.mxu0 %v7149
    %7782 = vmatprep.subr.bf16.mxu0 %v7390
    %7783 = vmatpush2.bf16.msra.mxu0 %v7389
    %7784 = vmatprep.subr.bf16.mxu0 %v7374
    %7785 = vmatpush2.bf16.msra.mxu0 %v7373
    %7786 = vmatprep.subr.bf16.mxu0 %v7358
    %7787 = vmatpush2.bf16.msra.mxu0 %v7357
    %7788 = vmatprep.subr.bf16.mxu0 %v7342
    %7789 = vmatpush2.bf16.msra.mxu0 %v7341
    %7790 = vmatprep.subr.bf16.mxu0 %v7326
    %7791 = vmatpush2.bf16.msra.mxu0 %v7325
    %7792 = vmatprep.subr.bf16.mxu0 %v7310
    %7793 = vmatpush2.bf16.msra.mxu0 %v7309
    %7794 = vmatprep.subr.bf16.mxu0 %v7294
    %7795 = vmatpush2.bf16.msra.mxu0 %v7293
    %7796 = vmatprep.subr.bf16.mxu0 %v7278
    %7797 = vmatpush2.bf16.msra.mxu0 %v7277
    %7798 = vmatprep.mubr.bf16.mxu0 %v2295
    %7799 = vmatmul.mubr.bf16.gmra.mxu0 %v2294
    %v7800 = vpop.f32.mrf.mxu0
    %v7801 = vadd.f32 %v7760, %v7800
    %v7802 = vpop.f32.mrf.mxu0
    %v7803 = vadd.f32 %v7762, %v7802
    %v7804 = vpop.f32.mrf.mxu0
    %v7805 = vpop.f32.mrf.mxu0
    %7806 = vdwg.mxu0
    %7807 = vmatprep.subr.bf16.mxu0 %v7008
    %7808 = vmatpush1.bf16.msra.mxu0 %v7007
    %7809 = vmatprep.subr.bf16.mxu0 %v6992
    %7810 = vmatpush1.bf16.msra.mxu0 %v6991
    %7811 = vmatprep.subr.bf16.mxu0 %v6976
    %7812 = vmatpush1.bf16.msra.mxu0 %v6975
    %7813 = vmatprep.subr.bf16.mxu0 %v6960
    %7814 = vmatpush1.bf16.msra.mxu0 %v6959
    %7815 = vmatprep.subr.bf16.mxu0 %v6944
    %7816 = vmatpush1.bf16.msra.mxu0 %v6943
    %7817 = vmatprep.subr.bf16.mxu0 %v6928
    %7818 = vmatpush1.bf16.msra.mxu0 %v6927
    %7819 = vmatprep.subr.bf16.mxu0 %v6912
    %7820 = vmatpush1.bf16.msra.mxu0 %v6911
    %7821 = vmatprep.subr.bf16.mxu0 %v6896
    %7822 = vmatpush1.bf16.msra.mxu0 %v6895
    %7823 = vmatprep.subr.bf16.mxu0 %v7136
    %7824 = vmatpush2.bf16.msra.mxu0 %v7135
    %7825 = vmatprep.subr.bf16.mxu0 %v7120
    %7826 = vmatpush2.bf16.msra.mxu0 %v7119
    %7827 = vmatprep.subr.bf16.mxu0 %v7104
    %7828 = vmatpush2.bf16.msra.mxu0 %v7103
    %7829 = vmatprep.subr.bf16.mxu0 %v7088
    %7830 = vmatpush2.bf16.msra.mxu0 %v7087
    %7831 = vmatprep.subr.bf16.mxu0 %v7072
    %7832 = vmatpush2.bf16.msra.mxu0 %v7071
    %7833 = vmatprep.subr.bf16.mxu0 %v7056
    %7834 = vmatpush2.bf16.msra.mxu0 %v7055
    %7835 = vmatprep.subr.bf16.mxu0 %v7040
    %7836 = vmatpush2.bf16.msra.mxu0 %v7039
    %7837 = vmatprep.subr.bf16.mxu0 %v7024
    %7838 = vmatpush2.bf16.msra.mxu0 %v7023
    %7839 = vmatprep.mubr.bf16.mxu0 %v2293
    %7840 = vmatmul.mubr.bf16.gmra.mxu0 %v2292
    %v7841 = vpop.f32.mrf.mxu0
    %v7842 = vadd.f32 0.0, %v7841
    %v7843 = vpop.f32.mrf.mxu0
    %v7844 = vadd.f32 0.0, %v7843
    %v7845 = vpop.f32.mrf.mxu0
    %v7846 = vpop.f32.mrf.mxu0
    %7847 = vdwg.mxu0
    %7848 = vmatprep.subr.bf16.mxu0 %v7264
    %7849 = vmatpush1.bf16.msra.mxu0 %v7263
    %7850 = vmatprep.subr.bf16.mxu0 %v7248
    %7851 = vmatpush1.bf16.msra.mxu0 %v7247
    %7852 = vmatprep.subr.bf16.mxu0 %v7232
    %7853 = vmatpush1.bf16.msra.mxu0 %v7231
    %7854 = vmatprep.subr.bf16.mxu0 %v7216
    %7855 = vmatpush1.bf16.msra.mxu0 %v7215
    %7856 = vmatprep.subr.bf16.mxu0 %v7200
    %7857 = vmatpush1.bf16.msra.mxu0 %v7199
    %7858 = vmatprep.subr.bf16.mxu0 %v7184
    %7859 = vmatpush1.bf16.msra.mxu0 %v7183
    %7860 = vmatprep.subr.bf16.mxu0 %v7168
    %7861 = vmatpush1.bf16.msra.mxu0 %v7167
    %7862 = vmatprep.subr.bf16.mxu0 %v7152
    %7863 = vmatpush1.bf16.msra.mxu0 %v7151
    %7864 = vmatprep.subr.bf16.mxu0 %v7392
    %7865 = vmatpush2.bf16.msra.mxu0 %v7391
    %7866 = vmatprep.subr.bf16.mxu0 %v7376
    %7867 = vmatpush2.bf16.msra.mxu0 %v7375
    %7868 = vmatprep.subr.bf16.mxu0 %v7360
    %7869 = vmatpush2.bf16.msra.mxu0 %v7359
    %7870 = vmatprep.subr.bf16.mxu0 %v7344
    %7871 = vmatpush2.bf16.msra.mxu0 %v7343
    %7872 = vmatprep.subr.bf16.mxu0 %v7328
    %7873 = vmatpush2.bf16.msra.mxu0 %v7327
    %7874 = vmatprep.subr.bf16.mxu0 %v7312
    %7875 = vmatpush2.bf16.msra.mxu0 %v7311
    %7876 = vmatprep.subr.bf16.mxu0 %v7296
    %7877 = vmatpush2.bf16.msra.mxu0 %v7295
    %7878 = vmatprep.subr.bf16.mxu0 %v7280
    %7879 = vmatpush2.bf16.msra.mxu0 %v7279
    %7880 = vmatprep.mubr.bf16.mxu0 %v2295
    %7881 = vmatmul.mubr.bf16.gmra.mxu0 %v2294
    %v7882 = vpop.f32.mrf.mxu0
    %v7883 = vadd.f32 %v7842, %v7882
    %v7884 = vpop.f32.mrf.mxu0
    %v7885 = vadd.f32 %v7844, %v7884
    %v7886 = vpop.f32.mrf.mxu0
    %v7887 = vpop.f32.mrf.mxu0
    %7888 = vdwg.mxu0
    %7889 = vmatprep.subr.bf16.mxu0 %v7010
    %7890 = vmatpush1.bf16.msra.mxu0 %v7009
    %7891 = vmatprep.subr.bf16.mxu0 %v6994
    %7892 = vmatpush1.bf16.msra.mxu0 %v6993
    %7893 = vmatprep.subr.bf16.mxu0 %v6978
    %7894 = vmatpush1.bf16.msra.mxu0 %v6977
    %7895 = vmatprep.subr.bf16.mxu0 %v6962
    %7896 = vmatpush1.bf16.msra.mxu0 %v6961
    %7897 = vmatprep.subr.bf16.mxu0 %v6946
    %7898 = vmatpush1.bf16.msra.mxu0 %v6945
    %7899 = vmatprep.subr.bf16.mxu0 %v6930
    %7900 = vmatpush1.bf16.msra.mxu0 %v6929
    %7901 = vmatprep.subr.bf16.mxu0 %v6914
    %7902 = vmatpush1.bf16.msra.mxu0 %v6913
    %7903 = vmatprep.subr.bf16.mxu0 %v6898
    %7904 = vmatpush1.bf16.msra.mxu0 %v6897
    %7905 = vmatprep.subr.bf16.mxu0 %v7138
    %7906 = vmatpush2.bf16.msra.mxu0 %v7137
    %7907 = vmatprep.subr.bf16.mxu0 %v7122
    %7908 = vmatpush2.bf16.msra.mxu0 %v7121
    %7909 = vmatprep.subr.bf16.mxu0 %v7106
    %7910 = vmatpush2.bf16.msra.mxu0 %v7105
    %7911 = vmatprep.subr.bf16.mxu0 %v7090
    %7912 = vmatpush2.bf16.msra.mxu0 %v7089
    %7913 = vmatprep.subr.bf16.mxu0 %v7074
    %7914 = vmatpush2.bf16.msra.mxu0 %v7073
    %7915 = vmatprep.subr.bf16.mxu0 %v7058
    %7916 = vmatpush2.bf16.msra.mxu0 %v7057
    %7917 = vmatprep.subr.bf16.mxu0 %v7042
    %7918 = vmatpush2.bf16.msra.mxu0 %v7041
    %7919 = vmatprep.subr.bf16.mxu0 %v7026
    %7920 = vmatpush2.bf16.msra.mxu0 %v7025
    %7921 = vmatprep.mubr.bf16.mxu0 %v2293
    %7922 = vmatmul.mubr.bf16.gmra.mxu0 %v2292
    %v7923 = vpop.f32.mrf.mxu0
    %v7924 = vadd.f32 0.0, %v7923
    %v7925 = vpop.f32.mrf.mxu0
    %v7926 = vadd.f32 0.0, %v7925
    %v7927 = vpop.f32.mrf.mxu0
    %v7928 = vpop.f32.mrf.mxu0
    %7929 = vdwg.mxu0
    %7930 = vmatprep.subr.bf16.mxu0 %v7266
    %7931 = vmatpush1.bf16.msra.mxu0 %v7265
    %7932 = vmatprep.subr.bf16.mxu0 %v7250
    %7933 = vmatpush1.bf16.msra.mxu0 %v7249
    %7934 = vmatprep.subr.bf16.mxu0 %v7234
    %7935 = vmatpush1.bf16.msra.mxu0 %v7233
    %7936 = vmatprep.subr.bf16.mxu0 %v7218
    %7937 = vmatpush1.bf16.msra.mxu0 %v7217
    %7938 = vmatprep.subr.bf16.mxu0 %v7202
    %7939 = vmatpush1.bf16.msra.mxu0 %v7201
    %7940 = vmatprep.subr.bf16.mxu0 %v7186
    %7941 = vmatpush1.bf16.msra.mxu0 %v7185
    %7942 = vmatprep.subr.bf16.mxu0 %v7170
    %7943 = vmatpush1.bf16.msra.mxu0 %v7169
    %7944 = vmatprep.subr.bf16.mxu0 %v7154
    %7945 = vmatpush1.bf16.msra.mxu0 %v7153
    %7946 = vmatprep.subr.bf16.mxu0 %v7394
    %7947 = vmatpush2.bf16.msra.mxu0 %v7393
    %7948 = vmatprep.subr.bf16.mxu0 %v7378
    %7949 = vmatpush2.bf16.msra.mxu0 %v7377
    %7950 = vmatprep.subr.bf16.mxu0 %v7362
    %7951 = vmatpush2.bf16.msra.mxu0 %v7361
    %7952 = vmatprep.subr.bf16.mxu0 %v7346
    %7953 = vmatpush2.bf16.msra.mxu0 %v7345
    %7954 = vmatprep.subr.bf16.mxu0 %v7330
    %7955 = vmatpush2.bf16.msra.mxu0 %v7329
    %7956 = vmatprep.subr.bf16.mxu0 %v7314
    %7957 = vmatpush2.bf16.msra.mxu0 %v7313
    %7958 = vmatprep.subr.bf16.mxu0 %v7298
    %7959 = vmatpush2.bf16.msra.mxu0 %v7297
    %7960 = vmatprep.subr.bf16.mxu0 %v7282
    %7961 = vmatpush2.bf16.msra.mxu0 %v7281
    %7962 = vmatprep.mubr.bf16.mxu0 %v2295
    %7963 = vmatmul.mubr.bf16.gmra.mxu0 %v2294
    %v7964 = vpop.f32.mrf.mxu0
    %v7965 = vadd.f32 %v7924, %v7964
    %v7966 = vpop.f32.mrf.mxu0
    %v7967 = vadd.f32 %v7926, %v7966
    %v7968 = vpop.f32.mrf.mxu0
    %v7969 = vpop.f32.mrf.mxu0
    %7970 = vdwg.mxu0
    %7971 = vmatprep.subr.bf16.mxu0 %v7012
    %7972 = vmatpush1.bf16.msra.mxu0 %v7011
    %7973 = vmatprep.subr.bf16.mxu0 %v6996
    %7974 = vmatpush1.bf16.msra.mxu0 %v6995
    %7975 = vmatprep.subr.bf16.mxu0 %v6980
    %7976 = vmatpush1.bf16.msra.mxu0 %v6979
    %7977 = vmatprep.subr.bf16.mxu0 %v6964
    %7978 = vmatpush1.bf16.msra.mxu0 %v6963
    %7979 = vmatprep.subr.bf16.mxu0 %v6948
    %7980 = vmatpush1.bf16.msra.mxu0 %v6947
    %7981 = vmatprep.subr.bf16.mxu0 %v6932
    %7982 = vmatpush1.bf16.msra.mxu0 %v6931
    %7983 = vmatprep.subr.bf16.mxu0 %v6916
    %7984 = vmatpush1.bf16.msra.mxu0 %v6915
    %7985 = vmatprep.subr.bf16.mxu0 %v6900
    %7986 = vmatpush1.bf16.msra.mxu0 %v6899
    %7987 = vmatprep.subr.bf16.mxu0 %v7140
    %7988 = vmatpush2.bf16.msra.mxu0 %v7139
    %7989 = vmatprep.subr.bf16.mxu0 %v7124
    %7990 = vmatpush2.bf16.msra.mxu0 %v7123
    %7991 = vmatprep.subr.bf16.mxu0 %v7108
    %7992 = vmatpush2.bf16.msra.mxu0 %v7107
    %7993 = vmatprep.subr.bf16.mxu0 %v7092
    %7994 = vmatpush2.bf16.msra.mxu0 %v7091
    %7995 = vmatprep.subr.bf16.mxu0 %v7076
    %7996 = vmatpush2.bf16.msra.mxu0 %v7075
    %7997 = vmatprep.subr.bf16.mxu0 %v7060
    %7998 = vmatpush2.bf16.msra.mxu0 %v7059
    %7999 = vmatprep.subr.bf16.mxu0 %v7044
    %8000 = vmatpush2.bf16.msra.mxu0 %v7043
    %8001 = vmatprep.subr.bf16.mxu0 %v7028
    %8002 = vmatpush2.bf16.msra.mxu0 %v7027
    %8003 = vmatprep.mubr.bf16.mxu0 %v2293
    %8004 = vmatmul.mubr.bf16.gmra.mxu0 %v2292
    %v8005 = vpop.f32.mrf.mxu0
    %v8006 = vadd.f32 0.0, %v8005
    %v8007 = vpop.f32.mrf.mxu0
    %v8008 = vadd.f32 0.0, %v8007
    %v8009 = vpop.f32.mrf.mxu0
    %v8010 = vpop.f32.mrf.mxu0
    %8011 = vdwg.mxu0
    %8012 = vmatprep.subr.bf16.mxu0 %v7268
    %8013 = vmatpush1.bf16.msra.mxu0 %v7267
    %8014 = vmatprep.subr.bf16.mxu0 %v7252
    %8015 = vmatpush1.bf16.msra.mxu0 %v7251
    %8016 = vmatprep.subr.bf16.mxu0 %v7236
    %8017 = vmatpush1.bf16.msra.mxu0 %v7235
    %8018 = vmatprep.subr.bf16.mxu0 %v7220
    %8019 = vmatpush1.bf16.msra.mxu0 %v7219
    %8020 = vmatprep.subr.bf16.mxu0 %v7204
    %8021 = vmatpush1.bf16.msra.mxu0 %v7203
    %8022 = vmatprep.subr.bf16.mxu0 %v7188
    %8023 = vmatpush1.bf16.msra.mxu0 %v7187
    %8024 = vmatprep.subr.bf16.mxu0 %v7172
    %8025 = vmatpush1.bf16.msra.mxu0 %v7171
    %8026 = vmatprep.subr.bf16.mxu0 %v7156
    %8027 = vmatpush1.bf16.msra.mxu0 %v7155
    %8028 = vmatprep.subr.bf16.mxu0 %v7396
    %8029 = vmatpush2.bf16.msra.mxu0 %v7395
    %8030 = vmatprep.subr.bf16.mxu0 %v7380
    %8031 = vmatpush2.bf16.msra.mxu0 %v7379
    %8032 = vmatprep.subr.bf16.mxu0 %v7364
    %8033 = vmatpush2.bf16.msra.mxu0 %v7363
    %8034 = vmatprep.subr.bf16.mxu0 %v7348
    %8035 = vmatpush2.bf16.msra.mxu0 %v7347
    %8036 = vmatprep.subr.bf16.mxu0 %v7332
    %8037 = vmatpush2.bf16.msra.mxu0 %v7331
    %8038 = vmatprep.subr.bf16.mxu0 %v7316
    %8039 = vmatpush2.bf16.msra.mxu0 %v7315
    %8040 = vmatprep.subr.bf16.mxu0 %v7300
    %8041 = vmatpush2.bf16.msra.mxu0 %v7299
    %8042 = vmatprep.subr.bf16.mxu0 %v7284
    %8043 = vmatpush2.bf16.msra.mxu0 %v7283
    %8044 = vmatprep.mubr.bf16.mxu0 %v2295
    %8045 = vmatmul.mubr.bf16.gmra.mxu0 %v2294
    %v8046 = vpop.f32.mrf.mxu0
    %v8047 = vadd.f32 %v8006, %v8046
    %v8048 = vpop.f32.mrf.mxu0
    %v8049 = vadd.f32 %v8008, %v8048
    %v8050 = vpop.f32.mrf.mxu0
    %v8051 = vpop.f32.mrf.mxu0
    %8052 = vdwg.mxu0
    %v8053 = vadd.f32 %v6600, %v7473
    %v8054 = vadd.f32 %v6601, %v7475
    %v8055 = vadd.f32 %v6602, %v7555
    %v8056 = vadd.f32 %v6603, %v7557
    %v8057 = vadd.f32 %v6604, %v7637
    %v8058 = vadd.f32 %v6605, %v7639
    %v8059 = vadd.f32 %v6606, %v7719
    %v8060 = vadd.f32 %v6607, %v7721
    %v8061 = vadd.f32 %v6608, %v7801
    %v8062 = vadd.f32 %v6609, %v7803
    %v8063 = vadd.f32 %v6610, %v7883
    %v8064 = vadd.f32 %v6611, %v7885
    %v8065 = vadd.f32 %v6612, %v7965
    %v8066 = vadd.f32 %v6613, %v7967
    %v8067 = vadd.f32 %v6614, %v8047
    %v8068 = vadd.f32 %v6615, %v8049
    %s8069 = scalar_lea.hbm %s5, 16384
    %s8070 = scalar_lea.vmem [#allocation3], 1024
    %s8071 = scalar_lea.sflag [#allocation5], 1
    // Predicated region
    $region54: #{improved_codebert_classifier_fwd.1} parent=1 // pred_check
      _
    $region55: #{improved_codebert_classifier_fwd.1} parent=1 // pred_check_branch
      %8073 = sbr.rel target = $region57
    $region56: #{improved_codebert_classifier_fwd.1} parent=1 // pred_region
      %8074 = sst [smem:[#allocation15]] [#allocation26]
      %8075 = sst [smem:[#allocation16]] [#allocation25]
    $region57: #{improved_codebert_classifier_fwd.1} parent=1 // pred_fallthru
      _
    %8077 = shalt.err (0)
    %s8079 = sshll.u32 %s8070, 4
    %s8080 = int_to_ptr.vmem [resolvable:$true] %s8079
    %8082 = dma.hbm_to_vmem [thread:$0]  %s8069, 16384, %s8080, %s8071
    %v8083 = vld [vmem:[#allocation8] sm:$0xf8]
    %v8084 = vld [vmem:[#allocation8 + $0x8] sm:$0xf8]
    %v8085 = vld [vmem:[#allocation8 + $0x10] sm:$0xf8]
    %v8086 = vld [vmem:[#allocation8 + $0x18] sm:$0xf8]
    %v8087 = vld [vmem:[#allocation8 + $0x20] sm:$0xf8]
    %v8088 = vld [vmem:[#allocation8 + $0x28] sm:$0xf8]
    %v8089 = vld [vmem:[#allocation8 + $0x30] sm:$0xf8]
    %v8090 = vld [vmem:[#allocation8 + $0x38] sm:$0xf8]
    %v8091 = vlaneseq
    %v8092 = vshrl.u32 %v8091, 7
    %v8093 = vsub.s32 3, %v8092
    %v8094 = vrot.slane %v8083, %v8093
    %v8095 = vlaneseq
    %v8096 = vshrl.u32 %v8095, 7
    %v8097 = vsub.s32 3, %v8096
    %v8098 = vrot.slane %v8084, %v8097
    %v8099 = vlaneseq
    %v8100 = vshrl.u32 %v8099, 7
    %v8101 = vsub.s32 3, %v8100
    %v8102 = vrot.slane %v8085, %v8101
    %v8103 = vlaneseq
    %v8104 = vshrl.u32 %v8103, 7
    %v8105 = vsub.s32 3, %v8104
    %v8106 = vrot.slane %v8086, %v8105
    %v8107 = vlaneseq
    %v8108 = vshrl.u32 %v8107, 7
    %v8109 = vsub.s32 3, %v8108
    %v8110 = vrot.slane %v8087, %v8109
    %v8111 = vlaneseq
    %v8112 = vshrl.u32 %v8111, 7
    %v8113 = vsub.s32 3, %v8112
    %v8114 = vrot.slane %v8088, %v8113
    %v8115 = vlaneseq
    %v8116 = vshrl.u32 %v8115, 7
    %v8117 = vsub.s32 3, %v8116
    %v8118 = vrot.slane %v8089, %v8117
    %v8119 = vlaneseq
    %v8120 = vshrl.u32 %v8119, 7
    %v8121 = vsub.s32 3, %v8120
    %v8122 = vrot.slane %v8090, %v8121
    %v8123 = vadd.f32 %v8053, %v8094
    %v8124 = vadd.f32 %v8054, %v8098
    %v8125 = vadd.f32 %v8055, %v8102
    %v8126 = vadd.f32 %v8056, %v8106
    %v8127 = vadd.f32 %v8057, %v8110
    %v8128 = vadd.f32 %v8058, %v8114
    %v8129 = vadd.f32 %v8059, %v8118
    %v8130 = vadd.f32 %v8060, %v8122
    %v8131 = vmax.f32 %v8123, 0.0
    %v8132 = vmax.f32 %v8124, 0.0
    %v8133 = vmax.f32 %v8125, 0.0
    %v8134 = vmax.f32 %v8126, 0.0
    %v8135 = vmax.f32 %v8127, 0.0
    %v8136 = vmax.f32 %v8128, 0.0
    %v8137 = vmax.f32 %v8129, 0.0
    %v8138 = vmax.f32 %v8130, 0.0
    %v8139 = vlaneseq
    %v8140 = vshrl.u32 %v8139, 7
    %v8141 = vsub.s32 4, %v8140
    %v8142 = vrot.slane %v8083, %v8141
    %v8143 = vlaneseq
    %v8144 = vshrl.u32 %v8143, 7
    %v8145 = vsub.s32 4, %v8144
    %v8146 = vrot.slane %v8084, %v8145
    %v8147 = vlaneseq
    %v8148 = vshrl.u32 %v8147, 7
    %v8149 = vsub.s32 4, %v8148
    %v8150 = vrot.slane %v8085, %v8149
    %v8151 = vlaneseq
    %v8152 = vshrl.u32 %v8151, 7
    %v8153 = vsub.s32 4, %v8152
    %v8154 = vrot.slane %v8086, %v8153
    %v8155 = vlaneseq
    %v8156 = vshrl.u32 %v8155, 7
    %v8157 = vsub.s32 4, %v8156
    %v8158 = vrot.slane %v8087, %v8157
    %v8159 = vlaneseq
    %v8160 = vshrl.u32 %v8159, 7
    %v8161 = vsub.s32 4, %v8160
    %v8162 = vrot.slane %v8088, %v8161
    %v8163 = vlaneseq
    %v8164 = vshrl.u32 %v8163, 7
    %v8165 = vsub.s32 4, %v8164
    %v8166 = vrot.slane %v8089, %v8165
    %v8167 = vlaneseq
    %v8168 = vshrl.u32 %v8167, 7
    %v8169 = vsub.s32 4, %v8168
    %v8170 = vrot.slane %v8090, %v8169
    %v8171 = vmul.f32 %v8131, %v8142
    %v8172 = vmul.f32 %v8132, %v8146
    %v8173 = vmul.f32 %v8133, %v8150
    %v8174 = vmul.f32 %v8134, %v8154
    %v8175 = vmul.f32 %v8135, %v8158
    %v8176 = vmul.f32 %v8136, %v8162
    %v8177 = vmul.f32 %v8137, %v8166
    %v8178 = vmul.f32 %v8138, %v8170
    %v8179 = vlaneseq
    %v8180 = vshrl.u32 %v8179, 7
    %v8181 = vsub.s32 5, %v8180
    %v8182 = vrot.slane %v8083, %v8181
    %v8183 = vlaneseq
    %v8184 = vshrl.u32 %v8183, 7
    %v8185 = vsub.s32 5, %v8184
    %v8186 = vrot.slane %v8084, %v8185
    %v8187 = vlaneseq
    %v8188 = vshrl.u32 %v8187, 7
    %v8189 = vsub.s32 5, %v8188
    %v8190 = vrot.slane %v8085, %v8189
    %v8191 = vlaneseq
    %v8192 = vshrl.u32 %v8191, 7
    %v8193 = vsub.s32 5, %v8192
    %v8194 = vrot.slane %v8086, %v8193
    %v8195 = vlaneseq
    %v8196 = vshrl.u32 %v8195, 7
    %v8197 = vsub.s32 5, %v8196
    %v8198 = vrot.slane %v8087, %v8197
    %v8199 = vlaneseq
    %v8200 = vshrl.u32 %v8199, 7
    %v8201 = vsub.s32 5, %v8200
    %v8202 = vrot.slane %v8088, %v8201
    %v8203 = vlaneseq
    %v8204 = vshrl.u32 %v8203, 7
    %v8205 = vsub.s32 5, %v8204
    %v8206 = vrot.slane %v8089, %v8205
    %v8207 = vlaneseq
    %v8208 = vshrl.u32 %v8207, 7
    %v8209 = vsub.s32 5, %v8208
    %v8210 = vrot.slane %v8090, %v8209
    %v8211 = vadd.f32 %v8171, %v8182
    %v8212 = vadd.f32 %v8172, %v8186
    %v8213 = vadd.f32 %v8173, %v8190
    %v8214 = vadd.f32 %v8174, %v8194
    %v8215 = vadd.f32 %v8175, %v8198
    %v8216 = vadd.f32 %v8176, %v8202
    %v8217 = vadd.f32 %v8177, %v8206
    %v8218 = vadd.f32 %v8178, %v8210
    %v8219 = vlaneseq
    %v8220 = vshrl.u32 %v8219, 7
    %v8221 = vsub.s32 6, %v8220
    %v8222 = vrot.slane %v8083, %v8221
    %v8223 = vlaneseq
    %v8224 = vshrl.u32 %v8223, 7
    %v8225 = vsub.s32 6, %v8224
    %v8226 = vrot.slane %v8084, %v8225
    %v8227 = vlaneseq
    %v8228 = vshrl.u32 %v8227, 7
    %v8229 = vsub.s32 6, %v8228
    %v8230 = vrot.slane %v8085, %v8229
    %v8231 = vlaneseq
    %v8232 = vshrl.u32 %v8231, 7
    %v8233 = vsub.s32 6, %v8232
    %v8234 = vrot.slane %v8086, %v8233
    %v8235 = vlaneseq
    %v8236 = vshrl.u32 %v8235, 7
    %v8237 = vsub.s32 6, %v8236
    %v8238 = vrot.slane %v8087, %v8237
    %v8239 = vlaneseq
    %v8240 = vshrl.u32 %v8239, 7
    %v8241 = vsub.s32 6, %v8240
    %v8242 = vrot.slane %v8088, %v8241
    %v8243 = vlaneseq
    %v8244 = vshrl.u32 %v8243, 7
    %v8245 = vsub.s32 6, %v8244
    %v8246 = vrot.slane %v8089, %v8245
    %v8247 = vlaneseq
    %v8248 = vshrl.u32 %v8247, 7
    %v8249 = vsub.s32 6, %v8248
    %v8250 = vrot.slane %v8090, %v8249
    %v8251 = vmul.f32 %v8061, %v8222
    %v8252 = vmul.f32 %v8062, %v8226
    %v8253 = vmul.f32 %v8063, %v8230
    %v8254 = vmul.f32 %v8064, %v8234
    %v8255 = vmul.f32 %v8065, %v8238
    %v8256 = vmul.f32 %v8066, %v8242
    %v8257 = vmul.f32 %v8067, %v8246
    %v8258 = vmul.f32 %v8068, %v8250
    %v8259 = vadd.f32 %v8211, %v8251
    %v8260 = vadd.f32 %v8212, %v8252
    %v8261 = vadd.f32 %v8213, %v8253
    %v8262 = vadd.f32 %v8214, %v8254
    %v8263 = vadd.f32 %v8215, %v8255
    %v8264 = vadd.f32 %v8216, %v8256
    %v8265 = vadd.f32 %v8217, %v8257
    %v8266 = vadd.f32 %v8218, %v8258
    %v8267 = vlaneseq
    %v8268 = vshrl.u32 %v8267, 7
    %v8269 = vsub.s32 7, %v8268
    %v8270 = vrot.slane %v8083, %v8269
    %v8271 = vlaneseq
    %v8272 = vshrl.u32 %v8271, 7
    %v8273 = vsub.s32 7, %v8272
    %v8274 = vrot.slane %v8084, %v8273
    %v8275 = vlaneseq
    %v8276 = vshrl.u32 %v8275, 7
    %v8277 = vsub.s32 7, %v8276
    %v8278 = vrot.slane %v8085, %v8277
    %v8279 = vlaneseq
    %v8280 = vshrl.u32 %v8279, 7
    %v8281 = vsub.s32 7, %v8280
    %v8282 = vrot.slane %v8086, %v8281
    %v8283 = vlaneseq
    %v8284 = vshrl.u32 %v8283, 7
    %v8285 = vsub.s32 7, %v8284
    %v8286 = vrot.slane %v8087, %v8285
    %v8287 = vlaneseq
    %v8288 = vshrl.u32 %v8287, 7
    %v8289 = vsub.s32 7, %v8288
    %v8290 = vrot.slane %v8088, %v8289
    %v8291 = vlaneseq
    %v8292 = vshrl.u32 %v8291, 7
    %v8293 = vsub.s32 7, %v8292
    %v8294 = vrot.slane %v8089, %v8293
    %v8295 = vlaneseq
    %v8296 = vshrl.u32 %v8295, 7
    %v8297 = vsub.s32 7, %v8296
    %v8298 = vrot.slane %v8090, %v8297
    %v8299 = vadd.f32 %v8259, %v8270
    %v8300 = vadd.f32 %v8260, %v8274
    %v8301 = vadd.f32 %v8261, %v8278
    %v8302 = vadd.f32 %v8262, %v8282
    %v8303 = vadd.f32 %v8263, %v8286
    %v8304 = vadd.f32 %v8264, %v8290
    %v8305 = vadd.f32 %v8265, %v8294
    %v8306 = vadd.f32 %v8266, %v8298
    %v8307 = vpack.c.bf16 %v8299, %v8299
    %v8308 = vpack.c.bf16 %v8300, %v8300
    %v8309 = vpack.c.bf16 %v8301, %v8301
    %v8310 = vpack.c.bf16 %v8302, %v8302
    %v8311 = vpack.c.bf16 %v8303, %v8303
    %v8312 = vpack.c.bf16 %v8304, %v8304
    %v8313 = vpack.c.bf16 %v8305, %v8305
    %v8314 = vpack.c.bf16 %v8306, %v8306
    %s8315 = smul.u32 %s2296, 8
    %s8316 = sshll.u32 %s8315, 4
    %8317 = dma.done [#allocation5], %s8316
    %v8318 = vld [vmem:[#allocation3] sm:$0xff]
    %v8319 = vld [vmem:[#allocation3 + $0x8] sm:$0xff]
    %v8320 = vld [vmem:[#allocation3 + $0x10] sm:$0xff]
    %v8321 = vld [vmem:[#allocation3 + $0x18] sm:$0xff]
    %v8322 = vld [vmem:[#allocation3 + $0x20] sm:$0xff]
    %v8323 = vld [vmem:[#allocation3 + $0x28] sm:$0xff]
    %v8324 = vld [vmem:[#allocation3 + $0x30] sm:$0xff]
    %v8325 = vld [vmem:[#allocation3 + $0x38] sm:$0xff]
    %v8326 = vld [vmem:[#allocation3 + $0x40] sm:$0xff]
    %v8327 = vld [vmem:[#allocation3 + $0x48] sm:$0xff]
    %v8328 = vld [vmem:[#allocation3 + $0x50] sm:$0xff]
    %v8329 = vld [vmem:[#allocation3 + $0x58] sm:$0xff]
    %v8330 = vld [vmem:[#allocation3 + $0x60] sm:$0xff]
    %v8331 = vld [vmem:[#allocation3 + $0x68] sm:$0xff]
    %v8332 = vld [vmem:[#allocation3 + $0x70] sm:$0xff]
    %v8333 = vld [vmem:[#allocation3 + $0x78] sm:$0xff]
    %v8334 = vld [vmem:[#allocation3 + $0x80] sm:$0xff]
    %v8335 = vld [vmem:[#allocation3 + $0x88] sm:$0xff]
    %v8336 = vld [vmem:[#allocation3 + $0x90] sm:$0xff]
    %v8337 = vld [vmem:[#allocation3 + $0x98] sm:$0xff]
    %v8338 = vld [vmem:[#allocation3 + $0xa0] sm:$0xff]
    %v8339 = vld [vmem:[#allocation3 + $0xa8] sm:$0xff]
    %v8340 = vld [vmem:[#allocation3 + $0xb0] sm:$0xff]
    %v8341 = vld [vmem:[#allocation3 + $0xb8] sm:$0xff]
    %v8342 = vld [vmem:[#allocation3 + $0xc0] sm:$0xff]
    %v8343 = vld [vmem:[#allocation3 + $0xc8] sm:$0xff]
    %v8344 = vld [vmem:[#allocation3 + $0xd0] sm:$0xff]
    %v8345 = vld [vmem:[#allocation3 + $0xd8] sm:$0xff]
    %v8346 = vld [vmem:[#allocation3 + $0xe0] sm:$0xff]
    %v8347 = vld [vmem:[#allocation3 + $0xe8] sm:$0xff]
    %v8348 = vld [vmem:[#allocation3 + $0xf0] sm:$0xff]
    %v8349 = vld [vmem:[#allocation3 + $0xf8] sm:$0xff]
    %v8350 = vld [vmem:[#allocation3 + $0x100] sm:$0xff]
    %v8351 = vld [vmem:[#allocation3 + $0x108] sm:$0xff]
    %v8352 = vld [vmem:[#allocation3 + $0x110] sm:$0xff]
    %v8353 = vld [vmem:[#allocation3 + $0x118] sm:$0xff]
    %v8354 = vld [vmem:[#allocation3 + $0x120] sm:$0xff]
    %v8355 = vld [vmem:[#allocation3 + $0x128] sm:$0xff]
    %v8356 = vld [vmem:[#allocation3 + $0x130] sm:$0xff]
    %v8357 = vld [vmem:[#allocation3 + $0x138] sm:$0xff]
    %v8358 = vld [vmem:[#allocation3 + $0x140] sm:$0xff]
    %v8359 = vld [vmem:[#allocation3 + $0x148] sm:$0xff]
    %v8360 = vld [vmem:[#allocation3 + $0x150] sm:$0xff]
    %v8361 = vld [vmem:[#allocation3 + $0x158] sm:$0xff]
    %v8362 = vld [vmem:[#allocation3 + $0x160] sm:$0xff]
    %v8363 = vld [vmem:[#allocation3 + $0x168] sm:$0xff]
    %v8364 = vld [vmem:[#allocation3 + $0x170] sm:$0xff]
    %v8365 = vld [vmem:[#allocation3 + $0x178] sm:$0xff]
    %v8366 = vld [vmem:[#allocation3 + $0x180] sm:$0xff]
    %v8367 = vld [vmem:[#allocation3 + $0x188] sm:$0xff]
    %v8368 = vld [vmem:[#allocation3 + $0x190] sm:$0xff]
    %v8369 = vld [vmem:[#allocation3 + $0x198] sm:$0xff]
    %v8370 = vld [vmem:[#allocation3 + $0x1a0] sm:$0xff]
    %v8371 = vld [vmem:[#allocation3 + $0x1a8] sm:$0xff]
    %v8372 = vld [vmem:[#allocation3 + $0x1b0] sm:$0xff]
    %v8373 = vld [vmem:[#allocation3 + $0x1b8] sm:$0xff]
    %v8374 = vld [vmem:[#allocation3 + $0x1c0] sm:$0xff]
    %v8375 = vld [vmem:[#allocation3 + $0x1c8] sm:$0xff]
    %v8376 = vld [vmem:[#allocation3 + $0x1d0] sm:$0xff]
    %v8377 = vld [vmem:[#allocation3 + $0x1d8] sm:$0xff]
    %v8378 = vld [vmem:[#allocation3 + $0x1e0] sm:$0xff]
    %v8379 = vld [vmem:[#allocation3 + $0x1e8] sm:$0xff]
    %v8380 = vld [vmem:[#allocation3 + $0x1f0] sm:$0xff]
    %v8381 = vld [vmem:[#allocation3 + $0x1f8] sm:$0xff]
    %v8382 = vld [vmem:[#allocation3 + $0x200] sm:$0xff]
    %v8383 = vld [vmem:[#allocation3 + $0x208] sm:$0xff]
    %v8384 = vld [vmem:[#allocation3 + $0x210] sm:$0xff]
    %v8385 = vld [vmem:[#allocation3 + $0x218] sm:$0xff]
    %v8386 = vld [vmem:[#allocation3 + $0x220] sm:$0xff]
    %v8387 = vld [vmem:[#allocation3 + $0x228] sm:$0xff]
    %v8388 = vld [vmem:[#allocation3 + $0x230] sm:$0xff]
    %v8389 = vld [vmem:[#allocation3 + $0x238] sm:$0xff]
    %v8390 = vld [vmem:[#allocation3 + $0x240] sm:$0xff]
    %v8391 = vld [vmem:[#allocation3 + $0x248] sm:$0xff]
    %v8392 = vld [vmem:[#allocation3 + $0x250] sm:$0xff]
    %v8393 = vld [vmem:[#allocation3 + $0x258] sm:$0xff]
    %v8394 = vld [vmem:[#allocation3 + $0x260] sm:$0xff]
    %v8395 = vld [vmem:[#allocation3 + $0x268] sm:$0xff]
    %v8396 = vld [vmem:[#allocation3 + $0x270] sm:$0xff]
    %v8397 = vld [vmem:[#allocation3 + $0x278] sm:$0xff]
    %v8398 = vld [vmem:[#allocation3 + $0x280] sm:$0xff]
    %v8399 = vld [vmem:[#allocation3 + $0x288] sm:$0xff]
    %v8400 = vld [vmem:[#allocation3 + $0x290] sm:$0xff]
    %v8401 = vld [vmem:[#allocation3 + $0x298] sm:$0xff]
    %v8402 = vld [vmem:[#allocation3 + $0x2a0] sm:$0xff]
    %v8403 = vld [vmem:[#allocation3 + $0x2a8] sm:$0xff]
    %v8404 = vld [vmem:[#allocation3 + $0x2b0] sm:$0xff]
    %v8405 = vld [vmem:[#allocation3 + $0x2b8] sm:$0xff]
    %v8406 = vld [vmem:[#allocation3 + $0x2c0] sm:$0xff]
    %v8407 = vld [vmem:[#allocation3 + $0x2c8] sm:$0xff]
    %v8408 = vld [vmem:[#allocation3 + $0x2d0] sm:$0xff]
    %v8409 = vld [vmem:[#allocation3 + $0x2d8] sm:$0xff]
    %v8410 = vld [vmem:[#allocation3 + $0x2e0] sm:$0xff]
    %v8411 = vld [vmem:[#allocation3 + $0x2e8] sm:$0xff]
    %v8412 = vld [vmem:[#allocation3 + $0x2f0] sm:$0xff]
    %v8413 = vld [vmem:[#allocation3 + $0x2f8] sm:$0xff]
    %v8414 = vld [vmem:[#allocation3 + $0x300] sm:$0xff]
    %v8415 = vld [vmem:[#allocation3 + $0x308] sm:$0xff]
    %v8416 = vld [vmem:[#allocation3 + $0x310] sm:$0xff]
    %v8417 = vld [vmem:[#allocation3 + $0x318] sm:$0xff]
    %v8418 = vld [vmem:[#allocation3 + $0x320] sm:$0xff]
    %v8419 = vld [vmem:[#allocation3 + $0x328] sm:$0xff]
    %v8420 = vld [vmem:[#allocation3 + $0x330] sm:$0xff]
    %v8421 = vld [vmem:[#allocation3 + $0x338] sm:$0xff]
    %v8422 = vld [vmem:[#allocation3 + $0x340] sm:$0xff]
    %v8423 = vld [vmem:[#allocation3 + $0x348] sm:$0xff]
    %v8424 = vld [vmem:[#allocation3 + $0x350] sm:$0xff]
    %v8425 = vld [vmem:[#allocation3 + $0x358] sm:$0xff]
    %v8426 = vld [vmem:[#allocation3 + $0x360] sm:$0xff]
    %v8427 = vld [vmem:[#allocation3 + $0x368] sm:$0xff]
    %v8428 = vld [vmem:[#allocation3 + $0x370] sm:$0xff]
    %v8429 = vld [vmem:[#allocation3 + $0x378] sm:$0xff]
    %v8430 = vld [vmem:[#allocation3 + $0x380] sm:$0xff]
    %v8431 = vld [vmem:[#allocation3 + $0x388] sm:$0xff]
    %v8432 = vld [vmem:[#allocation3 + $0x390] sm:$0xff]
    %v8433 = vld [vmem:[#allocation3 + $0x398] sm:$0xff]
    %v8434 = vld [vmem:[#allocation3 + $0x3a0] sm:$0xff]
    %v8435 = vld [vmem:[#allocation3 + $0x3a8] sm:$0xff]
    %v8436 = vld [vmem:[#allocation3 + $0x3b0] sm:$0xff]
    %v8437 = vld [vmem:[#allocation3 + $0x3b8] sm:$0xff]
    %v8438 = vld [vmem:[#allocation3 + $0x3c0] sm:$0xff]
    %v8439 = vld [vmem:[#allocation3 + $0x3c8] sm:$0xff]
    %v8440 = vld [vmem:[#allocation3 + $0x3d0] sm:$0xff]
    %v8441 = vld [vmem:[#allocation3 + $0x3d8] sm:$0xff]
    %v8442 = vld [vmem:[#allocation3 + $0x3e0] sm:$0xff]
    %v8443 = vld [vmem:[#allocation3 + $0x3e8] sm:$0xff]
    %v8444 = vld [vmem:[#allocation3 + $0x3f0] sm:$0xff]
    %v8445 = vld [vmem:[#allocation3 + $0x3f8] sm:$0xff]
    %v8446 = vunpack.c.l.s8.bf16 %v8318
    %v8447 = vunpack.c.l.s8.bf16 %v8319
    %v8448 = vunpack.c.l.s8.bf16 %v8320
    %v8449 = vunpack.c.l.s8.bf16 %v8321
    %v8450 = vunpack.c.l.s8.bf16 %v8322
    %v8451 = vunpack.c.l.s8.bf16 %v8323
    %v8452 = vunpack.c.l.s8.bf16 %v8324
    %v8453 = vunpack.c.l.s8.bf16 %v8325
    %v8454 = vunpack.c.h.s8.bf16 %v8318
    %v8455 = vunpack.c.h.s8.bf16 %v8319
    %v8456 = vunpack.c.h.s8.bf16 %v8320
    %v8457 = vunpack.c.h.s8.bf16 %v8321
    %v8458 = vunpack.c.h.s8.bf16 %v8322
    %v8459 = vunpack.c.h.s8.bf16 %v8323
    %v8460 = vunpack.c.h.s8.bf16 %v8324
    %v8461 = vunpack.c.h.s8.bf16 %v8325
    %v8462 = vunpack.c.l.s8.bf16 %v8326
    %v8463 = vunpack.c.l.s8.bf16 %v8327
    %v8464 = vunpack.c.l.s8.bf16 %v8328
    %v8465 = vunpack.c.l.s8.bf16 %v8329
    %v8466 = vunpack.c.l.s8.bf16 %v8330
    %v8467 = vunpack.c.l.s8.bf16 %v8331
    %v8468 = vunpack.c.l.s8.bf16 %v8332
    %v8469 = vunpack.c.l.s8.bf16 %v8333
    %v8470 = vunpack.c.h.s8.bf16 %v8326
    %v8471 = vunpack.c.h.s8.bf16 %v8327
    %v8472 = vunpack.c.h.s8.bf16 %v8328
    %v8473 = vunpack.c.h.s8.bf16 %v8329
    %v8474 = vunpack.c.h.s8.bf16 %v8330
    %v8475 = vunpack.c.h.s8.bf16 %v8331
    %v8476 = vunpack.c.h.s8.bf16 %v8332
    %v8477 = vunpack.c.h.s8.bf16 %v8333
    %v8478 = vunpack.c.l.s8.bf16 %v8334
    %v8479 = vunpack.c.l.s8.bf16 %v8335
    %v8480 = vunpack.c.l.s8.bf16 %v8336
    %v8481 = vunpack.c.l.s8.bf16 %v8337
    %v8482 = vunpack.c.l.s8.bf16 %v8338
    %v8483 = vunpack.c.l.s8.bf16 %v8339
    %v8484 = vunpack.c.l.s8.bf16 %v8340
    %v8485 = vunpack.c.l.s8.bf16 %v8341
    %v8486 = vunpack.c.h.s8.bf16 %v8334
    %v8487 = vunpack.c.h.s8.bf16 %v8335
    %v8488 = vunpack.c.h.s8.bf16 %v8336
    %v8489 = vunpack.c.h.s8.bf16 %v8337
    %v8490 = vunpack.c.h.s8.bf16 %v8338
    %v8491 = vunpack.c.h.s8.bf16 %v8339
    %v8492 = vunpack.c.h.s8.bf16 %v8340
    %v8493 = vunpack.c.h.s8.bf16 %v8341
    %v8494 = vunpack.c.l.s8.bf16 %v8342
    %v8495 = vunpack.c.l.s8.bf16 %v8343
    %v8496 = vunpack.c.l.s8.bf16 %v8344
    %v8497 = vunpack.c.l.s8.bf16 %v8345
    %v8498 = vunpack.c.l.s8.bf16 %v8346
    %v8499 = vunpack.c.l.s8.bf16 %v8347
    %v8500 = vunpack.c.l.s8.bf16 %v8348
    %v8501 = vunpack.c.l.s8.bf16 %v8349
    %v8502 = vunpack.c.h.s8.bf16 %v8342
    %v8503 = vunpack.c.h.s8.bf16 %v8343
    %v8504 = vunpack.c.h.s8.bf16 %v8344
    %v8505 = vunpack.c.h.s8.bf16 %v8345
    %v8506 = vunpack.c.h.s8.bf16 %v8346
    %v8507 = vunpack.c.h.s8.bf16 %v8347
    %v8508 = vunpack.c.h.s8.bf16 %v8348
    %v8509 = vunpack.c.h.s8.bf16 %v8349
    %v8510 = vunpack.c.l.s8.bf16 %v8350
    %v8511 = vunpack.c.l.s8.bf16 %v8351
    %v8512 = vunpack.c.l.s8.bf16 %v8352
    %v8513 = vunpack.c.l.s8.bf16 %v8353
    %v8514 = vunpack.c.l.s8.bf16 %v8354
    %v8515 = vunpack.c.l.s8.bf16 %v8355
    %v8516 = vunpack.c.l.s8.bf16 %v8356
    %v8517 = vunpack.c.l.s8.bf16 %v8357
    %v8518 = vunpack.c.h.s8.bf16 %v8350
    %v8519 = vunpack.c.h.s8.bf16 %v8351
    %v8520 = vunpack.c.h.s8.bf16 %v8352
    %v8521 = vunpack.c.h.s8.bf16 %v8353
    %v8522 = vunpack.c.h.s8.bf16 %v8354
    %v8523 = vunpack.c.h.s8.bf16 %v8355
    %v8524 = vunpack.c.h.s8.bf16 %v8356
    %v8525 = vunpack.c.h.s8.bf16 %v8357
    %v8526 = vunpack.c.l.s8.bf16 %v8358
    %v8527 = vunpack.c.l.s8.bf16 %v8359
    %v8528 = vunpack.c.l.s8.bf16 %v8360
    %v8529 = vunpack.c.l.s8.bf16 %v8361
    %v8530 = vunpack.c.l.s8.bf16 %v8362
    %v8531 = vunpack.c.l.s8.bf16 %v8363
    %v8532 = vunpack.c.l.s8.bf16 %v8364
    %v8533 = vunpack.c.l.s8.bf16 %v8365
    %v8534 = vunpack.c.h.s8.bf16 %v8358
    %v8535 = vunpack.c.h.s8.bf16 %v8359
    %v8536 = vunpack.c.h.s8.bf16 %v8360
    %v8537 = vunpack.c.h.s8.bf16 %v8361
    %v8538 = vunpack.c.h.s8.bf16 %v8362
    %v8539 = vunpack.c.h.s8.bf16 %v8363
    %v8540 = vunpack.c.h.s8.bf16 %v8364
    %v8541 = vunpack.c.h.s8.bf16 %v8365
    %v8542 = vunpack.c.l.s8.bf16 %v8366
    %v8543 = vunpack.c.l.s8.bf16 %v8367
    %v8544 = vunpack.c.l.s8.bf16 %v8368
    %v8545 = vunpack.c.l.s8.bf16 %v8369
    %v8546 = vunpack.c.l.s8.bf16 %v8370
    %v8547 = vunpack.c.l.s8.bf16 %v8371
    %v8548 = vunpack.c.l.s8.bf16 %v8372
    %v8549 = vunpack.c.l.s8.bf16 %v8373
    %v8550 = vunpack.c.h.s8.bf16 %v8366
    %v8551 = vunpack.c.h.s8.bf16 %v8367
    %v8552 = vunpack.c.h.s8.bf16 %v8368
    %v8553 = vunpack.c.h.s8.bf16 %v8369
    %v8554 = vunpack.c.h.s8.bf16 %v8370
    %v8555 = vunpack.c.h.s8.bf16 %v8371
    %v8556 = vunpack.c.h.s8.bf16 %v8372
    %v8557 = vunpack.c.h.s8.bf16 %v8373
    %v8558 = vunpack.c.l.s8.bf16 %v8374
    %v8559 = vunpack.c.l.s8.bf16 %v8375
    %v8560 = vunpack.c.l.s8.bf16 %v8376
    %v8561 = vunpack.c.l.s8.bf16 %v8377
    %v8562 = vunpack.c.l.s8.bf16 %v8378
    %v8563 = vunpack.c.l.s8.bf16 %v8379
    %v8564 = vunpack.c.l.s8.bf16 %v8380
    %v8565 = vunpack.c.l.s8.bf16 %v8381
    %v8566 = vunpack.c.h.s8.bf16 %v8374
    %v8567 = vunpack.c.h.s8.bf16 %v8375
    %v8568 = vunpack.c.h.s8.bf16 %v8376
    %v8569 = vunpack.c.h.s8.bf16 %v8377
    %v8570 = vunpack.c.h.s8.bf16 %v8378
    %v8571 = vunpack.c.h.s8.bf16 %v8379
    %v8572 = vunpack.c.h.s8.bf16 %v8380
    %v8573 = vunpack.c.h.s8.bf16 %v8381
    %v8574 = vunpack.c.l.s8.bf16 %v8382
    %v8575 = vunpack.c.l.s8.bf16 %v8383
    %v8576 = vunpack.c.l.s8.bf16 %v8384
    %v8577 = vunpack.c.l.s8.bf16 %v8385
    %v8578 = vunpack.c.l.s8.bf16 %v8386
    %v8579 = vunpack.c.l.s8.bf16 %v8387
    %v8580 = vunpack.c.l.s8.bf16 %v8388
    %v8581 = vunpack.c.l.s8.bf16 %v8389
    %v8582 = vunpack.c.h.s8.bf16 %v8382
    %v8583 = vunpack.c.h.s8.bf16 %v8383
    %v8584 = vunpack.c.h.s8.bf16 %v8384
    %v8585 = vunpack.c.h.s8.bf16 %v8385
    %v8586 = vunpack.c.h.s8.bf16 %v8386
    %v8587 = vunpack.c.h.s8.bf16 %v8387
    %v8588 = vunpack.c.h.s8.bf16 %v8388
    %v8589 = vunpack.c.h.s8.bf16 %v8389
    %v8590 = vunpack.c.l.s8.bf16 %v8390
    %v8591 = vunpack.c.l.s8.bf16 %v8391
    %v8592 = vunpack.c.l.s8.bf16 %v8392
    %v8593 = vunpack.c.l.s8.bf16 %v8393
    %v8594 = vunpack.c.l.s8.bf16 %v8394
    %v8595 = vunpack.c.l.s8.bf16 %v8395
    %v8596 = vunpack.c.l.s8.bf16 %v8396
    %v8597 = vunpack.c.l.s8.bf16 %v8397
    %v8598 = vunpack.c.h.s8.bf16 %v8390
    %v8599 = vunpack.c.h.s8.bf16 %v8391
    %v8600 = vunpack.c.h.s8.bf16 %v8392
    %v8601 = vunpack.c.h.s8.bf16 %v8393
    %v8602 = vunpack.c.h.s8.bf16 %v8394
    %v8603 = vunpack.c.h.s8.bf16 %v8395
    %v8604 = vunpack.c.h.s8.bf16 %v8396
    %v8605 = vunpack.c.h.s8.bf16 %v8397
    %v8606 = vunpack.c.l.s8.bf16 %v8398
    %v8607 = vunpack.c.l.s8.bf16 %v8399
    %v8608 = vunpack.c.l.s8.bf16 %v8400
    %v8609 = vunpack.c.l.s8.bf16 %v8401
    %v8610 = vunpack.c.l.s8.bf16 %v8402
    %v8611 = vunpack.c.l.s8.bf16 %v8403
    %v8612 = vunpack.c.l.s8.bf16 %v8404
    %v8613 = vunpack.c.l.s8.bf16 %v8405
    %v8614 = vunpack.c.h.s8.bf16 %v8398
    %v8615 = vunpack.c.h.s8.bf16 %v8399
    %v8616 = vunpack.c.h.s8.bf16 %v8400
    %v8617 = vunpack.c.h.s8.bf16 %v8401
    %v8618 = vunpack.c.h.s8.bf16 %v8402
    %v8619 = vunpack.c.h.s8.bf16 %v8403
    %v8620 = vunpack.c.h.s8.bf16 %v8404
    %v8621 = vunpack.c.h.s8.bf16 %v8405
    %v8622 = vunpack.c.l.s8.bf16 %v8406
    %v8623 = vunpack.c.l.s8.bf16 %v8407
    %v8624 = vunpack.c.l.s8.bf16 %v8408
    %v8625 = vunpack.c.l.s8.bf16 %v8409
    %v8626 = vunpack.c.l.s8.bf16 %v8410
    %v8627 = vunpack.c.l.s8.bf16 %v8411
    %v8628 = vunpack.c.l.s8.bf16 %v8412
    %v8629 = vunpack.c.l.s8.bf16 %v8413
    %v8630 = vunpack.c.h.s8.bf16 %v8406
    %v8631 = vunpack.c.h.s8.bf16 %v8407
    %v8632 = vunpack.c.h.s8.bf16 %v8408
    %v8633 = vunpack.c.h.s8.bf16 %v8409
    %v8634 = vunpack.c.h.s8.bf16 %v8410
    %v8635 = vunpack.c.h.s8.bf16 %v8411
    %v8636 = vunpack.c.h.s8.bf16 %v8412
    %v8637 = vunpack.c.h.s8.bf16 %v8413
    %v8638 = vunpack.c.l.s8.bf16 %v8414
    %v8639 = vunpack.c.l.s8.bf16 %v8415
    %v8640 = vunpack.c.l.s8.bf16 %v8416
    %v8641 = vunpack.c.l.s8.bf16 %v8417
    %v8642 = vunpack.c.l.s8.bf16 %v8418
    %v8643 = vunpack.c.l.s8.bf16 %v8419
    %v8644 = vunpack.c.l.s8.bf16 %v8420
    %v8645 = vunpack.c.l.s8.bf16 %v8421
    %v8646 = vunpack.c.h.s8.bf16 %v8414
    %v8647 = vunpack.c.h.s8.bf16 %v8415
    %v8648 = vunpack.c.h.s8.bf16 %v8416
    %v8649 = vunpack.c.h.s8.bf16 %v8417
    %v8650 = vunpack.c.h.s8.bf16 %v8418
    %v8651 = vunpack.c.h.s8.bf16 %v8419
    %v8652 = vunpack.c.h.s8.bf16 %v8420
    %v8653 = vunpack.c.h.s8.bf16 %v8421
    %v8654 = vunpack.c.l.s8.bf16 %v8422
    %v8655 = vunpack.c.l.s8.bf16 %v8423
    %v8656 = vunpack.c.l.s8.bf16 %v8424
    %v8657 = vunpack.c.l.s8.bf16 %v8425
    %v8658 = vunpack.c.l.s8.bf16 %v8426
    %v8659 = vunpack.c.l.s8.bf16 %v8427
    %v8660 = vunpack.c.l.s8.bf16 %v8428
    %v8661 = vunpack.c.l.s8.bf16 %v8429
    %v8662 = vunpack.c.h.s8.bf16 %v8422
    %v8663 = vunpack.c.h.s8.bf16 %v8423
    %v8664 = vunpack.c.h.s8.bf16 %v8424
    %v8665 = vunpack.c.h.s8.bf16 %v8425
    %v8666 = vunpack.c.h.s8.bf16 %v8426
    %v8667 = vunpack.c.h.s8.bf16 %v8427
    %v8668 = vunpack.c.h.s8.bf16 %v8428
    %v8669 = vunpack.c.h.s8.bf16 %v8429
    %v8670 = vunpack.c.l.s8.bf16 %v8430
    %v8671 = vunpack.c.l.s8.bf16 %v8431
    %v8672 = vunpack.c.l.s8.bf16 %v8432
    %v8673 = vunpack.c.l.s8.bf16 %v8433
    %v8674 = vunpack.c.l.s8.bf16 %v8434
    %v8675 = vunpack.c.l.s8.bf16 %v8435
    %v8676 = vunpack.c.l.s8.bf16 %v8436
    %v8677 = vunpack.c.l.s8.bf16 %v8437
    %v8678 = vunpack.c.h.s8.bf16 %v8430
    %v8679 = vunpack.c.h.s8.bf16 %v8431
    %v8680 = vunpack.c.h.s8.bf16 %v8432
    %v8681 = vunpack.c.h.s8.bf16 %v8433
    %v8682 = vunpack.c.h.s8.bf16 %v8434
    %v8683 = vunpack.c.h.s8.bf16 %v8435
    %v8684 = vunpack.c.h.s8.bf16 %v8436
    %v8685 = vunpack.c.h.s8.bf16 %v8437
    %v8686 = vunpack.c.l.s8.bf16 %v8438
    %v8687 = vunpack.c.l.s8.bf16 %v8439
    %v8688 = vunpack.c.l.s8.bf16 %v8440
    %v8689 = vunpack.c.l.s8.bf16 %v8441
    %v8690 = vunpack.c.l.s8.bf16 %v8442
    %v8691 = vunpack.c.l.s8.bf16 %v8443
    %v8692 = vunpack.c.l.s8.bf16 %v8444
    %v8693 = vunpack.c.l.s8.bf16 %v8445
    %v8694 = vunpack.c.h.s8.bf16 %v8438
    %v8695 = vunpack.c.h.s8.bf16 %v8439
    %v8696 = vunpack.c.h.s8.bf16 %v8440
    %v8697 = vunpack.c.h.s8.bf16 %v8441
    %v8698 = vunpack.c.h.s8.bf16 %v8442
    %v8699 = vunpack.c.h.s8.bf16 %v8443
    %v8700 = vunpack.c.h.s8.bf16 %v8444
    %v8701 = vunpack.c.h.s8.bf16 %v8445
    %s8702 = sshll.u32 %s8315, 4
    %8703 = dma.done %s8071, %s8702
    %v8704 = vld [vmem:[%s8070] sm:$0xff]
    %v8705 = vld [vmem:[%s8070 + $0x8] sm:$0xff]
    %v8706 = vld [vmem:[%s8070 + $0x10] sm:$0xff]
    %v8707 = vld [vmem:[%s8070 + $0x18] sm:$0xff]
    %v8708 = vld [vmem:[%s8070 + $0x20] sm:$0xff]
    %v8709 = vld [vmem:[%s8070 + $0x28] sm:$0xff]
    %v8710 = vld [vmem:[%s8070 + $0x30] sm:$0xff]
    %v8711 = vld [vmem:[%s8070 + $0x38] sm:$0xff]
    %v8712 = vld [vmem:[%s8070 + $0x40] sm:$0xff]
    %v8713 = vld [vmem:[%s8070 + $0x48] sm:$0xff]
    %v8714 = vld [vmem:[%s8070 + $0x50] sm:$0xff]
    %v8715 = vld [vmem:[%s8070 + $0x58] sm:$0xff]
    %v8716 = vld [vmem:[%s8070 + $0x60] sm:$0xff]
    %v8717 = vld [vmem:[%s8070 + $0x68] sm:$0xff]
    %v8718 = vld [vmem:[%s8070 + $0x70] sm:$0xff]
    %v8719 = vld [vmem:[%s8070 + $0x78] sm:$0xff]
    %v8720 = vld [vmem:[%s8070 + $0x80] sm:$0xff]
    %v8721 = vld [vmem:[%s8070 + $0x88] sm:$0xff]
    %v8722 = vld [vmem:[%s8070 + $0x90] sm:$0xff]
    %v8723 = vld [vmem:[%s8070 + $0x98] sm:$0xff]
    %v8724 = vld [vmem:[%s8070 + $0xa0] sm:$0xff]
    %v8725 = vld [vmem:[%s8070 + $0xa8] sm:$0xff]
    %v8726 = vld [vmem:[%s8070 + $0xb0] sm:$0xff]
    %v8727 = vld [vmem:[%s8070 + $0xb8] sm:$0xff]
    %v8728 = vld [vmem:[%s8070 + $0xc0] sm:$0xff]
    %v8729 = vld [vmem:[%s8070 + $0xc8] sm:$0xff]
    %v8730 = vld [vmem:[%s8070 + $0xd0] sm:$0xff]
    %v8731 = vld [vmem:[%s8070 + $0xd8] sm:$0xff]
    %v8732 = vld [vmem:[%s8070 + $0xe0] sm:$0xff]
    %v8733 = vld [vmem:[%s8070 + $0xe8] sm:$0xff]
    %v8734 = vld [vmem:[%s8070 + $0xf0] sm:$0xff]
    %v8735 = vld [vmem:[%s8070 + $0xf8] sm:$0xff]
    %v8736 = vld [vmem:[%s8070 + $0x100] sm:$0xff]
    %v8737 = vld [vmem:[%s8070 + $0x108] sm:$0xff]
    %v8738 = vld [vmem:[%s8070 + $0x110] sm:$0xff]
    %v8739 = vld [vmem:[%s8070 + $0x118] sm:$0xff]
    %v8740 = vld [vmem:[%s8070 + $0x120] sm:$0xff]
    %v8741 = vld [vmem:[%s8070 + $0x128] sm:$0xff]
    %v8742 = vld [vmem:[%s8070 + $0x130] sm:$0xff]
    %v8743 = vld [vmem:[%s8070 + $0x138] sm:$0xff]
    %v8744 = vld [vmem:[%s8070 + $0x140] sm:$0xff]
    %v8745 = vld [vmem:[%s8070 + $0x148] sm:$0xff]
    %v8746 = vld [vmem:[%s8070 + $0x150] sm:$0xff]
    %v8747 = vld [vmem:[%s8070 + $0x158] sm:$0xff]
    %v8748 = vld [vmem:[%s8070 + $0x160] sm:$0xff]
    %v8749 = vld [vmem:[%s8070 + $0x168] sm:$0xff]
    %v8750 = vld [vmem:[%s8070 + $0x170] sm:$0xff]
    %v8751 = vld [vmem:[%s8070 + $0x178] sm:$0xff]
    %v8752 = vld [vmem:[%s8070 + $0x180] sm:$0xff]
    %v8753 = vld [vmem:[%s8070 + $0x188] sm:$0xff]
    %v8754 = vld [vmem:[%s8070 + $0x190] sm:$0xff]
    %v8755 = vld [vmem:[%s8070 + $0x198] sm:$0xff]
    %v8756 = vld [vmem:[%s8070 + $0x1a0] sm:$0xff]
    %v8757 = vld [vmem:[%s8070 + $0x1a8] sm:$0xff]
    %v8758 = vld [vmem:[%s8070 + $0x1b0] sm:$0xff]
    %v8759 = vld [vmem:[%s8070 + $0x1b8] sm:$0xff]
    %v8760 = vld [vmem:[%s8070 + $0x1c0] sm:$0xff]
    %v8761 = vld [vmem:[%s8070 + $0x1c8] sm:$0xff]
    %v8762 = vld [vmem:[%s8070 + $0x1d0] sm:$0xff]
    %v8763 = vld [vmem:[%s8070 + $0x1d8] sm:$0xff]
    %v8764 = vld [vmem:[%s8070 + $0x1e0] sm:$0xff]
    %v8765 = vld [vmem:[%s8070 + $0x1e8] sm:$0xff]
    %v8766 = vld [vmem:[%s8070 + $0x1f0] sm:$0xff]
    %v8767 = vld [vmem:[%s8070 + $0x1f8] sm:$0xff]
    %v8768 = vld [vmem:[%s8070 + $0x200] sm:$0xff]
    %v8769 = vld [vmem:[%s8070 + $0x208] sm:$0xff]
    %v8770 = vld [vmem:[%s8070 + $0x210] sm:$0xff]
    %v8771 = vld [vmem:[%s8070 + $0x218] sm:$0xff]
    %v8772 = vld [vmem:[%s8070 + $0x220] sm:$0xff]
    %v8773 = vld [vmem:[%s8070 + $0x228] sm:$0xff]
    %v8774 = vld [vmem:[%s8070 + $0x230] sm:$0xff]
    %v8775 = vld [vmem:[%s8070 + $0x238] sm:$0xff]
    %v8776 = vld [vmem:[%s8070 + $0x240] sm:$0xff]
    %v8777 = vld [vmem:[%s8070 + $0x248] sm:$0xff]
    %v8778 = vld [vmem:[%s8070 + $0x250] sm:$0xff]
    %v8779 = vld [vmem:[%s8070 + $0x258] sm:$0xff]
    %v8780 = vld [vmem:[%s8070 + $0x260] sm:$0xff]
    %v8781 = vld [vmem:[%s8070 + $0x268] sm:$0xff]
    %v8782 = vld [vmem:[%s8070 + $0x270] sm:$0xff]
    %v8783 = vld [vmem:[%s8070 + $0x278] sm:$0xff]
    %v8784 = vld [vmem:[%s8070 + $0x280] sm:$0xff]
    %v8785 = vld [vmem:[%s8070 + $0x288] sm:$0xff]
    %v8786 = vld [vmem:[%s8070 + $0x290] sm:$0xff]
    %v8787 = vld [vmem:[%s8070 + $0x298] sm:$0xff]
    %v8788 = vld [vmem:[%s8070 + $0x2a0] sm:$0xff]
    %v8789 = vld [vmem:[%s8070 + $0x2a8] sm:$0xff]
    %v8790 = vld [vmem:[%s8070 + $0x2b0] sm:$0xff]
    %v8791 = vld [vmem:[%s8070 + $0x2b8] sm:$0xff]
    %v8792 = vld [vmem:[%s8070 + $0x2c0] sm:$0xff]
    %v8793 = vld [vmem:[%s8070 + $0x2c8] sm:$0xff]
    %v8794 = vld [vmem:[%s8070 + $0x2d0] sm:$0xff]
    %v8795 = vld [vmem:[%s8070 + $0x2d8] sm:$0xff]
    %v8796 = vld [vmem:[%s8070 + $0x2e0] sm:$0xff]
    %v8797 = vld [vmem:[%s8070 + $0x2e8] sm:$0xff]
    %v8798 = vld [vmem:[%s8070 + $0x2f0] sm:$0xff]
    %v8799 = vld [vmem:[%s8070 + $0x2f8] sm:$0xff]
    %v8800 = vld [vmem:[%s8070 + $0x300] sm:$0xff]
    %v8801 = vld [vmem:[%s8070 + $0x308] sm:$0xff]
    %v8802 = vld [vmem:[%s8070 + $0x310] sm:$0xff]
    %v8803 = vld [vmem:[%s8070 + $0x318] sm:$0xff]
    %v8804 = vld [vmem:[%s8070 + $0x320] sm:$0xff]
    %v8805 = vld [vmem:[%s8070 + $0x328] sm:$0xff]
    %v8806 = vld [vmem:[%s8070 + $0x330] sm:$0xff]
    %v8807 = vld [vmem:[%s8070 + $0x338] sm:$0xff]
    %v8808 = vld [vmem:[%s8070 + $0x340] sm:$0xff]
    %v8809 = vld [vmem:[%s8070 + $0x348] sm:$0xff]
    %v8810 = vld [vmem:[%s8070 + $0x350] sm:$0xff]
    %v8811 = vld [vmem:[%s8070 + $0x358] sm:$0xff]
    %v8812 = vld [vmem:[%s8070 + $0x360] sm:$0xff]
    %v8813 = vld [vmem:[%s8070 + $0x368] sm:$0xff]
    %v8814 = vld [vmem:[%s8070 + $0x370] sm:$0xff]
    %v8815 = vld [vmem:[%s8070 + $0x378] sm:$0xff]
    %v8816 = vld [vmem:[%s8070 + $0x380] sm:$0xff]
    %v8817 = vld [vmem:[%s8070 + $0x388] sm:$0xff]
    %v8818 = vld [vmem:[%s8070 + $0x390] sm:$0xff]
    %v8819 = vld [vmem:[%s8070 + $0x398] sm:$0xff]
    %v8820 = vld [vmem:[%s8070 + $0x3a0] sm:$0xff]
    %v8821 = vld [vmem:[%s8070 + $0x3a8] sm:$0xff]
    %v8822 = vld [vmem:[%s8070 + $0x3b0] sm:$0xff]
    %v8823 = vld [vmem:[%s8070 + $0x3b8] sm:$0xff]
    %v8824 = vld [vmem:[%s8070 + $0x3c0] sm:$0xff]
    %v8825 = vld [vmem:[%s8070 + $0x3c8] sm:$0xff]
    %v8826 = vld [vmem:[%s8070 + $0x3d0] sm:$0xff]
    %v8827 = vld [vmem:[%s8070 + $0x3d8] sm:$0xff]
    %v8828 = vld [vmem:[%s8070 + $0x3e0] sm:$0xff]
    %v8829 = vld [vmem:[%s8070 + $0x3e8] sm:$0xff]
    %v8830 = vld [vmem:[%s8070 + $0x3f0] sm:$0xff]
    %v8831 = vld [vmem:[%s8070 + $0x3f8] sm:$0xff]
    %v8832 = vunpack.c.l.s8.bf16 %v8704
    %v8833 = vunpack.c.l.s8.bf16 %v8705
    %v8834 = vunpack.c.l.s8.bf16 %v8706
    %v8835 = vunpack.c.l.s8.bf16 %v8707
    %v8836 = vunpack.c.l.s8.bf16 %v8708
    %v8837 = vunpack.c.l.s8.bf16 %v8709
    %v8838 = vunpack.c.l.s8.bf16 %v8710
    %v8839 = vunpack.c.l.s8.bf16 %v8711
    %v8840 = vunpack.c.h.s8.bf16 %v8704
    %v8841 = vunpack.c.h.s8.bf16 %v8705
    %v8842 = vunpack.c.h.s8.bf16 %v8706
    %v8843 = vunpack.c.h.s8.bf16 %v8707
    %v8844 = vunpack.c.h.s8.bf16 %v8708
    %v8845 = vunpack.c.h.s8.bf16 %v8709
    %v8846 = vunpack.c.h.s8.bf16 %v8710
    %v8847 = vunpack.c.h.s8.bf16 %v8711
    %v8848 = vunpack.c.l.s8.bf16 %v8712
    %v8849 = vunpack.c.l.s8.bf16 %v8713
    %v8850 = vunpack.c.l.s8.bf16 %v8714
    %v8851 = vunpack.c.l.s8.bf16 %v8715
    %v8852 = vunpack.c.l.s8.bf16 %v8716
    %v8853 = vunpack.c.l.s8.bf16 %v8717
    %v8854 = vunpack.c.l.s8.bf16 %v8718
    %v8855 = vunpack.c.l.s8.bf16 %v8719
    %v8856 = vunpack.c.h.s8.bf16 %v8712
    %v8857 = vunpack.c.h.s8.bf16 %v8713
    %v8858 = vunpack.c.h.s8.bf16 %v8714
    %v8859 = vunpack.c.h.s8.bf16 %v8715
    %v8860 = vunpack.c.h.s8.bf16 %v8716
    %v8861 = vunpack.c.h.s8.bf16 %v8717
    %v8862 = vunpack.c.h.s8.bf16 %v8718
    %v8863 = vunpack.c.h.s8.bf16 %v8719
    %v8864 = vunpack.c.l.s8.bf16 %v8720
    %v8865 = vunpack.c.l.s8.bf16 %v8721
    %v8866 = vunpack.c.l.s8.bf16 %v8722
    %v8867 = vunpack.c.l.s8.bf16 %v8723
    %v8868 = vunpack.c.l.s8.bf16 %v8724
    %v8869 = vunpack.c.l.s8.bf16 %v8725
    %v8870 = vunpack.c.l.s8.bf16 %v8726
    %v8871 = vunpack.c.l.s8.bf16 %v8727
    %v8872 = vunpack.c.h.s8.bf16 %v8720
    %v8873 = vunpack.c.h.s8.bf16 %v8721
    %v8874 = vunpack.c.h.s8.bf16 %v8722
    %v8875 = vunpack.c.h.s8.bf16 %v8723
    %v8876 = vunpack.c.h.s8.bf16 %v8724
    %v8877 = vunpack.c.h.s8.bf16 %v8725
    %v8878 = vunpack.c.h.s8.bf16 %v8726
    %v8879 = vunpack.c.h.s8.bf16 %v8727
    %v8880 = vunpack.c.l.s8.bf16 %v8728
    %v8881 = vunpack.c.l.s8.bf16 %v8729
    %v8882 = vunpack.c.l.s8.bf16 %v8730
    %v8883 = vunpack.c.l.s8.bf16 %v8731
    %v8884 = vunpack.c.l.s8.bf16 %v8732
    %v8885 = vunpack.c.l.s8.bf16 %v8733
    %v8886 = vunpack.c.l.s8.bf16 %v8734
    %v8887 = vunpack.c.l.s8.bf16 %v8735
    %v8888 = vunpack.c.h.s8.bf16 %v8728
    %v8889 = vunpack.c.h.s8.bf16 %v8729
    %v8890 = vunpack.c.h.s8.bf16 %v8730
    %v8891 = vunpack.c.h.s8.bf16 %v8731
    %v8892 = vunpack.c.h.s8.bf16 %v8732
    %v8893 = vunpack.c.h.s8.bf16 %v8733
    %v8894 = vunpack.c.h.s8.bf16 %v8734
    %v8895 = vunpack.c.h.s8.bf16 %v8735
    %v8896 = vunpack.c.l.s8.bf16 %v8736
    %v8897 = vunpack.c.l.s8.bf16 %v8737
    %v8898 = vunpack.c.l.s8.bf16 %v8738
    %v8899 = vunpack.c.l.s8.bf16 %v8739
    %v8900 = vunpack.c.l.s8.bf16 %v8740
    %v8901 = vunpack.c.l.s8.bf16 %v8741
    %v8902 = vunpack.c.l.s8.bf16 %v8742
    %v8903 = vunpack.c.l.s8.bf16 %v8743
    %v8904 = vunpack.c.h.s8.bf16 %v8736
    %v8905 = vunpack.c.h.s8.bf16 %v8737
    %v8906 = vunpack.c.h.s8.bf16 %v8738
    %v8907 = vunpack.c.h.s8.bf16 %v8739
    %v8908 = vunpack.c.h.s8.bf16 %v8740
    %v8909 = vunpack.c.h.s8.bf16 %v8741
    %v8910 = vunpack.c.h.s8.bf16 %v8742
    %v8911 = vunpack.c.h.s8.bf16 %v8743
    %v8912 = vunpack.c.l.s8.bf16 %v8744
    %v8913 = vunpack.c.l.s8.bf16 %v8745
    %v8914 = vunpack.c.l.s8.bf16 %v8746
    %v8915 = vunpack.c.l.s8.bf16 %v8747
    %v8916 = vunpack.c.l.s8.bf16 %v8748
    %v8917 = vunpack.c.l.s8.bf16 %v8749
    %v8918 = vunpack.c.l.s8.bf16 %v8750
    %v8919 = vunpack.c.l.s8.bf16 %v8751
    %v8920 = vunpack.c.h.s8.bf16 %v8744
    %v8921 = vunpack.c.h.s8.bf16 %v8745
    %v8922 = vunpack.c.h.s8.bf16 %v8746
    %v8923 = vunpack.c.h.s8.bf16 %v8747
    %v8924 = vunpack.c.h.s8.bf16 %v8748
    %v8925 = vunpack.c.h.s8.bf16 %v8749
    %v8926 = vunpack.c.h.s8.bf16 %v8750
    %v8927 = vunpack.c.h.s8.bf16 %v8751
    %v8928 = vunpack.c.l.s8.bf16 %v8752
    %v8929 = vunpack.c.l.s8.bf16 %v8753
    %v8930 = vunpack.c.l.s8.bf16 %v8754
    %v8931 = vunpack.c.l.s8.bf16 %v8755
    %v8932 = vunpack.c.l.s8.bf16 %v8756
    %v8933 = vunpack.c.l.s8.bf16 %v8757
    %v8934 = vunpack.c.l.s8.bf16 %v8758
    %v8935 = vunpack.c.l.s8.bf16 %v8759
    %v8936 = vunpack.c.h.s8.bf16 %v8752
    %v8937 = vunpack.c.h.s8.bf16 %v8753
    %v8938 = vunpack.c.h.s8.bf16 %v8754
    %v8939 = vunpack.c.h.s8.bf16 %v8755
    %v8940 = vunpack.c.h.s8.bf16 %v8756
    %v8941 = vunpack.c.h.s8.bf16 %v8757
    %v8942 = vunpack.c.h.s8.bf16 %v8758
    %v8943 = vunpack.c.h.s8.bf16 %v8759
    %v8944 = vunpack.c.l.s8.bf16 %v8760
    %v8945 = vunpack.c.l.s8.bf16 %v8761
    %v8946 = vunpack.c.l.s8.bf16 %v8762
    %v8947 = vunpack.c.l.s8.bf16 %v8763
    %v8948 = vunpack.c.l.s8.bf16 %v8764
    %v8949 = vunpack.c.l.s8.bf16 %v8765
    %v8950 = vunpack.c.l.s8.bf16 %v8766
    %v8951 = vunpack.c.l.s8.bf16 %v8767
    %v8952 = vunpack.c.h.s8.bf16 %v8760
    %v8953 = vunpack.c.h.s8.bf16 %v8761
    %v8954 = vunpack.c.h.s8.bf16 %v8762
    %v8955 = vunpack.c.h.s8.bf16 %v8763
    %v8956 = vunpack.c.h.s8.bf16 %v8764
    %v8957 = vunpack.c.h.s8.bf16 %v8765
    %v8958 = vunpack.c.h.s8.bf16 %v8766
    %v8959 = vunpack.c.h.s8.bf16 %v8767
    %v8960 = vunpack.c.l.s8.bf16 %v8768
    %v8961 = vunpack.c.l.s8.bf16 %v8769
    %v8962 = vunpack.c.l.s8.bf16 %v8770
    %v8963 = vunpack.c.l.s8.bf16 %v8771
    %v8964 = vunpack.c.l.s8.bf16 %v8772
    %v8965 = vunpack.c.l.s8.bf16 %v8773
    %v8966 = vunpack.c.l.s8.bf16 %v8774
    %v8967 = vunpack.c.l.s8.bf16 %v8775
    %v8968 = vunpack.c.h.s8.bf16 %v8768
    %v8969 = vunpack.c.h.s8.bf16 %v8769
    %v8970 = vunpack.c.h.s8.bf16 %v8770
    %v8971 = vunpack.c.h.s8.bf16 %v8771
    %v8972 = vunpack.c.h.s8.bf16 %v8772
    %v8973 = vunpack.c.h.s8.bf16 %v8773
    %v8974 = vunpack.c.h.s8.bf16 %v8774
    %v8975 = vunpack.c.h.s8.bf16 %v8775
    %v8976 = vunpack.c.l.s8.bf16 %v8776
    %v8977 = vunpack.c.l.s8.bf16 %v8777
    %v8978 = vunpack.c.l.s8.bf16 %v8778
    %v8979 = vunpack.c.l.s8.bf16 %v8779
    %v8980 = vunpack.c.l.s8.bf16 %v8780
    %v8981 = vunpack.c.l.s8.bf16 %v8781
    %v8982 = vunpack.c.l.s8.bf16 %v8782
    %v8983 = vunpack.c.l.s8.bf16 %v8783
    %v8984 = vunpack.c.h.s8.bf16 %v8776
    %v8985 = vunpack.c.h.s8.bf16 %v8777
    %v8986 = vunpack.c.h.s8.bf16 %v8778
    %v8987 = vunpack.c.h.s8.bf16 %v8779
    %v8988 = vunpack.c.h.s8.bf16 %v8780
    %v8989 = vunpack.c.h.s8.bf16 %v8781
    %v8990 = vunpack.c.h.s8.bf16 %v8782
    %v8991 = vunpack.c.h.s8.bf16 %v8783
    %v8992 = vunpack.c.l.s8.bf16 %v8784
    %v8993 = vunpack.c.l.s8.bf16 %v8785
    %v8994 = vunpack.c.l.s8.bf16 %v8786
    %v8995 = vunpack.c.l.s8.bf16 %v8787
    %v8996 = vunpack.c.l.s8.bf16 %v8788
    %v8997 = vunpack.c.l.s8.bf16 %v8789
    %v8998 = vunpack.c.l.s8.bf16 %v8790
    %v8999 = vunpack.c.l.s8.bf16 %v8791
    %v9000 = vunpack.c.h.s8.bf16 %v8784
    %v9001 = vunpack.c.h.s8.bf16 %v8785
    %v9002 = vunpack.c.h.s8.bf16 %v8786
    %v9003 = vunpack.c.h.s8.bf16 %v8787
    %v9004 = vunpack.c.h.s8.bf16 %v8788
    %v9005 = vunpack.c.h.s8.bf16 %v8789
    %v9006 = vunpack.c.h.s8.bf16 %v8790
    %v9007 = vunpack.c.h.s8.bf16 %v8791
    %v9008 = vunpack.c.l.s8.bf16 %v8792
    %v9009 = vunpack.c.l.s8.bf16 %v8793
    %v9010 = vunpack.c.l.s8.bf16 %v8794
    %v9011 = vunpack.c.l.s8.bf16 %v8795
    %v9012 = vunpack.c.l.s8.bf16 %v8796
    %v9013 = vunpack.c.l.s8.bf16 %v8797
    %v9014 = vunpack.c.l.s8.bf16 %v8798
    %v9015 = vunpack.c.l.s8.bf16 %v8799
    %v9016 = vunpack.c.h.s8.bf16 %v8792
    %v9017 = vunpack.c.h.s8.bf16 %v8793
    %v9018 = vunpack.c.h.s8.bf16 %v8794
    %v9019 = vunpack.c.h.s8.bf16 %v8795
    %v9020 = vunpack.c.h.s8.bf16 %v8796
    %v9021 = vunpack.c.h.s8.bf16 %v8797
    %v9022 = vunpack.c.h.s8.bf16 %v8798
    %v9023 = vunpack.c.h.s8.bf16 %v8799
    %v9024 = vunpack.c.l.s8.bf16 %v8800
    %v9025 = vunpack.c.l.s8.bf16 %v8801
    %v9026 = vunpack.c.l.s8.bf16 %v8802
    %v9027 = vunpack.c.l.s8.bf16 %v8803
    %v9028 = vunpack.c.l.s8.bf16 %v8804
    %v9029 = vunpack.c.l.s8.bf16 %v8805
    %v9030 = vunpack.c.l.s8.bf16 %v8806
    %v9031 = vunpack.c.l.s8.bf16 %v8807
    %v9032 = vunpack.c.h.s8.bf16 %v8800
    %v9033 = vunpack.c.h.s8.bf16 %v8801
    %v9034 = vunpack.c.h.s8.bf16 %v8802
    %v9035 = vunpack.c.h.s8.bf16 %v8803
    %v9036 = vunpack.c.h.s8.bf16 %v8804
    %v9037 = vunpack.c.h.s8.bf16 %v8805
    %v9038 = vunpack.c.h.s8.bf16 %v8806
    %v9039 = vunpack.c.h.s8.bf16 %v8807
    %v9040 = vunpack.c.l.s8.bf16 %v8808
    %v9041 = vunpack.c.l.s8.bf16 %v8809
    %v9042 = vunpack.c.l.s8.bf16 %v8810
    %v9043 = vunpack.c.l.s8.bf16 %v8811
    %v9044 = vunpack.c.l.s8.bf16 %v8812
    %v9045 = vunpack.c.l.s8.bf16 %v8813
    %v9046 = vunpack.c.l.s8.bf16 %v8814
    %v9047 = vunpack.c.l.s8.bf16 %v8815
    %v9048 = vunpack.c.h.s8.bf16 %v8808
    %v9049 = vunpack.c.h.s8.bf16 %v8809
    %v9050 = vunpack.c.h.s8.bf16 %v8810
    %v9051 = vunpack.c.h.s8.bf16 %v8811
    %v9052 = vunpack.c.h.s8.bf16 %v8812
    %v9053 = vunpack.c.h.s8.bf16 %v8813
    %v9054 = vunpack.c.h.s8.bf16 %v8814
    %v9055 = vunpack.c.h.s8.bf16 %v8815
    %v9056 = vunpack.c.l.s8.bf16 %v8816
    %v9057 = vunpack.c.l.s8.bf16 %v8817
    %v9058 = vunpack.c.l.s8.bf16 %v8818
    %v9059 = vunpack.c.l.s8.bf16 %v8819
    %v9060 = vunpack.c.l.s8.bf16 %v8820
    %v9061 = vunpack.c.l.s8.bf16 %v8821
    %v9062 = vunpack.c.l.s8.bf16 %v8822
    %v9063 = vunpack.c.l.s8.bf16 %v8823
    %v9064 = vunpack.c.h.s8.bf16 %v8816
    %v9065 = vunpack.c.h.s8.bf16 %v8817
    %v9066 = vunpack.c.h.s8.bf16 %v8818
    %v9067 = vunpack.c.h.s8.bf16 %v8819
    %v9068 = vunpack.c.h.s8.bf16 %v8820
    %v9069 = vunpack.c.h.s8.bf16 %v8821
    %v9070 = vunpack.c.h.s8.bf16 %v8822
    %v9071 = vunpack.c.h.s8.bf16 %v8823
    %v9072 = vunpack.c.l.s8.bf16 %v8824
    %v9073 = vunpack.c.l.s8.bf16 %v8825
    %v9074 = vunpack.c.l.s8.bf16 %v8826
    %v9075 = vunpack.c.l.s8.bf16 %v8827
    %v9076 = vunpack.c.l.s8.bf16 %v8828
    %v9077 = vunpack.c.l.s8.bf16 %v8829
    %v9078 = vunpack.c.l.s8.bf16 %v8830
    %v9079 = vunpack.c.l.s8.bf16 %v8831
    %v9080 = vunpack.c.h.s8.bf16 %v8824
    %v9081 = vunpack.c.h.s8.bf16 %v8825
    %v9082 = vunpack.c.h.s8.bf16 %v8826
    %v9083 = vunpack.c.h.s8.bf16 %v8827
    %v9084 = vunpack.c.h.s8.bf16 %v8828
    %v9085 = vunpack.c.h.s8.bf16 %v8829
    %v9086 = vunpack.c.h.s8.bf16 %v8830
    %v9087 = vunpack.c.h.s8.bf16 %v8831
    %9088 = vmatprep.subr.bf16.mxu0 %v8889
    %9089 = vmatpush1.bf16.msra.mxu0 %v8888
    %9090 = vmatprep.subr.bf16.mxu0 %v8881
    %9091 = vmatpush1.bf16.msra.mxu0 %v8880
    %9092 = vmatprep.subr.bf16.mxu0 %v8873
    %9093 = vmatpush1.bf16.msra.mxu0 %v8872
    %9094 = vmatprep.subr.bf16.mxu0 %v8865
    %9095 = vmatpush1.bf16.msra.mxu0 %v8864
    %9096 = vmatprep.subr.bf16.mxu0 %v8857
    %9097 = vmatpush1.bf16.msra.mxu0 %v8856
    %9098 = vmatprep.subr.bf16.mxu0 %v8849
    %9099 = vmatpush1.bf16.msra.mxu0 %v8848
    %9100 = vmatprep.subr.bf16.mxu0 %v8841
    %9101 = vmatpush1.bf16.msra.mxu0 %v8840
    %9102 = vmatprep.subr.bf16.mxu0 %v8833
    %9103 = vmatpush1.bf16.msra.mxu0 %v8832
    %9104 = vmatprep.subr.bf16.mxu0 %v8953
    %9105 = vmatpush2.bf16.msra.mxu0 %v8952
    %9106 = vmatprep.subr.bf16.mxu0 %v8945
    %9107 = vmatpush2.bf16.msra.mxu0 %v8944
    %9108 = vmatprep.subr.bf16.mxu0 %v8937
    %9109 = vmatpush2.bf16.msra.mxu0 %v8936
    %9110 = vmatprep.subr.bf16.mxu0 %v8929
    %9111 = vmatpush2.bf16.msra.mxu0 %v8928
    %9112 = vmatprep.subr.bf16.mxu0 %v8921
    %9113 = vmatpush2.bf16.msra.mxu0 %v8920
    %9114 = vmatprep.subr.bf16.mxu0 %v8913
    %9115 = vmatpush2.bf16.msra.mxu0 %v8912
    %9116 = vmatprep.subr.bf16.mxu0 %v8905
    %9117 = vmatpush2.bf16.msra.mxu0 %v8904
    %9118 = vmatprep.subr.bf16.mxu0 %v8897
    %9119 = vmatpush2.bf16.msra.mxu0 %v8896
    %9120 = vmatprep.mubr.bf16.mxu0 %v8312
    %9121 = vmatmul.mubr.bf16.gmra.mxu0 %v8311
    %v9122 = vpop.f32.mrf.mxu0
    %v9123 = vadd.f32 0.0, %v9122
    %v9124 = vpop.f32.mrf.mxu0
    %v9125 = vadd.f32 0.0, %v9124
    %v9126 = vpop.f32.mrf.mxu0
    %v9127 = vpop.f32.mrf.mxu0
    %9128 = vdwg.mxu0
    %9129 = vmatprep.subr.bf16.mxu0 %v9017
    %9130 = vmatpush1.bf16.msra.mxu0 %v9016
    %9131 = vmatprep.subr.bf16.mxu0 %v9009
    %9132 = vmatpush1.bf16.msra.mxu0 %v9008
    %9133 = vmatprep.subr.bf16.mxu0 %v9001
    %9134 = vmatpush1.bf16.msra.mxu0 %v9000
    %9135 = vmatprep.subr.bf16.mxu0 %v8993
    %9136 = vmatpush1.bf16.msra.mxu0 %v8992
    %9137 = vmatprep.subr.bf16.mxu0 %v8985
    %9138 = vmatpush1.bf16.msra.mxu0 %v8984
    %9139 = vmatprep.subr.bf16.mxu0 %v8977
    %9140 = vmatpush1.bf16.msra.mxu0 %v8976
    %9141 = vmatprep.subr.bf16.mxu0 %v8969
    %9142 = vmatpush1.bf16.msra.mxu0 %v8968
    %9143 = vmatprep.subr.bf16.mxu0 %v8961
    %9144 = vmatpush1.bf16.msra.mxu0 %v8960
    %9145 = vmatprep.subr.bf16.mxu0 %v9081
    %9146 = vmatpush2.bf16.msra.mxu0 %v9080
    %9147 = vmatprep.subr.bf16.mxu0 %v9073
    %9148 = vmatpush2.bf16.msra.mxu0 %v9072
    %9149 = vmatprep.subr.bf16.mxu0 %v9065
    %9150 = vmatpush2.bf16.msra.mxu0 %v9064
    %9151 = vmatprep.subr.bf16.mxu0 %v9057
    %9152 = vmatpush2.bf16.msra.mxu0 %v9056
    %9153 = vmatprep.subr.bf16.mxu0 %v9049
    %9154 = vmatpush2.bf16.msra.mxu0 %v9048
    %9155 = vmatprep.subr.bf16.mxu0 %v9041
    %9156 = vmatpush2.bf16.msra.mxu0 %v9040
    %9157 = vmatprep.subr.bf16.mxu0 %v9033
    %9158 = vmatpush2.bf16.msra.mxu0 %v9032
    %9159 = vmatprep.subr.bf16.mxu0 %v9025
    %9160 = vmatpush2.bf16.msra.mxu0 %v9024
    %9161 = vmatprep.mubr.bf16.mxu0 %v8314
    %9162 = vmatmul.mubr.bf16.gmra.mxu0 %v8313
    %v9163 = vpop.f32.mrf.mxu0
    %v9164 = vadd.f32 %v9123, %v9163
    %v9165 = vpop.f32.mrf.mxu0
    %v9166 = vadd.f32 %v9125, %v9165
    %v9167 = vpop.f32.mrf.mxu0
    %v9168 = vpop.f32.mrf.mxu0
    %9169 = vdwg.mxu0
    %9170 = vmatprep.subr.bf16.mxu0 %v8891
    %9171 = vmatpush1.bf16.msra.mxu0 %v8890
    %9172 = vmatprep.subr.bf16.mxu0 %v8883
    %9173 = vmatpush1.bf16.msra.mxu0 %v8882
    %9174 = vmatprep.subr.bf16.mxu0 %v8875
    %9175 = vmatpush1.bf16.msra.mxu0 %v8874
    %9176 = vmatprep.subr.bf16.mxu0 %v8867
    %9177 = vmatpush1.bf16.msra.mxu0 %v8866
    %9178 = vmatprep.subr.bf16.mxu0 %v8859
    %9179 = vmatpush1.bf16.msra.mxu0 %v8858
    %9180 = vmatprep.subr.bf16.mxu0 %v8851
    %9181 = vmatpush1.bf16.msra.mxu0 %v8850
    %9182 = vmatprep.subr.bf16.mxu0 %v8843
    %9183 = vmatpush1.bf16.msra.mxu0 %v8842
    %9184 = vmatprep.subr.bf16.mxu0 %v8835
    %9185 = vmatpush1.bf16.msra.mxu0 %v8834
    %9186 = vmatprep.subr.bf16.mxu0 %v8955
    %9187 = vmatpush2.bf16.msra.mxu0 %v8954
    %9188 = vmatprep.subr.bf16.mxu0 %v8947
    %9189 = vmatpush2.bf16.msra.mxu0 %v8946
    %9190 = vmatprep.subr.bf16.mxu0 %v8939
    %9191 = vmatpush2.bf16.msra.mxu0 %v8938
    %9192 = vmatprep.subr.bf16.mxu0 %v8931
    %9193 = vmatpush2.bf16.msra.mxu0 %v8930
    %9194 = vmatprep.subr.bf16.mxu0 %v8923
    %9195 = vmatpush2.bf16.msra.mxu0 %v8922
    %9196 = vmatprep.subr.bf16.mxu0 %v8915
    %9197 = vmatpush2.bf16.msra.mxu0 %v8914
    %9198 = vmatprep.subr.bf16.mxu0 %v8907
    %9199 = vmatpush2.bf16.msra.mxu0 %v8906
    %9200 = vmatprep.subr.bf16.mxu0 %v8899
    %9201 = vmatpush2.bf16.msra.mxu0 %v8898
    %9202 = vmatprep.mubr.bf16.mxu0 %v8312
    %9203 = vmatmul.mubr.bf16.gmra.mxu0 %v8311
    %v9204 = vpop.f32.mrf.mxu0
    %v9205 = vadd.f32 0.0, %v9204
    %v9206 = vpop.f32.mrf.mxu0
    %v9207 = vadd.f32 0.0, %v9206
    %v9208 = vpop.f32.mrf.mxu0
    %v9209 = vpop.f32.mrf.mxu0
    %9210 = vdwg.mxu0
    %9211 = vmatprep.subr.bf16.mxu0 %v9019
    %9212 = vmatpush1.bf16.msra.mxu0 %v9018
    %9213 = vmatprep.subr.bf16.mxu0 %v9011
    %9214 = vmatpush1.bf16.msra.mxu0 %v9010
    %9215 = vmatprep.subr.bf16.mxu0 %v9003
    %9216 = vmatpush1.bf16.msra.mxu0 %v9002
    %9217 = vmatprep.subr.bf16.mxu0 %v8995
    %9218 = vmatpush1.bf16.msra.mxu0 %v8994
    %9219 = vmatprep.subr.bf16.mxu0 %v8987
    %9220 = vmatpush1.bf16.msra.mxu0 %v8986
    %9221 = vmatprep.subr.bf16.mxu0 %v8979
    %9222 = vmatpush1.bf16.msra.mxu0 %v8978
    %9223 = vmatprep.subr.bf16.mxu0 %v8971
    %9224 = vmatpush1.bf16.msra.mxu0 %v8970
    %9225 = vmatprep.subr.bf16.mxu0 %v8963
    %9226 = vmatpush1.bf16.msra.mxu0 %v8962
    %9227 = vmatprep.subr.bf16.mxu0 %v9083
    %9228 = vmatpush2.bf16.msra.mxu0 %v9082
    %9229 = vmatprep.subr.bf16.mxu0 %v9075
    %9230 = vmatpush2.bf16.msra.mxu0 %v9074
    %9231 = vmatprep.subr.bf16.mxu0 %v9067
    %9232 = vmatpush2.bf16.msra.mxu0 %v9066
    %9233 = vmatprep.subr.bf16.mxu0 %v9059
    %9234 = vmatpush2.bf16.msra.mxu0 %v9058
    %9235 = vmatprep.subr.bf16.mxu0 %v9051
    %9236 = vmatpush2.bf16.msra.mxu0 %v9050
    %9237 = vmatprep.subr.bf16.mxu0 %v9043
    %9238 = vmatpush2.bf16.msra.mxu0 %v9042
    %9239 = vmatprep.subr.bf16.mxu0 %v9035
    %9240 = vmatpush2.bf16.msra.mxu0 %v9034
    %9241 = vmatprep.subr.bf16.mxu0 %v9027
    %9242 = vmatpush2.bf16.msra.mxu0 %v9026
    %9243 = vmatprep.mubr.bf16.mxu0 %v8314
    %9244 = vmatmul.mubr.bf16.gmra.mxu0 %v8313
    %v9245 = vpop.f32.mrf.mxu0
    %v9246 = vadd.f32 %v9205, %v9245
    %v9247 = vpop.f32.mrf.mxu0
    %v9248 = vadd.f32 %v9207, %v9247
    %v9249 = vpop.f32.mrf.mxu0
    %v9250 = vpop.f32.mrf.mxu0
    %9251 = vdwg.mxu0
    %9252 = vmatprep.subr.bf16.mxu0 %v8893
    %9253 = vmatpush1.bf16.msra.mxu0 %v8892
    %9254 = vmatprep.subr.bf16.mxu0 %v8885
    %9255 = vmatpush1.bf16.msra.mxu0 %v8884
    %9256 = vmatprep.subr.bf16.mxu0 %v8877
    %9257 = vmatpush1.bf16.msra.mxu0 %v8876
    %9258 = vmatprep.subr.bf16.mxu0 %v8869
    %9259 = vmatpush1.bf16.msra.mxu0 %v8868
    %9260 = vmatprep.subr.bf16.mxu0 %v8861
    %9261 = vmatpush1.bf16.msra.mxu0 %v8860
    %9262 = vmatprep.subr.bf16.mxu0 %v8853
    %9263 = vmatpush1.bf16.msra.mxu0 %v8852
    %9264 = vmatprep.subr.bf16.mxu0 %v8845
    %9265 = vmatpush1.bf16.msra.mxu0 %v8844
    %9266 = vmatprep.subr.bf16.mxu0 %v8837
    %9267 = vmatpush1.bf16.msra.mxu0 %v8836
    %9268 = vmatprep.subr.bf16.mxu0 %v8957
    %9269 = vmatpush2.bf16.msra.mxu0 %v8956
    %9270 = vmatprep.subr.bf16.mxu0 %v8949
    %9271 = vmatpush2.bf16.msra.mxu0 %v8948
    %9272 = vmatprep.subr.bf16.mxu0 %v8941
    %9273 = vmatpush2.bf16.msra.mxu0 %v8940
    %9274 = vmatprep.subr.bf16.mxu0 %v8933
    %9275 = vmatpush2.bf16.msra.mxu0 %v8932
    %9276 = vmatprep.subr.bf16.mxu0 %v8925
    %9277 = vmatpush2.bf16.msra.mxu0 %v8924
    %9278 = vmatprep.subr.bf16.mxu0 %v8917
    %9279 = vmatpush2.bf16.msra.mxu0 %v8916
    %9280 = vmatprep.subr.bf16.mxu0 %v8909
    %9281 = vmatpush2.bf16.msra.mxu0 %v8908
    %9282 = vmatprep.subr.bf16.mxu0 %v8901
    %9283 = vmatpush2.bf16.msra.mxu0 %v8900
    %9284 = vmatprep.mubr.bf16.mxu0 %v8312
    %9285 = vmatmul.mubr.bf16.gmra.mxu0 %v8311
    %v9286 = vpop.f32.mrf.mxu0
    %v9287 = vadd.f32 0.0, %v9286
    %v9288 = vpop.f32.mrf.mxu0
    %v9289 = vadd.f32 0.0, %v9288
    %v9290 = vpop.f32.mrf.mxu0
    %v9291 = vpop.f32.mrf.mxu0
    %9292 = vdwg.mxu0
    %9293 = vmatprep.subr.bf16.mxu0 %v9021
    %9294 = vmatpush1.bf16.msra.mxu0 %v9020
    %9295 = vmatprep.subr.bf16.mxu0 %v9013
    %9296 = vmatpush1.bf16.msra.mxu0 %v9012
    %9297 = vmatprep.subr.bf16.mxu0 %v9005
    %9298 = vmatpush1.bf16.msra.mxu0 %v9004
    %9299 = vmatprep.subr.bf16.mxu0 %v8997
    %9300 = vmatpush1.bf16.msra.mxu0 %v8996
    %9301 = vmatprep.subr.bf16.mxu0 %v8989
    %9302 = vmatpush1.bf16.msra.mxu0 %v8988
    %9303 = vmatprep.subr.bf16.mxu0 %v8981
    %9304 = vmatpush1.bf16.msra.mxu0 %v8980
    %9305 = vmatprep.subr.bf16.mxu0 %v8973
    %9306 = vmatpush1.bf16.msra.mxu0 %v8972
    %9307 = vmatprep.subr.bf16.mxu0 %v8965
    %9308 = vmatpush1.bf16.msra.mxu0 %v8964
    %9309 = vmatprep.subr.bf16.mxu0 %v9085
    %9310 = vmatpush2.bf16.msra.mxu0 %v9084
    %9311 = vmatprep.subr.bf16.mxu0 %v9077
    %9312 = vmatpush2.bf16.msra.mxu0 %v9076
    %9313 = vmatprep.subr.bf16.mxu0 %v9069
    %9314 = vmatpush2.bf16.msra.mxu0 %v9068
    %9315 = vmatprep.subr.bf16.mxu0 %v9061
    %9316 = vmatpush2.bf16.msra.mxu0 %v9060
    %9317 = vmatprep.subr.bf16.mxu0 %v9053
    %9318 = vmatpush2.bf16.msra.mxu0 %v9052
    %9319 = vmatprep.subr.bf16.mxu0 %v9045
    %9320 = vmatpush2.bf16.msra.mxu0 %v9044
    %9321 = vmatprep.subr.bf16.mxu0 %v9037
    %9322 = vmatpush2.bf16.msra.mxu0 %v9036
    %9323 = vmatprep.subr.bf16.mxu0 %v9029
    %9324 = vmatpush2.bf16.msra.mxu0 %v9028
    %9325 = vmatprep.mubr.bf16.mxu0 %v8314
    %9326 = vmatmul.mubr.bf16.gmra.mxu0 %v8313
    %v9327 = vpop.f32.mrf.mxu0
    %v9328 = vadd.f32 %v9287, %v9327
    %v9329 = vpop.f32.mrf.mxu0
    %v9330 = vadd.f32 %v9289, %v9329
    %v9331 = vpop.f32.mrf.mxu0
    %v9332 = vpop.f32.mrf.mxu0
    %9333 = vdwg.mxu0
    %9334 = vmatprep.subr.bf16.mxu0 %v8895
    %9335 = vmatpush1.bf16.msra.mxu0 %v8894
    %9336 = vmatprep.subr.bf16.mxu0 %v8887
    %9337 = vmatpush1.bf16.msra.mxu0 %v8886
    %9338 = vmatprep.subr.bf16.mxu0 %v8879
    %9339 = vmatpush1.bf16.msra.mxu0 %v8878
    %9340 = vmatprep.subr.bf16.mxu0 %v8871
    %9341 = vmatpush1.bf16.msra.mxu0 %v8870
    %9342 = vmatprep.subr.bf16.mxu0 %v8863
    %9343 = vmatpush1.bf16.msra.mxu0 %v8862
    %9344 = vmatprep.subr.bf16.mxu0 %v8855
    %9345 = vmatpush1.bf16.msra.mxu0 %v8854
    %9346 = vmatprep.subr.bf16.mxu0 %v8847
    %9347 = vmatpush1.bf16.msra.mxu0 %v8846
    %9348 = vmatprep.subr.bf16.mxu0 %v8839
    %9349 = vmatpush1.bf16.msra.mxu0 %v8838
    %9350 = vmatprep.subr.bf16.mxu0 %v8959
    %9351 = vmatpush2.bf16.msra.mxu0 %v8958
    %9352 = vmatprep.subr.bf16.mxu0 %v8951
    %9353 = vmatpush2.bf16.msra.mxu0 %v8950
    %9354 = vmatprep.subr.bf16.mxu0 %v8943
    %9355 = vmatpush2.bf16.msra.mxu0 %v8942
    %9356 = vmatprep.subr.bf16.mxu0 %v8935
    %9357 = vmatpush2.bf16.msra.mxu0 %v8934
    %9358 = vmatprep.subr.bf16.mxu0 %v8927
    %9359 = vmatpush2.bf16.msra.mxu0 %v8926
    %9360 = vmatprep.subr.bf16.mxu0 %v8919
    %9361 = vmatpush2.bf16.msra.mxu0 %v8918
    %9362 = vmatprep.subr.bf16.mxu0 %v8911
    %9363 = vmatpush2.bf16.msra.mxu0 %v8910
    %9364 = vmatprep.subr.bf16.mxu0 %v8903
    %9365 = vmatpush2.bf16.msra.mxu0 %v8902
    %9366 = vmatprep.mubr.bf16.mxu0 %v8312
    %9367 = vmatmul.mubr.bf16.gmra.mxu0 %v8311
    %v9368 = vpop.f32.mrf.mxu0
    %v9369 = vadd.f32 0.0, %v9368
    %v9370 = vpop.f32.mrf.mxu0
    %v9371 = vadd.f32 0.0, %v9370
    %v9372 = vpop.f32.mrf.mxu0
    %v9373 = vpop.f32.mrf.mxu0
    %9374 = vdwg.mxu0
    %9375 = vmatprep.subr.bf16.mxu0 %v9023
    %9376 = vmatpush1.bf16.msra.mxu0 %v9022
    %9377 = vmatprep.subr.bf16.mxu0 %v9015
    %9378 = vmatpush1.bf16.msra.mxu0 %v9014
    %9379 = vmatprep.subr.bf16.mxu0 %v9007
    %9380 = vmatpush1.bf16.msra.mxu0 %v9006
    %9381 = vmatprep.subr.bf16.mxu0 %v8999
    %9382 = vmatpush1.bf16.msra.mxu0 %v8998
    %9383 = vmatprep.subr.bf16.mxu0 %v8991
    %9384 = vmatpush1.bf16.msra.mxu0 %v8990
    %9385 = vmatprep.subr.bf16.mxu0 %v8983
    %9386 = vmatpush1.bf16.msra.mxu0 %v8982
    %9387 = vmatprep.subr.bf16.mxu0 %v8975
    %9388 = vmatpush1.bf16.msra.mxu0 %v8974
    %9389 = vmatprep.subr.bf16.mxu0 %v8967
    %9390 = vmatpush1.bf16.msra.mxu0 %v8966
    %9391 = vmatprep.subr.bf16.mxu0 %v9087
    %9392 = vmatpush2.bf16.msra.mxu0 %v9086
    %9393 = vmatprep.subr.bf16.mxu0 %v9079
    %9394 = vmatpush2.bf16.msra.mxu0 %v9078
    %9395 = vmatprep.subr.bf16.mxu0 %v9071
    %9396 = vmatpush2.bf16.msra.mxu0 %v9070
    %9397 = vmatprep.subr.bf16.mxu0 %v9063
    %9398 = vmatpush2.bf16.msra.mxu0 %v9062
    %9399 = vmatprep.subr.bf16.mxu0 %v9055
    %9400 = vmatpush2.bf16.msra.mxu0 %v9054
    %9401 = vmatprep.subr.bf16.mxu0 %v9047
    %9402 = vmatpush2.bf16.msra.mxu0 %v9046
    %9403 = vmatprep.subr.bf16.mxu0 %v9039
    %9404 = vmatpush2.bf16.msra.mxu0 %v9038
    %9405 = vmatprep.subr.bf16.mxu0 %v9031
    %9406 = vmatpush2.bf16.msra.mxu0 %v9030
    %9407 = vmatprep.mubr.bf16.mxu0 %v8314
    %9408 = vmatmul.mubr.bf16.gmra.mxu0 %v8313
    %v9409 = vpop.f32.mrf.mxu0
    %v9410 = vadd.f32 %v9369, %v9409
    %v9411 = vpop.f32.mrf.mxu0
    %v9412 = vadd.f32 %v9371, %v9411
    %v9413 = vpop.f32.mrf.mxu0
    %v9414 = vpop.f32.mrf.mxu0
    %9415 = vdwg.mxu0
    %9416 = vmatprep.subr.bf16.mxu0 %v8503
    %9417 = vmatpush1.bf16.msra.mxu0 %v8502
    %9418 = vmatprep.subr.bf16.mxu0 %v8495
    %9419 = vmatpush1.bf16.msra.mxu0 %v8494
    %9420 = vmatprep.subr.bf16.mxu0 %v8487
    %9421 = vmatpush1.bf16.msra.mxu0 %v8486
    %9422 = vmatprep.subr.bf16.mxu0 %v8479
    %9423 = vmatpush1.bf16.msra.mxu0 %v8478
    %9424 = vmatprep.subr.bf16.mxu0 %v8471
    %9425 = vmatpush1.bf16.msra.mxu0 %v8470
    %9426 = vmatprep.subr.bf16.mxu0 %v8463
    %9427 = vmatpush1.bf16.msra.mxu0 %v8462
    %9428 = vmatprep.subr.bf16.mxu0 %v8455
    %9429 = vmatpush1.bf16.msra.mxu0 %v8454
    %9430 = vmatprep.subr.bf16.mxu0 %v8447
    %9431 = vmatpush1.bf16.msra.mxu0 %v8446
    %9432 = vmatprep.subr.bf16.mxu0 %v8567
    %9433 = vmatpush2.bf16.msra.mxu0 %v8566
    %9434 = vmatprep.subr.bf16.mxu0 %v8559
    %9435 = vmatpush2.bf16.msra.mxu0 %v8558
    %9436 = vmatprep.subr.bf16.mxu0 %v8551
    %9437 = vmatpush2.bf16.msra.mxu0 %v8550
    %9438 = vmatprep.subr.bf16.mxu0 %v8543
    %9439 = vmatpush2.bf16.msra.mxu0 %v8542
    %9440 = vmatprep.subr.bf16.mxu0 %v8535
    %9441 = vmatpush2.bf16.msra.mxu0 %v8534
    %9442 = vmatprep.subr.bf16.mxu0 %v8527
    %9443 = vmatpush2.bf16.msra.mxu0 %v8526
    %9444 = vmatprep.subr.bf16.mxu0 %v8519
    %9445 = vmatpush2.bf16.msra.mxu0 %v8518
    %9446 = vmatprep.subr.bf16.mxu0 %v8511
    %9447 = vmatpush2.bf16.msra.mxu0 %v8510
    %9448 = vmatprep.mubr.bf16.mxu0 %v8308
    %9449 = vmatmul.mubr.bf16.gmra.mxu0 %v8307
    %v9450 = vpop.f32.mrf.mxu0
    %v9451 = vadd.f32 %v9164, %v9450
    %v9452 = vpop.f32.mrf.mxu0
    %v9453 = vadd.f32 %v9166, %v9452
    %v9454 = vpop.f32.mrf.mxu0
    %v9455 = vpop.f32.mrf.mxu0
    %9456 = vdwg.mxu0
    %9457 = vmatprep.subr.bf16.mxu0 %v8631
    %9458 = vmatpush1.bf16.msra.mxu0 %v8630
    %9459 = vmatprep.subr.bf16.mxu0 %v8623
    %9460 = vmatpush1.bf16.msra.mxu0 %v8622
    %9461 = vmatprep.subr.bf16.mxu0 %v8615
    %9462 = vmatpush1.bf16.msra.mxu0 %v8614
    %9463 = vmatprep.subr.bf16.mxu0 %v8607
    %9464 = vmatpush1.bf16.msra.mxu0 %v8606
    %9465 = vmatprep.subr.bf16.mxu0 %v8599
    %9466 = vmatpush1.bf16.msra.mxu0 %v8598
    %9467 = vmatprep.subr.bf16.mxu0 %v8591
    %9468 = vmatpush1.bf16.msra.mxu0 %v8590
    %9469 = vmatprep.subr.bf16.mxu0 %v8583
    %9470 = vmatpush1.bf16.msra.mxu0 %v8582
    %9471 = vmatprep.subr.bf16.mxu0 %v8575
    %9472 = vmatpush1.bf16.msra.mxu0 %v8574
    %9473 = vmatprep.subr.bf16.mxu0 %v8695
    %9474 = vmatpush2.bf16.msra.mxu0 %v8694
    %9475 = vmatprep.subr.bf16.mxu0 %v8687
    %9476 = vmatpush2.bf16.msra.mxu0 %v8686
    %9477 = vmatprep.subr.bf16.mxu0 %v8679
    %9478 = vmatpush2.bf16.msra.mxu0 %v8678
    %9479 = vmatprep.subr.bf16.mxu0 %v8671
    %9480 = vmatpush2.bf16.msra.mxu0 %v8670
    %9481 = vmatprep.subr.bf16.mxu0 %v8663
    %9482 = vmatpush2.bf16.msra.mxu0 %v8662
    %9483 = vmatprep.subr.bf16.mxu0 %v8655
    %9484 = vmatpush2.bf16.msra.mxu0 %v8654
    %9485 = vmatprep.subr.bf16.mxu0 %v8647
    %9486 = vmatpush2.bf16.msra.mxu0 %v8646
    %9487 = vmatprep.subr.bf16.mxu0 %v8639
    %9488 = vmatpush2.bf16.msra.mxu0 %v8638
    %9489 = vmatprep.mubr.bf16.mxu0 %v8310
    %9490 = vmatmul.mubr.bf16.gmra.mxu0 %v8309
    %v9491 = vpop.f32.mrf.mxu0
    %v9492 = vadd.f32 %v9451, %v9491
    %v9493 = vpop.f32.mrf.mxu0
    %v9494 = vadd.f32 %v9453, %v9493
    %v9495 = vpop.f32.mrf.mxu0
    %v9496 = vpop.f32.mrf.mxu0
    %9497 = vdwg.mxu0
    %9498 = vmatprep.subr.bf16.mxu0 %v8505
    %9499 = vmatpush1.bf16.msra.mxu0 %v8504
    %9500 = vmatprep.subr.bf16.mxu0 %v8497
    %9501 = vmatpush1.bf16.msra.mxu0 %v8496
    %9502 = vmatprep.subr.bf16.mxu0 %v8489
    %9503 = vmatpush1.bf16.msra.mxu0 %v8488
    %9504 = vmatprep.subr.bf16.mxu0 %v8481
    %9505 = vmatpush1.bf16.msra.mxu0 %v8480
    %9506 = vmatprep.subr.bf16.mxu0 %v8473
    %9507 = vmatpush1.bf16.msra.mxu0 %v8472
    %9508 = vmatprep.subr.bf16.mxu0 %v8465
    %9509 = vmatpush1.bf16.msra.mxu0 %v8464
    %9510 = vmatprep.subr.bf16.mxu0 %v8457
    %9511 = vmatpush1.bf16.msra.mxu0 %v8456
    %9512 = vmatprep.subr.bf16.mxu0 %v8449
    %9513 = vmatpush1.bf16.msra.mxu0 %v8448
    %9514 = vmatprep.subr.bf16.mxu0 %v8569
    %9515 = vmatpush2.bf16.msra.mxu0 %v8568
    %9516 = vmatprep.subr.bf16.mxu0 %v8561
    %9517 = vmatpush2.bf16.msra.mxu0 %v8560
    %9518 = vmatprep.subr.bf16.mxu0 %v8553
    %9519 = vmatpush2.bf16.msra.mxu0 %v8552
    %9520 = vmatprep.subr.bf16.mxu0 %v8545
    %9521 = vmatpush2.bf16.msra.mxu0 %v8544
    %9522 = vmatprep.subr.bf16.mxu0 %v8537
    %9523 = vmatpush2.bf16.msra.mxu0 %v8536
    %9524 = vmatprep.subr.bf16.mxu0 %v8529
    %9525 = vmatpush2.bf16.msra.mxu0 %v8528
    %9526 = vmatprep.subr.bf16.mxu0 %v8521
    %9527 = vmatpush2.bf16.msra.mxu0 %v8520
    %9528 = vmatprep.subr.bf16.mxu0 %v8513
    %9529 = vmatpush2.bf16.msra.mxu0 %v8512
    %9530 = vmatprep.mubr.bf16.mxu0 %v8308
    %9531 = vmatmul.mubr.bf16.gmra.mxu0 %v8307
    %v9532 = vpop.f32.mrf.mxu0
    %v9533 = vadd.f32 %v9246, %v9532
    %v9534 = vpop.f32.mrf.mxu0
    %v9535 = vadd.f32 %v9248, %v9534
    %v9536 = vpop.f32.mrf.mxu0
    %v9537 = vpop.f32.mrf.mxu0
    %9538 = vdwg.mxu0
    %9539 = vmatprep.subr.bf16.mxu0 %v8633
    %9540 = vmatpush1.bf16.msra.mxu0 %v8632
    %9541 = vmatprep.subr.bf16.mxu0 %v8625
    %9542 = vmatpush1.bf16.msra.mxu0 %v8624
    %9543 = vmatprep.subr.bf16.mxu0 %v8617
    %9544 = vmatpush1.bf16.msra.mxu0 %v8616
    %9545 = vmatprep.subr.bf16.mxu0 %v8609
    %9546 = vmatpush1.bf16.msra.mxu0 %v8608
    %9547 = vmatprep.subr.bf16.mxu0 %v8601
    %9548 = vmatpush1.bf16.msra.mxu0 %v8600
    %9549 = vmatprep.subr.bf16.mxu0 %v8593
    %9550 = vmatpush1.bf16.msra.mxu0 %v8592
    %9551 = vmatprep.subr.bf16.mxu0 %v8585
    %9552 = vmatpush1.bf16.msra.mxu0 %v8584
    %9553 = vmatprep.subr.bf16.mxu0 %v8577
    %9554 = vmatpush1.bf16.msra.mxu0 %v8576
    %9555 = vmatprep.subr.bf16.mxu0 %v8697
    %9556 = vmatpush2.bf16.msra.mxu0 %v8696
    %9557 = vmatprep.subr.bf16.mxu0 %v8689
    %9558 = vmatpush2.bf16.msra.mxu0 %v8688
    %9559 = vmatprep.subr.bf16.mxu0 %v8681
    %9560 = vmatpush2.bf16.msra.mxu0 %v8680
    %9561 = vmatprep.subr.bf16.mxu0 %v8673
    %9562 = vmatpush2.bf16.msra.mxu0 %v8672
    %9563 = vmatprep.subr.bf16.mxu0 %v8665
    %9564 = vmatpush2.bf16.msra.mxu0 %v8664
    %9565 = vmatprep.subr.bf16.mxu0 %v8657
    %9566 = vmatpush2.bf16.msra.mxu0 %v8656
    %9567 = vmatprep.subr.bf16.mxu0 %v8649
    %9568 = vmatpush2.bf16.msra.mxu0 %v8648
    %9569 = vmatprep.subr.bf16.mxu0 %v8641
    %9570 = vmatpush2.bf16.msra.mxu0 %v8640
    %9571 = vmatprep.mubr.bf16.mxu0 %v8310
    %9572 = vmatmul.mubr.bf16.gmra.mxu0 %v8309
    %v9573 = vpop.f32.mrf.mxu0
    %v9574 = vadd.f32 %v9533, %v9573
    %v9575 = vpop.f32.mrf.mxu0
    %v9576 = vadd.f32 %v9535, %v9575
    %v9577 = vpop.f32.mrf.mxu0
    %v9578 = vpop.f32.mrf.mxu0
    %9579 = vdwg.mxu0
    %9580 = vmatprep.subr.bf16.mxu0 %v8507
    %9581 = vmatpush1.bf16.msra.mxu0 %v8506
    %9582 = vmatprep.subr.bf16.mxu0 %v8499
    %9583 = vmatpush1.bf16.msra.mxu0 %v8498
    %9584 = vmatprep.subr.bf16.mxu0 %v8491
    %9585 = vmatpush1.bf16.msra.mxu0 %v8490
    %9586 = vmatprep.subr.bf16.mxu0 %v8483
    %9587 = vmatpush1.bf16.msra.mxu0 %v8482
    %9588 = vmatprep.subr.bf16.mxu0 %v8475
    %9589 = vmatpush1.bf16.msra.mxu0 %v8474
    %9590 = vmatprep.subr.bf16.mxu0 %v8467
    %9591 = vmatpush1.bf16.msra.mxu0 %v8466
    %9592 = vmatprep.subr.bf16.mxu0 %v8459
    %9593 = vmatpush1.bf16.msra.mxu0 %v8458
    %9594 = vmatprep.subr.bf16.mxu0 %v8451
    %9595 = vmatpush1.bf16.msra.mxu0 %v8450
    %9596 = vmatprep.subr.bf16.mxu0 %v8571
    %9597 = vmatpush2.bf16.msra.mxu0 %v8570
    %9598 = vmatprep.subr.bf16.mxu0 %v8563
    %9599 = vmatpush2.bf16.msra.mxu0 %v8562
    %9600 = vmatprep.subr.bf16.mxu0 %v8555
    %9601 = vmatpush2.bf16.msra.mxu0 %v8554
    %9602 = vmatprep.subr.bf16.mxu0 %v8547
    %9603 = vmatpush2.bf16.msra.mxu0 %v8546
    %9604 = vmatprep.subr.bf16.mxu0 %v8539
    %9605 = vmatpush2.bf16.msra.mxu0 %v8538
    %9606 = vmatprep.subr.bf16.mxu0 %v8531
    %9607 = vmatpush2.bf16.msra.mxu0 %v8530
    %9608 = vmatprep.subr.bf16.mxu0 %v8523
    %9609 = vmatpush2.bf16.msra.mxu0 %v8522
    %9610 = vmatprep.subr.bf16.mxu0 %v8515
    %9611 = vmatpush2.bf16.msra.mxu0 %v8514
    %9612 = vmatprep.mubr.bf16.mxu0 %v8308
    %9613 = vmatmul.mubr.bf16.gmra.mxu0 %v8307
    %v9614 = vpop.f32.mrf.mxu0
    %v9615 = vadd.f32 %v9328, %v9614
    %v9616 = vpop.f32.mrf.mxu0
    %v9617 = vadd.f32 %v9330, %v9616
    %v9618 = vpop.f32.mrf.mxu0
    %v9619 = vpop.f32.mrf.mxu0
    %9620 = vdwg.mxu0
    %9621 = vmatprep.subr.bf16.mxu0 %v8635
    %9622 = vmatpush1.bf16.msra.mxu0 %v8634
    %9623 = vmatprep.subr.bf16.mxu0 %v8627
    %9624 = vmatpush1.bf16.msra.mxu0 %v8626
    %9625 = vmatprep.subr.bf16.mxu0 %v8619
    %9626 = vmatpush1.bf16.msra.mxu0 %v8618
    %9627 = vmatprep.subr.bf16.mxu0 %v8611
    %9628 = vmatpush1.bf16.msra.mxu0 %v8610
    %9629 = vmatprep.subr.bf16.mxu0 %v8603
    %9630 = vmatpush1.bf16.msra.mxu0 %v8602
    %9631 = vmatprep.subr.bf16.mxu0 %v8595
    %9632 = vmatpush1.bf16.msra.mxu0 %v8594
    %9633 = vmatprep.subr.bf16.mxu0 %v8587
    %9634 = vmatpush1.bf16.msra.mxu0 %v8586
    %9635 = vmatprep.subr.bf16.mxu0 %v8579
    %9636 = vmatpush1.bf16.msra.mxu0 %v8578
    %9637 = vmatprep.subr.bf16.mxu0 %v8699
    %9638 = vmatpush2.bf16.msra.mxu0 %v8698
    %9639 = vmatprep.subr.bf16.mxu0 %v8691
    %9640 = vmatpush2.bf16.msra.mxu0 %v8690
    %9641 = vmatprep.subr.bf16.mxu0 %v8683
    %9642 = vmatpush2.bf16.msra.mxu0 %v8682
    %9643 = vmatprep.subr.bf16.mxu0 %v8675
    %9644 = vmatpush2.bf16.msra.mxu0 %v8674
    %9645 = vmatprep.subr.bf16.mxu0 %v8667
    %9646 = vmatpush2.bf16.msra.mxu0 %v8666
    %9647 = vmatprep.subr.bf16.mxu0 %v8659
    %9648 = vmatpush2.bf16.msra.mxu0 %v8658
    %9649 = vmatprep.subr.bf16.mxu0 %v8651
    %9650 = vmatpush2.bf16.msra.mxu0 %v8650
    %9651 = vmatprep.subr.bf16.mxu0 %v8643
    %9652 = vmatpush2.bf16.msra.mxu0 %v8642
    %9653 = vmatprep.mubr.bf16.mxu0 %v8310
    %9654 = vmatmul.mubr.bf16.gmra.mxu0 %v8309
    %v9655 = vpop.f32.mrf.mxu0
    %v9656 = vadd.f32 %v9615, %v9655
    %v9657 = vpop.f32.mrf.mxu0
    %v9658 = vadd.f32 %v9617, %v9657
    %v9659 = vpop.f32.mrf.mxu0
    %v9660 = vpop.f32.mrf.mxu0
    %9661 = vdwg.mxu0
    %9662 = vmatprep.subr.bf16.mxu0 %v8509
    %9663 = vmatpush1.bf16.msra.mxu0 %v8508
    %9664 = vmatprep.subr.bf16.mxu0 %v8501
    %9665 = vmatpush1.bf16.msra.mxu0 %v8500
    %9666 = vmatprep.subr.bf16.mxu0 %v8493
    %9667 = vmatpush1.bf16.msra.mxu0 %v8492
    %9668 = vmatprep.subr.bf16.mxu0 %v8485
    %9669 = vmatpush1.bf16.msra.mxu0 %v8484
    %9670 = vmatprep.subr.bf16.mxu0 %v8477
    %9671 = vmatpush1.bf16.msra.mxu0 %v8476
    %9672 = vmatprep.subr.bf16.mxu0 %v8469
    %9673 = vmatpush1.bf16.msra.mxu0 %v8468
    %9674 = vmatprep.subr.bf16.mxu0 %v8461
    %9675 = vmatpush1.bf16.msra.mxu0 %v8460
    %9676 = vmatprep.subr.bf16.mxu0 %v8453
    %9677 = vmatpush1.bf16.msra.mxu0 %v8452
    %9678 = vmatprep.subr.bf16.mxu0 %v8573
    %9679 = vmatpush2.bf16.msra.mxu0 %v8572
    %9680 = vmatprep.subr.bf16.mxu0 %v8565
    %9681 = vmatpush2.bf16.msra.mxu0 %v8564
    %9682 = vmatprep.subr.bf16.mxu0 %v8557
    %9683 = vmatpush2.bf16.msra.mxu0 %v8556
    %9684 = vmatprep.subr.bf16.mxu0 %v8549
    %9685 = vmatpush2.bf16.msra.mxu0 %v8548
    %9686 = vmatprep.subr.bf16.mxu0 %v8541
    %9687 = vmatpush2.bf16.msra.mxu0 %v8540
    %9688 = vmatprep.subr.bf16.mxu0 %v8533
    %9689 = vmatpush2.bf16.msra.mxu0 %v8532
    %9690 = vmatprep.subr.bf16.mxu0 %v8525
    %9691 = vmatpush2.bf16.msra.mxu0 %v8524
    %9692 = vmatprep.subr.bf16.mxu0 %v8517
    %9693 = vmatpush2.bf16.msra.mxu0 %v8516
    %9694 = vmatprep.mubr.bf16.mxu0 %v8308
    %9695 = vmatmul.mubr.bf16.gmra.mxu0 %v8307
    %v9696 = vpop.f32.mrf.mxu0
    %v9697 = vadd.f32 %v9410, %v9696
    %v9698 = vpop.f32.mrf.mxu0
    %v9699 = vadd.f32 %v9412, %v9698
    %v9700 = vpop.f32.mrf.mxu0
    %v9701 = vpop.f32.mrf.mxu0
    %9702 = vdwg.mxu0
    %9703 = vmatprep.subr.bf16.mxu0 %v8637
    %9704 = vmatpush1.bf16.msra.mxu0 %v8636
    %9705 = vmatprep.subr.bf16.mxu0 %v8629
    %9706 = vmatpush1.bf16.msra.mxu0 %v8628
    %9707 = vmatprep.subr.bf16.mxu0 %v8621
    %9708 = vmatpush1.bf16.msra.mxu0 %v8620
    %9709 = vmatprep.subr.bf16.mxu0 %v8613
    %9710 = vmatpush1.bf16.msra.mxu0 %v8612
    %9711 = vmatprep.subr.bf16.mxu0 %v8605
    %9712 = vmatpush1.bf16.msra.mxu0 %v8604
    %9713 = vmatprep.subr.bf16.mxu0 %v8597
    %9714 = vmatpush1.bf16.msra.mxu0 %v8596
    %9715 = vmatprep.subr.bf16.mxu0 %v8589
    %9716 = vmatpush1.bf16.msra.mxu0 %v8588
    %9717 = vmatprep.subr.bf16.mxu0 %v8581
    %9718 = vmatpush1.bf16.msra.mxu0 %v8580
    %9719 = vmatprep.subr.bf16.mxu0 %v8701
    %9720 = vmatpush2.bf16.msra.mxu0 %v8700
    %9721 = vmatprep.subr.bf16.mxu0 %v8693
    %9722 = vmatpush2.bf16.msra.mxu0 %v8692
    %9723 = vmatprep.subr.bf16.mxu0 %v8685
    %9724 = vmatpush2.bf16.msra.mxu0 %v8684
    %9725 = vmatprep.subr.bf16.mxu0 %v8677
    %9726 = vmatpush2.bf16.msra.mxu0 %v8676
    %9727 = vmatprep.subr.bf16.mxu0 %v8669
    %9728 = vmatpush2.bf16.msra.mxu0 %v8668
    %9729 = vmatprep.subr.bf16.mxu0 %v8661
    %9730 = vmatpush2.bf16.msra.mxu0 %v8660
    %9731 = vmatprep.subr.bf16.mxu0 %v8653
    %9732 = vmatpush2.bf16.msra.mxu0 %v8652
    %9733 = vmatprep.subr.bf16.mxu0 %v8645
    %9734 = vmatpush2.bf16.msra.mxu0 %v8644
    %9735 = vmatprep.mubr.bf16.mxu0 %v8310
    %9736 = vmatmul.mubr.bf16.gmra.mxu0 %v8309
    %v9737 = vpop.f32.mrf.mxu0
    %v9738 = vadd.f32 %v9697, %v9737
    %v9739 = vpop.f32.mrf.mxu0
    %v9740 = vadd.f32 %v9699, %v9739
    %v9741 = vpop.f32.mrf.mxu0
    %v9742 = vpop.f32.mrf.mxu0
    %9743 = vdwg.mxu0
    %v9744 = vld [vmem:[#allocation8 + $0x40] sm:$0xf8]
    %v9745 = vld [vmem:[#allocation8 + $0x48] sm:$0xf8]
    %v9746 = vld [vmem:[#allocation8 + $0x50] sm:$0xf8]
    %v9747 = vld [vmem:[#allocation8 + $0x58] sm:$0xf8]
    %v9748 = vlaneseq
    %v9749 = vshrl.u32 %v9748, 7
    %v9750 = vsub.s32 3, %v9749
    %v9751 = vrot.slane %v9744, %v9750
    %v9752 = vlaneseq
    %v9753 = vshrl.u32 %v9752, 7
    %v9754 = vsub.s32 3, %v9753
    %v9755 = vrot.slane %v9745, %v9754
    %v9756 = vlaneseq
    %v9757 = vshrl.u32 %v9756, 7
    %v9758 = vsub.s32 3, %v9757
    %v9759 = vrot.slane %v9746, %v9758
    %v9760 = vlaneseq
    %v9761 = vshrl.u32 %v9760, 7
    %v9762 = vsub.s32 3, %v9761
    %v9763 = vrot.slane %v9747, %v9762
    %v9764 = vadd.f32 %v9492, %v9751
    %v9765 = vadd.f32 %v9494, %v9755
    %v9766 = vadd.f32 %v9574, %v9759
    %v9767 = vadd.f32 %v9576, %v9763
    %v9768 = vmax.f32 %v9764, 0.0
    %v9769 = vmax.f32 %v9765, 0.0
    %v9770 = vmax.f32 %v9766, 0.0
    %v9771 = vmax.f32 %v9767, 0.0
    %v9772 = vlaneseq
    %v9773 = vshrl.u32 %v9772, 7
    %v9774 = vsub.s32 4, %v9773
    %v9775 = vrot.slane %v9744, %v9774
    %v9776 = vlaneseq
    %v9777 = vshrl.u32 %v9776, 7
    %v9778 = vsub.s32 4, %v9777
    %v9779 = vrot.slane %v9745, %v9778
    %v9780 = vlaneseq
    %v9781 = vshrl.u32 %v9780, 7
    %v9782 = vsub.s32 4, %v9781
    %v9783 = vrot.slane %v9746, %v9782
    %v9784 = vlaneseq
    %v9785 = vshrl.u32 %v9784, 7
    %v9786 = vsub.s32 4, %v9785
    %v9787 = vrot.slane %v9747, %v9786
    %v9788 = vmul.f32 %v9768, %v9775
    %v9789 = vmul.f32 %v9769, %v9779
    %v9790 = vmul.f32 %v9770, %v9783
    %v9791 = vmul.f32 %v9771, %v9787
    %v9792 = vlaneseq
    %v9793 = vshrl.u32 %v9792, 7
    %v9794 = vsub.s32 5, %v9793
    %v9795 = vrot.slane %v9744, %v9794
    %v9796 = vlaneseq
    %v9797 = vshrl.u32 %v9796, 7
    %v9798 = vsub.s32 5, %v9797
    %v9799 = vrot.slane %v9745, %v9798
    %v9800 = vlaneseq
    %v9801 = vshrl.u32 %v9800, 7
    %v9802 = vsub.s32 5, %v9801
    %v9803 = vrot.slane %v9746, %v9802
    %v9804 = vlaneseq
    %v9805 = vshrl.u32 %v9804, 7
    %v9806 = vsub.s32 5, %v9805
    %v9807 = vrot.slane %v9747, %v9806
    %v9808 = vadd.f32 %v9788, %v9795
    %v9809 = vadd.f32 %v9789, %v9799
    %v9810 = vadd.f32 %v9790, %v9803
    %v9811 = vadd.f32 %v9791, %v9807
    %v9812 = vlaneseq
    %v9813 = vshrl.u32 %v9812, 7
    %v9814 = vsub.s32 6, %v9813
    %v9815 = vrot.slane %v9744, %v9814
    %v9816 = vlaneseq
    %v9817 = vshrl.u32 %v9816, 7
    %v9818 = vsub.s32 6, %v9817
    %v9819 = vrot.slane %v9745, %v9818
    %v9820 = vlaneseq
    %v9821 = vshrl.u32 %v9820, 7
    %v9822 = vsub.s32 6, %v9821
    %v9823 = vrot.slane %v9746, %v9822
    %v9824 = vlaneseq
    %v9825 = vshrl.u32 %v9824, 7
    %v9826 = vsub.s32 6, %v9825
    %v9827 = vrot.slane %v9747, %v9826
    %v9828 = vmul.f32 %v9656, %v9815
    %v9829 = vmul.f32 %v9658, %v9819
    %v9830 = vmul.f32 %v9738, %v9823
    %v9831 = vmul.f32 %v9740, %v9827
    %v9832 = vadd.f32 %v9808, %v9828
    %v9833 = vadd.f32 %v9809, %v9829
    %v9834 = vadd.f32 %v9810, %v9830
    %v9835 = vadd.f32 %v9811, %v9831
    %v9836 = vlaneseq
    %v9837 = vshrl.u32 %v9836, 7
    %v9838 = vsub.s32 7, %v9837
    %v9839 = vrot.slane %v9744, %v9838
    %v9840 = vlaneseq
    %v9841 = vshrl.u32 %v9840, 7
    %v9842 = vsub.s32 7, %v9841
    %v9843 = vrot.slane %v9745, %v9842
    %v9844 = vlaneseq
    %v9845 = vshrl.u32 %v9844, 7
    %v9846 = vsub.s32 7, %v9845
    %v9847 = vrot.slane %v9746, %v9846
    %v9848 = vlaneseq
    %v9849 = vshrl.u32 %v9848, 7
    %v9850 = vsub.s32 7, %v9849
    %v9851 = vrot.slane %v9747, %v9850
    %v9852 = vadd.f32 %v9832, %v9839
    %v9853 = vadd.f32 %v9833, %v9843
    %v9854 = vadd.f32 %v9834, %v9847
    %v9855 = vadd.f32 %v9835, %v9851
    %v9856 = vpack.c.bf16 %v9852, %v9852
    %v9857 = vpack.c.bf16 %v9853, %v9853
    %v9858 = vpack.c.bf16 %v9854, %v9854
    %v9859 = vpack.c.bf16 %v9855, %v9855
    %v9860 = vld [vmem:[#allocation11] sm:$0xff]
    %v9861 = vld [vmem:[#allocation11 + $0x8] sm:$0xff]
    %v9862 = vld [vmem:[#allocation11 + $0x10] sm:$0xff]
    %v9863 = vld [vmem:[#allocation11 + $0x18] sm:$0xff]
    %v9864 = vld [vmem:[#allocation11 + $0x20] sm:$0xff]
    %v9865 = vld [vmem:[#allocation11 + $0x28] sm:$0xff]
    %v9866 = vld [vmem:[#allocation11 + $0x30] sm:$0xff]
    %v9867 = vld [vmem:[#allocation11 + $0x38] sm:$0xff]
    %v9868 = vld [vmem:[#allocation11 + $0x40] sm:$0xff]
    %v9869 = vld [vmem:[#allocation11 + $0x48] sm:$0xff]
    %v9870 = vld [vmem:[#allocation11 + $0x50] sm:$0xff]
    %v9871 = vld [vmem:[#allocation11 + $0x58] sm:$0xff]
    %v9872 = vld [vmem:[#allocation11 + $0x60] sm:$0xff]
    %v9873 = vld [vmem:[#allocation11 + $0x68] sm:$0xff]
    %v9874 = vld [vmem:[#allocation11 + $0x70] sm:$0xff]
    %v9875 = vld [vmem:[#allocation11 + $0x78] sm:$0xff]
    %v9876 = vld [vmem:[#allocation11 + $0x80] sm:$0xff]
    %v9877 = vld [vmem:[#allocation11 + $0x88] sm:$0xff]
    %v9878 = vld [vmem:[#allocation11 + $0x90] sm:$0xff]
    %v9879 = vld [vmem:[#allocation11 + $0x98] sm:$0xff]
    %v9880 = vld [vmem:[#allocation11 + $0xa0] sm:$0xff]
    %v9881 = vld [vmem:[#allocation11 + $0xa8] sm:$0xff]
    %v9882 = vld [vmem:[#allocation11 + $0xb0] sm:$0xff]
    %v9883 = vld [vmem:[#allocation11 + $0xb8] sm:$0xff]
    %v9884 = vld [vmem:[#allocation11 + $0xc0] sm:$0xff]
    %v9885 = vld [vmem:[#allocation11 + $0xc8] sm:$0xff]
    %v9886 = vld [vmem:[#allocation11 + $0xd0] sm:$0xff]
    %v9887 = vld [vmem:[#allocation11 + $0xd8] sm:$0xff]
    %v9888 = vld [vmem:[#allocation11 + $0xe0] sm:$0xff]
    %v9889 = vld [vmem:[#allocation11 + $0xe8] sm:$0xff]
    %v9890 = vld [vmem:[#allocation11 + $0xf0] sm:$0xff]
    %v9891 = vld [vmem:[#allocation11 + $0xf8] sm:$0xff]
    %v9892 = vld [vmem:[#allocation11 + $0x100] sm:$0xff]
    %v9893 = vld [vmem:[#allocation11 + $0x108] sm:$0xff]
    %v9894 = vld [vmem:[#allocation11 + $0x110] sm:$0xff]
    %v9895 = vld [vmem:[#allocation11 + $0x118] sm:$0xff]
    %v9896 = vld [vmem:[#allocation11 + $0x120] sm:$0xff]
    %v9897 = vld [vmem:[#allocation11 + $0x128] sm:$0xff]
    %v9898 = vld [vmem:[#allocation11 + $0x130] sm:$0xff]
    %v9899 = vld [vmem:[#allocation11 + $0x138] sm:$0xff]
    %v9900 = vld [vmem:[#allocation11 + $0x140] sm:$0xff]
    %v9901 = vld [vmem:[#allocation11 + $0x148] sm:$0xff]
    %v9902 = vld [vmem:[#allocation11 + $0x150] sm:$0xff]
    %v9903 = vld [vmem:[#allocation11 + $0x158] sm:$0xff]
    %v9904 = vld [vmem:[#allocation11 + $0x160] sm:$0xff]
    %v9905 = vld [vmem:[#allocation11 + $0x168] sm:$0xff]
    %v9906 = vld [vmem:[#allocation11 + $0x170] sm:$0xff]
    %v9907 = vld [vmem:[#allocation11 + $0x178] sm:$0xff]
    %v9908 = vld [vmem:[#allocation11 + $0x180] sm:$0xff]
    %v9909 = vld [vmem:[#allocation11 + $0x188] sm:$0xff]
    %v9910 = vld [vmem:[#allocation11 + $0x190] sm:$0xff]
    %v9911 = vld [vmem:[#allocation11 + $0x198] sm:$0xff]
    %v9912 = vld [vmem:[#allocation11 + $0x1a0] sm:$0xff]
    %v9913 = vld [vmem:[#allocation11 + $0x1a8] sm:$0xff]
    %v9914 = vld [vmem:[#allocation11 + $0x1b0] sm:$0xff]
    %v9915 = vld [vmem:[#allocation11 + $0x1b8] sm:$0xff]
    %v9916 = vld [vmem:[#allocation11 + $0x1c0] sm:$0xff]
    %v9917 = vld [vmem:[#allocation11 + $0x1c8] sm:$0xff]
    %v9918 = vld [vmem:[#allocation11 + $0x1d0] sm:$0xff]
    %v9919 = vld [vmem:[#allocation11 + $0x1d8] sm:$0xff]
    %v9920 = vld [vmem:[#allocation11 + $0x1e0] sm:$0xff]
    %v9921 = vld [vmem:[#allocation11 + $0x1e8] sm:$0xff]
    %v9922 = vld [vmem:[#allocation11 + $0x1f0] sm:$0xff]
    %v9923 = vld [vmem:[#allocation11 + $0x1f8] sm:$0xff]
    %v9924 = vld [vmem:[#allocation11 + $0x200] sm:$0xff]
    %v9925 = vld [vmem:[#allocation11 + $0x208] sm:$0xff]
    %v9926 = vld [vmem:[#allocation11 + $0x210] sm:$0xff]
    %v9927 = vld [vmem:[#allocation11 + $0x218] sm:$0xff]
    %v9928 = vld [vmem:[#allocation11 + $0x220] sm:$0xff]
    %v9929 = vld [vmem:[#allocation11 + $0x228] sm:$0xff]
    %v9930 = vld [vmem:[#allocation11 + $0x230] sm:$0xff]
    %v9931 = vld [vmem:[#allocation11 + $0x238] sm:$0xff]
    %v9932 = vld [vmem:[#allocation11 + $0x240] sm:$0xff]
    %v9933 = vld [vmem:[#allocation11 + $0x248] sm:$0xff]
    %v9934 = vld [vmem:[#allocation11 + $0x250] sm:$0xff]
    %v9935 = vld [vmem:[#allocation11 + $0x258] sm:$0xff]
    %v9936 = vld [vmem:[#allocation11 + $0x260] sm:$0xff]
    %v9937 = vld [vmem:[#allocation11 + $0x268] sm:$0xff]
    %v9938 = vld [vmem:[#allocation11 + $0x270] sm:$0xff]
    %v9939 = vld [vmem:[#allocation11 + $0x278] sm:$0xff]
    %v9940 = vld [vmem:[#allocation11 + $0x280] sm:$0xff]
    %v9941 = vld [vmem:[#allocation11 + $0x288] sm:$0xff]
    %v9942 = vld [vmem:[#allocation11 + $0x290] sm:$0xff]
    %v9943 = vld [vmem:[#allocation11 + $0x298] sm:$0xff]
    %v9944 = vld [vmem:[#allocation11 + $0x2a0] sm:$0xff]
    %v9945 = vld [vmem:[#allocation11 + $0x2a8] sm:$0xff]
    %v9946 = vld [vmem:[#allocation11 + $0x2b0] sm:$0xff]
    %v9947 = vld [vmem:[#allocation11 + $0x2b8] sm:$0xff]
    %v9948 = vld [vmem:[#allocation11 + $0x2c0] sm:$0xff]
    %v9949 = vld [vmem:[#allocation11 + $0x2c8] sm:$0xff]
    %v9950 = vld [vmem:[#allocation11 + $0x2d0] sm:$0xff]
    %v9951 = vld [vmem:[#allocation11 + $0x2d8] sm:$0xff]
    %v9952 = vld [vmem:[#allocation11 + $0x2e0] sm:$0xff]
    %v9953 = vld [vmem:[#allocation11 + $0x2e8] sm:$0xff]
    %v9954 = vld [vmem:[#allocation11 + $0x2f0] sm:$0xff]
    %v9955 = vld [vmem:[#allocation11 + $0x2f8] sm:$0xff]
    %v9956 = vld [vmem:[#allocation11 + $0x300] sm:$0xff]
    %v9957 = vld [vmem:[#allocation11 + $0x308] sm:$0xff]
    %v9958 = vld [vmem:[#allocation11 + $0x310] sm:$0xff]
    %v9959 = vld [vmem:[#allocation11 + $0x318] sm:$0xff]
    %v9960 = vld [vmem:[#allocation11 + $0x320] sm:$0xff]
    %v9961 = vld [vmem:[#allocation11 + $0x328] sm:$0xff]
    %v9962 = vld [vmem:[#allocation11 + $0x330] sm:$0xff]
    %v9963 = vld [vmem:[#allocation11 + $0x338] sm:$0xff]
    %v9964 = vld [vmem:[#allocation11 + $0x340] sm:$0xff]
    %v9965 = vld [vmem:[#allocation11 + $0x348] sm:$0xff]
    %v9966 = vld [vmem:[#allocation11 + $0x350] sm:$0xff]
    %v9967 = vld [vmem:[#allocation11 + $0x358] sm:$0xff]
    %v9968 = vld [vmem:[#allocation11 + $0x360] sm:$0xff]
    %v9969 = vld [vmem:[#allocation11 + $0x368] sm:$0xff]
    %v9970 = vld [vmem:[#allocation11 + $0x370] sm:$0xff]
    %v9971 = vld [vmem:[#allocation11 + $0x378] sm:$0xff]
    %v9972 = vld [vmem:[#allocation11 + $0x380] sm:$0xff]
    %v9973 = vld [vmem:[#allocation11 + $0x388] sm:$0xff]
    %v9974 = vld [vmem:[#allocation11 + $0x390] sm:$0xff]
    %v9975 = vld [vmem:[#allocation11 + $0x398] sm:$0xff]
    %v9976 = vld [vmem:[#allocation11 + $0x3a0] sm:$0xff]
    %v9977 = vld [vmem:[#allocation11 + $0x3a8] sm:$0xff]
    %v9978 = vld [vmem:[#allocation11 + $0x3b0] sm:$0xff]
    %v9979 = vld [vmem:[#allocation11 + $0x3b8] sm:$0xff]
    %v9980 = vld [vmem:[#allocation11 + $0x3c0] sm:$0xff]
    %v9981 = vld [vmem:[#allocation11 + $0x3c8] sm:$0xff]
    %v9982 = vld [vmem:[#allocation11 + $0x3d0] sm:$0xff]
    %v9983 = vld [vmem:[#allocation11 + $0x3d8] sm:$0xff]
    %v9984 = vld [vmem:[#allocation11 + $0x3e0] sm:$0xff]
    %v9985 = vld [vmem:[#allocation11 + $0x3e8] sm:$0xff]
    %v9986 = vld [vmem:[#allocation11 + $0x3f0] sm:$0xff]
    %v9987 = vld [vmem:[#allocation11 + $0x3f8] sm:$0xff]
    %v10116 = vunpack.c.l.b16 %v9860
    %v10117 = vunpack.c.h.b16 %v9860
    %v10118 = vunpack.c.l.b16 %v9861
    %v10119 = vunpack.c.h.b16 %v9861
    %v10120 = vunpack.c.l.b16 %v9862
    %v10121 = vunpack.c.h.b16 %v9862
    %v10122 = vunpack.c.l.b16 %v9863
    %v10123 = vunpack.c.h.b16 %v9863
    %v10124 = vunpack.c.l.b16 %v9864
    %v10125 = vunpack.c.h.b16 %v9864
    %v10126 = vunpack.c.l.b16 %v9865
    %v10127 = vunpack.c.h.b16 %v9865
    %v10128 = vunpack.c.l.b16 %v9866
    %v10129 = vunpack.c.h.b16 %v9866
    %v10130 = vunpack.c.l.b16 %v9867
    %v10131 = vunpack.c.h.b16 %v9867
    %v10132 = vunpack.c.l.b16 %v9868
    %v10133 = vunpack.c.h.b16 %v9868
    %v10134 = vunpack.c.l.b16 %v9869
    %v10135 = vunpack.c.h.b16 %v9869
    %v10136 = vunpack.c.l.b16 %v9870
    %v10137 = vunpack.c.h.b16 %v9870
    %v10138 = vunpack.c.l.b16 %v9871
    %v10139 = vunpack.c.h.b16 %v9871
    %v10140 = vunpack.c.l.b16 %v9872
    %v10141 = vunpack.c.h.b16 %v9872
    %v10142 = vunpack.c.l.b16 %v9873
    %v10143 = vunpack.c.h.b16 %v9873
    %v10144 = vunpack.c.l.b16 %v9874
    %v10145 = vunpack.c.h.b16 %v9874
    %v10146 = vunpack.c.l.b16 %v9875
    %v10147 = vunpack.c.h.b16 %v9875
    %v10148 = vunpack.c.l.b16 %v9876
    %v10149 = vunpack.c.h.b16 %v9876
    %v10150 = vunpack.c.l.b16 %v9877
    %v10151 = vunpack.c.h.b16 %v9877
    %v10152 = vunpack.c.l.b16 %v9878
    %v10153 = vunpack.c.h.b16 %v9878
    %v10154 = vunpack.c.l.b16 %v9879
    %v10155 = vunpack.c.h.b16 %v9879
    %v10156 = vunpack.c.l.b16 %v9880
    %v10157 = vunpack.c.h.b16 %v9880
    %v10158 = vunpack.c.l.b16 %v9881
    %v10159 = vunpack.c.h.b16 %v9881
    %v10160 = vunpack.c.l.b16 %v9882
    %v10161 = vunpack.c.h.b16 %v9882
    %v10162 = vunpack.c.l.b16 %v9883
    %v10163 = vunpack.c.h.b16 %v9883
    %v10164 = vunpack.c.l.b16 %v9884
    %v10165 = vunpack.c.h.b16 %v9884
    %v10166 = vunpack.c.l.b16 %v9885
    %v10167 = vunpack.c.h.b16 %v9885
    %v10168 = vunpack.c.l.b16 %v9886
    %v10169 = vunpack.c.h.b16 %v9886
    %v10170 = vunpack.c.l.b16 %v9887
    %v10171 = vunpack.c.h.b16 %v9887
    %v10172 = vunpack.c.l.b16 %v9888
    %v10173 = vunpack.c.h.b16 %v9888
    %v10174 = vunpack.c.l.b16 %v9889
    %v10175 = vunpack.c.h.b16 %v9889
    %v10176 = vunpack.c.l.b16 %v9890
    %v10177 = vunpack.c.h.b16 %v9890
    %v10178 = vunpack.c.l.b16 %v9891
    %v10179 = vunpack.c.h.b16 %v9891
    %v10180 = vunpack.c.l.b16 %v9892
    %v10181 = vunpack.c.h.b16 %v9892
    %v10182 = vunpack.c.l.b16 %v9893
    %v10183 = vunpack.c.h.b16 %v9893
    %v10184 = vunpack.c.l.b16 %v9894
    %v10185 = vunpack.c.h.b16 %v9894
    %v10186 = vunpack.c.l.b16 %v9895
    %v10187 = vunpack.c.h.b16 %v9895
    %v10188 = vunpack.c.l.b16 %v9896
    %v10189 = vunpack.c.h.b16 %v9896
    %v10190 = vunpack.c.l.b16 %v9897
    %v10191 = vunpack.c.h.b16 %v9897
    %v10192 = vunpack.c.l.b16 %v9898
    %v10193 = vunpack.c.h.b16 %v9898
    %v10194 = vunpack.c.l.b16 %v9899
    %v10195 = vunpack.c.h.b16 %v9899
    %v10196 = vunpack.c.l.b16 %v9900
    %v10197 = vunpack.c.h.b16 %v9900
    %v10198 = vunpack.c.l.b16 %v9901
    %v10199 = vunpack.c.h.b16 %v9901
    %v10200 = vunpack.c.l.b16 %v9902
    %v10201 = vunpack.c.h.b16 %v9902
    %v10202 = vunpack.c.l.b16 %v9903
    %v10203 = vunpack.c.h.b16 %v9903
    %v10204 = vunpack.c.l.b16 %v9904
    %v10205 = vunpack.c.h.b16 %v9904
    %v10206 = vunpack.c.l.b16 %v9905
    %v10207 = vunpack.c.h.b16 %v9905
    %v10208 = vunpack.c.l.b16 %v9906
    %v10209 = vunpack.c.h.b16 %v9906
    %v10210 = vunpack.c.l.b16 %v9907
    %v10211 = vunpack.c.h.b16 %v9907
    %v10212 = vunpack.c.l.b16 %v9908
    %v10213 = vunpack.c.h.b16 %v9908
    %v10214 = vunpack.c.l.b16 %v9909
    %v10215 = vunpack.c.h.b16 %v9909
    %v10216 = vunpack.c.l.b16 %v9910
    %v10217 = vunpack.c.h.b16 %v9910
    %v10218 = vunpack.c.l.b16 %v9911
    %v10219 = vunpack.c.h.b16 %v9911
    %v10220 = vunpack.c.l.b16 %v9912
    %v10221 = vunpack.c.h.b16 %v9912
    %v10222 = vunpack.c.l.b16 %v9913
    %v10223 = vunpack.c.h.b16 %v9913
    %v10224 = vunpack.c.l.b16 %v9914
    %v10225 = vunpack.c.h.b16 %v9914
    %v10226 = vunpack.c.l.b16 %v9915
    %v10227 = vunpack.c.h.b16 %v9915
    %v10228 = vunpack.c.l.b16 %v9916
    %v10229 = vunpack.c.h.b16 %v9916
    %v10230 = vunpack.c.l.b16 %v9917
    %v10231 = vunpack.c.h.b16 %v9917
    %v10232 = vunpack.c.l.b16 %v9918
    %v10233 = vunpack.c.h.b16 %v9918
    %v10234 = vunpack.c.l.b16 %v9919
    %v10235 = vunpack.c.h.b16 %v9919
    %v10236 = vunpack.c.l.b16 %v9920
    %v10237 = vunpack.c.h.b16 %v9920
    %v10238 = vunpack.c.l.b16 %v9921
    %v10239 = vunpack.c.h.b16 %v9921
    %v10240 = vunpack.c.l.b16 %v9922
    %v10241 = vunpack.c.h.b16 %v9922
    %v10242 = vunpack.c.l.b16 %v9923
    %v10243 = vunpack.c.h.b16 %v9923
    %v10244 = vunpack.c.l.b16 %v9924
    %v10245 = vunpack.c.h.b16 %v9924
    %v10246 = vunpack.c.l.b16 %v9925
    %v10247 = vunpack.c.h.b16 %v9925
    %v10248 = vunpack.c.l.b16 %v9926
    %v10249 = vunpack.c.h.b16 %v9926
    %v10250 = vunpack.c.l.b16 %v9927
    %v10251 = vunpack.c.h.b16 %v9927
    %v10252 = vunpack.c.l.b16 %v9928
    %v10253 = vunpack.c.h.b16 %v9928
    %v10254 = vunpack.c.l.b16 %v9929
    %v10255 = vunpack.c.h.b16 %v9929
    %v10256 = vunpack.c.l.b16 %v9930
    %v10257 = vunpack.c.h.b16 %v9930
    %v10258 = vunpack.c.l.b16 %v9931
    %v10259 = vunpack.c.h.b16 %v9931
    %v10260 = vunpack.c.l.b16 %v9932
    %v10261 = vunpack.c.h.b16 %v9932
    %v10262 = vunpack.c.l.b16 %v9933
    %v10263 = vunpack.c.h.b16 %v9933
    %v10264 = vunpack.c.l.b16 %v9934
    %v10265 = vunpack.c.h.b16 %v9934
    %v10266 = vunpack.c.l.b16 %v9935
    %v10267 = vunpack.c.h.b16 %v9935
    %v10268 = vunpack.c.l.b16 %v9936
    %v10269 = vunpack.c.h.b16 %v9936
    %v10270 = vunpack.c.l.b16 %v9937
    %v10271 = vunpack.c.h.b16 %v9937
    %v10272 = vunpack.c.l.b16 %v9938
    %v10273 = vunpack.c.h.b16 %v9938
    %v10274 = vunpack.c.l.b16 %v9939
    %v10275 = vunpack.c.h.b16 %v9939
    %v10276 = vunpack.c.l.b16 %v9940
    %v10277 = vunpack.c.h.b16 %v9940
    %v10278 = vunpack.c.l.b16 %v9941
    %v10279 = vunpack.c.h.b16 %v9941
    %v10280 = vunpack.c.l.b16 %v9942
    %v10281 = vunpack.c.h.b16 %v9942
    %v10282 = vunpack.c.l.b16 %v9943
    %v10283 = vunpack.c.h.b16 %v9943
    %v10284 = vunpack.c.l.b16 %v9944
    %v10285 = vunpack.c.h.b16 %v9944
    %v10286 = vunpack.c.l.b16 %v9945
    %v10287 = vunpack.c.h.b16 %v9945
    %v10288 = vunpack.c.l.b16 %v9946
    %v10289 = vunpack.c.h.b16 %v9946
    %v10290 = vunpack.c.l.b16 %v9947
    %v10291 = vunpack.c.h.b16 %v9947
    %v10292 = vunpack.c.l.b16 %v9948
    %v10293 = vunpack.c.h.b16 %v9948
    %v10294 = vunpack.c.l.b16 %v9949
    %v10295 = vunpack.c.h.b16 %v9949
    %v10296 = vunpack.c.l.b16 %v9950
    %v10297 = vunpack.c.h.b16 %v9950
    %v10298 = vunpack.c.l.b16 %v9951
    %v10299 = vunpack.c.h.b16 %v9951
    %v10300 = vunpack.c.l.b16 %v9952
    %v10301 = vunpack.c.h.b16 %v9952
    %v10302 = vunpack.c.l.b16 %v9953
    %v10303 = vunpack.c.h.b16 %v9953
    %v10304 = vunpack.c.l.b16 %v9954
    %v10305 = vunpack.c.h.b16 %v9954
    %v10306 = vunpack.c.l.b16 %v9955
    %v10307 = vunpack.c.h.b16 %v9955
    %v10308 = vunpack.c.l.b16 %v9956
    %v10309 = vunpack.c.h.b16 %v9956
    %v10310 = vunpack.c.l.b16 %v9957
    %v10311 = vunpack.c.h.b16 %v9957
    %v10312 = vunpack.c.l.b16 %v9958
    %v10313 = vunpack.c.h.b16 %v9958
    %v10314 = vunpack.c.l.b16 %v9959
    %v10315 = vunpack.c.h.b16 %v9959
    %v10316 = vunpack.c.l.b16 %v9960
    %v10317 = vunpack.c.h.b16 %v9960
    %v10318 = vunpack.c.l.b16 %v9961
    %v10319 = vunpack.c.h.b16 %v9961
    %v10320 = vunpack.c.l.b16 %v9962
    %v10321 = vunpack.c.h.b16 %v9962
    %v10322 = vunpack.c.l.b16 %v9963
    %v10323 = vunpack.c.h.b16 %v9963
    %v10324 = vunpack.c.l.b16 %v9964
    %v10325 = vunpack.c.h.b16 %v9964
    %v10326 = vunpack.c.l.b16 %v9965
    %v10327 = vunpack.c.h.b16 %v9965
    %v10328 = vunpack.c.l.b16 %v9966
    %v10329 = vunpack.c.h.b16 %v9966
    %v10330 = vunpack.c.l.b16 %v9967
    %v10331 = vunpack.c.h.b16 %v9967
    %v10332 = vunpack.c.l.b16 %v9968
    %v10333 = vunpack.c.h.b16 %v9968
    %v10334 = vunpack.c.l.b16 %v9969
    %v10335 = vunpack.c.h.b16 %v9969
    %v10336 = vunpack.c.l.b16 %v9970
    %v10337 = vunpack.c.h.b16 %v9970
    %v10338 = vunpack.c.l.b16 %v9971
    %v10339 = vunpack.c.h.b16 %v9971
    %v10340 = vunpack.c.l.b16 %v9972
    %v10341 = vunpack.c.h.b16 %v9972
    %v10342 = vunpack.c.l.b16 %v9973
    %v10343 = vunpack.c.h.b16 %v9973
    %v10344 = vunpack.c.l.b16 %v9974
    %v10345 = vunpack.c.h.b16 %v9974
    %v10346 = vunpack.c.l.b16 %v9975
    %v10347 = vunpack.c.h.b16 %v9975
    %v10348 = vunpack.c.l.b16 %v9976
    %v10349 = vunpack.c.h.b16 %v9976
    %v10350 = vunpack.c.l.b16 %v9977
    %v10351 = vunpack.c.h.b16 %v9977
    %v10352 = vunpack.c.l.b16 %v9978
    %v10353 = vunpack.c.h.b16 %v9978
    %v10354 = vunpack.c.l.b16 %v9979
    %v10355 = vunpack.c.h.b16 %v9979
    %v10356 = vunpack.c.l.b16 %v9980
    %v10357 = vunpack.c.h.b16 %v9980
    %v10358 = vunpack.c.l.b16 %v9981
    %v10359 = vunpack.c.h.b16 %v9981
    %v10360 = vunpack.c.l.b16 %v9982
    %v10361 = vunpack.c.h.b16 %v9982
    %v10362 = vunpack.c.l.b16 %v9983
    %v10363 = vunpack.c.h.b16 %v9983
    %v10364 = vunpack.c.l.b16 %v9984
    %v10365 = vunpack.c.h.b16 %v9984
    %v10366 = vunpack.c.l.b16 %v9985
    %v10367 = vunpack.c.h.b16 %v9985
    %v10368 = vunpack.c.l.b16 %v9986
    %v10369 = vunpack.c.h.b16 %v9986
    %v10370 = vunpack.c.l.b16 %v9987
    %v10371 = vunpack.c.h.b16 %v9987
    %v10372 = vpack.c.b16 %v10120, %v10116
    %v10373 = vpack.c.b16 %v10121, %v10117
    %v10374 = vpack.c.b16 %v10122, %v10118
    %v10375 = vpack.c.b16 %v10123, %v10119
    %v10376 = vpack.c.b16 %v10128, %v10124
    %v10377 = vpack.c.b16 %v10129, %v10125
    %v10378 = vpack.c.b16 %v10130, %v10126
    %v10379 = vpack.c.b16 %v10131, %v10127
    %v10380 = vpack.c.b16 %v10136, %v10132
    %v10381 = vpack.c.b16 %v10137, %v10133
    %v10382 = vpack.c.b16 %v10138, %v10134
    %v10383 = vpack.c.b16 %v10139, %v10135
    %v10384 = vpack.c.b16 %v10144, %v10140
    %v10385 = vpack.c.b16 %v10145, %v10141
    %v10386 = vpack.c.b16 %v10146, %v10142
    %v10387 = vpack.c.b16 %v10147, %v10143
    %v10388 = vpack.c.b16 %v10152, %v10148
    %v10389 = vpack.c.b16 %v10153, %v10149
    %v10390 = vpack.c.b16 %v10154, %v10150
    %v10391 = vpack.c.b16 %v10155, %v10151
    %v10392 = vpack.c.b16 %v10160, %v10156
    %v10393 = vpack.c.b16 %v10161, %v10157
    %v10394 = vpack.c.b16 %v10162, %v10158
    %v10395 = vpack.c.b16 %v10163, %v10159
    %v10396 = vpack.c.b16 %v10168, %v10164
    %v10397 = vpack.c.b16 %v10169, %v10165
    %v10398 = vpack.c.b16 %v10170, %v10166
    %v10399 = vpack.c.b16 %v10171, %v10167
    %v10400 = vpack.c.b16 %v10176, %v10172
    %v10401 = vpack.c.b16 %v10177, %v10173
    %v10402 = vpack.c.b16 %v10178, %v10174
    %v10403 = vpack.c.b16 %v10179, %v10175
    %v10404 = vpack.c.b16 %v10184, %v10180
    %v10405 = vpack.c.b16 %v10185, %v10181
    %v10406 = vpack.c.b16 %v10186, %v10182
    %v10407 = vpack.c.b16 %v10187, %v10183
    %v10408 = vpack.c.b16 %v10192, %v10188
    %v10409 = vpack.c.b16 %v10193, %v10189
    %v10410 = vpack.c.b16 %v10194, %v10190
    %v10411 = vpack.c.b16 %v10195, %v10191
    %v10412 = vpack.c.b16 %v10200, %v10196
    %v10413 = vpack.c.b16 %v10201, %v10197
    %v10414 = vpack.c.b16 %v10202, %v10198
    %v10415 = vpack.c.b16 %v10203, %v10199
    %v10416 = vpack.c.b16 %v10208, %v10204
    %v10417 = vpack.c.b16 %v10209, %v10205
    %v10418 = vpack.c.b16 %v10210, %v10206
    %v10419 = vpack.c.b16 %v10211, %v10207
    %v10420 = vpack.c.b16 %v10216, %v10212
    %v10421 = vpack.c.b16 %v10217, %v10213
    %v10422 = vpack.c.b16 %v10218, %v10214
    %v10423 = vpack.c.b16 %v10219, %v10215
    %v10424 = vpack.c.b16 %v10224, %v10220
    %v10425 = vpack.c.b16 %v10225, %v10221
    %v10426 = vpack.c.b16 %v10226, %v10222
    %v10427 = vpack.c.b16 %v10227, %v10223
    %v10428 = vpack.c.b16 %v10232, %v10228
    %v10429 = vpack.c.b16 %v10233, %v10229
    %v10430 = vpack.c.b16 %v10234, %v10230
    %v10431 = vpack.c.b16 %v10235, %v10231
    %v10432 = vpack.c.b16 %v10240, %v10236
    %v10433 = vpack.c.b16 %v10241, %v10237
    %v10434 = vpack.c.b16 %v10242, %v10238
    %v10435 = vpack.c.b16 %v10243, %v10239
    %v10436 = vpack.c.b16 %v10248, %v10244
    %v10437 = vpack.c.b16 %v10249, %v10245
    %v10438 = vpack.c.b16 %v10250, %v10246
    %v10439 = vpack.c.b16 %v10251, %v10247
    %v10440 = vpack.c.b16 %v10256, %v10252
    %v10441 = vpack.c.b16 %v10257, %v10253
    %v10442 = vpack.c.b16 %v10258, %v10254
    %v10443 = vpack.c.b16 %v10259, %v10255
    %v10444 = vpack.c.b16 %v10264, %v10260
    %v10445 = vpack.c.b16 %v10265, %v10261
    %v10446 = vpack.c.b16 %v10266, %v10262
    %v10447 = vpack.c.b16 %v10267, %v10263
    %v10448 = vpack.c.b16 %v10272, %v10268
    %v10449 = vpack.c.b16 %v10273, %v10269
    %v10450 = vpack.c.b16 %v10274, %v10270
    %v10451 = vpack.c.b16 %v10275, %v10271
    %v10452 = vpack.c.b16 %v10280, %v10276
    %v10453 = vpack.c.b16 %v10281, %v10277
    %v10454 = vpack.c.b16 %v10282, %v10278
    %v10455 = vpack.c.b16 %v10283, %v10279
    %v10456 = vpack.c.b16 %v10288, %v10284
    %v10457 = vpack.c.b16 %v10289, %v10285
    %v10458 = vpack.c.b16 %v10290, %v10286
    %v10459 = vpack.c.b16 %v10291, %v10287
    %v10460 = vpack.c.b16 %v10296, %v10292
    %v10461 = vpack.c.b16 %v10297, %v10293
    %v10462 = vpack.c.b16 %v10298, %v10294
    %v10463 = vpack.c.b16 %v10299, %v10295
    %v10464 = vpack.c.b16 %v10304, %v10300
    %v10465 = vpack.c.b16 %v10305, %v10301
    %v10466 = vpack.c.b16 %v10306, %v10302
    %v10467 = vpack.c.b16 %v10307, %v10303
    %v10468 = vpack.c.b16 %v10312, %v10308
    %v10469 = vpack.c.b16 %v10313, %v10309
    %v10470 = vpack.c.b16 %v10314, %v10310
    %v10471 = vpack.c.b16 %v10315, %v10311
    %v10472 = vpack.c.b16 %v10320, %v10316
    %v10473 = vpack.c.b16 %v10321, %v10317
    %v10474 = vpack.c.b16 %v10322, %v10318
    %v10475 = vpack.c.b16 %v10323, %v10319
    %v10476 = vpack.c.b16 %v10328, %v10324
    %v10477 = vpack.c.b16 %v10329, %v10325
    %v10478 = vpack.c.b16 %v10330, %v10326
    %v10479 = vpack.c.b16 %v10331, %v10327
    %v10480 = vpack.c.b16 %v10336, %v10332
    %v10481 = vpack.c.b16 %v10337, %v10333
    %v10482 = vpack.c.b16 %v10338, %v10334
    %v10483 = vpack.c.b16 %v10339, %v10335
    %v10484 = vpack.c.b16 %v10344, %v10340
    %v10485 = vpack.c.b16 %v10345, %v10341
    %v10486 = vpack.c.b16 %v10346, %v10342
    %v10487 = vpack.c.b16 %v10347, %v10343
    %v10488 = vpack.c.b16 %v10352, %v10348
    %v10489 = vpack.c.b16 %v10353, %v10349
    %v10490 = vpack.c.b16 %v10354, %v10350
    %v10491 = vpack.c.b16 %v10355, %v10351
    %v10492 = vpack.c.b16 %v10360, %v10356
    %v10493 = vpack.c.b16 %v10361, %v10357
    %v10494 = vpack.c.b16 %v10362, %v10358
    %v10495 = vpack.c.b16 %v10363, %v10359
    %v10496 = vpack.c.b16 %v10368, %v10364
    %v10497 = vpack.c.b16 %v10369, %v10365
    %v10498 = vpack.c.b16 %v10370, %v10366
    %v10499 = vpack.c.b16 %v10371, %v10367
    %10628 = vmatprep.subr.bf16.mxu0 %v10401
    %10629 = vmatpush1.bf16.msra.mxu0 %v10400
    %10630 = vmatprep.subr.bf16.mxu0 %v10397
    %10631 = vmatpush1.bf16.msra.mxu0 %v10396
    %10632 = vmatprep.subr.bf16.mxu0 %v10393
    %10633 = vmatpush1.bf16.msra.mxu0 %v10392
    %10634 = vmatprep.subr.bf16.mxu0 %v10389
    %10635 = vmatpush1.bf16.msra.mxu0 %v10388
    %10636 = vmatprep.subr.bf16.mxu0 %v10385
    %10637 = vmatpush1.bf16.msra.mxu0 %v10384
    %10638 = vmatprep.subr.bf16.mxu0 %v10381
    %10639 = vmatpush1.bf16.msra.mxu0 %v10380
    %10640 = vmatprep.subr.bf16.mxu0 %v10377
    %10641 = vmatpush1.bf16.msra.mxu0 %v10376
    %10642 = vmatprep.subr.bf16.mxu0 %v10373
    %10643 = vmatpush1.bf16.msra.mxu0 %v10372
    %10644 = vmatprep.subr.bf16.mxu0 %v10433
    %10645 = vmatpush2.bf16.msra.mxu0 %v10432
    %10646 = vmatprep.subr.bf16.mxu0 %v10429
    %10647 = vmatpush2.bf16.msra.mxu0 %v10428
    %10648 = vmatprep.subr.bf16.mxu0 %v10425
    %10649 = vmatpush2.bf16.msra.mxu0 %v10424
    %10650 = vmatprep.subr.bf16.mxu0 %v10421
    %10651 = vmatpush2.bf16.msra.mxu0 %v10420
    %10652 = vmatprep.subr.bf16.mxu0 %v10417
    %10653 = vmatpush2.bf16.msra.mxu0 %v10416
    %10654 = vmatprep.subr.bf16.mxu0 %v10413
    %10655 = vmatpush2.bf16.msra.mxu0 %v10412
    %10656 = vmatprep.subr.bf16.mxu0 %v10409
    %10657 = vmatpush2.bf16.msra.mxu0 %v10408
    %10658 = vmatprep.subr.bf16.mxu0 %v10405
    %10659 = vmatpush2.bf16.msra.mxu0 %v10404
    %10660 = vmatprep.mubr.bf16.mxu0 %v9857
    %10661 = vmatmul.mubr.bf16.gmra.mxu0 %v9856
    %v10662 = vpop.f32.mrf.mxu0
    %v10663 = vadd.f32 0.0, %v10662
    %v10664 = vpop.f32.mrf.mxu0
    %v10665 = vadd.f32 0.0, %v10664
    %v10666 = vpop.f32.mrf.mxu0
    %v10667 = vpop.f32.mrf.mxu0
    %10668 = vdwg.mxu0
    %10669 = vmatprep.subr.bf16.mxu0 %v10465
    %10670 = vmatpush1.bf16.msra.mxu0 %v10464
    %10671 = vmatprep.subr.bf16.mxu0 %v10461
    %10672 = vmatpush1.bf16.msra.mxu0 %v10460
    %10673 = vmatprep.subr.bf16.mxu0 %v10457
    %10674 = vmatpush1.bf16.msra.mxu0 %v10456
    %10675 = vmatprep.subr.bf16.mxu0 %v10453
    %10676 = vmatpush1.bf16.msra.mxu0 %v10452
    %10677 = vmatprep.subr.bf16.mxu0 %v10449
    %10678 = vmatpush1.bf16.msra.mxu0 %v10448
    %10679 = vmatprep.subr.bf16.mxu0 %v10445
    %10680 = vmatpush1.bf16.msra.mxu0 %v10444
    %10681 = vmatprep.subr.bf16.mxu0 %v10441
    %10682 = vmatpush1.bf16.msra.mxu0 %v10440
    %10683 = vmatprep.subr.bf16.mxu0 %v10437
    %10684 = vmatpush1.bf16.msra.mxu0 %v10436
    %10685 = vmatprep.subr.bf16.mxu0 %v10497
    %10686 = vmatpush2.bf16.msra.mxu0 %v10496
    %10687 = vmatprep.subr.bf16.mxu0 %v10493
    %10688 = vmatpush2.bf16.msra.mxu0 %v10492
    %10689 = vmatprep.subr.bf16.mxu0 %v10489
    %10690 = vmatpush2.bf16.msra.mxu0 %v10488
    %10691 = vmatprep.subr.bf16.mxu0 %v10485
    %10692 = vmatpush2.bf16.msra.mxu0 %v10484
    %10693 = vmatprep.subr.bf16.mxu0 %v10481
    %10694 = vmatpush2.bf16.msra.mxu0 %v10480
    %10695 = vmatprep.subr.bf16.mxu0 %v10477
    %10696 = vmatpush2.bf16.msra.mxu0 %v10476
    %10697 = vmatprep.subr.bf16.mxu0 %v10473
    %10698 = vmatpush2.bf16.msra.mxu0 %v10472
    %10699 = vmatprep.subr.bf16.mxu0 %v10469
    %10700 = vmatpush2.bf16.msra.mxu0 %v10468
    %10701 = vmatprep.mubr.bf16.mxu0 %v9859
    %10702 = vmatmul.mubr.bf16.gmra.mxu0 %v9858
    %v10703 = vpop.f32.mrf.mxu0
    %v10704 = vadd.f32 %v10663, %v10703
    %v10705 = vpop.f32.mrf.mxu0
    %v10706 = vadd.f32 %v10665, %v10705
    %v10707 = vpop.f32.mrf.mxu0
    %v10708 = vpop.f32.mrf.mxu0
    %10709 = vdwg.mxu0
    %10710 = vmatprep.subr.bf16.mxu0 %v10403
    %10711 = vmatpush1.bf16.msra.mxu0 %v10402
    %10712 = vmatprep.subr.bf16.mxu0 %v10399
    %10713 = vmatpush1.bf16.msra.mxu0 %v10398
    %10714 = vmatprep.subr.bf16.mxu0 %v10395
    %10715 = vmatpush1.bf16.msra.mxu0 %v10394
    %10716 = vmatprep.subr.bf16.mxu0 %v10391
    %10717 = vmatpush1.bf16.msra.mxu0 %v10390
    %10718 = vmatprep.subr.bf16.mxu0 %v10387
    %10719 = vmatpush1.bf16.msra.mxu0 %v10386
    %10720 = vmatprep.subr.bf16.mxu0 %v10383
    %10721 = vmatpush1.bf16.msra.mxu0 %v10382
    %10722 = vmatprep.subr.bf16.mxu0 %v10379
    %10723 = vmatpush1.bf16.msra.mxu0 %v10378
    %10724 = vmatprep.subr.bf16.mxu0 %v10375
    %10725 = vmatpush1.bf16.msra.mxu0 %v10374
    %10726 = vmatprep.subr.bf16.mxu0 %v10435
    %10727 = vmatpush2.bf16.msra.mxu0 %v10434
    %10728 = vmatprep.subr.bf16.mxu0 %v10431
    %10729 = vmatpush2.bf16.msra.mxu0 %v10430
    %10730 = vmatprep.subr.bf16.mxu0 %v10427
    %10731 = vmatpush2.bf16.msra.mxu0 %v10426
    %10732 = vmatprep.subr.bf16.mxu0 %v10423
    %10733 = vmatpush2.bf16.msra.mxu0 %v10422
    %10734 = vmatprep.subr.bf16.mxu0 %v10419
    %10735 = vmatpush2.bf16.msra.mxu0 %v10418
    %10736 = vmatprep.subr.bf16.mxu0 %v10415
    %10737 = vmatpush2.bf16.msra.mxu0 %v10414
    %10738 = vmatprep.subr.bf16.mxu0 %v10411
    %10739 = vmatpush2.bf16.msra.mxu0 %v10410
    %10740 = vmatprep.subr.bf16.mxu0 %v10407
    %10741 = vmatpush2.bf16.msra.mxu0 %v10406
    %10742 = vmatprep.mubr.bf16.mxu0 %v9857
    %10743 = vmatmul.mubr.bf16.gmra.mxu0 %v9856
    %v10744 = vpop.f32.mrf.mxu0
    %v10745 = vadd.f32 0.0, %v10744
    %v10746 = vpop.f32.mrf.mxu0
    %v10747 = vadd.f32 0.0, %v10746
    %v10748 = vpop.f32.mrf.mxu0
    %v10749 = vpop.f32.mrf.mxu0
    %10750 = vdwg.mxu0
    %10751 = vmatprep.subr.bf16.mxu0 %v10467
    %10752 = vmatpush1.bf16.msra.mxu0 %v10466
    %10753 = vmatprep.subr.bf16.mxu0 %v10463
    %10754 = vmatpush1.bf16.msra.mxu0 %v10462
    %10755 = vmatprep.subr.bf16.mxu0 %v10459
    %10756 = vmatpush1.bf16.msra.mxu0 %v10458
    %10757 = vmatprep.subr.bf16.mxu0 %v10455
    %10758 = vmatpush1.bf16.msra.mxu0 %v10454
    %10759 = vmatprep.subr.bf16.mxu0 %v10451
    %10760 = vmatpush1.bf16.msra.mxu0 %v10450
    %10761 = vmatprep.subr.bf16.mxu0 %v10447
    %10762 = vmatpush1.bf16.msra.mxu0 %v10446
    %10763 = vmatprep.subr.bf16.mxu0 %v10443
    %10764 = vmatpush1.bf16.msra.mxu0 %v10442
    %10765 = vmatprep.subr.bf16.mxu0 %v10439
    %10766 = vmatpush1.bf16.msra.mxu0 %v10438
    %10767 = vmatprep.subr.bf16.mxu0 %v10499
    %10768 = vmatpush2.bf16.msra.mxu0 %v10498
    %10769 = vmatprep.subr.bf16.mxu0 %v10495
    %10770 = vmatpush2.bf16.msra.mxu0 %v10494
    %10771 = vmatprep.subr.bf16.mxu0 %v10491
    %10772 = vmatpush2.bf16.msra.mxu0 %v10490
    %10773 = vmatprep.subr.bf16.mxu0 %v10487
    %10774 = vmatpush2.bf16.msra.mxu0 %v10486
    %10775 = vmatprep.subr.bf16.mxu0 %v10483
    %10776 = vmatpush2.bf16.msra.mxu0 %v10482
    %10777 = vmatprep.subr.bf16.mxu0 %v10479
    %10778 = vmatpush2.bf16.msra.mxu0 %v10478
    %10779 = vmatprep.subr.bf16.mxu0 %v10475
    %10780 = vmatpush2.bf16.msra.mxu0 %v10474
    %10781 = vmatprep.subr.bf16.mxu0 %v10471
    %10782 = vmatpush2.bf16.msra.mxu0 %v10470
    %10783 = vmatprep.mubr.bf16.mxu0 %v9859
    %10784 = vmatmul.mubr.bf16.gmra.mxu0 %v9858
    %v10785 = vpop.f32.mrf.mxu0
    %v10786 = vadd.f32 %v10745, %v10785
    %v10787 = vpop.f32.mrf.mxu0
    %v10788 = vadd.f32 %v10747, %v10787
    %v10789 = vpop.f32.mrf.mxu0
    %v10790 = vpop.f32.mrf.mxu0
    %10791 = vdwg.mxu0
    %v10792 = vld [vmem:[#allocation8 + $0x60] sm:$0xf8]
    %v10793 = vld [vmem:[#allocation8 + $0x68] sm:$0xf8]
    %v10794 = vlaneseq
    %v10795 = vshrl.u32 %v10794, 7
    %v10796 = vsub.s32 3, %v10795
    %v10797 = vrot.slane %v10792, %v10796
    %v10798 = vlaneseq
    %v10799 = vshrl.u32 %v10798, 7
    %v10800 = vsub.s32 3, %v10799
    %v10801 = vrot.slane %v10793, %v10800
    %v10802 = vadd.f32 %v10704, %v10797
    %v10803 = vadd.f32 %v10706, %v10801
    %v10804 = vmax.f32 %v10802, 0.0
    %v10805 = vmax.f32 %v10803, 0.0
    %v10806 = vlaneseq
    %v10807 = vshrl.u32 %v10806, 7
    %v10808 = vsub.s32 4, %v10807
    %v10809 = vrot.slane %v10792, %v10808
    %v10810 = vlaneseq
    %v10811 = vshrl.u32 %v10810, 7
    %v10812 = vsub.s32 4, %v10811
    %v10813 = vrot.slane %v10793, %v10812
    %v10814 = vmul.f32 %v10804, %v10809
    %v10815 = vmul.f32 %v10805, %v10813
    %v10816 = vlaneseq
    %v10817 = vshrl.u32 %v10816, 7
    %v10818 = vsub.s32 5, %v10817
    %v10819 = vrot.slane %v10792, %v10818
    %v10820 = vlaneseq
    %v10821 = vshrl.u32 %v10820, 7
    %v10822 = vsub.s32 5, %v10821
    %v10823 = vrot.slane %v10793, %v10822
    %v10824 = vadd.f32 %v10814, %v10819
    %v10825 = vadd.f32 %v10815, %v10823
    %v10826 = vlaneseq
    %v10827 = vshrl.u32 %v10826, 7
    %v10828 = vsub.s32 6, %v10827
    %v10829 = vrot.slane %v10792, %v10828
    %v10830 = vlaneseq
    %v10831 = vshrl.u32 %v10830, 7
    %v10832 = vsub.s32 6, %v10831
    %v10833 = vrot.slane %v10793, %v10832
    %v10834 = vmul.f32 %v10786, %v10829
    %v10835 = vmul.f32 %v10788, %v10833
    %v10836 = vadd.f32 %v10824, %v10834
    %v10837 = vadd.f32 %v10825, %v10835
    %v10838 = vlaneseq
    %v10839 = vshrl.u32 %v10838, 7
    %v10840 = vsub.s32 7, %v10839
    %v10841 = vrot.slane %v10792, %v10840
    %v10842 = vlaneseq
    %v10843 = vshrl.u32 %v10842, 7
    %v10844 = vsub.s32 7, %v10843
    %v10845 = vrot.slane %v10793, %v10844
    %v10846 = vadd.f32 %v10836, %v10841
    %v10847 = vadd.f32 %v10837, %v10845
    %s10848 = scalar_lea.vmem [#allocation8], 115
    %v10849 = vld [vmem:[%s10848] ss:$8 sm:$0x3]
    %v10850 = vld [vmem:[#allocation8 + $0x74] ss:$0 sm:$0xff]
    %v10852 = vlaneseq
    %v10853 = vshrl.u32 %v10852, 7
    %v10854 = vsub.s32 0, %v10853
    %v10855 = vrot.slane %v10849, %v10854
    %v10856 = vlaneseq
    %v10857 = vshrl.u32 %v10856, 7
    %v10858 = vsub.s32 1, %v10857
    %v10859 = vrot.slane %v10849, %v10858
    %v10862 = vmul.f32 %v10846, %v10855
    %v10863 = vmul.f32 %v10847, %v10859
    %v10864 = vadd.f32 %v10862, %v10863
    %10865 = vadd.xlane.f32.xlu0 %v10864
    %v10866 = vpop.xlane.xlu0 %10865
    %v10867 = vadd.f32 %v10866, %v10850
    %vm10868 = vcmask 7168
    %10869 = vst.msk [vmem:[%s6] sm:$0xff] %vm10868, %v10867
    // Predicated region
    $region58: #{improved_codebert_classifier_fwd.1} parent=1 // pred_check
      _
    $region59: #{improved_codebert_classifier_fwd.1} parent=1 // pred_check_branch
      %10871 = sbr.rel (0) target = $region61
    $region60: #{improved_codebert_classifier_fwd.1} parent=1 // pred_region
      _
    $region61: #{improved_codebert_classifier_fwd.1} parent=1 // pred_fallthru
      _
    // Predicated region
    $region62: #{improved_codebert_classifier_fwd.1} parent=1 // pred_check
      _
    $region63: #{improved_codebert_classifier_fwd.1} parent=1 // pred_check_branch
      %10873 = sbr.rel (0) target = $region65
    $region64: #{improved_codebert_classifier_fwd.1} parent=1 // pred_region
      _
    $region65: #{improved_codebert_classifier_fwd.1} parent=1 // pred_fallthru
      _
    %10874 = vsyncpa [#allocation7], 1
    %10875 = vsyncpa [#allocation9], 1
    %10876 = vsyncpa [#allocation12], 1
  %10877 = vsyncmov [#allocation4]
  %s10878 = vpop.sfrf %10877
  %p10879 = scmp.eq.s32.totalorder %s10878, 0
  %p10880 = pneg %p10879
  %10882 = shalt.err (%p10880)
  %s10883 = scalar_lea.sflag [#allocation4], 1
  %10884 = vsyncmov %s10883
  %s10885 = vpop.sfrf %10884
  %p10886 = scmp.eq.s32.totalorder %s10885, 0
  %p10887 = pneg %p10886
  %10889 = shalt.err (%p10887)
  %10890 = vsyncmov [#allocation5]
  %s10891 = vpop.sfrf %10890
  %p10892 = scmp.eq.s32.totalorder %s10891, 0
  %p10893 = pneg %p10892
  %10895 = shalt.err (%p10893)
  %s10896 = scalar_lea.sflag [#allocation5], 1
  %10897 = vsyncmov %s10896
  %s10898 = vpop.sfrf %10897
  %p10899 = scmp.eq.s32.totalorder %s10898, 0
  %p10900 = pneg %p10899
  %10902 = shalt.err (%p10900)

</llo_original>
